<compile_context>
chip_gen: v7x
topology: tpu7x:2x2x1
jax: 0.10.0
libtpu: 0.0.40
codegen_flags: <defaults>
</compile_context>

<pallas_src>
import functools

import jax
import jax.numpy as jnp
from jax.experimental import pallas as pl
from jax.experimental.pallas import tpu as pltpu


def _round_up(v, m):
    return (v + m - 1) // m * m


def _pad2(a, rows, cols):
    pr, pc = rows - a.shape[0], cols - a.shape[1]
    if pr == 0 and pc == 0:
        return a
    return jnp.pad(a, ((0, pr), (0, pc)))


def _apply_act(r, act):
    """Fused epilogue activations (f32 math; tanh/exp ride the EUP slot)."""
    if act == 'relu':
        return jnp.maximum(r, 0.0)
    if act == 'sigmoid':
        return 1.0 / (1.0 + jnp.exp(-r))
    if act == 'gelu':
        c = 0.7978845608028654          # sqrt(2/pi); tanh-approx GELU
        return 0.5 * r * (1.0 + jnp.tanh(c * (r + 0.044715 * r * r * r)))
    return r


# ----------------------------- Pallas kernels -----------------------------

_MM_TM = 512   # rows per tile (multiple of 16 for bf16 sublane packing)
_MM_TN = 512   # output-channel tile (multiple of 128)
_MM_TK = 1024  # reduction tile (multiple of 128)


def _matmul_kernel_fullk(x_ref, w_ref, b_ref, o_ref, *, act):
    """Single-K-tile path: no accumulator scratch, no init/finalize; the x block
    stays VMEM-resident across the inner N sweep."""
    r = jnp.dot(x_ref[...], w_ref[...], preferred_element_type=jnp.float32)
    r = r + b_ref[...]
    o_ref[...] = _apply_act(r, act).astype(o_ref.dtype)


def _matmul_kernel_acc(x_ref, w_ref, b_ref, o_ref, acc_ref, *, act):
    @pl.when(pl.program_id(2) == 0)
    def _init():
        acc_ref[...] = jnp.zeros_like(acc_ref)

    acc_ref[...] += jnp.dot(x_ref[...], w_ref[...],
                            preferred_element_type=jnp.float32)

    @pl.when(pl.program_id(2) == pl.num_programs(2) - 1)
    def _finalize():
        r = acc_ref[...] + b_ref[...]
        o_ref[...] = _apply_act(r, act).astype(o_ref.dtype)


def matmul_bias_act(x, w, b, act=None, out_dtype=jnp.float32):
    """(M,K) @ (K,N) + b [+ fused relu/sigmoid/gelu]; bf16 MXU feeds, f32 acc."""
    M, K = x.shape
    N = w.shape[1]
    tm = min(_MM_TM, _round_up(M, 16))
    tn = min(_MM_TN, _round_up(N, 128))
    tk = min(_MM_TK, _round_up(K, 128))
    Mp, Kp, Np = _round_up(M, tm), _round_up(K, tk), _round_up(N, tn)
    # bf16 BEFORE padding; padding skipped entirely when already aligned.
    xp = _pad2(x.astype(jnp.bfloat16), Mp, Kp)
    wp = _pad2(w.astype(jnp.bfloat16), Kp, Np)
    bp = _pad2(b.astype(jnp.float32).reshape(1, N), 1, Np)
    cost = pl.CostEstimate(
        flops=int(2 * Mp * Np * Kp), transcendentals=0,
        bytes_accessed=int((Mp * Kp + Kp * Np) * 2 + Mp * Np * jnp.dtype(out_dtype).itemsize))

    if Kp == tk:                                          # K fits one VMEM panel
        out = pl.pallas_call(
            functools.partial(_matmul_kernel_fullk, act=act),
            out_shape=jax.ShapeDtypeStruct((Mp, Np), out_dtype),
            grid=(Mp // tm, Np // tn),
            in_specs=[pl.BlockSpec((tm, Kp), lambda i, j: (i, 0)),
                      pl.BlockSpec((Kp, tn), lambda i, j: (0, j)),
                      pl.BlockSpec((1, tn), lambda i, j: (0, j))],
            out_specs=pl.BlockSpec((tm, tn), lambda i, j: (i, j)),
            compiler_params=pltpu.CompilerParams(
                dimension_semantics=("parallel", "parallel")),
            cost_estimate=cost,
        )(xp, wp, bp)
    else:
        out = pl.pallas_call(
            functools.partial(_matmul_kernel_acc, act=act),
            out_shape=jax.ShapeDtypeStruct((Mp, Np), out_dtype),
            grid=(Mp // tm, Np // tn, Kp // tk),
            in_specs=[pl.BlockSpec((tm, tk), lambda i, j, k: (i, k)),
                      pl.BlockSpec((tk, tn), lambda i, j, k: (k, j)),
                      pl.BlockSpec((1, tn), lambda i, j, k: (0, j))],
            out_specs=pl.BlockSpec((tm, tn), lambda i, j, k: (i, j)),
            scratch_shapes=[pltpu.VMEM((tm, tn), jnp.float32)],
            compiler_params=pltpu.CompilerParams(
                dimension_semantics=("parallel", "parallel", "arbitrary")),
            cost_estimate=cost,
        )(xp, wp, bp)
    return out[:M, :N]


def _layernorm_kernel(x_ref, g_ref, b_ref, o_ref):
    x = x_ref[...]
    mean = jnp.mean(x, axis=-1, keepdims=True)
    var = jnp.mean(jnp.square(x - mean), axis=-1, keepdims=True)
    r = (x - mean) * jax.lax.rsqrt(var + 1e-5) * g_ref[...] + b_ref[...]
    o_ref[...] = r.astype(o_ref.dtype)


def layernorm(x2d, gamma, beta, out_dtype=jnp.float32):
    M, C = x2d.shape
    tm_budget = max(16, ((6 * 1024 * 1024) // max(C * 12, 1)) // 16 * 16)
    tm = min(1024, tm_budget, _round_up(M, 16))
    Mp = _round_up(M, tm)
    xp = _pad2(x2d.astype(jnp.float32), Mp, C)
    out = pl.pallas_call(
        _layernorm_kernel,
        out_shape=jax.ShapeDtypeStruct((Mp, C), out_dtype),
        grid=(Mp // tm,),
        in_specs=[pl.BlockSpec((tm, C), lambda i: (i, 0)),
                  pl.BlockSpec((1, C), lambda i: (0, 0)),
                  pl.BlockSpec((1, C), lambda i: (0, 0))],
        out_specs=pl.BlockSpec((tm, C), lambda i: (i, 0)),
        compiler_params=pltpu.CompilerParams(dimension_semantics=("parallel",)),
    )(xp, gamma.reshape(1, C).astype(jnp.float32),
      beta.reshape(1, C).astype(jnp.float32))
    return out[:M]


def _dwconv_kernel(p_ref, w_ref, s_ref, b_ref, o_ref, *, act):
    acc = p_ref[0].astype(jnp.float32) * w_ref[0]
    for k in range(1, p_ref.shape[0]):
        acc = acc + p_ref[k].astype(jnp.float32) * w_ref[k]
    r = acc * s_ref[...] + b_ref[...]                     # fused post-BN scale/shift
    o_ref[...] = _apply_act(r, act).astype(o_ref.dtype)


def dwconv_apply(patches_kmc, taps_kc, scale_c, shift_c, act=None,
                 out_dtype=jnp.float32):
    KK, M, C = patches_kmc.shape
    # Row tile adaptive to C so (KK, tm, C) bf16 double-buffered + outputs stay
    # under ~8 MiB (fits v5e's 16 MiB scoped default with headroom for v7x).
    tm_budget = max(16, ((8 * 1024 * 1024) // max(C * (4 * KK + 8), 1)) // 16 * 16)
    tm = min(1024, tm_budget, _round_up(M, 16))
    Mp = _round_up(M, tm)
    pp = patches_kmc.astype(jnp.bfloat16)
    if Mp != M:
        pp = jnp.pad(pp, ((0, 0), (0, Mp - M), (0, 0)))
    out = pl.pallas_call(
        functools.partial(_dwconv_kernel, act=act),
        out_shape=jax.ShapeDtypeStruct((Mp, C), out_dtype),
        grid=(Mp // tm,),
        in_specs=[pl.BlockSpec((KK, tm, C), lambda i: (0, i, 0)),
                  pl.BlockSpec((KK, 1, C), lambda i: (0, 0, 0)),
                  pl.BlockSpec((1, C), lambda i: (0, 0)),
                  pl.BlockSpec((1, C), lambda i: (0, 0))],
        out_specs=pl.BlockSpec((tm, C), lambda i: (i, 0)),
        compiler_params=pltpu.CompilerParams(dimension_semantics=("parallel",)),
    )(pp, taps_kc.reshape(KK, 1, C).astype(jnp.float32),
      scale_c.reshape(1, C).astype(jnp.float32),
      shift_c.reshape(1, C).astype(jnp.float32))
    return out[:M]


def _attention_kernel(q_ref, k_ref, v_ref, b_ref, o_ref, *, num_heads, scale):
    """All heads per step; q/k/v/out blocks are (wb, N, C) -> lane-dense HBM I/O."""
    C = q_ref.shape[-1]
    D = C // num_heads
    q = q_ref[...]
    k = k_ref[...]
    v = v_ref[...]
    bias = b_ref[...]                                     # (H, N, N) f32, resident
    outs = []
    for h in range(num_heads):
        qh = q[:, :, h * D:(h + 1) * D]
        kh = k[:, :, h * D:(h + 1) * D]
        vh = v[:, :, h * D:(h + 1) * D]
        s = jnp.einsum('bqd,bkd->bqk', qh, kh, preferred_element_type=jnp.float32)
        s = s * scale + bias[h][None]                     # scale fused in-kernel
        s = s - jnp.max(s, axis=-1, keepdims=True)
        p = jnp.exp(s)
        p = p * pl.reciprocal(jnp.sum(p, axis=-1, keepdims=True), approx=True)
        outs.append(jnp.einsum('bqk,bkd->bqd', p.astype(vh.dtype), vh,
                               preferred_element_type=jnp.float32))
    o_ref[...] = jnp.concatenate(outs, axis=-1).astype(o_ref.dtype)


def attention(q, k, v, bias, scale, num_heads):
    """q/k/v: (B_, N, C) head-major along C; bias: (H, N, N).  Output (B_, N, C)."""
    B_, N, C = q.shape
    per_win = N * C * 24 + N * N * 8                      # rough bytes per window
    wb = max(1, min(B_, 128, (12 * 1024 * 1024) // max(per_win, 1)))
    nblk = -(-B_ // wb)
    if nblk > 1 and nblk % 2:                             # even split for v7x's 2 TCs
        nblk += 1
    Bp = nblk * wb

    def prep(a):
        a = a.astype(jnp.bfloat16)
        if Bp != B_:
            a = jnp.pad(a, ((0, Bp - B_), (0, 0), (0, 0)))
        return a

    qb, kb, vb = prep(q), prep(k), prep(v)
    out = pl.pallas_call(
        functools.partial(_attention_kernel, num_heads=num_heads, scale=scale),
        out_shape=jax.ShapeDtypeStruct((Bp, N, C), jnp.bfloat16),
        grid=(nblk,),
        in_specs=[pl.BlockSpec((wb, N, C), lambda b: (b, 0, 0)),
                  pl.BlockSpec((wb, N, C), lambda b: (b, 0, 0)),
                  pl.BlockSpec((wb, N, C), lambda b: (b, 0, 0)),
                  pl.BlockSpec((num_heads, N, N), lambda b: (0, 0, 0))],
        out_specs=pl.BlockSpec((wb, N, C), lambda b: (b, 0, 0)),
        compiler_params=pltpu.CompilerParams(dimension_semantics=("parallel",)),
        cost_estimate=pl.CostEstimate(
            flops=int(4 * Bp * N * N * C),
            transcendentals=int(Bp * num_heads * N * N),
            bytes_accessed=int(8 * Bp * N * C + num_heads * N * N * 4)),
    )(qb, kb, vb, bias.astype(jnp.float32))
    return out[:B_]


# ------------------------------ JAX glue ops ------------------------------

def _bn_fold(p, eps=1e-5):                                # eval-mode BN -> scale/shift
    inv = p['gamma'] * jax.lax.rsqrt(p['var'] + eps)
    return inv, p['beta'] - p['mean'] * inv


def conv2d(x, w, b, stride, pad, act=None, out_dtype=jnp.float32):
    """Regular conv, NHWC input, OIHW weight; lane-preserving bf16 im2col feeds
    the tiled Pallas matmul with fused bias/act epilogue."""
    B, H, W_, Cin = x.shape
    Cout, _, kh, kw = w.shape
    xb = x.astype(jnp.bfloat16)
    xp = jnp.pad(xb, ((0, 0), (pad, pad), (pad, pad), (0, 0)))
    Ho = (H + 2 * pad - kh) // stride + 1
    Wo = (W_ + 2 * pad - kw) // stride + 1
    cols = []
    for di in range(kh):
        for dj in range(kw):
            cols.append(xp[:, di:di + stride * Ho:stride, dj:dj + stride * Wo:stride, :])
    patches = jnp.concatenate(cols, axis=-1).reshape(B * Ho * Wo, kh * kw * Cin)
    wm = jnp.transpose(w, (2, 3, 1, 0)).reshape(kh * kw * Cin, Cout)
    if b is None:
        b = jnp.zeros((Cout,), jnp.float32)
    out = matmul_bias_act(patches, wm, b, act=act, out_dtype=out_dtype)
    return out.reshape(B, Ho, Wo, Cout)


def conv1x1(x, w2d, b, act=None, out_dtype=jnp.float32):
    B, H, W_, Cin = x.shape
    Cout = w2d.shape[1]
    out = matmul_bias_act(x.reshape(-1, Cin), w2d, b, act=act, out_dtype=out_dtype)
    return out.reshape(B, H, W_, Cout)


def depthwise_conv2d(x, w, stride, pad, scale, shift, act=None,
                     out_dtype=jnp.float32):
    """Depthwise 3x3 (groups=C), NHWC, fused post-BN scale/shift (+GELU)."""
    B, H, W_, C = x.shape
    kh, kw = w.shape[2], w.shape[3]
    xb = x.astype(jnp.bfloat16)
    xp = jnp.pad(xb, ((0, 0), (pad, pad), (pad, pad), (0, 0)))
    Ho = (H + 2 * pad - kh) // stride + 1
    Wo = (W_ + 2 * pad - kw) // stride + 1
    taps = []
    for di in range(kh):
        for dj in range(kw):
            taps.append(
                xp[:, di:di + stride * Ho:stride, dj:dj + stride * Wo:stride, :]
                .reshape(B * Ho * Wo, C))
    patches = jnp.stack(taps, axis=0)                     # (KK, M, C) bf16
    w_kc = w.reshape(C, kh * kw).T                        # (KK, C)
    out = dwconv_apply(patches, w_kc, scale, shift, act=act, out_dtype=out_dtype)
    return out.reshape(B, Ho, Wo, C)


def maxpool2x2(x):
    B, H, W_, C = x.shape
    return x.reshape(B, H // 2, 2, W_ // 2, 2, C).max(axis=(2, 4))


# ----------------------- window / grid utils (NHWC) -----------------------

def window_partition(x, ws):
    B, H, W_, C = x.shape
    x = x.reshape(B, H // ws[0], ws[0], W_ // ws[1], ws[1], C)
    x = x.transpose(0, 1, 3, 2, 4, 5)
    return x.reshape(-1, ws[0] * ws[1], C)


def window_reverse(tokens, original_size, ws):
    H, W_ = original_size
    C = tokens.shape[-1]
    B = tokens.shape[0] // ((H // ws[0]) * (W_ // ws[1]))
    out = tokens.reshape(B, H // ws[0], W_ // ws[1], ws[0], ws[1], C)
    out = out.transpose(0, 1, 3, 2, 4, 5)
    return out.reshape(B, H, W_, C)


def grid_partition(x, gs):
    B, H, W_, C = x.shape
    x = x.reshape(B, gs[0], H // gs[0], gs[1], W_ // gs[1], C)
    x = x.transpose(0, 2, 4, 1, 3, 5)
    return x.reshape(-1, gs[0] * gs[1], C)


def grid_reverse(tokens, original_size, gs):
    H, W_ = original_size
    C = tokens.shape[-1]
    B = tokens.shape[0] // ((H // gs[0]) * (W_ // gs[1]))
    out = tokens.reshape(B, H // gs[0], W_ // gs[1], gs[0], gs[1], C)
    out = out.transpose(0, 3, 1, 4, 2, 5)
    return out.reshape(B, H, W_, C)


# ------------------------------ model blocks ------------------------------

def mbconv(x, p, cin, cout, downscale):
    """MBConv: pre-BN -> dw3x3(+BN+GELU) -> pw1x1(+BN)[+res] -> SE -> 1x1, + skip."""
    inv0, sh0 = _bn_fold(p['pre_bn'])
    z = x * inv0 + sh0                                    # eval-mode BN (NHWC bcast)
    stride = 2 if downscale else 1
    inv1, sh1 = _bn_fold(p['bn1'])
    y = depthwise_conv2d(z, p['dw_w'], stride, 1, inv1, sh1,
                         act='gelu', out_dtype=jnp.bfloat16)
    inv2, sh2 = _bn_fold(p['bn2'])
    w_pw = p['pw_w'].reshape(cout, cin).T * inv2[None, :]     # fold BN2 into 1x1
    y = conv1x1(y, w_pw, sh2)
    if stride == 1 and cin == cout:
        y = y + z
    # SqueezeExcite (rd_ratio = 0.25): M = batch -> plain XLA dots
    rd = p['se_red_w'].shape[0]
    se = jnp.mean(y, axis=(1, 2))
    se = jnp.maximum(se @ p['se_red_w'].reshape(rd, cout).T + p['se_red_b'], 0.0)
    se = jax.nn.sigmoid(se @ p['se_exp_w'].reshape(cout, rd).T + p['se_exp_b'])
    y = y * se[:, None, None, :]
    # final 1x1 projection
    y = conv1x1(y, p['final_w'].reshape(cout, cout).T, p['final_b'])
    # MBConv skip path
    if downscale:
        s = conv1x1(maxpool2x2(x), p['skip_w'].reshape(cout, cin).T, p['skip_b'])
    else:
        s = x
    return y + s


def relative_self_attention(y, p, num_heads):
    """y: LN output, (B_, N, C) bf16."""
    B_, N, C = y.shape
    scale = num_heads ** -0.5                             # towhee reference quirk
    qkv = matmul_bias_act(y.reshape(-1, C), p['qkv_w'], p['qkv_b'],
                          out_dtype=jnp.bfloat16).reshape(B_, N, 3 * C)
    q, k, v = qkv[..., :C], qkv[..., C:2 * C], qkv[..., 2 * C:]   # head-major C
    bias = p['rpb_table'][p['rp_index'].reshape(-1)]
    bias = bias.reshape(N, N, num_heads).transpose(2, 0, 1)       # (H, N, N)
    o = attention(q, k, v, bias, scale, num_heads)                # (B_, N, C) bf16
    o = matmul_bias_act(o.reshape(-1, C), p['proj_w'], p['proj_b'])
    return o.reshape(B_, N, C)


def mlp(tokens, p):
    B_, N, C = tokens.shape
    h = matmul_bias_act(tokens.reshape(-1, C), p['fc1_w'], p['fc1_b'],
                        act='gelu', out_dtype=jnp.bfloat16)       # fused GELU
    o = matmul_bias_act(h, p['fc2_w'], p['fc2_b'])
    return o.reshape(B_, N, C)


def transformer_block(x, p, partition, reverse, gws, num_heads):
    B, H, W_, C = x.shape
    tokens = partition(x, gws)                            # (B_, N, C) f32 residual
    B_, N, _ = tokens.shape
    y = layernorm(tokens.reshape(-1, C), p['ln1_g'], p['ln1_b'],
                  out_dtype=jnp.bfloat16).reshape(B_, N, C)
    tokens = tokens + relative_self_attention(y, p['attn'], num_heads)
    z = layernorm(tokens.reshape(-1, C), p['ln2_g'], p['ln2_b'],
                  out_dtype=jnp.bfloat16).reshape(B_, N, C)
    tokens = tokens + mlp(z, p['mlp'])
    return reverse(tokens, (H, W_), gws)


def maxvit_block(x, p, cin, cout, downscale, gws, num_heads):
    x = mbconv(x, p['mbconv'], cin, cout, downscale)
    x = transformer_block(x, p['block_tf'], window_partition, window_reverse, gws, num_heads)
    x = transformer_block(x, p['grid_tf'], grid_partition, grid_reverse, gws, num_heads)
    return x


def maxvit_forward(x_nchw, params, cfg):
    x = jnp.transpose(x_nchw, (0, 2, 3, 1))               # NCHW -> NHWC once
    # stem (GELU fused in the conv matmul epilogue)
    x = conv2d(x, params['stem']['c1_w'], params['stem']['c1_b'], 2, 1,
               act='gelu', out_dtype=jnp.bfloat16)
    x = conv2d(x, params['stem']['c2_w'], params['stem']['c2_b'], 1, 1,
               act='gelu', out_dtype=jnp.float32)
    # stages
    in_c = cfg['embed_dim']
    for s_idx, (depth, out_c) in enumerate(zip(cfg['depths'], cfg['channels'])):
        for b_idx in range(depth):
            cin = in_c if b_idx == 0 else out_c
            x = maxvit_block(x, params['stages'][s_idx][b_idx], cin, out_c,
                             b_idx == 0, cfg['grid_window_size'], cfg['num_heads'])
        in_c = out_c
    # head, global_pool = 'avg' (M = batch -> plain XLA dot)
    feat = jnp.mean(x, axis=(1, 2))
    return feat @ params['head_w'] + params['head_b']


# --------------------------- parameter creation ---------------------------

class _KeyGen:
    def __init__(self, seed):
        self._key = jax.random.PRNGKey(seed)
        self._n = 0

    def __call__(self):
        self._n += 1
        return jax.random.fold_in(self._key, self._n)


def _w(kg, shape, scale=0.05):
    return scale * jax.random.normal(kg(), shape, dtype=jnp.float32)


def _bn(kg, c):
    return {'gamma': 1.0 + 0.05 * jax.random.normal(kg(), (c,), jnp.float32),
            'beta': 0.05 * jax.random.normal(kg(), (c,), jnp.float32),
            'mean': jnp.zeros((c,), jnp.float32),
            'var': jnp.ones((c,), jnp.float32)}


def _make_divisible(v, divisor=8):
    return max(divisor, int(v + divisor / 2) // divisor * divisor)


def get_relative_position_index(wh, ww):
    coords = jnp.stack(jnp.meshgrid(jnp.arange(wh), jnp.arange(ww), indexing='ij'), axis=0)
    flat = coords.reshape(2, -1)
    rel = (flat[:, :, None] - flat[:, None, :]).transpose(1, 2, 0)
    rel = rel + jnp.array([wh - 1, ww - 1])
    return rel[..., 0] * (2 * ww - 1) + rel[..., 1]       # (N, N) int32


def init_mbconv(kg, cin, cout, downscale):
    rd = _make_divisible(cout * 0.25)
    p = {'pre_bn': _bn(kg, cin),
         'dw_w': _w(kg, (cin, 1, 3, 3)),
         'bn1': _bn(kg, cin),
         'pw_w': _w(kg, (cout, cin, 1, 1)),
         'bn2': _bn(kg, cout),
         'se_red_w': _w(kg, (rd, cout, 1, 1)), 'se_red_b': _w(kg, (rd,)),
         'se_exp_w': _w(kg, (cout, rd, 1, 1)), 'se_exp_b': _w(kg, (cout,)),
         'final_w': _w(kg, (cout, cout, 1, 1)), 'final_b': _w(kg, (cout,))}
    if downscale:
        p['skip_w'] = _w(kg, (cout, cin, 1, 1))
        p['skip_b'] = _w(kg, (cout,))
    return p


def init_attention(kg, c, num_heads, gws):
    n_bias = (2 * gws[0] - 1) * (2 * gws[1] - 1)
    return {'qkv_w': _w(kg, (c, 3 * c)), 'qkv_b': _w(kg, (3 * c,)),
            'proj_w': _w(kg, (c, c)), 'proj_b': _w(kg, (c,)),
            'rpb_table': _w(kg, (n_bias, num_heads), 0.02),
            'rp_index': get_relative_position_index(gws[0], gws[1])}


def init_transformer(kg, c, num_heads, gws, mlp_ratio):
    hidden = int(mlp_ratio * c)
    return {'ln1_g': 1.0 + 0.05 * jax.random.normal(kg(), (c,), jnp.float32),
            'ln1_b': _w(kg, (c,)),
            'attn': init_attention(kg, c, num_heads, gws),
            'ln2_g': 1.0 + 0.05 * jax.random.normal(kg(), (c,), jnp.float32),
            'ln2_b': _w(kg, (c,)),
            'mlp': {'fc1_w': _w(kg, (c, hidden)), 'fc1_b': _w(kg, (hidden,)),
                    'fc2_w': _w(kg, (hidden, c)), 'fc2_b': _w(kg, (c,))}}


def init_maxvit(kg, cfg):
    ed = cfg['embed_dim']
    params = {'stem': {'c1_w': _w(kg, (ed, cfg['in_channels'], 3, 3)), 'c1_b': _w(kg, (ed,)),
                       'c2_w': _w(kg, (ed, ed, 3, 3)), 'c2_b': _w(kg, (ed,))},
              'stages': []}
    in_c = ed
    for depth, out_c in zip(cfg['depths'], cfg['channels']):
        blocks = []
        for b in range(depth):
            cin = in_c if b == 0 else out_c
            blocks.append({
                'mbconv': init_mbconv(kg, cin, out_c, b == 0),
                'block_tf': init_transformer(kg, out_c, cfg['num_heads'],
                                             cfg['grid_window_size'], cfg['mlp_ratio']),
                'grid_tf': init_transformer(kg, out_c, cfg['num_heads'],
                                            cfg['grid_window_size'], cfg['mlp_ratio'])})
        params['stages'].append(blocks)
        in_c = out_c
    params['head_w'] = _w(kg, (cfg['channels'][-1], cfg['num_classes']))
    params['head_b'] = _w(kg, (cfg['num_classes'],))
    return params


# ---------------------------------- main -----------------------------------

if __name__ == "__main__":
    # Small, MaxViT-consistent config: every downscale / window(2x2) / grid(2x2)
    # stage divides the spatial dims exactly (16 -> stem 8 -> 4 -> 2).
    cfg = dict(in_channels=3, depths=(2, 1), channels=(8, 16), num_classes=10,
               embed_dim=8, num_heads=2, grid_window_size=(2, 2), mlp_ratio=4.0)

    kg = _KeyGen(0)
    params = init_maxvit(kg, cfg)
    x = jax.random.normal(jax.random.PRNGKey(0), (2, 3, 16, 16), dtype=jnp.float32)

    fwd = jax.jit(lambda inp, prm: maxvit_forward(inp, prm, cfg))
    out = jax.block_until_ready(fwd(x, params))

    assert out.shape == (2, cfg['num_classes']), out.shape
    assert bool(jnp.all(jnp.isfinite(out)))
    print("KERNEL_OK")
</pallas_src>

<mosaic_0001>
module attributes {stable_mosaic.version = 11 : i64} {
  func.func @_matmul_kernel_fullk(%arg0: i32, %arg1: i32, %arg2: memref<128x128xbf16, #tpu.memory_space<vmem>>, %arg3: memref<128x128xbf16, #tpu.memory_space<vmem>>, %arg4: memref<1x128xf32, #tpu.memory_space<vmem>>, %arg5: memref<128x128xbf16, #tpu.memory_space<vmem>>) attributes {dimension_semantics = [#tpu.dimension_semantics<parallel>, #tpu.dimension_semantics<parallel>], iteration_bounds = array<i64: 1, 1>, scalar_prefetch = 0 : i64, scratch_operands = 0 : i64, tpu.core_type = #tpu.core_type<tc>, window_params = [{transform_indices = @transform_0, window_bounds = array<i64: 128, 128>}, {transform_indices = @transform_1, window_bounds = array<i64: 128, 128>}, {transform_indices = @transform_2, window_bounds = array<i64: 1, 128>}, {transform_indices = @transform_3, window_bounds = array<i64: 128, 128>}]} {
    %c0 = arith.constant 0 : index
    %c0_0 = arith.constant 0 : index
    %0 = vector.load %arg2[%c0, %c0_0] : memref<128x128xbf16, #tpu.memory_space<vmem>>, vector<128x128xbf16>
    %c0_1 = arith.constant 0 : index
    %c0_2 = arith.constant 0 : index
    %1 = vector.load %arg3[%c0_1, %c0_2] : memref<128x128xbf16, #tpu.memory_space<vmem>>, vector<128x128xbf16>
    %cst = arith.constant dense<0.000000e+00> : vector<128x128xf32>
    %2 = tpu.matmul %0, %1, %cst {dimension_numbers = #tpu.dot_dimension_numbers<[1], [0], [0], [1], [0, 0, 1, 1], [], []>} : vector<128x128xbf16>, vector<128x128xbf16>, vector<128x128xf32> -> vector<128x128xf32>
    %c0_3 = arith.constant 0 : index
    %c0_4 = arith.constant 0 : index
    %3 = vector.load %arg4[%c0_3, %c0_4] : memref<1x128xf32, #tpu.memory_space<vmem>>, vector<1x128xf32>
    %4 = vector.broadcast %3 : vector<1x128xf32> to vector<128x128xf32>
    %5 = arith.addf %2, %4 : vector<128x128xf32>
    %cst_5 = arith.constant 5.000000e-01 : f32
    %6 = vector.broadcast %cst_5 : f32 to vector<128x128xf32>
    %7 = arith.mulf %6, %5 : vector<128x128xf32>
    %cst_6 = arith.constant 4.471500e-02 : f32
    %8 = vector.broadcast %cst_6 : f32 to vector<128x128xf32>
    %9 = arith.mulf %8, %5 : vector<128x128xf32>
    %10 = arith.mulf %9, %5 : vector<128x128xf32>
    %11 = arith.mulf %10, %5 : vector<128x128xf32>
    %12 = arith.addf %5, %11 : vector<128x128xf32>
    %cst_7 = arith.constant 0.797884583 : f32
    %13 = vector.broadcast %cst_7 : f32 to vector<128x128xf32>
    %14 = arith.mulf %13, %12 : vector<128x128xf32>
    %15 = math.tanh %14 : vector<128x128xf32>
    %cst_8 = arith.constant 1.000000e+00 : f32
    %16 = vector.broadcast %cst_8 : f32 to vector<128x128xf32>
    %17 = arith.addf %16, %15 : vector<128x128xf32>
    %18 = arith.mulf %7, %17 : vector<128x128xf32>
    %19 = arith.truncf %18 : vector<128x128xf32> to vector<128x128xbf16>
    %c0_9 = arith.constant 0 : index
    %c0_10 = arith.constant 0 : index
    %20 = vector.load %arg5[%c0_9, %c0_10] : memref<128x128xbf16, #tpu.memory_space<vmem>>, vector<128x128xbf16>
    tpu.vector_store %arg5[%c0_9, %c0_10], %19 {strides = array<i32>} : memref<128x128xbf16, #tpu.memory_space<vmem>>, vector<128x128xbf16>,
    return
  }
  func.func @transform_0(%arg0: i32, %arg1: i32) -> (i32, i32) {
    %c0_i32 = arith.constant 0 : i32
    %c0_i32_0 = arith.constant 0 : i32
    return %arg0, %c0_i32 : i32, i32
  }
  func.func @transform_1(%arg0: i32, %arg1: i32) -> (i32, i32) {
    %c0_i32 = arith.constant 0 : i32
    %c0_i32_0 = arith.constant 0 : i32
    return %c0_i32, %arg1 : i32, i32
  }
  func.func @transform_2(%arg0: i32, %arg1: i32) -> (i32, i32) {
    %c0_i32 = arith.constant 0 : i32
    %c0_i32_0 = arith.constant 0 : i32
    return %c0_i32, %arg1 : i32, i32
  }
  func.func @transform_3(%arg0: i32, %arg1: i32) -> (i32, i32) {
    %c0_i32 = arith.constant 0 : i32
    return %arg0, %arg1 : i32, i32
  }
}

module attributes {stable_mosaic.version = 11 : i64} {
  func.func @_matmul_kernel_fullk(%arg0: i32, %arg1: i32, %arg2: memref<128x128xbf16, #tpu.memory_space<vmem>>, %arg3: memref<128x128xbf16, #tpu.memory_space<vmem>>, %arg4: memref<1x128xf32, #tpu.memory_space<vmem>>, %arg5: memref<128x128xf32, #tpu.memory_space<vmem>>) attributes {dimension_semantics = [#tpu.dimension_semantics<parallel>, #tpu.dimension_semantics<parallel>], iteration_bounds = array<i64: 1, 1>, scalar_prefetch = 0 : i64, scratch_operands = 0 : i64, tpu.core_type = #tpu.core_type<tc>, window_params = [{transform_indices = @transform_0, window_bounds = array<i64: 128, 128>}, {transform_indices = @transform_1, window_bounds = array<i64: 128, 128>}, {transform_indices = @transform_2, window_bounds = array<i64: 1, 128>}, {transform_indices = @transform_3, window_bounds = array<i64: 128, 128>}]} {
    %c0 = arith.constant 0 : index
    %c0_0 = arith.constant 0 : index
    %0 = vector.load %arg2[%c0, %c0_0] : memref<128x128xbf16, #tpu.memory_space<vmem>>, vector<128x128xbf16>
    %c0_1 = arith.constant 0 : index
    %c0_2 = arith.constant 0 : index
    %1 = vector.load %arg3[%c0_1, %c0_2] : memref<128x128xbf16, #tpu.memory_space<vmem>>, vector<128x128xbf16>
    %cst = arith.constant dense<0.000000e+00> : vector<128x128xf32>
    %2 = tpu.matmul %0, %1, %cst {dimension_numbers = #tpu.dot_dimension_numbers<[1], [0], [0], [1], [0, 0, 1, 1], [], []>} : vector<128x128xbf16>, vector<128x128xbf16>, vector<128x128xf32> -> vector<128x128xf32>
    %c0_3 = arith.constant 0 : index
    %c0_4 = arith.constant 0 : index
    %3 = vector.load %arg4[%c0_3, %c0_4] : memref<1x128xf32, #tpu.memory_space<vmem>>, vector<1x128xf32>
    %4 = vector.broadcast %3 : vector<1x128xf32> to vector<128x128xf32>
    %5 = arith.addf %2, %4 : vector<128x128xf32>
    %cst_5 = arith.constant 5.000000e-01 : f32
    %6 = vector.broadcast %cst_5 : f32 to vector<128x128xf32>
    %7 = arith.mulf %6, %5 : vector<128x128xf32>
    %cst_6 = arith.constant 4.471500e-02 : f32
    %8 = vector.broadcast %cst_6 : f32 to vector<128x128xf32>
    %9 = arith.mulf %8, %5 : vector<128x128xf32>
    %10 = arith.mulf %9, %5 : vector<128x128xf32>
    %11 = arith.mulf %10, %5 : vector<128x128xf32>
    %12 = arith.addf %5, %11 : vector<128x128xf32>
    %cst_7 = arith.constant 0.797884583 : f32
    %13 = vector.broadcast %cst_7 : f32 to vector<128x128xf32>
    %14 = arith.mulf %13, %12 : vector<128x128xf32>
    %15 = math.tanh %14 : vector<128x128xf32>
    %cst_8 = arith.constant 1.000000e+00 : f32
    %16 = vector.broadcast %cst_8 : f32 to vector<128x128xf32>
    %17 = arith.addf %16, %15 : vector<128x128xf32>
    %18 = arith.mulf %7, %17 : vector<128x128xf32>
    %c0_9 = arith.constant 0 : index
    %c0_10 = arith.constant 0 : index
    %19 = vector.load %arg5[%c0_9, %c0_10] : memref<128x128xf32, #tpu.memory_space<vmem>>, vector<128x128xf32>
    tpu.vector_store %arg5[%c0_9, %c0_10], %18 {strides = array<i32>} : memref<128x128xf32, #tpu.memory_space<vmem>>, vector<128x128xf32>,
    return
  }
  func.func @transform_0(%arg0: i32, %arg1: i32) -> (i32, i32) {
    %c0_i32 = arith.constant 0 : i32
    %c0_i32_0 = arith.constant 0 : i32
    return %arg0, %c0_i32 : i32, i32
  }
  func.func @transform_1(%arg0: i32, %arg1: i32) -> (i32, i32) {
    %c0_i32 = arith.constant 0 : i32
    %c0_i32_0 = arith.constant 0 : i32
    return %c0_i32, %arg1 : i32, i32
  }
  func.func @transform_2(%arg0: i32, %arg1: i32) -> (i32, i32) {
    %c0_i32 = arith.constant 0 : i32
    %c0_i32_0 = arith.constant 0 : i32
    return %c0_i32, %arg1 : i32, i32
  }
  func.func @transform_3(%arg0: i32, %arg1: i32) -> (i32, i32) {
    %c0_i32 = arith.constant 0 : i32
    return %arg0, %arg1 : i32, i32
  }
}

module attributes {stable_mosaic.version = 11 : i64} {
  func.func @_matmul_kernel_fullk(%arg0: i32, %arg1: i32, %arg2: memref<32x128xbf16, #tpu.memory_space<vmem>>, %arg3: memref<128x128xbf16, #tpu.memory_space<vmem>>, %arg4: memref<1x128xf32, #tpu.memory_space<vmem>>, %arg5: memref<32x128xf32, #tpu.memory_space<vmem>>) attributes {dimension_semantics = [#tpu.dimension_semantics<parallel>, #tpu.dimension_semantics<parallel>], iteration_bounds = array<i64: 1, 1>, scalar_prefetch = 0 : i64, scratch_operands = 0 : i64, tpu.core_type = #tpu.core_type<tc>, window_params = [{transform_indices = @transform_0, window_bounds = array<i64: 32, 128>}, {transform_indices = @transform_1, window_bounds = array<i64: 128, 128>}, {transform_indices = @transform_2, window_bounds = array<i64: 1, 128>}, {transform_indices = @transform_3, window_bounds = array<i64: 32, 128>}]} {
    %c0 = arith.constant 0 : index
    %c0_0 = arith.constant 0 : index
    %0 = vector.load %arg2[%c0, %c0_0] : memref<32x128xbf16, #tpu.memory_space<vmem>>, vector<32x128xbf16>
    %c0_1 = arith.constant 0 : index
    %c0_2 = arith.constant 0 : index
    %1 = vector.load %arg3[%c0_1, %c0_2] : memref<128x128xbf16, #tpu.memory_space<vmem>>, vector<128x128xbf16>
    %cst = arith.constant dense<0.000000e+00> : vector<32x128xf32>
    %2 = tpu.matmul %0, %1, %cst {dimension_numbers = #tpu.dot_dimension_numbers<[1], [0], [0], [1], [0, 0, 1, 1], [], []>} : vector<32x128xbf16>, vector<128x128xbf16>, vector<32x128xf32> -> vector<32x128xf32>
    %c0_3 = arith.constant 0 : index
    %c0_4 = arith.constant 0 : index
    %3 = vector.load %arg4[%c0_3, %c0_4] : memref<1x128xf32, #tpu.memory_space<vmem>>, vector<1x128xf32>
    %4 = vector.broadcast %3 : vector<1x128xf32> to vector<32x128xf32>
    %5 = arith.addf %2, %4 : vector<32x128xf32>
    %c0_5 = arith.constant 0 : index
    %c0_6 = arith.constant 0 : index
    %6 = vector.load %arg5[%c0_5, %c0_6] : memref<32x128xf32, #tpu.memory_space<vmem>>, vector<32x128xf32>
    tpu.vector_store %arg5[%c0_5, %c0_6], %5 {strides = array<i32>} : memref<32x128xf32, #tpu.memory_space<vmem>>, vector<32x128xf32>,
    return
  }
  func.func @transform_0(%arg0: i32, %arg1: i32) -> (i32, i32) {
    %c0_i32 = arith.constant 0 : i32
    %c0_i32_0 = arith.constant 0 : i32
    return %arg0, %c0_i32 : i32, i32
  }
  func.func @transform_1(%arg0: i32, %arg1: i32) -> (i32, i32) {
    %c0_i32 = arith.constant 0 : i32
    %c0_i32_0 = arith.constant 0 : i32
    return %c0_i32, %arg1 : i32, i32
  }
  func.func @transform_2(%arg0: i32, %arg1: i32) -> (i32, i32) {
    %c0_i32 = arith.constant 0 : i32
    %c0_i32_0 = arith.constant 0 : i32
    return %c0_i32, %arg1 : i32, i32
  }
  func.func @transform_3(%arg0: i32, %arg1: i32) -> (i32, i32) {
    %c0_i32 = arith.constant 0 : i32
    return %arg0, %arg1 : i32, i32
  }
}

module attributes {stable_mosaic.version = 11 : i64} {
  func.func @_dwconv_kernel(%arg0: i32, %arg1: memref<9x32x8xbf16, #tpu.memory_space<vmem>>, %arg2: memref<9x1x8xf32, #tpu.memory_space<vmem>>, %arg3: memref<1x8xf32, #tpu.memory_space<vmem>>, %arg4: memref<1x8xf32, #tpu.memory_space<vmem>>, %arg5: memref<32x8xbf16, #tpu.memory_space<vmem>>) attributes {dimension_semantics = [#tpu.dimension_semantics<parallel>], iteration_bounds = array<i64: 1>, scalar_prefetch = 0 : i64, scratch_operands = 0 : i64, tpu.core_type = #tpu.core_type<tc>, window_params = [{transform_indices = @transform_0, window_bounds = array<i64: 9, 32, 8>}, {pipeline_mode = #tpu.pipeline_mode<synchronous>, transform_indices = @transform_1, window_bounds = array<i64: 9, 1, 8>}, {pipeline_mode = #tpu.pipeline_mode<synchronous>, transform_indices = @transform_2, window_bounds = array<i64: 1, 8>}, {pipeline_mode = #tpu.pipeline_mode<synchronous>, transform_indices = @transform_3, window_bounds = array<i64: 1, 8>}, {transform_indices = @transform_4, window_bounds = array<i64: 32, 8>}]} {
    %c0 = arith.constant 0 : index
    %c0_0 = arith.constant 0 : index
    %c0_1 = arith.constant 0 : index
    %0 = vector.load %arg1[%c0, %c0_0, %c0_1] : memref<9x32x8xbf16, #tpu.memory_space<vmem>>, vector<1x32x8xbf16>
    %1 = vector.shape_cast %0 : vector<1x32x8xbf16> to vector<32x8xbf16>
    %2 = arith.extf %1 : vector<32x8xbf16> to vector<32x8xf32>
    %c0_2 = arith.constant 0 : index
    %c0_3 = arith.constant 0 : index
    %c0_4 = arith.constant 0 : index
    %3 = vector.load %arg2[%c0_2, %c0_3, %c0_4] : memref<9x1x8xf32, #tpu.memory_space<vmem>>, vector<1x1x8xf32>
    %4 = vector.shape_cast %3 : vector<1x1x8xf32> to vector<1x8xf32>
    %5 = vector.broadcast %4 : vector<1x8xf32> to vector<32x8xf32>
    %6 = arith.mulf %2, %5 : vector<32x8xf32>
    %c1 = arith.constant 1 : index
    %c0_5 = arith.constant 0 : index
    %c0_6 = arith.constant 0 : index
    %7 = vector.load %arg1[%c1, %c0_5, %c0_6] : memref<9x32x8xbf16, #tpu.memory_space<vmem>>, vector<1x32x8xbf16>
    %8 = vector.shape_cast %7 : vector<1x32x8xbf16> to vector<32x8xbf16>
    %9 = arith.extf %8 : vector<32x8xbf16> to vector<32x8xf32>
    %c1_7 = arith.constant 1 : index
    %c0_8 = arith.constant 0 : index
    %c0_9 = arith.constant 0 : index
    %10 = vector.load %arg2[%c1_7, %c0_8, %c0_9] : memref<9x1x8xf32, #tpu.memory_space<vmem>>, vector<1x1x8xf32>
    %11 = vector.shape_cast %10 : vector<1x1x8xf32> to vector<1x8xf32>
    %12 = vector.broadcast %11 : vector<1x8xf32> to vector<32x8xf32>
    %13 = arith.mulf %9, %12 : vector<32x8xf32>
    %14 = arith.addf %6, %13 : vector<32x8xf32>
    %c2 = arith.constant 2 : index
    %c0_10 = arith.constant 0 : index
    %c0_11 = arith.constant 0 : index
    %15 = vector.load %arg1[%c2, %c0_10, %c0_11] : memref<9x32x8xbf16, #tpu.memory_space<vmem>>, vector<1x32x8xbf16>
    %16 = vector.shape_cast %15 : vector<1x32x8xbf16> to vector<32x8xbf16>
    %17 = arith.extf %16 : vector<32x8xbf16> to vector<32x8xf32>
    %c2_12 = arith.constant 2 : index
    %c0_13 = arith.constant 0 : index
    %c0_14 = arith.constant 0 : index
    %18 = vector.load %arg2[%c2_12, %c0_13, %c0_14] : memref<9x1x8xf32, #tpu.memory_space<vmem>>, vector<1x1x8xf32>
    %19 = vector.shape_cast %18 : vector<1x1x8xf32> to vector<1x8xf32>
    %20 = vector.broadcast %19 : vector<1x8xf32> to vector<32x8xf32>
    %21 = arith.mulf %17, %20 : vector<32x8xf32>
    %22 = arith.addf %14, %21 : vector<32x8xf32>
    %c3 = arith.constant 3 : index
    %c0_15 = arith.constant 0 : index
    %c0_16 = arith.constant 0 : index
    %23 = vector.load %arg1[%c3, %c0_15, %c0_16] : memref<9x32x8xbf16, #tpu.memory_space<vmem>>, vector<1x32x8xbf16>
    %24 = vector.shape_cast %23 : vector<1x32x8xbf16> to vector<32x8xbf16>
    %25 = arith.extf %24 : vector<32x8xbf16> to vector<32x8xf32>
    %c3_17 = arith.constant 3 : index
    %c0_18 = arith.constant 0 : index
    %c0_19 = arith.constant 0 : index
    %26 = vector.load %arg2[%c3_17, %c0_18, %c0_19] : memref<9x1x8xf32, #tpu.memory_space<vmem>>, vector<1x1x8xf32>
    %27 = vector.shape_cast %26 : vector<1x1x8xf32> to vector<1x8xf32>
    %28 = vector.broadcast %27 : vector<1x8xf32> to vector<32x8xf32>
    %29 = arith.mulf %25, %28 : vector<32x8xf32>
    %30 = arith.addf %22, %29 : vector<32x8xf32>
    %c4 = arith.constant 4 : index
    %c0_20 = arith.constant 0 : index
    %c0_21 = arith.constant 0 : index
    %31 = vector.load %arg1[%c4, %c0_20, %c0_21] : memref<9x32x8xbf16, #tpu.memory_space<vmem>>, vector<1x32x8xbf16>
    %32 = vector.shape_cast %31 : vector<1x32x8xbf16> to vector<32x8xbf16>
    %33 = arith.extf %32 : vector<32x8xbf16> to vector<32x8xf32>
    %c4_22 = arith.constant 4 : index
    %c0_23 = arith.constant 0 : index
    %c0_24 = arith.constant 0 : index
    %34 = vector.load %arg2[%c4_22, %c0_23, %c0_24] : memref<9x1x8xf32, #tpu.memory_space<vmem>>, vector<1x1x8xf32>
    %35 = vector.shape_cast %34 : vector<1x1x8xf32> to vector<1x8xf32>
    %36 = vector.broadcast %35 : vector<1x8xf32> to vector<32x8xf32>
    %37 = arith.mulf %33, %36 : vector<32x8xf32>
    %38 = arith.addf %30, %37 : vector<32x8xf32>
    %c5 = arith.constant 5 : index
    %c0_25 = arith.constant 0 : index
    %c0_26 = arith.constant 0 : index
    %39 = vector.load %arg1[%c5, %c0_25, %c0_26] : memref<9x32x8xbf16, #tpu.memory_space<vmem>>, vector<1x32x8xbf16>
    %40 = vector.shape_cast %39 : vector<1x32x8xbf16> to vector<32x8xbf16>
    %41 = arith.extf %40 : vector<32x8xbf16> to vector<32x8xf32>
    %c5_27 = arith.constant 5 : index
    %c0_28 = arith.constant 0 : index
    %c0_29 = arith.constant 0 : index
    %42 = vector.load %arg2[%c5_27, %c0_28, %c0_29] : memref<9x1x8xf32, #tpu.memory_space<vmem>>, vector<1x1x8xf32>
    %43 = vector.shape_cast %42 : vector<1x1x8xf32> to vector<1x8xf32>
    %44 = vector.broadcast %43 : vector<1x8xf32> to vector<32x8xf32>
    %45 = arith.mulf %41, %44 : vector<32x8xf32>
    %46 = arith.addf %38, %45 : vector<32x8xf32>
    %c6 = arith.constant 6 : index
    %c0_30 = arith.constant 0 : index
    %c0_31 = arith.constant 0 : index
    %47 = vector.load %arg1[%c6, %c0_30, %c0_31] : memref<9x32x8xbf16, #tpu.memory_space<vmem>>, vector<1x32x8xbf16>
    %48 = vector.shape_cast %47 : vector<1x32x8xbf16> to vector<32x8xbf16>
    %49 = arith.extf %48 : vector<32x8xbf16> to vector<32x8xf32>
    %c6_32 = arith.constant 6 : index
    %c0_33 = arith.constant 0 : index
    %c0_34 = arith.constant 0 : index
    %50 = vector.load %arg2[%c6_32, %c0_33, %c0_34] : memref<9x1x8xf32, #tpu.memory_space<vmem>>, vector<1x1x8xf32>
    %51 = vector.shape_cast %50 : vector<1x1x8xf32> to vector<1x8xf32>
    %52 = vector.broadcast %51 : vector<1x8xf32> to vector<32x8xf32>
    %53 = arith.mulf %49, %52 : vector<32x8xf32>
    %54 = arith.addf %46, %53 : vector<32x8xf32>
    %c7 = arith.constant 7 : index
    %c0_35 = arith.constant 0 : index
    %c0_36 = arith.constant 0 : index
    %55 = vector.load %arg1[%c7, %c0_35, %c0_36] : memref<9x32x8xbf16, #tpu.memory_space<vmem>>, vector<1x32x8xbf16>
    %56 = vector.shape_cast %55 : vector<1x32x8xbf16> to vector<32x8xbf16>
    %57 = arith.extf %56 : vector<32x8xbf16> to vector<32x8xf32>
    %c7_37 = arith.constant 7 : index
    %c0_38 = arith.constant 0 : index
    %c0_39 = arith.constant 0 : index
    %58 = vector.load %arg2[%c7_37, %c0_38, %c0_39] : memref<9x1x8xf32, #tpu.memory_space<vmem>>, vector<1x1x8xf32>
    %59 = vector.shape_cast %58 : vector<1x1x8xf32> to vector<1x8xf32>
    %60 = vector.broadcast %59 : vector<1x8xf32> to vector<32x8xf32>
    %61 = arith.mulf %57, %60 : vector<32x8xf32>
    %62 = arith.addf %54, %61 : vector<32x8xf32>
    %c8 = arith.constant 8 : index
    %c0_40 = arith.constant 0 : index
    %c0_41 = arith.constant 0 : index
    %63 = vector.load %arg1[%c8, %c0_40, %c0_41] : memref<9x32x8xbf16, #tpu.memory_space<vmem>>, vector<1x32x8xbf16>
    %64 = vector.shape_cast %63 : vector<1x32x8xbf16> to vector<32x8xbf16>
    %65 = arith.extf %64 : vector<32x8xbf16> to vector<32x8xf32>
    %c8_42 = arith.constant 8 : index
    %c0_43 = arith.constant 0 : index
    %c0_44 = arith.constant 0 : index
    %66 = vector.load %arg2[%c8_42, %c0_43, %c0_44] : memref<9x1x8xf32, #tpu.memory_space<vmem>>, vector<1x1x8xf32>
    %67 = vector.shape_cast %66 : vector<1x1x8xf32> to vector<1x8xf32>
    %68 = vector.broadcast %67 : vector<1x8xf32> to vector<32x8xf32>
    %69 = arith.mulf %65, %68 : vector<32x8xf32>
    %70 = arith.addf %62, %69 : vector<32x8xf32>
    %c0_45 = arith.constant 0 : index
    %c0_46 = arith.constant 0 : index
    %71 = vector.load %arg3[%c0_45, %c0_46] : memref<1x8xf32, #tpu.memory_space<vmem>>, vector<1x8xf32>
    %72 = vector.broadcast %71 : vector<1x8xf32> to vector<32x8xf32>
    %73 = arith.mulf %70, %72 : vector<32x8xf32>
    %c0_47 = arith.constant 0 : index
    %c0_48 = arith.constant 0 : index
    %74 = vector.load %arg4[%c0_47, %c0_48] : memref<1x8xf32, #tpu.memory_space<vmem>>, vector<1x8xf32>
    %75 = vector.broadcast %74 : vector<1x8xf32> to vector<32x8xf32>
    %76 = arith.addf %73, %75 : vector<32x8xf32>
    %cst = arith.constant 5.000000e-01 : f32
    %77 = vector.broadcast %cst : f32 to vector<32x8xf32>
    %78 = arith.mulf %77, %76 : vector<32x8xf32>
    %cst_49 = arith.constant 4.471500e-02 : f32
    %79 = vector.broadcast %cst_49 : f32 to vector<32x8xf32>
    %80 = arith.mulf %79, %76 : vector<32x8xf32>
    %81 = arith.mulf %80, %76 : vector<32x8xf32>
    %82 = arith.mulf %81, %76 : vector<32x8xf32>
    %83 = arith.addf %76, %82 : vector<32x8xf32>
    %cst_50 = arith.constant 0.797884583 : f32
    %84 = vector.broadcast %cst_50 : f32 to vector<32x8xf32>
    %85 = arith.mulf %84, %83 : vector<32x8xf32>
    %86 = math.tanh %85 : vector<32x8xf32>
    %cst_51 = arith.constant 1.000000e+00 : f32
    %87 = vector.broadcast %cst_51 : f32 to vector<32x8xf32>
    %88 = arith.addf %87, %86 : vector<32x8xf32>
    %89 = arith.mulf %78, %88 : vector<32x8xf32>
    %90 = arith.truncf %89 : vector<32x8xf32> to vector<32x8xbf16>
    %c0_52 = arith.constant 0 : index
    %c0_53 = arith.constant 0 : index
    %91 = vector.load %arg5[%c0_52, %c0_53] : memref<32x8xbf16, #tpu.memory_space<vmem>>, vector<32x8xbf16>
    tpu.vector_store %arg5[%c0_52, %c0_53], %90 {strides = array<i32>} : memref<32x8xbf16, #tpu.memory_space<vmem>>, vector<32x8xbf16>,
    return
  }
  func.func @transform_0(%arg0: i32) -> (i32, i32, i32) {
    %c0_i32 = arith.constant 0 : i32
    %c0_i32_0 = arith.constant 0 : i32
    %c0_i32_1 = arith.constant 0 : i32
    return %c0_i32, %arg0, %c0_i32_0 : i32, i32, i32
  }
  func.func @transform_1(%arg0: i32) -> (i32, i32, i32) {
    %c0_i32 = arith.constant 0 : i32
    %c0_i32_0 = arith.constant 0 : i32
    %c0_i32_1 = arith.constant 0 : i32
    %c0_i32_2 = arith.constant 0 : i32
    return %c0_i32, %c0_i32_0, %c0_i32_1 : i32, i32, i32
  }
  func.func @transform_2(%arg0: i32) -> (i32, i32) {
    %c0_i32 = arith.constant 0 : i32
    %c0_i32_0 = arith.constant 0 : i32
    %c0_i32_1 = arith.constant 0 : i32
    return %c0_i32, %c0_i32_0 : i32, i32
  }
  func.func @transform_3(%arg0: i32) -> (i32, i32) {
    %c0_i32 = arith.constant 0 : i32
    %c0_i32_0 = arith.constant 0 : i32
    %c0_i32_1 = arith.constant 0 : i32
    return %c0_i32, %c0_i32_0 : i32, i32
  }
  func.func @transform_4(%arg0: i32) -> (i32, i32) {
    %c0_i32 = arith.constant 0 : i32
    %c0_i32_0 = arith.constant 0 : i32
    return %arg0, %c0_i32 : i32, i32
  }
}

module attributes {stable_mosaic.version = 11 : i64} {
  func.func @_layernorm_kernel(%arg0: i32, %arg1: memref<32x8xf32, #tpu.memory_space<vmem>>, %arg2: memref<1x8xf32, #tpu.memory_space<vmem>>, %arg3: memref<1x8xf32, #tpu.memory_space<vmem>>, %arg4: memref<32x8xbf16, #tpu.memory_space<vmem>>) attributes {dimension_semantics = [#tpu.dimension_semantics<parallel>], iteration_bounds = array<i64: 1>, scalar_prefetch = 0 : i64, scratch_operands = 0 : i64, tpu.core_type = #tpu.core_type<tc>, window_params = [{transform_indices = @transform_0, window_bounds = array<i64: 32, 8>}, {pipeline_mode = #tpu.pipeline_mode<synchronous>, transform_indices = @transform_1, window_bounds = array<i64: 1, 8>}, {pipeline_mode = #tpu.pipeline_mode<synchronous>, transform_indices = @transform_2, window_bounds = array<i64: 1, 8>}, {transform_indices = @transform_3, window_bounds = array<i64: 32, 8>}]} {
    %c0 = arith.constant 0 : index
    %c0_0 = arith.constant 0 : index
    %0 = vector.load %arg1[%c0, %c0_0] : memref<32x8xf32, #tpu.memory_space<vmem>>, vector<32x8xf32>
    %cst = arith.constant dense<0.000000e+00> : vector<32xf32>
    %1 = vector.multi_reduction <add>, %0, %cst [1] : vector<32x8xf32> to vector<32xf32>
    %2 = vector.shape_cast %1 : vector<32xf32> to vector<32x1xf32>
    %cst_1 = arith.constant 8.000000e+00 : f32
    %3 = vector.broadcast %cst_1 : f32 to vector<32x1xf32>
    %4 = arith.divf %2, %3 : vector<32x1xf32>
    %5 = vector.broadcast %4 : vector<32x1xf32> to vector<32x8xf32>
    %6 = arith.subf %0, %5 : vector<32x8xf32>
    %7 = arith.mulf %6, %6 : vector<32x8xf32>
    %cst_2 = arith.constant dense<0.000000e+00> : vector<32xf32>
    %8 = vector.multi_reduction <add>, %7, %cst_2 [1] : vector<32x8xf32> to vector<32xf32>
    %9 = vector.shape_cast %8 : vector<32xf32> to vector<32x1xf32>
    %cst_3 = arith.constant 8.000000e+00 : f32
    %10 = vector.broadcast %cst_3 : f32 to vector<32x1xf32>
    %11 = arith.divf %9, %10 : vector<32x1xf32>
    %12 = vector.broadcast %4 : vector<32x1xf32> to vector<32x8xf32>
    %13 = arith.subf %0, %12 : vector<32x8xf32>
    %cst_4 = arith.constant 9.99999974E-6 : f32
    %14 = vector.broadcast %cst_4 : f32 to vector<32x1xf32>
    %15 = arith.addf %11, %14 : vector<32x1xf32>
    %16 = math.rsqrt %15 : vector<32x1xf32>
    %17 = vector.broadcast %16 : vector<32x1xf32> to vector<32x8xf32>
    %18 = arith.mulf %13, %17 : vector<32x8xf32>
    %c0_5 = arith.constant 0 : index
    %c0_6 = arith.constant 0 : index
    %19 = vector.load %arg2[%c0_5, %c0_6] : memref<1x8xf32, #tpu.memory_space<vmem>>, vector<1x8xf32>
    %20 = vector.broadcast %19 : vector<1x8xf32> to vector<32x8xf32>
    %21 = arith.mulf %18, %20 : vector<32x8xf32>
    %c0_7 = arith.constant 0 : index
    %c0_8 = arith.constant 0 : index
    %22 = vector.load %arg3[%c0_7, %c0_8] : memref<1x8xf32, #tpu.memory_space<vmem>>, vector<1x8xf32>
    %23 = vector.broadcast %22 : vector<1x8xf32> to vector<32x8xf32>
    %24 = arith.addf %21, %23 : vector<32x8xf32>
    %25 = arith.truncf %24 : vector<32x8xf32> to vector<32x8xbf16>
    %c0_9 = arith.constant 0 : index
    %c0_10 = arith.constant 0 : index
    %26 = vector.load %arg4[%c0_9, %c0_10] : memref<32x8xbf16, #tpu.memory_space<vmem>>, vector<32x8xbf16>
    tpu.vector_store %arg4[%c0_9, %c0_10], %25 {strides = array<i32>} : memref<32x8xbf16, #tpu.memory_space<vmem>>, vector<32x8xbf16>,
    return
  }
  func.func @transform_0(%arg0: i32) -> (i32, i32) {
    %c0_i32 = arith.constant 0 : i32
    %c0_i32_0 = arith.constant 0 : i32
    return %arg0, %c0_i32 : i32, i32
  }
  func.func @transform_1(%arg0: i32) -> (i32, i32) {
    %c0_i32 = arith.constant 0 : i32
    %c0_i32_0 = arith.constant 0 : i32
    %c0_i32_1 = arith.constant 0 : i32
    return %c0_i32, %c0_i32_0 : i32, i32
  }
  func.func @transform_2(%arg0: i32) -> (i32, i32) {
    %c0_i32 = arith.constant 0 : i32
    %c0_i32_0 = arith.constant 0 : i32
    %c0_i32_1 = arith.constant 0 : i32
    return %c0_i32, %c0_i32_0 : i32, i32
  }
  func.func @transform_3(%arg0: i32) -> (i32, i32) {
    %c0_i32 = arith.constant 0 : i32
    %c0_i32_0 = arith.constant 0 : i32
    return %arg0, %c0_i32 : i32, i32
  }
}

module attributes {stable_mosaic.version = 11 : i64} {
  func.func @_matmul_kernel_fullk(%arg0: i32, %arg1: i32, %arg2: memref<32x128xbf16, #tpu.memory_space<vmem>>, %arg3: memref<128x128xbf16, #tpu.memory_space<vmem>>, %arg4: memref<1x128xf32, #tpu.memory_space<vmem>>, %arg5: memref<32x128xbf16, #tpu.memory_space<vmem>>) attributes {dimension_semantics = [#tpu.dimension_semantics<parallel>, #tpu.dimension_semantics<parallel>], iteration_bounds = array<i64: 1, 1>, scalar_prefetch = 0 : i64, scratch_operands = 0 : i64, tpu.core_type = #tpu.core_type<tc>, window_params = [{transform_indices = @transform_0, window_bounds = array<i64: 32, 128>}, {transform_indices = @transform_1, window_bounds = array<i64: 128, 128>}, {transform_indices = @transform_2, window_bounds = array<i64: 1, 128>}, {transform_indices = @transform_3, window_bounds = array<i64: 32, 128>}]} {
    %c0 = arith.constant 0 : index
    %c0_0 = arith.constant 0 : index
    %0 = vector.load %arg2[%c0, %c0_0] : memref<32x128xbf16, #tpu.memory_space<vmem>>, vector<32x128xbf16>
    %c0_1 = arith.constant 0 : index
    %c0_2 = arith.constant 0 : index
    %1 = vector.load %arg3[%c0_1, %c0_2] : memref<128x128xbf16, #tpu.memory_space<vmem>>, vector<128x128xbf16>
    %cst = arith.constant dense<0.000000e+00> : vector<32x128xf32>
    %2 = tpu.matmul %0, %1, %cst {dimension_numbers = #tpu.dot_dimension_numbers<[1], [0], [0], [1], [0, 0, 1, 1], [], []>} : vector<32x128xbf16>, vector<128x128xbf16>, vector<32x128xf32> -> vector<32x128xf32>
    %c0_3 = arith.constant 0 : index
    %c0_4 = arith.constant 0 : index
    %3 = vector.load %arg4[%c0_3, %c0_4] : memref<1x128xf32, #tpu.memory_space<vmem>>, vector<1x128xf32>
    %4 = vector.broadcast %3 : vector<1x128xf32> to vector<32x128xf32>
    %5 = arith.addf %2, %4 : vector<32x128xf32>
    %6 = arith.truncf %5 : vector<32x128xf32> to vector<32x128xbf16>
    %c0_5 = arith.constant 0 : index
    %c0_6 = arith.constant 0 : index
    %7 = vector.load %arg5[%c0_5, %c0_6] : memref<32x128xbf16, #tpu.memory_space<vmem>>, vector<32x128xbf16>
    tpu.vector_store %arg5[%c0_5, %c0_6], %6 {strides = array<i32>} : memref<32x128xbf16, #tpu.memory_space<vmem>>, vector<32x128xbf16>,
    return
  }
  func.func @transform_0(%arg0: i32, %arg1: i32) -> (i32, i32) {
    %c0_i32 = arith.constant 0 : i32
    %c0_i32_0 = arith.constant 0 : i32
    return %arg0, %c0_i32 : i32, i32
  }
  func.func @transform_1(%arg0: i32, %arg1: i32) -> (i32, i32) {
    %c0_i32 = arith.constant 0 : i32
    %c0_i32_0 = arith.constant 0 : i32
    return %c0_i32, %arg1 : i32, i32
  }
  func.func @transform_2(%arg0: i32, %arg1: i32) -> (i32, i32) {
    %c0_i32 = arith.constant 0 : i32
    %c0_i32_0 = arith.constant 0 : i32
    return %c0_i32, %arg1 : i32, i32
  }
  func.func @transform_3(%arg0: i32, %arg1: i32) -> (i32, i32) {
    %c0_i32 = arith.constant 0 : i32
    return %arg0, %arg1 : i32, i32
  }
}

module attributes {stable_mosaic.version = 11 : i64} {
  func.func @_attention_kernel(%arg0: i32, %arg1: memref<8x4x8xbf16, #tpu.memory_space<vmem>>, %arg2: memref<8x4x8xbf16, #tpu.memory_space<vmem>>, %arg3: memref<8x4x8xbf16, #tpu.memory_space<vmem>>, %arg4: memref<2x4x4xf32, #tpu.memory_space<vmem>>, %arg5: memref<8x4x8xbf16, #tpu.memory_space<vmem>>) attributes {dimension_semantics = [#tpu.dimension_semantics<parallel>], iteration_bounds = array<i64: 1>, scalar_prefetch = 0 : i64, scratch_operands = 0 : i64, tpu.core_type = #tpu.core_type<tc>, window_params = [{transform_indices = @transform_0, window_bounds = array<i64: 8, 4, 8>}, {transform_indices = @transform_1, window_bounds = array<i64: 8, 4, 8>}, {transform_indices = @transform_2, window_bounds = array<i64: 8, 4, 8>}, {pipeline_mode = #tpu.pipeline_mode<synchronous>, transform_indices = @transform_3, window_bounds = array<i64: 2, 4, 4>}, {transform_indices = @transform_4, window_bounds = array<i64: 8, 4, 8>}]} {
    %c0 = arith.constant 0 : index
    %c0_0 = arith.constant 0 : index
    %c0_1 = arith.constant 0 : index
    %0 = vector.load %arg1[%c0, %c0_0, %c0_1] : memref<8x4x8xbf16, #tpu.memory_space<vmem>>, vector<8x4x8xbf16>
    %c0_2 = arith.constant 0 : index
    %c0_3 = arith.constant 0 : index
    %c0_4 = arith.constant 0 : index
    %1 = vector.load %arg2[%c0_2, %c0_3, %c0_4] : memref<8x4x8xbf16, #tpu.memory_space<vmem>>, vector<8x4x8xbf16>
    %c0_5 = arith.constant 0 : index
    %c0_6 = arith.constant 0 : index
    %c0_7 = arith.constant 0 : index
    %2 = vector.load %arg3[%c0_5, %c0_6, %c0_7] : memref<8x4x8xbf16, #tpu.memory_space<vmem>>, vector<8x4x8xbf16>
    %c0_8 = arith.constant 0 : index
    %c0_9 = arith.constant 0 : index
    %c0_10 = arith.constant 0 : index
    %3 = vector.load %arg4[%c0_8, %c0_9, %c0_10] : memref<2x4x4xf32, #tpu.memory_space<vmem>>, vector<2x4x4xf32>
    %4 = vector.extract_strided_slice %0 {offsets = [0, 0, 0], sizes = [8, 4, 4], strides = [1, 1, 1]} : vector<8x4x8xbf16> to vector<8x4x4xbf16>
    %5 = vector.extract_strided_slice %1 {offsets = [0, 0, 0], sizes = [8, 4, 4], strides = [1, 1, 1]} : vector<8x4x8xbf16> to vector<8x4x4xbf16>
    %6 = vector.extract_strided_slice %2 {offsets = [0, 0, 0], sizes = [8, 4, 4], strides = [1, 1, 1]} : vector<8x4x8xbf16> to vector<8x4x4xbf16>
    "tpu.trace_start"() <{level = 10 : i32, message = "bqd,bkd->bqk"}> : () -> ()
    %cst = arith.constant dense<0.000000e+00> : vector<8x4x4xf32>
    %7 = tpu.matmul %4, %5, %cst {dimension_numbers = #tpu.dot_dimension_numbers<[2], [2], [1], [1], [0, 0, 0, 1, 1, 1], [0], [0]>} : vector<8x4x4xbf16>, vector<8x4x4xbf16>, vector<8x4x4xf32> -> vector<8x4x4xf32>
    "tpu.trace_stop"() : () -> ()
    %cst_11 = arith.constant 0.707106769 : f32
    %8 = vector.broadcast %cst_11 : f32 to vector<8x4x4xf32>
    %9 = arith.mulf %7, %8 : vector<8x4x4xf32>
    %10 = vector.extract_strided_slice %3 {offsets = [0, 0, 0], sizes = [1, 4, 4], strides = [1, 1, 1]} : vector<2x4x4xf32> to vector<1x4x4xf32>
    %11 = vector.shape_cast %10 : vector<1x4x4xf32> to vector<4x4xf32>
    %12 = vector.shape_cast %11 : vector<4x4xf32> to vector<1x4x4xf32>
    %13 = vector.broadcast %12 : vector<1x4x4xf32> to vector<8x4x4xf32>
    %14 = arith.addf %9, %13 : vector<8x4x4xf32>
    %cst_12 = arith.constant dense<0xFF800000> : vector<8x4xf32>
    %15 = vector.multi_reduction <maximumf>, %14, %cst_12 [2] : vector<8x4x4xf32> to vector<8x4xf32>
    %16 = vector.shape_cast %15 : vector<8x4xf32> to vector<8x4x1xf32>
    %17 = vector.broadcast %16 : vector<8x4x1xf32> to vector<8x4x4xf32>
    %18 = arith.subf %14, %17 : vector<8x4x4xf32>
    %19 = math.exp %18 : vector<8x4x4xf32>
    %cst_13 = arith.constant dense<0.000000e+00> : vector<8x4xf32>
    %20 = vector.multi_reduction <add>, %19, %cst_13 [2] : vector<8x4x4xf32> to vector<8x4xf32>
    %21 = vector.shape_cast %20 : vector<8x4xf32> to vector<8x4x1xf32>
    %22 = tpu.reciprocal %21 {approx = true} : vector<8x4x1xf32> -> vector<8x4x1xf32>
    %23 = vector.broadcast %22 : vector<8x4x1xf32> to vector<8x4x4xf32>
    %24 = arith.mulf %19, %23 : vector<8x4x4xf32>
    %25 = arith.truncf %24 : vector<8x4x4xf32> to vector<8x4x4xbf16>
    "tpu.trace_start"() <{level = 10 : i32, message = "bqk,bkd->bqd"}> : () -> ()
    %cst_14 = arith.constant dense<0.000000e+00> : vector<8x4x4xf32>
    %26 = tpu.matmul %25, %6, %cst_14 {dimension_numbers = #tpu.dot_dimension_numbers<[2], [1], [1], [2], [0, 0, 0, 1, 1, 2], [0], [0]>} : vector<8x4x4xbf16>, vector<8x4x4xbf16>, vector<8x4x4xf32> -> vector<8x4x4xf32>
    "tpu.trace_stop"() : () -> ()
    %27 = vector.extract_strided_slice %0 {offsets = [0, 0, 4], sizes = [8, 4, 4], strides = [1, 1, 1]} : vector<8x4x8xbf16> to vector<8x4x4xbf16>
    %28 = vector.extract_strided_slice %1 {offsets = [0, 0, 4], sizes = [8, 4, 4], strides = [1, 1, 1]} : vector<8x4x8xbf16> to vector<8x4x4xbf16>
    %29 = vector.extract_strided_slice %2 {offsets = [0, 0, 4], sizes = [8, 4, 4], strides = [1, 1, 1]} : vector<8x4x8xbf16> to vector<8x4x4xbf16>
    "tpu.trace_start"() <{level = 10 : i32, message = "bqd,bkd->bqk"}> : () -> ()
    %cst_15 = arith.constant dense<0.000000e+00> : vector<8x4x4xf32>
    %30 = tpu.matmul %27, %28, %cst_15 {dimension_numbers = #tpu.dot_dimension_numbers<[2], [2], [1], [1], [0, 0, 0, 1, 1, 1], [0], [0]>} : vector<8x4x4xbf16>, vector<8x4x4xbf16>, vector<8x4x4xf32> -> vector<8x4x4xf32>
    "tpu.trace_stop"() : () -> ()
    %cst_16 = arith.constant 0.707106769 : f32
    %31 = vector.broadcast %cst_16 : f32 to vector<8x4x4xf32>
    %32 = arith.mulf %30, %31 : vector<8x4x4xf32>
    %33 = vector.extract_strided_slice %3 {offsets = [1, 0, 0], sizes = [1, 4, 4], strides = [1, 1, 1]} : vector<2x4x4xf32> to vector<1x4x4xf32>
    %34 = vector.shape_cast %33 : vector<1x4x4xf32> to vector<4x4xf32>
    %35 = vector.shape_cast %34 : vector<4x4xf32> to vector<1x4x4xf32>
    %36 = vector.broadcast %35 : vector<1x4x4xf32> to vector<8x4x4xf32>
    %37 = arith.addf %32, %36 : vector<8x4x4xf32>
    %cst_17 = arith.constant dense<0xFF800000> : vector<8x4xf32>
    %38 = vector.multi_reduction <maximumf>, %37, %cst_17 [2] : vector<8x4x4xf32> to vector<8x4xf32>
    %39 = vector.shape_cast %38 : vector<8x4xf32> to vector<8x4x1xf32>
    %40 = vector.broadcast %39 : vector<8x4x1xf32> to vector<8x4x4xf32>
    %41 = arith.subf %37, %40 : vector<8x4x4xf32>
    %42 = math.exp %41 : vector<8x4x4xf32>
    %cst_18 = arith.constant dense<0.000000e+00> : vector<8x4xf32>
    %43 = vector.multi_reduction <add>, %42, %cst_18 [2] : vector<8x4x4xf32> to vector<8x4xf32>
    %44 = vector.shape_cast %43 : vector<8x4xf32> to vector<8x4x1xf32>
    %45 = tpu.reciprocal %44 {approx = true} : vector<8x4x1xf32> -> vector<8x4x1xf32>
    %46 = vector.broadcast %45 : vector<8x4x1xf32> to vector<8x4x4xf32>
    %47 = arith.mulf %42, %46 : vector<8x4x4xf32>
    %48 = arith.truncf %47 : vector<8x4x4xf32> to vector<8x4x4xbf16>
    "tpu.trace_start"() <{level = 10 : i32, message = "bqk,bkd->bqd"}> : () -> ()
    %cst_19 = arith.constant dense<0.000000e+00> : vector<8x4x4xf32>
    %49 = tpu.matmul %48, %29, %cst_19 {dimension_numbers = #tpu.dot_dimension_numbers<[2], [1], [1], [2], [0, 0, 0, 1, 1, 2], [0], [0]>} : vector<8x4x4xbf16>, vector<8x4x4xbf16>, vector<8x4x4xf32> -> vector<8x4x4xf32>
    "tpu.trace_stop"() : () -> ()
    %50 = tpu.concatenate %26, %49 in 2 : vector<8x4x4xf32>, vector<8x4x4xf32> -> vector<8x4x8xf32>
    %51 = arith.truncf %50 : vector<8x4x8xf32> to vector<8x4x8xbf16>
    %c0_20 = arith.constant 0 : index
    %c0_21 = arith.constant 0 : index
    %c0_22 = arith.constant 0 : index
    %52 = vector.load %arg5[%c0_20, %c0_21, %c0_22] : memref<8x4x8xbf16, #tpu.memory_space<vmem>>, vector<8x4x8xbf16>
    tpu.vector_store %arg5[%c0_20, %c0_21, %c0_22], %51 {strides = array<i32>} : memref<8x4x8xbf16, #tpu.memory_space<vmem>>, vector<8x4x8xbf16>,
    return
  }
  func.func @transform_0(%arg0: i32) -> (i32, i32, i32) {
    %c0_i32 = arith.constant 0 : i32
    %c0_i32_0 = arith.constant 0 : i32
    %c0_i32_1 = arith.constant 0 : i32
    return %arg0, %c0_i32, %c0_i32_0 : i32, i32, i32
  }
  func.func @transform_1(%arg0: i32) -> (i32, i32, i32) {
    %c0_i32 = arith.constant 0 : i32
    %c0_i32_0 = arith.constant 0 : i32
    %c0_i32_1 = arith.constant 0 : i32
    return %arg0, %c0_i32, %c0_i32_0 : i32, i32, i32
  }
  func.func @transform_2(%arg0: i32) -> (i32, i32, i32) {
    %c0_i32 = arith.constant 0 : i32
    %c0_i32_0 = arith.constant 0 : i32
    %c0_i32_1 = arith.constant 0 : i32
    return %arg0, %c0_i32, %c0_i32_0 : i32, i32, i32
  }
  func.func @transform_3(%arg0: i32) -> (i32, i32, i32) {
    %c0_i32 = arith.constant 0 : i32
    %c0_i32_0 = arith.constant 0 : i32
    %c0_i32_1 = arith.constant 0 : i32
    %c0_i32_2 = arith.constant 0 : i32
    return %c0_i32, %c0_i32_0, %c0_i32_1 : i32, i32, i32
  }
  func.func @transform_4(%arg0: i32) -> (i32, i32, i32) {
    %c0_i32 = arith.constant 0 : i32
    %c0_i32_0 = arith.constant 0 : i32
    %c0_i32_1 = arith.constant 0 : i32
    return %arg0, %c0_i32, %c0_i32_0 : i32, i32, i32
  }
}

module attributes {stable_mosaic.version = 11 : i64} {
  func.func @_matmul_kernel_fullk(%arg0: i32, %arg1: i32, %arg2: memref<32x128xbf16, #tpu.memory_space<vmem>>, %arg3: memref<128x128xbf16, #tpu.memory_space<vmem>>, %arg4: memref<1x128xf32, #tpu.memory_space<vmem>>, %arg5: memref<32x128xbf16, #tpu.memory_space<vmem>>) attributes {dimension_semantics = [#tpu.dimension_semantics<parallel>, #tpu.dimension_semantics<parallel>], iteration_bounds = array<i64: 1, 1>, scalar_prefetch = 0 : i64, scratch_operands = 0 : i64, tpu.core_type = #tpu.core_type<tc>, window_params = [{transform_indices = @transform_0, window_bounds = array<i64: 32, 128>}, {transform_indices = @transform_1, window_bounds = array<i64: 128, 128>}, {transform_indices = @transform_2, window_bounds = array<i64: 1, 128>}, {transform_indices = @transform_3, window_bounds = array<i64: 32, 128>}]} {
    %c0 = arith.constant 0 : index
    %c0_0 = arith.constant 0 : index
    %0 = vector.load %arg2[%c0, %c0_0] : memref<32x128xbf16, #tpu.memory_space<vmem>>, vector<32x128xbf16>
    %c0_1 = arith.constant 0 : index
    %c0_2 = arith.constant 0 : index
    %1 = vector.load %arg3[%c0_1, %c0_2] : memref<128x128xbf16, #tpu.memory_space<vmem>>, vector<128x128xbf16>
    %cst = arith.constant dense<0.000000e+00> : vector<32x128xf32>
    %2 = tpu.matmul %0, %1, %cst {dimension_numbers = #tpu.dot_dimension_numbers<[1], [0], [0], [1], [0, 0, 1, 1], [], []>} : vector<32x128xbf16>, vector<128x128xbf16>, vector<32x128xf32> -> vector<32x128xf32>
    %c0_3 = arith.constant 0 : index
    %c0_4 = arith.constant 0 : index
    %3 = vector.load %arg4[%c0_3, %c0_4] : memref<1x128xf32, #tpu.memory_space<vmem>>, vector<1x128xf32>
    %4 = vector.broadcast %3 : vector<1x128xf32> to vector<32x128xf32>
    %5 = arith.addf %2, %4 : vector<32x128xf32>
    %cst_5 = arith.constant 5.000000e-01 : f32
    %6 = vector.broadcast %cst_5 : f32 to vector<32x128xf32>
    %7 = arith.mulf %6, %5 : vector<32x128xf32>
    %cst_6 = arith.constant 4.471500e-02 : f32
    %8 = vector.broadcast %cst_6 : f32 to vector<32x128xf32>
    %9 = arith.mulf %8, %5 : vector<32x128xf32>
    %10 = arith.mulf %9, %5 : vector<32x128xf32>
    %11 = arith.mulf %10, %5 : vector<32x128xf32>
    %12 = arith.addf %5, %11 : vector<32x128xf32>
    %cst_7 = arith.constant 0.797884583 : f32
    %13 = vector.broadcast %cst_7 : f32 to vector<32x128xf32>
    %14 = arith.mulf %13, %12 : vector<32x128xf32>
    %15 = math.tanh %14 : vector<32x128xf32>
    %cst_8 = arith.constant 1.000000e+00 : f32
    %16 = vector.broadcast %cst_8 : f32 to vector<32x128xf32>
    %17 = arith.addf %16, %15 : vector<32x128xf32>
    %18 = arith.mulf %7, %17 : vector<32x128xf32>
    %19 = arith.truncf %18 : vector<32x128xf32> to vector<32x128xbf16>
    %c0_9 = arith.constant 0 : index
    %c0_10 = arith.constant 0 : index
    %20 = vector.load %arg5[%c0_9, %c0_10] : memref<32x128xbf16, #tpu.memory_space<vmem>>, vector<32x128xbf16>
    tpu.vector_store %arg5[%c0_9, %c0_10], %19 {strides = array<i32>} : memref<32x128xbf16, #tpu.memory_space<vmem>>, vector<32x128xbf16>,
    return
  }
  func.func @transform_0(%arg0: i32, %arg1: i32) -> (i32, i32) {
    %c0_i32 = arith.constant 0 : i32
    %c0_i32_0 = arith.constant 0 : i32
    return %arg0, %c0_i32 : i32, i32
  }
  func.func @transform_1(%arg0: i32, %arg1: i32) -> (i32, i32) {
    %c0_i32 = arith.constant 0 : i32
    %c0_i32_0 = arith.constant 0 : i32
    return %c0_i32, %arg1 : i32, i32
  }
  func.func @transform_2(%arg0: i32, %arg1: i32) -> (i32, i32) {
    %c0_i32 = arith.constant 0 : i32
    %c0_i32_0 = arith.constant 0 : i32
    return %c0_i32, %arg1 : i32, i32
  }
  func.func @transform_3(%arg0: i32, %arg1: i32) -> (i32, i32) {
    %c0_i32 = arith.constant 0 : i32
    return %arg0, %arg1 : i32, i32
  }
}

module attributes {stable_mosaic.version = 11 : i64} {
  func.func @_dwconv_kernel(%arg0: i32, %arg1: memref<9x16x8xbf16, #tpu.memory_space<vmem>>, %arg2: memref<9x1x8xf32, #tpu.memory_space<vmem>>, %arg3: memref<1x8xf32, #tpu.memory_space<vmem>>, %arg4: memref<1x8xf32, #tpu.memory_space<vmem>>, %arg5: memref<16x8xbf16, #tpu.memory_space<vmem>>) attributes {dimension_semantics = [#tpu.dimension_semantics<parallel>], iteration_bounds = array<i64: 1>, scalar_prefetch = 0 : i64, scratch_operands = 0 : i64, tpu.core_type = #tpu.core_type<tc>, window_params = [{transform_indices = @transform_0, window_bounds = array<i64: 9, 16, 8>}, {pipeline_mode = #tpu.pipeline_mode<synchronous>, transform_indices = @transform_1, window_bounds = array<i64: 9, 1, 8>}, {pipeline_mode = #tpu.pipeline_mode<synchronous>, transform_indices = @transform_2, window_bounds = array<i64: 1, 8>}, {pipeline_mode = #tpu.pipeline_mode<synchronous>, transform_indices = @transform_3, window_bounds = array<i64: 1, 8>}, {transform_indices = @transform_4, window_bounds = array<i64: 16, 8>}]} {
    %c0 = arith.constant 0 : index
    %c0_0 = arith.constant 0 : index
    %c0_1 = arith.constant 0 : index
    %0 = vector.load %arg1[%c0, %c0_0, %c0_1] : memref<9x16x8xbf16, #tpu.memory_space<vmem>>, vector<1x16x8xbf16>
    %1 = vector.shape_cast %0 : vector<1x16x8xbf16> to vector<16x8xbf16>
    %2 = arith.extf %1 : vector<16x8xbf16> to vector<16x8xf32>
    %c0_2 = arith.constant 0 : index
    %c0_3 = arith.constant 0 : index
    %c0_4 = arith.constant 0 : index
    %3 = vector.load %arg2[%c0_2, %c0_3, %c0_4] : memref<9x1x8xf32, #tpu.memory_space<vmem>>, vector<1x1x8xf32>
    %4 = vector.shape_cast %3 : vector<1x1x8xf32> to vector<1x8xf32>
    %5 = vector.broadcast %4 : vector<1x8xf32> to vector<16x8xf32>
    %6 = arith.mulf %2, %5 : vector<16x8xf32>
    %c1 = arith.constant 1 : index
    %c0_5 = arith.constant 0 : index
    %c0_6 = arith.constant 0 : index
    %7 = vector.load %arg1[%c1, %c0_5, %c0_6] : memref<9x16x8xbf16, #tpu.memory_space<vmem>>, vector<1x16x8xbf16>
    %8 = vector.shape_cast %7 : vector<1x16x8xbf16> to vector<16x8xbf16>
    %9 = arith.extf %8 : vector<16x8xbf16> to vector<16x8xf32>
    %c1_7 = arith.constant 1 : index
    %c0_8 = arith.constant 0 : index
    %c0_9 = arith.constant 0 : index
    %10 = vector.load %arg2[%c1_7, %c0_8, %c0_9] : memref<9x1x8xf32, #tpu.memory_space<vmem>>, vector<1x1x8xf32>
    %11 = vector.shape_cast %10 : vector<1x1x8xf32> to vector<1x8xf32>
    %12 = vector.broadcast %11 : vector<1x8xf32> to vector<16x8xf32>
    %13 = arith.mulf %9, %12 : vector<16x8xf32>
    %14 = arith.addf %6, %13 : vector<16x8xf32>
    %c2 = arith.constant 2 : index
    %c0_10 = arith.constant 0 : index
    %c0_11 = arith.constant 0 : index
    %15 = vector.load %arg1[%c2, %c0_10, %c0_11] : memref<9x16x8xbf16, #tpu.memory_space<vmem>>, vector<1x16x8xbf16>
    %16 = vector.shape_cast %15 : vector<1x16x8xbf16> to vector<16x8xbf16>
    %17 = arith.extf %16 : vector<16x8xbf16> to vector<16x8xf32>
    %c2_12 = arith.constant 2 : index
    %c0_13 = arith.constant 0 : index
    %c0_14 = arith.constant 0 : index
    %18 = vector.load %arg2[%c2_12, %c0_13, %c0_14] : memref<9x1x8xf32, #tpu.memory_space<vmem>>, vector<1x1x8xf32>
    %19 = vector.shape_cast %18 : vector<1x1x8xf32> to vector<1x8xf32>
    %20 = vector.broadcast %19 : vector<1x8xf32> to vector<16x8xf32>
    %21 = arith.mulf %17, %20 : vector<16x8xf32>
    %22 = arith.addf %14, %21 : vector<16x8xf32>
    %c3 = arith.constant 3 : index
    %c0_15 = arith.constant 0 : index
    %c0_16 = arith.constant 0 : index
    %23 = vector.load %arg1[%c3, %c0_15, %c0_16] : memref<9x16x8xbf16, #tpu.memory_space<vmem>>, vector<1x16x8xbf16>
    %24 = vector.shape_cast %23 : vector<1x16x8xbf16> to vector<16x8xbf16>
    %25 = arith.extf %24 : vector<16x8xbf16> to vector<16x8xf32>
    %c3_17 = arith.constant 3 : index
    %c0_18 = arith.constant 0 : index
    %c0_19 = arith.constant 0 : index
    %26 = vector.load %arg2[%c3_17, %c0_18, %c0_19] : memref<9x1x8xf32, #tpu.memory_space<vmem>>, vector<1x1x8xf32>
    %27 = vector.shape_cast %26 : vector<1x1x8xf32> to vector<1x8xf32>
    %28 = vector.broadcast %27 : vector<1x8xf32> to vector<16x8xf32>
    %29 = arith.mulf %25, %28 : vector<16x8xf32>
    %30 = arith.addf %22, %29 : vector<16x8xf32>
    %c4 = arith.constant 4 : index
    %c0_20 = arith.constant 0 : index
    %c0_21 = arith.constant 0 : index
    %31 = vector.load %arg1[%c4, %c0_20, %c0_21] : memref<9x16x8xbf16, #tpu.memory_space<vmem>>, vector<1x16x8xbf16>
    %32 = vector.shape_cast %31 : vector<1x16x8xbf16> to vector<16x8xbf16>
    %33 = arith.extf %32 : vector<16x8xbf16> to vector<16x8xf32>
    %c4_22 = arith.constant 4 : index
    %c0_23 = arith.constant 0 : index
    %c0_24 = arith.constant 0 : index
    %34 = vector.load %arg2[%c4_22, %c0_23, %c0_24] : memref<9x1x8xf32, #tpu.memory_space<vmem>>, vector<1x1x8xf32>
    %35 = vector.shape_cast %34 : vector<1x1x8xf32> to vector<1x8xf32>
    %36 = vector.broadcast %35 : vector<1x8xf32> to vector<16x8xf32>
    %37 = arith.mulf %33, %36 : vector<16x8xf32>
    %38 = arith.addf %30, %37 : vector<16x8xf32>
    %c5 = arith.constant 5 : index
    %c0_25 = arith.constant 0 : index
    %c0_26 = arith.constant 0 : index
    %39 = vector.load %arg1[%c5, %c0_25, %c0_26] : memref<9x16x8xbf16, #tpu.memory_space<vmem>>, vector<1x16x8xbf16>
    %40 = vector.shape_cast %39 : vector<1x16x8xbf16> to vector<16x8xbf16>
    %41 = arith.extf %40 : vector<16x8xbf16> to vector<16x8xf32>
    %c5_27 = arith.constant 5 : index
    %c0_28 = arith.constant 0 : index
    %c0_29 = arith.constant 0 : index
    %42 = vector.load %arg2[%c5_27, %c0_28, %c0_29] : memref<9x1x8xf32, #tpu.memory_space<vmem>>, vector<1x1x8xf32>
    %43 = vector.shape_cast %42 : vector<1x1x8xf32> to vector<1x8xf32>
    %44 = vector.broadcast %43 : vector<1x8xf32> to vector<16x8xf32>
    %45 = arith.mulf %41, %44 : vector<16x8xf32>
    %46 = arith.addf %38, %45 : vector<16x8xf32>
    %c6 = arith.constant 6 : index
    %c0_30 = arith.constant 0 : index
    %c0_31 = arith.constant 0 : index
    %47 = vector.load %arg1[%c6, %c0_30, %c0_31] : memref<9x16x8xbf16, #tpu.memory_space<vmem>>, vector<1x16x8xbf16>
    %48 = vector.shape_cast %47 : vector<1x16x8xbf16> to vector<16x8xbf16>
    %49 = arith.extf %48 : vector<16x8xbf16> to vector<16x8xf32>
    %c6_32 = arith.constant 6 : index
    %c0_33 = arith.constant 0 : index
    %c0_34 = arith.constant 0 : index
    %50 = vector.load %arg2[%c6_32, %c0_33, %c0_34] : memref<9x1x8xf32, #tpu.memory_space<vmem>>, vector<1x1x8xf32>
    %51 = vector.shape_cast %50 : vector<1x1x8xf32> to vector<1x8xf32>
    %52 = vector.broadcast %51 : vector<1x8xf32> to vector<16x8xf32>
    %53 = arith.mulf %49, %52 : vector<16x8xf32>
    %54 = arith.addf %46, %53 : vector<16x8xf32>
    %c7 = arith.constant 7 : index
    %c0_35 = arith.constant 0 : index
    %c0_36 = arith.constant 0 : index
    %55 = vector.load %arg1[%c7, %c0_35, %c0_36] : memref<9x16x8xbf16, #tpu.memory_space<vmem>>, vector<1x16x8xbf16>
    %56 = vector.shape_cast %55 : vector<1x16x8xbf16> to vector<16x8xbf16>
    %57 = arith.extf %56 : vector<16x8xbf16> to vector<16x8xf32>
    %c7_37 = arith.constant 7 : index
    %c0_38 = arith.constant 0 : index
    %c0_39 = arith.constant 0 : index
    %58 = vector.load %arg2[%c7_37, %c0_38, %c0_39] : memref<9x1x8xf32, #tpu.memory_space<vmem>>, vector<1x1x8xf32>
    %59 = vector.shape_cast %58 : vector<1x1x8xf32> to vector<1x8xf32>
    %60 = vector.broadcast %59 : vector<1x8xf32> to vector<16x8xf32>
    %61 = arith.mulf %57, %60 : vector<16x8xf32>
    %62 = arith.addf %54, %61 : vector<16x8xf32>
    %c8 = arith.constant 8 : index
    %c0_40 = arith.constant 0 : index
    %c0_41 = arith.constant 0 : index
    %63 = vector.load %arg1[%c8, %c0_40, %c0_41] : memref<9x16x8xbf16, #tpu.memory_space<vmem>>, vector<1x16x8xbf16>
    %64 = vector.shape_cast %63 : vector<1x16x8xbf16> to vector<16x8xbf16>
    %65 = arith.extf %64 : vector<16x8xbf16> to vector<16x8xf32>
    %c8_42 = arith.constant 8 : index
    %c0_43 = arith.constant 0 : index
    %c0_44 = arith.constant 0 : index
    %66 = vector.load %arg2[%c8_42, %c0_43, %c0_44] : memref<9x1x8xf32, #tpu.memory_space<vmem>>, vector<1x1x8xf32>
    %67 = vector.shape_cast %66 : vector<1x1x8xf32> to vector<1x8xf32>
    %68 = vector.broadcast %67 : vector<1x8xf32> to vector<16x8xf32>
    %69 = arith.mulf %65, %68 : vector<16x8xf32>
    %70 = arith.addf %62, %69 : vector<16x8xf32>
    %c0_45 = arith.constant 0 : index
    %c0_46 = arith.constant 0 : index
    %71 = vector.load %arg3[%c0_45, %c0_46] : memref<1x8xf32, #tpu.memory_space<vmem>>, vector<1x8xf32>
    %72 = vector.broadcast %71 : vector<1x8xf32> to vector<16x8xf32>
    %73 = arith.mulf %70, %72 : vector<16x8xf32>
    %c0_47 = arith.constant 0 : index
    %c0_48 = arith.constant 0 : index
    %74 = vector.load %arg4[%c0_47, %c0_48] : memref<1x8xf32, #tpu.memory_space<vmem>>, vector<1x8xf32>
    %75 = vector.broadcast %74 : vector<1x8xf32> to vector<16x8xf32>
    %76 = arith.addf %73, %75 : vector<16x8xf32>
    %cst = arith.constant 5.000000e-01 : f32
    %77 = vector.broadcast %cst : f32 to vector<16x8xf32>
    %78 = arith.mulf %77, %76 : vector<16x8xf32>
    %cst_49 = arith.constant 4.471500e-02 : f32
    %79 = vector.broadcast %cst_49 : f32 to vector<16x8xf32>
    %80 = arith.mulf %79, %76 : vector<16x8xf32>
    %81 = arith.mulf %80, %76 : vector<16x8xf32>
    %82 = arith.mulf %81, %76 : vector<16x8xf32>
    %83 = arith.addf %76, %82 : vector<16x8xf32>
    %cst_50 = arith.constant 0.797884583 : f32
    %84 = vector.broadcast %cst_50 : f32 to vector<16x8xf32>
    %85 = arith.mulf %84, %83 : vector<16x8xf32>
    %86 = math.tanh %85 : vector<16x8xf32>
    %cst_51 = arith.constant 1.000000e+00 : f32
    %87 = vector.broadcast %cst_51 : f32 to vector<16x8xf32>
    %88 = arith.addf %87, %86 : vector<16x8xf32>
    %89 = arith.mulf %78, %88 : vector<16x8xf32>
    %90 = arith.truncf %89 : vector<16x8xf32> to vector<16x8xbf16>
    %c0_52 = arith.constant 0 : index
    %c0_53 = arith.constant 0 : index
    %91 = vector.load %arg5[%c0_52, %c0_53] : memref<16x8xbf16, #tpu.memory_space<vmem>>, vector<16x8xbf16>
    tpu.vector_store %arg5[%c0_52, %c0_53], %90 {strides = array<i32>} : memref<16x8xbf16, #tpu.memory_space<vmem>>, vector<16x8xbf16>,
    return
  }
  func.func @transform_0(%arg0: i32) -> (i32, i32, i32) {
    %c0_i32 = arith.constant 0 : i32
    %c0_i32_0 = arith.constant 0 : i32
    %c0_i32_1 = arith.constant 0 : i32
    return %c0_i32, %arg0, %c0_i32_0 : i32, i32, i32
  }
  func.func @transform_1(%arg0: i32) -> (i32, i32, i32) {
    %c0_i32 = arith.constant 0 : i32
    %c0_i32_0 = arith.constant 0 : i32
    %c0_i32_1 = arith.constant 0 : i32
    %c0_i32_2 = arith.constant 0 : i32
    return %c0_i32, %c0_i32_0, %c0_i32_1 : i32, i32, i32
  }
  func.func @transform_2(%arg0: i32) -> (i32, i32) {
    %c0_i32 = arith.constant 0 : i32
    %c0_i32_0 = arith.constant 0 : i32
    %c0_i32_1 = arith.constant 0 : i32
    return %c0_i32, %c0_i32_0 : i32, i32
  }
  func.func @transform_3(%arg0: i32) -> (i32, i32) {
    %c0_i32 = arith.constant 0 : i32
    %c0_i32_0 = arith.constant 0 : i32
    %c0_i32_1 = arith.constant 0 : i32
    return %c0_i32, %c0_i32_0 : i32, i32
  }
  func.func @transform_4(%arg0: i32) -> (i32, i32) {
    %c0_i32 = arith.constant 0 : i32
    %c0_i32_0 = arith.constant 0 : i32
    return %arg0, %c0_i32 : i32, i32
  }
}

module attributes {stable_mosaic.version = 11 : i64} {
  func.func @_matmul_kernel_fullk(%arg0: i32, %arg1: i32, %arg2: memref<16x128xbf16, #tpu.memory_space<vmem>>, %arg3: memref<128x128xbf16, #tpu.memory_space<vmem>>, %arg4: memref<1x128xf32, #tpu.memory_space<vmem>>, %arg5: memref<16x128xf32, #tpu.memory_space<vmem>>) attributes {dimension_semantics = [#tpu.dimension_semantics<parallel>, #tpu.dimension_semantics<parallel>], iteration_bounds = array<i64: 1, 1>, scalar_prefetch = 0 : i64, scratch_operands = 0 : i64, tpu.core_type = #tpu.core_type<tc>, window_params = [{transform_indices = @transform_0, window_bounds = array<i64: 16, 128>}, {transform_indices = @transform_1, window_bounds = array<i64: 128, 128>}, {transform_indices = @transform_2, window_bounds = array<i64: 1, 128>}, {transform_indices = @transform_3, window_bounds = array<i64: 16, 128>}]} {
    %c0 = arith.constant 0 : index
    %c0_0 = arith.constant 0 : index
    %0 = vector.load %arg2[%c0, %c0_0] : memref<16x128xbf16, #tpu.memory_space<vmem>>, vector<16x128xbf16>
    %c0_1 = arith.constant 0 : index
    %c0_2 = arith.constant 0 : index
    %1 = vector.load %arg3[%c0_1, %c0_2] : memref<128x128xbf16, #tpu.memory_space<vmem>>, vector<128x128xbf16>
    %cst = arith.constant dense<0.000000e+00> : vector<16x128xf32>
    %2 = tpu.matmul %0, %1, %cst {dimension_numbers = #tpu.dot_dimension_numbers<[1], [0], [0], [1], [0, 0, 1, 1], [], []>} : vector<16x128xbf16>, vector<128x128xbf16>, vector<16x128xf32> -> vector<16x128xf32>
    %c0_3 = arith.constant 0 : index
    %c0_4 = arith.constant 0 : index
    %3 = vector.load %arg4[%c0_3, %c0_4] : memref<1x128xf32, #tpu.memory_space<vmem>>, vector<1x128xf32>
    %4 = vector.broadcast %3 : vector<1x128xf32> to vector<16x128xf32>
    %5 = arith.addf %2, %4 : vector<16x128xf32>
    %c0_5 = arith.constant 0 : index
    %c0_6 = arith.constant 0 : index
    %6 = vector.load %arg5[%c0_5, %c0_6] : memref<16x128xf32, #tpu.memory_space<vmem>>, vector<16x128xf32>
    tpu.vector_store %arg5[%c0_5, %c0_6], %5 {strides = array<i32>} : memref<16x128xf32, #tpu.memory_space<vmem>>, vector<16x128xf32>,
    return
  }
  func.func @transform_0(%arg0: i32, %arg1: i32) -> (i32, i32) {
    %c0_i32 = arith.constant 0 : i32
    %c0_i32_0 = arith.constant 0 : i32
    return %arg0, %c0_i32 : i32, i32
  }
  func.func @transform_1(%arg0: i32, %arg1: i32) -> (i32, i32) {
    %c0_i32 = arith.constant 0 : i32
    %c0_i32_0 = arith.constant 0 : i32
    return %c0_i32, %arg1 : i32, i32
  }
  func.func @transform_2(%arg0: i32, %arg1: i32) -> (i32, i32) {
    %c0_i32 = arith.constant 0 : i32
    %c0_i32_0 = arith.constant 0 : i32
    return %c0_i32, %arg1 : i32, i32
  }
  func.func @transform_3(%arg0: i32, %arg1: i32) -> (i32, i32) {
    %c0_i32 = arith.constant 0 : i32
    return %arg0, %arg1 : i32, i32
  }
}

module attributes {stable_mosaic.version = 11 : i64} {
  func.func @_layernorm_kernel(%arg0: i32, %arg1: memref<16x16xf32, #tpu.memory_space<vmem>>, %arg2: memref<1x16xf32, #tpu.memory_space<vmem>>, %arg3: memref<1x16xf32, #tpu.memory_space<vmem>>, %arg4: memref<16x16xbf16, #tpu.memory_space<vmem>>) attributes {dimension_semantics = [#tpu.dimension_semantics<parallel>], iteration_bounds = array<i64: 1>, scalar_prefetch = 0 : i64, scratch_operands = 0 : i64, tpu.core_type = #tpu.core_type<tc>, window_params = [{transform_indices = @transform_0, window_bounds = array<i64: 16, 16>}, {pipeline_mode = #tpu.pipeline_mode<synchronous>, transform_indices = @transform_1, window_bounds = array<i64: 1, 16>}, {pipeline_mode = #tpu.pipeline_mode<synchronous>, transform_indices = @transform_2, window_bounds = array<i64: 1, 16>}, {transform_indices = @transform_3, window_bounds = array<i64: 16, 16>}]} {
    %c0 = arith.constant 0 : index
    %c0_0 = arith.constant 0 : index
    %0 = vector.load %arg1[%c0, %c0_0] : memref<16x16xf32, #tpu.memory_space<vmem>>, vector<16x16xf32>
    %cst = arith.constant dense<0.000000e+00> : vector<16xf32>
    %1 = vector.multi_reduction <add>, %0, %cst [1] : vector<16x16xf32> to vector<16xf32>
    %2 = vector.shape_cast %1 : vector<16xf32> to vector<16x1xf32>
    %cst_1 = arith.constant 1.600000e+01 : f32
    %3 = vector.broadcast %cst_1 : f32 to vector<16x1xf32>
    %4 = arith.divf %2, %3 : vector<16x1xf32>
    %5 = vector.broadcast %4 : vector<16x1xf32> to vector<16x16xf32>
    %6 = arith.subf %0, %5 : vector<16x16xf32>
    %7 = arith.mulf %6, %6 : vector<16x16xf32>
    %cst_2 = arith.constant dense<0.000000e+00> : vector<16xf32>
    %8 = vector.multi_reduction <add>, %7, %cst_2 [1] : vector<16x16xf32> to vector<16xf32>
    %9 = vector.shape_cast %8 : vector<16xf32> to vector<16x1xf32>
    %cst_3 = arith.constant 1.600000e+01 : f32
    %10 = vector.broadcast %cst_3 : f32 to vector<16x1xf32>
    %11 = arith.divf %9, %10 : vector<16x1xf32>
    %12 = vector.broadcast %4 : vector<16x1xf32> to vector<16x16xf32>
    %13 = arith.subf %0, %12 : vector<16x16xf32>
    %cst_4 = arith.constant 9.99999974E-6 : f32
    %14 = vector.broadcast %cst_4 : f32 to vector<16x1xf32>
    %15 = arith.addf %11, %14 : vector<16x1xf32>
    %16 = math.rsqrt %15 : vector<16x1xf32>
    %17 = vector.broadcast %16 : vector<16x1xf32> to vector<16x16xf32>
    %18 = arith.mulf %13, %17 : vector<16x16xf32>
    %c0_5 = arith.constant 0 : index
    %c0_6 = arith.constant 0 : index
    %19 = vector.load %arg2[%c0_5, %c0_6] : memref<1x16xf32, #tpu.memory_space<vmem>>, vector<1x16xf32>
    %20 = vector.broadcast %19 : vector<1x16xf32> to vector<16x16xf32>
    %21 = arith.mulf %18, %20 : vector<16x16xf32>
    %c0_7 = arith.constant 0 : index
    %c0_8 = arith.constant 0 : index
    %22 = vector.load %arg3[%c0_7, %c0_8] : memref<1x16xf32, #tpu.memory_space<vmem>>, vector<1x16xf32>
    %23 = vector.broadcast %22 : vector<1x16xf32> to vector<16x16xf32>
    %24 = arith.addf %21, %23 : vector<16x16xf32>
    %25 = arith.truncf %24 : vector<16x16xf32> to vector<16x16xbf16>
    %c0_9 = arith.constant 0 : index
    %c0_10 = arith.constant 0 : index
    %26 = vector.load %arg4[%c0_9, %c0_10] : memref<16x16xbf16, #tpu.memory_space<vmem>>, vector<16x16xbf16>
    tpu.vector_store %arg4[%c0_9, %c0_10], %25 {strides = array<i32>} : memref<16x16xbf16, #tpu.memory_space<vmem>>, vector<16x16xbf16>,
    return
  }
  func.func @transform_0(%arg0: i32) -> (i32, i32) {
    %c0_i32 = arith.constant 0 : i32
    %c0_i32_0 = arith.constant 0 : i32
    return %arg0, %c0_i32 : i32, i32
  }
  func.func @transform_1(%arg0: i32) -> (i32, i32) {
    %c0_i32 = arith.constant 0 : i32
    %c0_i32_0 = arith.constant 0 : i32
    %c0_i32_1 = arith.constant 0 : i32
    return %c0_i32, %c0_i32_0 : i32, i32
  }
  func.func @transform_2(%arg0: i32) -> (i32, i32) {
    %c0_i32 = arith.constant 0 : i32
    %c0_i32_0 = arith.constant 0 : i32
    %c0_i32_1 = arith.constant 0 : i32
    return %c0_i32, %c0_i32_0 : i32, i32
  }
  func.func @transform_3(%arg0: i32) -> (i32, i32) {
    %c0_i32 = arith.constant 0 : i32
    %c0_i32_0 = arith.constant 0 : i32
    return %arg0, %c0_i32 : i32, i32
  }
}

module attributes {stable_mosaic.version = 11 : i64} {
  func.func @_matmul_kernel_fullk(%arg0: i32, %arg1: i32, %arg2: memref<16x128xbf16, #tpu.memory_space<vmem>>, %arg3: memref<128x128xbf16, #tpu.memory_space<vmem>>, %arg4: memref<1x128xf32, #tpu.memory_space<vmem>>, %arg5: memref<16x128xbf16, #tpu.memory_space<vmem>>) attributes {dimension_semantics = [#tpu.dimension_semantics<parallel>, #tpu.dimension_semantics<parallel>], iteration_bounds = array<i64: 1, 1>, scalar_prefetch = 0 : i64, scratch_operands = 0 : i64, tpu.core_type = #tpu.core_type<tc>, window_params = [{transform_indices = @transform_0, window_bounds = array<i64: 16, 128>}, {transform_indices = @transform_1, window_bounds = array<i64: 128, 128>}, {transform_indices = @transform_2, window_bounds = array<i64: 1, 128>}, {transform_indices = @transform_3, window_bounds = array<i64: 16, 128>}]} {
    %c0 = arith.constant 0 : index
    %c0_0 = arith.constant 0 : index
    %0 = vector.load %arg2[%c0, %c0_0] : memref<16x128xbf16, #tpu.memory_space<vmem>>, vector<16x128xbf16>
    %c0_1 = arith.constant 0 : index
    %c0_2 = arith.constant 0 : index
    %1 = vector.load %arg3[%c0_1, %c0_2] : memref<128x128xbf16, #tpu.memory_space<vmem>>, vector<128x128xbf16>
    %cst = arith.constant dense<0.000000e+00> : vector<16x128xf32>
    %2 = tpu.matmul %0, %1, %cst {dimension_numbers = #tpu.dot_dimension_numbers<[1], [0], [0], [1], [0, 0, 1, 1], [], []>} : vector<16x128xbf16>, vector<128x128xbf16>, vector<16x128xf32> -> vector<16x128xf32>
    %c0_3 = arith.constant 0 : index
    %c0_4 = arith.constant 0 : index
    %3 = vector.load %arg4[%c0_3, %c0_4] : memref<1x128xf32, #tpu.memory_space<vmem>>, vector<1x128xf32>
    %4 = vector.broadcast %3 : vector<1x128xf32> to vector<16x128xf32>
    %5 = arith.addf %2, %4 : vector<16x128xf32>
    %6 = arith.truncf %5 : vector<16x128xf32> to vector<16x128xbf16>
    %c0_5 = arith.constant 0 : index
    %c0_6 = arith.constant 0 : index
    %7 = vector.load %arg5[%c0_5, %c0_6] : memref<16x128xbf16, #tpu.memory_space<vmem>>, vector<16x128xbf16>
    tpu.vector_store %arg5[%c0_5, %c0_6], %6 {strides = array<i32>} : memref<16x128xbf16, #tpu.memory_space<vmem>>, vector<16x128xbf16>,
    return
  }
  func.func @transform_0(%arg0: i32, %arg1: i32) -> (i32, i32) {
    %c0_i32 = arith.constant 0 : i32
    %c0_i32_0 = arith.constant 0 : i32
    return %arg0, %c0_i32 : i32, i32
  }
  func.func @transform_1(%arg0: i32, %arg1: i32) -> (i32, i32) {
    %c0_i32 = arith.constant 0 : i32
    %c0_i32_0 = arith.constant 0 : i32
    return %c0_i32, %arg1 : i32, i32
  }
  func.func @transform_2(%arg0: i32, %arg1: i32) -> (i32, i32) {
    %c0_i32 = arith.constant 0 : i32
    %c0_i32_0 = arith.constant 0 : i32
    return %c0_i32, %arg1 : i32, i32
  }
  func.func @transform_3(%arg0: i32, %arg1: i32) -> (i32, i32) {
    %c0_i32 = arith.constant 0 : i32
    return %arg0, %arg1 : i32, i32
  }
}

module attributes {stable_mosaic.version = 11 : i64} {
  func.func @_attention_kernel(%arg0: i32, %arg1: memref<2x4x16xbf16, #tpu.memory_space<vmem>>, %arg2: memref<2x4x16xbf16, #tpu.memory_space<vmem>>, %arg3: memref<2x4x16xbf16, #tpu.memory_space<vmem>>, %arg4: memref<2x4x4xf32, #tpu.memory_space<vmem>>, %arg5: memref<2x4x16xbf16, #tpu.memory_space<vmem>>) attributes {dimension_semantics = [#tpu.dimension_semantics<parallel>], iteration_bounds = array<i64: 1>, scalar_prefetch = 0 : i64, scratch_operands = 0 : i64, tpu.core_type = #tpu.core_type<tc>, window_params = [{transform_indices = @transform_0, window_bounds = array<i64: 2, 4, 16>}, {transform_indices = @transform_1, window_bounds = array<i64: 2, 4, 16>}, {transform_indices = @transform_2, window_bounds = array<i64: 2, 4, 16>}, {pipeline_mode = #tpu.pipeline_mode<synchronous>, transform_indices = @transform_3, window_bounds = array<i64: 2, 4, 4>}, {transform_indices = @transform_4, window_bounds = array<i64: 2, 4, 16>}]} {
    %c0 = arith.constant 0 : index
    %c0_0 = arith.constant 0 : index
    %c0_1 = arith.constant 0 : index
    %0 = vector.load %arg1[%c0, %c0_0, %c0_1] : memref<2x4x16xbf16, #tpu.memory_space<vmem>>, vector<2x4x16xbf16>
    %c0_2 = arith.constant 0 : index
    %c0_3 = arith.constant 0 : index
    %c0_4 = arith.constant 0 : index
    %1 = vector.load %arg2[%c0_2, %c0_3, %c0_4] : memref<2x4x16xbf16, #tpu.memory_space<vmem>>, vector<2x4x16xbf16>
    %c0_5 = arith.constant 0 : index
    %c0_6 = arith.constant 0 : index
    %c0_7 = arith.constant 0 : index
    %2 = vector.load %arg3[%c0_5, %c0_6, %c0_7] : memref<2x4x16xbf16, #tpu.memory_space<vmem>>, vector<2x4x16xbf16>
    %c0_8 = arith.constant 0 : index
    %c0_9 = arith.constant 0 : index
    %c0_10 = arith.constant 0 : index
    %3 = vector.load %arg4[%c0_8, %c0_9, %c0_10] : memref<2x4x4xf32, #tpu.memory_space<vmem>>, vector<2x4x4xf32>
    %4 = vector.extract_strided_slice %0 {offsets = [0, 0, 0], sizes = [2, 4, 8], strides = [1, 1, 1]} : vector<2x4x16xbf16> to vector<2x4x8xbf16>
    %5 = vector.extract_strided_slice %1 {offsets = [0, 0, 0], sizes = [2, 4, 8], strides = [1, 1, 1]} : vector<2x4x16xbf16> to vector<2x4x8xbf16>
    %6 = vector.extract_strided_slice %2 {offsets = [0, 0, 0], sizes = [2, 4, 8], strides = [1, 1, 1]} : vector<2x4x16xbf16> to vector<2x4x8xbf16>
    "tpu.trace_start"() <{level = 10 : i32, message = "bqd,bkd->bqk"}> : () -> ()
    %cst = arith.constant dense<0.000000e+00> : vector<2x4x4xf32>
    %7 = tpu.matmul %4, %5, %cst {dimension_numbers = #tpu.dot_dimension_numbers<[2], [2], [1], [1], [0, 0, 0, 1, 1, 1], [0], [0]>} : vector<2x4x8xbf16>, vector<2x4x8xbf16>, vector<2x4x4xf32> -> vector<2x4x4xf32>
    "tpu.trace_stop"() : () -> ()
    %cst_11 = arith.constant 0.707106769 : f32
    %8 = vector.broadcast %cst_11 : f32 to vector<2x4x4xf32>
    %9 = arith.mulf %7, %8 : vector<2x4x4xf32>
    %10 = vector.extract_strided_slice %3 {offsets = [0, 0, 0], sizes = [1, 4, 4], strides = [1, 1, 1]} : vector<2x4x4xf32> to vector<1x4x4xf32>
    %11 = vector.shape_cast %10 : vector<1x4x4xf32> to vector<4x4xf32>
    %12 = vector.shape_cast %11 : vector<4x4xf32> to vector<1x4x4xf32>
    %13 = vector.broadcast %12 : vector<1x4x4xf32> to vector<2x4x4xf32>
    %14 = arith.addf %9, %13 : vector<2x4x4xf32>
    %cst_12 = arith.constant dense<0xFF800000> : vector<2x4xf32>
    %15 = vector.multi_reduction <maximumf>, %14, %cst_12 [2] : vector<2x4x4xf32> to vector<2x4xf32>
    %16 = vector.shape_cast %15 : vector<2x4xf32> to vector<2x4x1xf32>
    %17 = vector.broadcast %16 : vector<2x4x1xf32> to vector<2x4x4xf32>
    %18 = arith.subf %14, %17 : vector<2x4x4xf32>
    %19 = math.exp %18 : vector<2x4x4xf32>
    %cst_13 = arith.constant dense<0.000000e+00> : vector<2x4xf32>
    %20 = vector.multi_reduction <add>, %19, %cst_13 [2] : vector<2x4x4xf32> to vector<2x4xf32>
    %21 = vector.shape_cast %20 : vector<2x4xf32> to vector<2x4x1xf32>
    %22 = tpu.reciprocal %21 {approx = true} : vector<2x4x1xf32> -> vector<2x4x1xf32>
    %23 = vector.broadcast %22 : vector<2x4x1xf32> to vector<2x4x4xf32>
    %24 = arith.mulf %19, %23 : vector<2x4x4xf32>
    %25 = arith.truncf %24 : vector<2x4x4xf32> to vector<2x4x4xbf16>
    "tpu.trace_start"() <{level = 10 : i32, message = "bqk,bkd->bqd"}> : () -> ()
    %cst_14 = arith.constant dense<0.000000e+00> : vector<2x4x8xf32>
    %26 = tpu.matmul %25, %6, %cst_14 {dimension_numbers = #tpu.dot_dimension_numbers<[2], [1], [1], [2], [0, 0, 0, 1, 1, 2], [0], [0]>} : vector<2x4x4xbf16>, vector<2x4x8xbf16>, vector<2x4x8xf32> -> vector<2x4x8xf32>
    "tpu.trace_stop"() : () -> ()
    %27 = vector.extract_strided_slice %0 {offsets = [0, 0, 8], sizes = [2, 4, 8], strides = [1, 1, 1]} : vector<2x4x16xbf16> to vector<2x4x8xbf16>
    %28 = vector.extract_strided_slice %1 {offsets = [0, 0, 8], sizes = [2, 4, 8], strides = [1, 1, 1]} : vector<2x4x16xbf16> to vector<2x4x8xbf16>
    %29 = vector.extract_strided_slice %2 {offsets = [0, 0, 8], sizes = [2, 4, 8], strides = [1, 1, 1]} : vector<2x4x16xbf16> to vector<2x4x8xbf16>
    "tpu.trace_start"() <{level = 10 : i32, message = "bqd,bkd->bqk"}> : () -> ()
    %cst_15 = arith.constant dense<0.000000e+00> : vector<2x4x4xf32>
    %30 = tpu.matmul %27, %28, %cst_15 {dimension_numbers = #tpu.dot_dimension_numbers<[2], [2], [1], [1], [0, 0, 0, 1, 1, 1], [0], [0]>} : vector<2x4x8xbf16>, vector<2x4x8xbf16>, vector<2x4x4xf32> -> vector<2x4x4xf32>
    "tpu.trace_stop"() : () -> ()
    %cst_16 = arith.constant 0.707106769 : f32
    %31 = vector.broadcast %cst_16 : f32 to vector<2x4x4xf32>
    %32 = arith.mulf %30, %31 : vector<2x4x4xf32>
    %33 = vector.extract_strided_slice %3 {offsets = [1, 0, 0], sizes = [1, 4, 4], strides = [1, 1, 1]} : vector<2x4x4xf32> to vector<1x4x4xf32>
    %34 = vector.shape_cast %33 : vector<1x4x4xf32> to vector<4x4xf32>
    %35 = vector.shape_cast %34 : vector<4x4xf32> to vector<1x4x4xf32>
    %36 = vector.broadcast %35 : vector<1x4x4xf32> to vector<2x4x4xf32>
    %37 = arith.addf %32, %36 : vector<2x4x4xf32>
    %cst_17 = arith.constant dense<0xFF800000> : vector<2x4xf32>
    %38 = vector.multi_reduction <maximumf>, %37, %cst_17 [2] : vector<2x4x4xf32> to vector<2x4xf32>
    %39 = vector.shape_cast %38 : vector<2x4xf32> to vector<2x4x1xf32>
    %40 = vector.broadcast %39 : vector<2x4x1xf32> to vector<2x4x4xf32>
    %41 = arith.subf %37, %40 : vector<2x4x4xf32>
    %42 = math.exp %41 : vector<2x4x4xf32>
    %cst_18 = arith.constant dense<0.000000e+00> : vector<2x4xf32>
    %43 = vector.multi_reduction <add>, %42, %cst_18 [2] : vector<2x4x4xf32> to vector<2x4xf32>
    %44 = vector.shape_cast %43 : vector<2x4xf32> to vector<2x4x1xf32>
    %45 = tpu.reciprocal %44 {approx = true} : vector<2x4x1xf32> -> vector<2x4x1xf32>
    %46 = vector.broadcast %45 : vector<2x4x1xf32> to vector<2x4x4xf32>
    %47 = arith.mulf %42, %46 : vector<2x4x4xf32>
    %48 = arith.truncf %47 : vector<2x4x4xf32> to vector<2x4x4xbf16>
    "tpu.trace_start"() <{level = 10 : i32, message = "bqk,bkd->bqd"}> : () -> ()
    %cst_19 = arith.constant dense<0.000000e+00> : vector<2x4x8xf32>
    %49 = tpu.matmul %48, %29, %cst_19 {dimension_numbers = #tpu.dot_dimension_numbers<[2], [1], [1], [2], [0, 0, 0, 1, 1, 2], [0], [0]>} : vector<2x4x4xbf16>, vector<2x4x8xbf16>, vector<2x4x8xf32> -> vector<2x4x8xf32>
    "tpu.trace_stop"() : () -> ()
    %50 = tpu.concatenate %26, %49 in 2 : vector<2x4x8xf32>, vector<2x4x8xf32> -> vector<2x4x16xf32>
    %51 = arith.truncf %50 : vector<2x4x16xf32> to vector<2x4x16xbf16>
    %c0_20 = arith.constant 0 : index
    %c0_21 = arith.constant 0 : index
    %c0_22 = arith.constant 0 : index
    %52 = vector.load %arg5[%c0_20, %c0_21, %c0_22] : memref<2x4x16xbf16, #tpu.memory_space<vmem>>, vector<2x4x16xbf16>
    tpu.vector_store %arg5[%c0_20, %c0_21, %c0_22], %51 {strides = array<i32>} : memref<2x4x16xbf16, #tpu.memory_space<vmem>>, vector<2x4x16xbf16>,
    return
  }
  func.func @transform_0(%arg0: i32) -> (i32, i32, i32) {
    %c0_i32 = arith.constant 0 : i32
    %c0_i32_0 = arith.constant 0 : i32
    %c0_i32_1 = arith.constant 0 : i32
    return %arg0, %c0_i32, %c0_i32_0 : i32, i32, i32
  }
  func.func @transform_1(%arg0: i32) -> (i32, i32, i32) {
    %c0_i32 = arith.constant 0 : i32
    %c0_i32_0 = arith.constant 0 : i32
    %c0_i32_1 = arith.constant 0 : i32
    return %arg0, %c0_i32, %c0_i32_0 : i32, i32, i32
  }
  func.func @transform_2(%arg0: i32) -> (i32, i32, i32) {
    %c0_i32 = arith.constant 0 : i32
    %c0_i32_0 = arith.constant 0 : i32
    %c0_i32_1 = arith.constant 0 : i32
    return %arg0, %c0_i32, %c0_i32_0 : i32, i32, i32
  }
  func.func @transform_3(%arg0: i32) -> (i32, i32, i32) {
    %c0_i32 = arith.constant 0 : i32
    %c0_i32_0 = arith.constant 0 : i32
    %c0_i32_1 = arith.constant 0 : i32
    %c0_i32_2 = arith.constant 0 : i32
    return %c0_i32, %c0_i32_0, %c0_i32_1 : i32, i32, i32
  }
  func.func @transform_4(%arg0: i32) -> (i32, i32, i32) {
    %c0_i32 = arith.constant 0 : i32
    %c0_i32_0 = arith.constant 0 : i32
    %c0_i32_1 = arith.constant 0 : i32
    return %arg0, %c0_i32, %c0_i32_0 : i32, i32, i32
  }
}

module attributes {stable_mosaic.version = 11 : i64} {
  func.func @_matmul_kernel_fullk(%arg0: i32, %arg1: i32, %arg2: memref<16x128xbf16, #tpu.memory_space<vmem>>, %arg3: memref<128x128xbf16, #tpu.memory_space<vmem>>, %arg4: memref<1x128xf32, #tpu.memory_space<vmem>>, %arg5: memref<16x128xbf16, #tpu.memory_space<vmem>>) attributes {dimension_semantics = [#tpu.dimension_semantics<parallel>, #tpu.dimension_semantics<parallel>], iteration_bounds = array<i64: 1, 1>, scalar_prefetch = 0 : i64, scratch_operands = 0 : i64, tpu.core_type = #tpu.core_type<tc>, window_params = [{transform_indices = @transform_0, window_bounds = array<i64: 16, 128>}, {transform_indices = @transform_1, window_bounds = array<i64: 128, 128>}, {transform_indices = @transform_2, window_bounds = array<i64: 1, 128>}, {transform_indices = @transform_3, window_bounds = array<i64: 16, 128>}]} {
    %c0 = arith.constant 0 : index
    %c0_0 = arith.constant 0 : index
    %0 = vector.load %arg2[%c0, %c0_0] : memref<16x128xbf16, #tpu.memory_space<vmem>>, vector<16x128xbf16>
    %c0_1 = arith.constant 0 : index
    %c0_2 = arith.constant 0 : index
    %1 = vector.load %arg3[%c0_1, %c0_2] : memref<128x128xbf16, #tpu.memory_space<vmem>>, vector<128x128xbf16>
    %cst = arith.constant dense<0.000000e+00> : vector<16x128xf32>
    %2 = tpu.matmul %0, %1, %cst {dimension_numbers = #tpu.dot_dimension_numbers<[1], [0], [0], [1], [0, 0, 1, 1], [], []>} : vector<16x128xbf16>, vector<128x128xbf16>, vector<16x128xf32> -> vector<16x128xf32>
    %c0_3 = arith.constant 0 : index
    %c0_4 = arith.constant 0 : index
    %3 = vector.load %arg4[%c0_3, %c0_4] : memref<1x128xf32, #tpu.memory_space<vmem>>, vector<1x128xf32>
    %4 = vector.broadcast %3 : vector<1x128xf32> to vector<16x128xf32>
    %5 = arith.addf %2, %4 : vector<16x128xf32>
    %cst_5 = arith.constant 5.000000e-01 : f32
    %6 = vector.broadcast %cst_5 : f32 to vector<16x128xf32>
    %7 = arith.mulf %6, %5 : vector<16x128xf32>
    %cst_6 = arith.constant 4.471500e-02 : f32
    %8 = vector.broadcast %cst_6 : f32 to vector<16x128xf32>
    %9 = arith.mulf %8, %5 : vector<16x128xf32>
    %10 = arith.mulf %9, %5 : vector<16x128xf32>
    %11 = arith.mulf %10, %5 : vector<16x128xf32>
    %12 = arith.addf %5, %11 : vector<16x128xf32>
    %cst_7 = arith.constant 0.797884583 : f32
    %13 = vector.broadcast %cst_7 : f32 to vector<16x128xf32>
    %14 = arith.mulf %13, %12 : vector<16x128xf32>
    %15 = math.tanh %14 : vector<16x128xf32>
    %cst_8 = arith.constant 1.000000e+00 : f32
    %16 = vector.broadcast %cst_8 : f32 to vector<16x128xf32>
    %17 = arith.addf %16, %15 : vector<16x128xf32>
    %18 = arith.mulf %7, %17 : vector<16x128xf32>
    %19 = arith.truncf %18 : vector<16x128xf32> to vector<16x128xbf16>
    %c0_9 = arith.constant 0 : index
    %c0_10 = arith.constant 0 : index
    %20 = vector.load %arg5[%c0_9, %c0_10] : memref<16x128xbf16, #tpu.memory_space<vmem>>, vector<16x128xbf16>
    tpu.vector_store %arg5[%c0_9, %c0_10], %19 {strides = array<i32>} : memref<16x128xbf16, #tpu.memory_space<vmem>>, vector<16x128xbf16>,
    return
  }
  func.func @transform_0(%arg0: i32, %arg1: i32) -> (i32, i32) {
    %c0_i32 = arith.constant 0 : i32
    %c0_i32_0 = arith.constant 0 : i32
    return %arg0, %c0_i32 : i32, i32
  }
  func.func @transform_1(%arg0: i32, %arg1: i32) -> (i32, i32) {
    %c0_i32 = arith.constant 0 : i32
    %c0_i32_0 = arith.constant 0 : i32
    return %c0_i32, %arg1 : i32, i32
  }
  func.func @transform_2(%arg0: i32, %arg1: i32) -> (i32, i32) {
    %c0_i32 = arith.constant 0 : i32
    %c0_i32_0 = arith.constant 0 : i32
    return %c0_i32, %arg1 : i32, i32
  }
  func.func @transform_3(%arg0: i32, %arg1: i32) -> (i32, i32) {
    %c0_i32 = arith.constant 0 : i32
    return %arg0, %arg1 : i32, i32
  }
}

</mosaic_0001>

<llo_original>
// kernel: _lambda_.55
$region0: #{_lambda_.55}
  #allocation0 [shape = 'u32[]', space=smem, size = 0x4, offset = 0x4, fixed_abs, tag = 'smem constant byte address 0x4 - core index']
  #allocation1 [shape = 'u32[144,128]{1,0:T(1,128)}', space=vmem, size = 0x12000, scoped, tag = 'internal scratch']
  %s0 = inlined_call_operand.vmem [shape: bf16[128,128], index: 0, kind: input, shape index: {}]
  %s1 = inlined_call_operand.vmem [shape: bf16[128,128], index: 1, kind: input, shape index: {}]
  %s2 = inlined_call_operand.vmem [shape: f32[1,128], index: 2, kind: input, shape index: {}]
  %s3 = inlined_call_operand.vmem [shape: bf16[128,128], index: 3, kind: output, shape index: {}]
  %s4 = sld [smem:[#allocation0]]
  $region22: #{_lambda_.55} parent=0
    _
  %s6 = ssub.s32 1, %s4
  %s7 = scalar_select 0, %s6, %s4
  // Predicated region
  $region2: #{_lambda_.55} parent=0 // pred_check
    _
  $region3: #{_lambda_.55} parent=0 // pred_check_branch
    %9 = sbr.rel (0) target = $region5
  $region4: #{_lambda_.55} parent=0 // pred_region
    _
  $region5: #{_lambda_.55} parent=0 // pred_fallthru
    _
  // Predicated region
  $region6: #{_lambda_.55} parent=0 // pred_check
    _
  $region7: #{_lambda_.55} parent=0 // pred_check_branch
    %11 = sbr.rel (0) target = $region9
  $region8: #{_lambda_.55} parent=0 // pred_region
    _
  $region9: #{_lambda_.55} parent=0 // pred_fallthru
    _
  // Predicated region
  $region10: #{_lambda_.55} parent=0 // pred_check
    _
  $region11: #{_lambda_.55} parent=0 // pred_check_branch
    %13 = sbr.rel (0) target = $region13
  $region12: #{_lambda_.55} parent=0 // pred_region
    _
  $region13: #{_lambda_.55} parent=0 // pred_fallthru
    _
  %v15 = vld [vmem:[%s0] sm:$0xf]
  %v16 = vld [vmem:[%s0 + $0x4] sm:$0xf]
  %v17 = vld [vmem:[%s0 + $0x8] sm:$0xf]
  %v18 = vld [vmem:[%s0 + $0xc] sm:$0xf]
  %v19 = vld [vmem:[%s0 + $0x10] sm:$0xf]
  %v20 = vld [vmem:[%s0 + $0x14] sm:$0xf]
  %v21 = vld [vmem:[%s0 + $0x18] sm:$0xf]
  %v22 = vld [vmem:[%s0 + $0x1c] sm:$0xf]
  %v23 = vld [vmem:[%s0 + $0x20] sm:$0xf]
  %v24 = vld [vmem:[%s0 + $0x24] sm:$0xf]
  %v25 = vld [vmem:[%s0 + $0x28] sm:$0xf]
  %v26 = vld [vmem:[%s0 + $0x2c] sm:$0xf]
  %v27 = vld [vmem:[%s0 + $0x30] sm:$0xf]
  %v28 = vld [vmem:[%s0 + $0x34] sm:$0xf]
  %v29 = vld [vmem:[%s0 + $0x38] sm:$0xf]
  %v30 = vld [vmem:[%s0 + $0x3c] sm:$0xf]
  %v31 = vld [vmem:[%s1] sm:$0xf]
  %v32 = vld [vmem:[%s1 + $0x4] sm:$0xf]
  %v33 = vld [vmem:[%s1 + $0x8] sm:$0xf]
  %v34 = vld [vmem:[%s1 + $0xc] sm:$0xf]
  %v35 = vld [vmem:[%s1 + $0x10] sm:$0xf]
  %v36 = vld [vmem:[%s1 + $0x14] sm:$0xf]
  %v37 = vld [vmem:[%s1 + $0x18] sm:$0xf]
  %v38 = vld [vmem:[%s1 + $0x1c] sm:$0xf]
  %v39 = vld [vmem:[%s1 + $0x20] sm:$0xf]
  %v40 = vld [vmem:[%s1 + $0x24] sm:$0xf]
  %v41 = vld [vmem:[%s1 + $0x28] sm:$0xf]
  %v42 = vld [vmem:[%s1 + $0x2c] sm:$0xf]
  %v43 = vld [vmem:[%s1 + $0x30] sm:$0xf]
  %v44 = vld [vmem:[%s1 + $0x34] sm:$0xf]
  %v45 = vld [vmem:[%s1 + $0x38] sm:$0xf]
  %v46 = vld [vmem:[%s1 + $0x3c] sm:$0xf]
  %v47 = vld [vmem:[%s2] sm:$0x1]
  %v49 = vlaneseq
  %v50 = vshrl.u32 %v49, 7
  %v51 = vsub.s32 0, %v50
  %v52 = vrot.slane %v47, %v51
  %v70 = vunpack.c.l.b16 %v15
  %v71 = vunpack.c.l.b16 %v16
  %v72 = vunpack.c.l.b16 %v17
  %v73 = vunpack.c.l.b16 %v18
  %v74 = vunpack.c.l.b16 %v19
  %v75 = vunpack.c.l.b16 %v20
  %v76 = vunpack.c.l.b16 %v21
  %v77 = vunpack.c.l.b16 %v22
  %v78 = vunpack.c.l.b16 %v23
  %v79 = vunpack.c.l.b16 %v24
  %v80 = vunpack.c.l.b16 %v25
  %v81 = vunpack.c.l.b16 %v26
  %v82 = vunpack.c.l.b16 %v27
  %v83 = vunpack.c.l.b16 %v28
  %v84 = vunpack.c.l.b16 %v29
  %v85 = vunpack.c.l.b16 %v30
  %v86 = vpack.c.b16 %v71, %v70
  %v87 = vpack.c.b16 %v73, %v72
  %v88 = vpack.c.b16 %v75, %v74
  %v89 = vpack.c.b16 %v77, %v76
  %v90 = vpack.c.b16 %v79, %v78
  %v91 = vpack.c.b16 %v81, %v80
  %v92 = vpack.c.b16 %v83, %v82
  %v93 = vpack.c.b16 %v85, %v84
  %v118 = vunpack.c.l.b16 %v31
  %v119 = vunpack.c.l.b16 %v32
  %v120 = vunpack.c.l.b16 %v33
  %v121 = vunpack.c.l.b16 %v34
  %v122 = vunpack.c.l.b16 %v35
  %v123 = vunpack.c.l.b16 %v36
  %v124 = vunpack.c.l.b16 %v37
  %v125 = vunpack.c.l.b16 %v38
  %v126 = vunpack.c.l.b16 %v39
  %v127 = vunpack.c.l.b16 %v40
  %v128 = vunpack.c.l.b16 %v41
  %v129 = vunpack.c.l.b16 %v42
  %v130 = vunpack.c.l.b16 %v43
  %v131 = vunpack.c.l.b16 %v44
  %v132 = vunpack.c.l.b16 %v45
  %v133 = vunpack.c.l.b16 %v46
  %v134 = vpack.c.b16 %v119, %v118
  %v135 = vpack.c.b16 %v121, %v120
  %v136 = vpack.c.b16 %v123, %v122
  %v137 = vpack.c.b16 %v125, %v124
  %v138 = vpack.c.b16 %v127, %v126
  %v139 = vpack.c.b16 %v129, %v128
  %v140 = vpack.c.b16 %v131, %v130
  %v141 = vpack.c.b16 %v133, %v132
  %150 = vmatprep.subr.bf16.mxu0 0
  %151 = vmatpush1.bf16.msra.mxu0 %v134
  %152 = vmatprep.subr.bf16.mxu0 0
  %153 = vmatpush1.bf16.msra.mxu0 %v135
  %154 = vmatprep.subr.bf16.mxu0 0
  %155 = vmatpush1.bf16.msra.mxu0 %v136
  %156 = vmatprep.subr.bf16.mxu0 0
  %157 = vmatpush1.bf16.msra.mxu0 %v137
  %158 = vmatprep.subr.bf16.mxu0 0
  %159 = vmatpush1.bf16.msra.mxu0 %v138
  %160 = vmatprep.subr.bf16.mxu0 0
  %161 = vmatpush1.bf16.msra.mxu0 %v139
  %162 = vmatprep.subr.bf16.mxu0 0
  %163 = vmatpush1.bf16.msra.mxu0 %v140
  %164 = vmatprep.subr.bf16.mxu0 0
  %165 = vmatpush1.bf16.msra.mxu0 %v141
  %166 = vmatprep.subr.bf16.mxu0 0
  %167 = vmatpush1.bf16.msra.mxu0 0
  %168 = vmatprep.subr.bf16.mxu0 0
  %169 = vmatpush1.bf16.msra.mxu0 0
  %170 = vmatprep.subr.bf16.mxu0 0
  %171 = vmatpush1.bf16.msra.mxu0 0
  %172 = vmatprep.subr.bf16.mxu0 0
  %173 = vmatpush1.bf16.msra.mxu0 0
  %174 = vmatprep.subr.bf16.mxu0 0
  %175 = vmatpush1.bf16.msra.mxu0 0
  %176 = vmatprep.subr.bf16.mxu0 0
  %177 = vmatpush1.bf16.msra.mxu0 0
  %178 = vmatprep.subr.bf16.mxu0 0
  %179 = vmatpush1.bf16.msra.mxu0 0
  %180 = vmatprep.subr.bf16.mxu0 0
  %181 = vmatpush1.bf16.msra.mxu0 0
  %182 = vmatprep.mubr.bf16.mxu0 0
  %183 = vmatmul.mubr.bf16.gmra.mrb[0].mxu0 %v86
  %v184 = vpop.f32.mrb[0].mxu0
  %v185 = vadd.f32 %v52, %v184
  %v186 = vpop.f32.mrb[0].mxu0
  %v187 = vpop.f32.mrb[0].mxu0
  %v188 = vadd.f32 %v52, %v187
  %v189 = vpop.f32.mrb[0].mxu0
  %190 = vmatprep.mubr.bf16.mxu0 0
  %191 = vmatmul.mubr.bf16.gmra.mrb[0].mxu0 %v87
  %v192 = vpop.f32.mrb[0].mxu0
  %v193 = vadd.f32 %v52, %v192
  %v194 = vpop.f32.mrb[0].mxu0
  %v195 = vpop.f32.mrb[0].mxu0
  %v196 = vadd.f32 %v52, %v195
  %v197 = vpop.f32.mrb[0].mxu0
  %198 = vmatprep.mubr.bf16.mxu0 0
  %199 = vmatmul.mubr.bf16.gmra.mrb[0].mxu0 %v88
  %v200 = vpop.f32.mrb[0].mxu0
  %v201 = vadd.f32 %v52, %v200
  %v202 = vpop.f32.mrb[0].mxu0
  %v203 = vpop.f32.mrb[0].mxu0
  %v204 = vadd.f32 %v52, %v203
  %v205 = vpop.f32.mrb[0].mxu0
  %206 = vmatprep.mubr.bf16.mxu0 0
  %207 = vmatmul.mubr.bf16.gmra.mrb[0].mxu0 %v89
  %v208 = vpop.f32.mrb[0].mxu0
  %v209 = vadd.f32 %v52, %v208
  %v210 = vpop.f32.mrb[0].mxu0
  %v211 = vpop.f32.mrb[0].mxu0
  %v212 = vadd.f32 %v52, %v211
  %v213 = vpop.f32.mrb[0].mxu0
  %214 = vmatprep.mubr.bf16.mxu0 0
  %215 = vmatmul.mubr.bf16.gmra.mrb[0].mxu0 %v90
  %v216 = vpop.f32.mrb[0].mxu0
  %v217 = vadd.f32 %v52, %v216
  %v218 = vpop.f32.mrb[0].mxu0
  %v219 = vpop.f32.mrb[0].mxu0
  %v220 = vadd.f32 %v52, %v219
  %v221 = vpop.f32.mrb[0].mxu0
  %222 = vmatprep.mubr.bf16.mxu0 0
  %223 = vmatmul.mubr.bf16.gmra.mrb[0].mxu0 %v91
  %v224 = vpop.f32.mrb[0].mxu0
  %v225 = vadd.f32 %v52, %v224
  %v226 = vpop.f32.mrb[0].mxu0
  %v227 = vpop.f32.mrb[0].mxu0
  %v228 = vadd.f32 %v52, %v227
  %v229 = vpop.f32.mrb[0].mxu0
  %230 = vmatprep.mubr.bf16.mxu0 0
  %231 = vmatmul.mubr.bf16.gmra.mrb[0].mxu0 %v92
  %v232 = vpop.f32.mrb[0].mxu0
  %v233 = vadd.f32 %v52, %v232
  %v234 = vpop.f32.mrb[0].mxu0
  %v235 = vpop.f32.mrb[0].mxu0
  %v236 = vadd.f32 %v52, %v235
  %v237 = vpop.f32.mrb[0].mxu0
  %238 = vmatprep.mubr.bf16.mxu0 0
  %239 = vmatmul.mubr.bf16.gmra.mrb[0].mxu0 %v93
  %v240 = vpop.f32.mrb[0].mxu0
  %v241 = vadd.f32 %v52, %v240
  %v242 = vpop.f32.mrb[0].mxu0
  %v243 = vpop.f32.mrb[0].mxu0
  %v244 = vadd.f32 %v52, %v243
  %v245 = vpop.f32.mrb[0].mxu0
  %246 = vdwg.mxu0
  %v247 = vmul.f32 %v185, 0.5
  %v248 = vmul.f32 %v188, 0.5
  %v249 = vmul.f32 %v193, 0.5
  %v250 = vmul.f32 %v196, 0.5
  %v251 = vmul.f32 %v201, 0.5
  %v252 = vmul.f32 %v204, 0.5
  %v253 = vmul.f32 %v209, 0.5
  %v254 = vmul.f32 %v212, 0.5
  %v255 = vmul.f32 %v217, 0.5
  %v256 = vmul.f32 %v220, 0.5
  %v257 = vmul.f32 %v225, 0.5
  %v258 = vmul.f32 %v228, 0.5
  %v259 = vmul.f32 %v233, 0.5
  %v260 = vmul.f32 %v236, 0.5
  %v261 = vmul.f32 %v241, 0.5
  %v262 = vmul.f32 %v244, 0.5
  %v263 = vmul.f32 %v185, 0.044715
  %v264 = vmul.f32 %v188, 0.044715
  %v265 = vmul.f32 %v193, 0.044715
  %v266 = vmul.f32 %v196, 0.044715
  %v267 = vmul.f32 %v201, 0.044715
  %v268 = vmul.f32 %v204, 0.044715
  %v269 = vmul.f32 %v209, 0.044715
  %v270 = vmul.f32 %v212, 0.044715
  %v271 = vmul.f32 %v217, 0.044715
  %v272 = vmul.f32 %v220, 0.044715
  %v273 = vmul.f32 %v225, 0.044715
  %v274 = vmul.f32 %v228, 0.044715
  %v275 = vmul.f32 %v233, 0.044715
  %v276 = vmul.f32 %v236, 0.044715
  %v277 = vmul.f32 %v241, 0.044715
  %v278 = vmul.f32 %v244, 0.044715
  %v279 = vmul.f32 %v263, %v185
  %v280 = vmul.f32 %v264, %v188
  %v281 = vmul.f32 %v265, %v193
  %v282 = vmul.f32 %v266, %v196
  %v283 = vmul.f32 %v267, %v201
  %v284 = vmul.f32 %v268, %v204
  %v285 = vmul.f32 %v269, %v209
  %v286 = vmul.f32 %v270, %v212
  %v287 = vmul.f32 %v271, %v217
  %v288 = vmul.f32 %v272, %v220
  %v289 = vmul.f32 %v273, %v225
  %v290 = vmul.f32 %v274, %v228
  %v291 = vmul.f32 %v275, %v233
  %v292 = vmul.f32 %v276, %v236
  %v293 = vmul.f32 %v277, %v241
  %v294 = vmul.f32 %v278, %v244
  %v295 = vmul.f32 %v279, %v185
  %v296 = vmul.f32 %v280, %v188
  %v297 = vmul.f32 %v281, %v193
  %v298 = vmul.f32 %v282, %v196
  %v299 = vmul.f32 %v283, %v201
  %v300 = vmul.f32 %v284, %v204
  %v301 = vmul.f32 %v285, %v209
  %v302 = vmul.f32 %v286, %v212
  %v303 = vmul.f32 %v287, %v217
  %v304 = vmul.f32 %v288, %v220
  %v305 = vmul.f32 %v289, %v225
  %v306 = vmul.f32 %v290, %v228
  %v307 = vmul.f32 %v291, %v233
  %v308 = vmul.f32 %v292, %v236
  %v309 = vmul.f32 %v293, %v241
  %v310 = vmul.f32 %v294, %v244
  %v311 = vadd.f32 %v185, %v295
  %v312 = vadd.f32 %v188, %v296
  %v313 = vadd.f32 %v193, %v297
  %v314 = vadd.f32 %v196, %v298
  %v315 = vadd.f32 %v201, %v299
  %v316 = vadd.f32 %v204, %v300
  %v317 = vadd.f32 %v209, %v301
  %v318 = vadd.f32 %v212, %v302
  %v319 = vadd.f32 %v217, %v303
  %v320 = vadd.f32 %v220, %v304
  %v321 = vadd.f32 %v225, %v305
  %v322 = vadd.f32 %v228, %v306
  %v323 = vadd.f32 %v233, %v307
  %v324 = vadd.f32 %v236, %v308
  %v325 = vadd.f32 %v241, %v309
  %v326 = vadd.f32 %v244, %v310
  %v327 = vmul.f32 %v311, 0.7978846
  %v328 = vmul.f32 %v312, 0.7978846
  %v329 = vmul.f32 %v313, 0.7978846
  %v330 = vmul.f32 %v314, 0.7978846
  %v331 = vmul.f32 %v315, 0.7978846
  %v332 = vmul.f32 %v316, 0.7978846
  %v333 = vmul.f32 %v317, 0.7978846
  %v334 = vmul.f32 %v318, 0.7978846
  %v335 = vmul.f32 %v319, 0.7978846
  %v336 = vmul.f32 %v320, 0.7978846
  %v337 = vmul.f32 %v321, 0.7978846
  %v338 = vmul.f32 %v322, 0.7978846
  %v339 = vmul.f32 %v323, 0.7978846
  %v340 = vmul.f32 %v324, 0.7978846
  %v341 = vmul.f32 %v325, 0.7978846
  %v342 = vmul.f32 %v326, 0.7978846
  %v343 = vtanh.pop %v327
  %v344 = vtanh.pop %v328
  %v345 = vtanh.pop %v329
  %v346 = vtanh.pop %v330
  %v347 = vtanh.pop %v331
  %v348 = vtanh.pop %v332
  %v349 = vtanh.pop %v333
  %v350 = vtanh.pop %v334
  %v351 = vtanh.pop %v335
  %v352 = vtanh.pop %v336
  %v353 = vtanh.pop %v337
  %v354 = vtanh.pop %v338
  %v355 = vtanh.pop %v339
  %v356 = vtanh.pop %v340
  %v357 = vtanh.pop %v341
  %v358 = vtanh.pop %v342
  %v359 = vadd.f32 %v343, 1.0
  %v360 = vadd.f32 %v344, 1.0
  %v361 = vadd.f32 %v345, 1.0
  %v362 = vadd.f32 %v346, 1.0
  %v363 = vadd.f32 %v347, 1.0
  %v364 = vadd.f32 %v348, 1.0
  %v365 = vadd.f32 %v349, 1.0
  %v366 = vadd.f32 %v350, 1.0
  %v367 = vadd.f32 %v351, 1.0
  %v368 = vadd.f32 %v352, 1.0
  %v369 = vadd.f32 %v353, 1.0
  %v370 = vadd.f32 %v354, 1.0
  %v371 = vadd.f32 %v355, 1.0
  %v372 = vadd.f32 %v356, 1.0
  %v373 = vadd.f32 %v357, 1.0
  %v374 = vadd.f32 %v358, 1.0
  %v375 = vmul.f32 %v247, %v359
  %v376 = vmul.f32 %v248, %v360
  %v377 = vmul.f32 %v249, %v361
  %v378 = vmul.f32 %v250, %v362
  %v379 = vmul.f32 %v251, %v363
  %v380 = vmul.f32 %v252, %v364
  %v381 = vmul.f32 %v253, %v365
  %v382 = vmul.f32 %v254, %v366
  %v383 = vmul.f32 %v255, %v367
  %v384 = vmul.f32 %v256, %v368
  %v385 = vmul.f32 %v257, %v369
  %v386 = vmul.f32 %v258, %v370
  %v387 = vmul.f32 %v259, %v371
  %v388 = vmul.f32 %v260, %v372
  %v389 = vmul.f32 %v261, %v373
  %v390 = vmul.f32 %v262, %v374
  %v391 = vpack.c.bf16 %v376, %v375
  %v392 = vpack.c.bf16 %v378, %v377
  %v393 = vpack.c.bf16 %v380, %v379
  %v394 = vpack.c.bf16 %v382, %v381
  %v395 = vpack.c.bf16 %v384, %v383
  %v396 = vpack.c.bf16 %v386, %v385
  %v397 = vpack.c.bf16 %v388, %v387
  %v398 = vpack.c.bf16 %v390, %v389
  %v407 = vunpack.c.l.b16 %v391
  %v408 = vunpack.c.h.b16 %v391
  %v409 = vunpack.c.l.b16 %v392
  %v410 = vunpack.c.h.b16 %v392
  %v411 = vunpack.c.l.b16 %v393
  %v412 = vunpack.c.h.b16 %v393
  %v413 = vunpack.c.l.b16 %v394
  %v414 = vunpack.c.h.b16 %v394
  %v415 = vunpack.c.l.b16 %v395
  %v416 = vunpack.c.h.b16 %v395
  %v417 = vunpack.c.l.b16 %v396
  %v418 = vunpack.c.h.b16 %v396
  %v419 = vunpack.c.l.b16 %v397
  %v420 = vunpack.c.h.b16 %v397
  %v421 = vunpack.c.l.b16 %v398
  %v422 = vunpack.c.h.b16 %v398
  %v423 = vpack.c.b16 %v407, %v407
  %v424 = vpack.c.b16 %v408, %v408
  %v425 = vpack.c.b16 %v409, %v409
  %v426 = vpack.c.b16 %v410, %v410
  %v427 = vpack.c.b16 %v411, %v411
  %v428 = vpack.c.b16 %v412, %v412
  %v429 = vpack.c.b16 %v413, %v413
  %v430 = vpack.c.b16 %v414, %v414
  %v431 = vpack.c.b16 %v415, %v415
  %v432 = vpack.c.b16 %v416, %v416
  %v433 = vpack.c.b16 %v417, %v417
  %v434 = vpack.c.b16 %v418, %v418
  %v435 = vpack.c.b16 %v419, %v419
  %v436 = vpack.c.b16 %v420, %v420
  %v437 = vpack.c.b16 %v421, %v421
  %v438 = vpack.c.b16 %v422, %v422
  %455 = vst [vmem:[%s3] sm:$0xf] %v423
  %456 = vst [vmem:[%s3 + $0x4] sm:$0xf] %v424
  %457 = vst [vmem:[%s3 + $0x8] sm:$0xf] %v425
  %458 = vst [vmem:[%s3 + $0xc] sm:$0xf] %v426
  %459 = vst [vmem:[%s3 + $0x10] sm:$0xf] %v427
  %460 = vst [vmem:[%s3 + $0x14] sm:$0xf] %v428
  %461 = vst [vmem:[%s3 + $0x18] sm:$0xf] %v429
  %462 = vst [vmem:[%s3 + $0x1c] sm:$0xf] %v430
  %463 = vst [vmem:[%s3 + $0x20] sm:$0xf] %v431
  %464 = vst [vmem:[%s3 + $0x24] sm:$0xf] %v432
  %465 = vst [vmem:[%s3 + $0x28] sm:$0xf] %v433
  %466 = vst [vmem:[%s3 + $0x2c] sm:$0xf] %v434
  %467 = vst [vmem:[%s3 + $0x30] sm:$0xf] %v435
  %468 = vst [vmem:[%s3 + $0x34] sm:$0xf] %v436
  %469 = vst [vmem:[%s3 + $0x38] sm:$0xf] %v437
  %470 = vst [vmem:[%s3 + $0x3c] sm:$0xf] %v438
  // Predicated region
  $region14: #{_lambda_.55} parent=0 // pred_check
    _
  $region15: #{_lambda_.55} parent=0 // pred_check_branch
    %472 = sbr.rel (0) target = $region17
  $region16: #{_lambda_.55} parent=0 // pred_region
    _
  $region17: #{_lambda_.55} parent=0 // pred_fallthru
    _
  // Predicated region
  $region18: #{_lambda_.55} parent=0 // pred_check
    _
  $region19: #{_lambda_.55} parent=0 // pred_check_branch
    %474 = sbr.rel (0) target = $region21
  $region20: #{_lambda_.55} parent=0 // pred_region
    _
  $region21: #{_lambda_.55} parent=0 // pred_fallthru
    _

// kernel: _lambda_.56
$region0: #{_lambda_.56}
  #allocation0 [shape = 'u32[]', space=smem, size = 0x4, offset = 0x4, fixed_abs, tag = 'smem constant byte address 0x4 - core index']
  #allocation1 [shape = 'u32[144,128]{1,0:T(1,128)}', space=vmem, size = 0x12000, scoped, tag = 'internal scratch']
  %s0 = inlined_call_operand.vmem [shape: bf16[128,128], index: 0, kind: input, shape index: {}]
  %s1 = inlined_call_operand.vmem [shape: bf16[128,128], index: 1, kind: input, shape index: {}]
  %s2 = inlined_call_operand.vmem [shape: f32[1,128], index: 2, kind: input, shape index: {}]
  %s3 = inlined_call_operand.vmem [shape: f32[128,128], index: 3, kind: output, shape index: {}]
  %s4 = sld [smem:[#allocation0]]
  $region22: #{_lambda_.56} parent=0
    _
  %s6 = ssub.s32 1, %s4
  %s7 = scalar_select 0, %s6, %s4
  // Predicated region
  $region2: #{_lambda_.56} parent=0 // pred_check
    _
  $region3: #{_lambda_.56} parent=0 // pred_check_branch
    %9 = sbr.rel (0) target = $region5
  $region4: #{_lambda_.56} parent=0 // pred_region
    _
  $region5: #{_lambda_.56} parent=0 // pred_fallthru
    _
  // Predicated region
  $region6: #{_lambda_.56} parent=0 // pred_check
    _
  $region7: #{_lambda_.56} parent=0 // pred_check_branch
    %11 = sbr.rel (0) target = $region9
  $region8: #{_lambda_.56} parent=0 // pred_region
    _
  $region9: #{_lambda_.56} parent=0 // pred_fallthru
    _
  // Predicated region
  $region10: #{_lambda_.56} parent=0 // pred_check
    _
  $region11: #{_lambda_.56} parent=0 // pred_check_branch
    %13 = sbr.rel (0) target = $region13
  $region12: #{_lambda_.56} parent=0 // pred_region
    _
  $region13: #{_lambda_.56} parent=0 // pred_fallthru
    _
  %v15 = vld [vmem:[%s0] sm:$0xf]
  %v16 = vld [vmem:[%s0 + $0x4] sm:$0xf]
  %v17 = vld [vmem:[%s0 + $0x8] sm:$0xf]
  %v18 = vld [vmem:[%s0 + $0xc] sm:$0xf]
  %v19 = vld [vmem:[%s0 + $0x10] sm:$0xf]
  %v20 = vld [vmem:[%s0 + $0x14] sm:$0xf]
  %v21 = vld [vmem:[%s0 + $0x18] sm:$0xf]
  %v22 = vld [vmem:[%s0 + $0x1c] sm:$0xf]
  %v23 = vld [vmem:[%s0 + $0x20] sm:$0xf]
  %v24 = vld [vmem:[%s0 + $0x24] sm:$0xf]
  %v25 = vld [vmem:[%s0 + $0x28] sm:$0xf]
  %v26 = vld [vmem:[%s0 + $0x2c] sm:$0xf]
  %v27 = vld [vmem:[%s0 + $0x30] sm:$0xf]
  %v28 = vld [vmem:[%s0 + $0x34] sm:$0xf]
  %v29 = vld [vmem:[%s0 + $0x38] sm:$0xf]
  %v30 = vld [vmem:[%s0 + $0x3c] sm:$0xf]
  %v31 = vld [vmem:[%s1] sm:$0xf]
  %v32 = vld [vmem:[%s1 + $0x4] sm:$0xf]
  %v33 = vld [vmem:[%s1 + $0x8] sm:$0xf]
  %v34 = vld [vmem:[%s1 + $0xc] sm:$0xf]
  %v35 = vld [vmem:[%s1 + $0x10] sm:$0xf]
  %v36 = vld [vmem:[%s1 + $0x14] sm:$0xf]
  %v37 = vld [vmem:[%s1 + $0x18] sm:$0xf]
  %v38 = vld [vmem:[%s1 + $0x1c] sm:$0xf]
  %v39 = vld [vmem:[%s1 + $0x20] sm:$0xf]
  %v40 = vld [vmem:[%s1 + $0x24] sm:$0xf]
  %v41 = vld [vmem:[%s1 + $0x28] sm:$0xf]
  %v42 = vld [vmem:[%s1 + $0x2c] sm:$0xf]
  %v43 = vld [vmem:[%s1 + $0x30] sm:$0xf]
  %v44 = vld [vmem:[%s1 + $0x34] sm:$0xf]
  %v45 = vld [vmem:[%s1 + $0x38] sm:$0xf]
  %v46 = vld [vmem:[%s1 + $0x3c] sm:$0xf]
  %v47 = vld [vmem:[%s2] sm:$0x1]
  %v49 = vlaneseq
  %v50 = vshrl.u32 %v49, 7
  %v51 = vsub.s32 0, %v50
  %v52 = vrot.slane %v47, %v51
  %v70 = vunpack.c.l.b16 %v15
  %v71 = vunpack.c.l.b16 %v16
  %v72 = vunpack.c.l.b16 %v17
  %v73 = vunpack.c.l.b16 %v18
  %v74 = vunpack.c.l.b16 %v19
  %v75 = vunpack.c.l.b16 %v20
  %v76 = vunpack.c.l.b16 %v21
  %v77 = vunpack.c.l.b16 %v22
  %v78 = vunpack.c.l.b16 %v23
  %v79 = vunpack.c.l.b16 %v24
  %v80 = vunpack.c.l.b16 %v25
  %v81 = vunpack.c.l.b16 %v26
  %v82 = vunpack.c.l.b16 %v27
  %v83 = vunpack.c.l.b16 %v28
  %v84 = vunpack.c.l.b16 %v29
  %v85 = vunpack.c.l.b16 %v30
  %v86 = vpack.c.b16 %v71, %v70
  %v87 = vpack.c.b16 %v73, %v72
  %v88 = vpack.c.b16 %v75, %v74
  %v89 = vpack.c.b16 %v77, %v76
  %v90 = vpack.c.b16 %v79, %v78
  %v91 = vpack.c.b16 %v81, %v80
  %v92 = vpack.c.b16 %v83, %v82
  %v93 = vpack.c.b16 %v85, %v84
  %v118 = vunpack.c.l.b16 %v31
  %v119 = vunpack.c.l.b16 %v32
  %v120 = vunpack.c.l.b16 %v33
  %v121 = vunpack.c.l.b16 %v34
  %v122 = vunpack.c.l.b16 %v35
  %v123 = vunpack.c.l.b16 %v36
  %v124 = vunpack.c.l.b16 %v37
  %v125 = vunpack.c.l.b16 %v38
  %v126 = vunpack.c.l.b16 %v39
  %v127 = vunpack.c.l.b16 %v40
  %v128 = vunpack.c.l.b16 %v41
  %v129 = vunpack.c.l.b16 %v42
  %v130 = vunpack.c.l.b16 %v43
  %v131 = vunpack.c.l.b16 %v44
  %v132 = vunpack.c.l.b16 %v45
  %v133 = vunpack.c.l.b16 %v46
  %v134 = vpack.c.b16 %v119, %v118
  %v135 = vpack.c.b16 %v121, %v120
  %v136 = vpack.c.b16 %v123, %v122
  %v137 = vpack.c.b16 %v125, %v124
  %v138 = vpack.c.b16 %v127, %v126
  %v139 = vpack.c.b16 %v129, %v128
  %v140 = vpack.c.b16 %v131, %v130
  %v141 = vpack.c.b16 %v133, %v132
  %150 = vmatprep.subr.bf16.mxu0 0
  %151 = vmatpush1.bf16.msra.mxu0 %v134
  %152 = vmatprep.subr.bf16.mxu0 0
  %153 = vmatpush1.bf16.msra.mxu0 %v135
  %154 = vmatprep.subr.bf16.mxu0 0
  %155 = vmatpush1.bf16.msra.mxu0 %v136
  %156 = vmatprep.subr.bf16.mxu0 0
  %157 = vmatpush1.bf16.msra.mxu0 %v137
  %158 = vmatprep.subr.bf16.mxu0 0
  %159 = vmatpush1.bf16.msra.mxu0 %v138
  %160 = vmatprep.subr.bf16.mxu0 0
  %161 = vmatpush1.bf16.msra.mxu0 %v139
  %162 = vmatprep.subr.bf16.mxu0 0
  %163 = vmatpush1.bf16.msra.mxu0 %v140
  %164 = vmatprep.subr.bf16.mxu0 0
  %165 = vmatpush1.bf16.msra.mxu0 %v141
  %166 = vmatprep.subr.bf16.mxu0 0
  %167 = vmatpush1.bf16.msra.mxu0 0
  %168 = vmatprep.subr.bf16.mxu0 0
  %169 = vmatpush1.bf16.msra.mxu0 0
  %170 = vmatprep.subr.bf16.mxu0 0
  %171 = vmatpush1.bf16.msra.mxu0 0
  %172 = vmatprep.subr.bf16.mxu0 0
  %173 = vmatpush1.bf16.msra.mxu0 0
  %174 = vmatprep.subr.bf16.mxu0 0
  %175 = vmatpush1.bf16.msra.mxu0 0
  %176 = vmatprep.subr.bf16.mxu0 0
  %177 = vmatpush1.bf16.msra.mxu0 0
  %178 = vmatprep.subr.bf16.mxu0 0
  %179 = vmatpush1.bf16.msra.mxu0 0
  %180 = vmatprep.subr.bf16.mxu0 0
  %181 = vmatpush1.bf16.msra.mxu0 0
  %182 = vmatprep.mubr.bf16.mxu0 0
  %183 = vmatmul.mubr.bf16.gmra.mrb[0].mxu0 %v86
  %v184 = vpop.f32.mrb[0].mxu0
  %v185 = vadd.f32 %v52, %v184
  %v186 = vpop.f32.mrb[0].mxu0
  %v187 = vpop.f32.mrb[0].mxu0
  %v188 = vadd.f32 %v52, %v187
  %v189 = vpop.f32.mrb[0].mxu0
  %190 = vmatprep.mubr.bf16.mxu0 0
  %191 = vmatmul.mubr.bf16.gmra.mrb[0].mxu0 %v87
  %v192 = vpop.f32.mrb[0].mxu0
  %v193 = vadd.f32 %v52, %v192
  %v194 = vpop.f32.mrb[0].mxu0
  %v195 = vpop.f32.mrb[0].mxu0
  %v196 = vadd.f32 %v52, %v195
  %v197 = vpop.f32.mrb[0].mxu0
  %198 = vmatprep.mubr.bf16.mxu0 0
  %199 = vmatmul.mubr.bf16.gmra.mrb[0].mxu0 %v88
  %v200 = vpop.f32.mrb[0].mxu0
  %v201 = vadd.f32 %v52, %v200
  %v202 = vpop.f32.mrb[0].mxu0
  %v203 = vpop.f32.mrb[0].mxu0
  %v204 = vadd.f32 %v52, %v203
  %v205 = vpop.f32.mrb[0].mxu0
  %206 = vmatprep.mubr.bf16.mxu0 0
  %207 = vmatmul.mubr.bf16.gmra.mrb[0].mxu0 %v89
  %v208 = vpop.f32.mrb[0].mxu0
  %v209 = vadd.f32 %v52, %v208
  %v210 = vpop.f32.mrb[0].mxu0
  %v211 = vpop.f32.mrb[0].mxu0
  %v212 = vadd.f32 %v52, %v211
  %v213 = vpop.f32.mrb[0].mxu0
  %214 = vmatprep.mubr.bf16.mxu0 0
  %215 = vmatmul.mubr.bf16.gmra.mrb[0].mxu0 %v90
  %v216 = vpop.f32.mrb[0].mxu0
  %v217 = vadd.f32 %v52, %v216
  %v218 = vpop.f32.mrb[0].mxu0
  %v219 = vpop.f32.mrb[0].mxu0
  %v220 = vadd.f32 %v52, %v219
  %v221 = vpop.f32.mrb[0].mxu0
  %222 = vmatprep.mubr.bf16.mxu0 0
  %223 = vmatmul.mubr.bf16.gmra.mrb[0].mxu0 %v91
  %v224 = vpop.f32.mrb[0].mxu0
  %v225 = vadd.f32 %v52, %v224
  %v226 = vpop.f32.mrb[0].mxu0
  %v227 = vpop.f32.mrb[0].mxu0
  %v228 = vadd.f32 %v52, %v227
  %v229 = vpop.f32.mrb[0].mxu0
  %230 = vmatprep.mubr.bf16.mxu0 0
  %231 = vmatmul.mubr.bf16.gmra.mrb[0].mxu0 %v92
  %v232 = vpop.f32.mrb[0].mxu0
  %v233 = vadd.f32 %v52, %v232
  %v234 = vpop.f32.mrb[0].mxu0
  %v235 = vpop.f32.mrb[0].mxu0
  %v236 = vadd.f32 %v52, %v235
  %v237 = vpop.f32.mrb[0].mxu0
  %238 = vmatprep.mubr.bf16.mxu0 0
  %239 = vmatmul.mubr.bf16.gmra.mrb[0].mxu0 %v93
  %v240 = vpop.f32.mrb[0].mxu0
  %v241 = vadd.f32 %v52, %v240
  %v242 = vpop.f32.mrb[0].mxu0
  %v243 = vpop.f32.mrb[0].mxu0
  %v244 = vadd.f32 %v52, %v243
  %v245 = vpop.f32.mrb[0].mxu0
  %246 = vdwg.mxu0
  %v247 = vmul.f32 %v185, 0.5
  %v248 = vmul.f32 %v188, 0.5
  %v249 = vmul.f32 %v193, 0.5
  %v250 = vmul.f32 %v196, 0.5
  %v251 = vmul.f32 %v201, 0.5
  %v252 = vmul.f32 %v204, 0.5
  %v253 = vmul.f32 %v209, 0.5
  %v254 = vmul.f32 %v212, 0.5
  %v255 = vmul.f32 %v217, 0.5
  %v256 = vmul.f32 %v220, 0.5
  %v257 = vmul.f32 %v225, 0.5
  %v258 = vmul.f32 %v228, 0.5
  %v259 = vmul.f32 %v233, 0.5
  %v260 = vmul.f32 %v236, 0.5
  %v261 = vmul.f32 %v241, 0.5
  %v262 = vmul.f32 %v244, 0.5
  %v263 = vmul.f32 %v185, 0.044715
  %v264 = vmul.f32 %v188, 0.044715
  %v265 = vmul.f32 %v193, 0.044715
  %v266 = vmul.f32 %v196, 0.044715
  %v267 = vmul.f32 %v201, 0.044715
  %v268 = vmul.f32 %v204, 0.044715
  %v269 = vmul.f32 %v209, 0.044715
  %v270 = vmul.f32 %v212, 0.044715
  %v271 = vmul.f32 %v217, 0.044715
  %v272 = vmul.f32 %v220, 0.044715
  %v273 = vmul.f32 %v225, 0.044715
  %v274 = vmul.f32 %v228, 0.044715
  %v275 = vmul.f32 %v233, 0.044715
  %v276 = vmul.f32 %v236, 0.044715
  %v277 = vmul.f32 %v241, 0.044715
  %v278 = vmul.f32 %v244, 0.044715
  %v279 = vmul.f32 %v263, %v185
  %v280 = vmul.f32 %v264, %v188
  %v281 = vmul.f32 %v265, %v193
  %v282 = vmul.f32 %v266, %v196
  %v283 = vmul.f32 %v267, %v201
  %v284 = vmul.f32 %v268, %v204
  %v285 = vmul.f32 %v269, %v209
  %v286 = vmul.f32 %v270, %v212
  %v287 = vmul.f32 %v271, %v217
  %v288 = vmul.f32 %v272, %v220
  %v289 = vmul.f32 %v273, %v225
  %v290 = vmul.f32 %v274, %v228
  %v291 = vmul.f32 %v275, %v233
  %v292 = vmul.f32 %v276, %v236
  %v293 = vmul.f32 %v277, %v241
  %v294 = vmul.f32 %v278, %v244
  %v295 = vmul.f32 %v279, %v185
  %v296 = vmul.f32 %v280, %v188
  %v297 = vmul.f32 %v281, %v193
  %v298 = vmul.f32 %v282, %v196
  %v299 = vmul.f32 %v283, %v201
  %v300 = vmul.f32 %v284, %v204
  %v301 = vmul.f32 %v285, %v209
  %v302 = vmul.f32 %v286, %v212
  %v303 = vmul.f32 %v287, %v217
  %v304 = vmul.f32 %v288, %v220
  %v305 = vmul.f32 %v289, %v225
  %v306 = vmul.f32 %v290, %v228
  %v307 = vmul.f32 %v291, %v233
  %v308 = vmul.f32 %v292, %v236
  %v309 = vmul.f32 %v293, %v241
  %v310 = vmul.f32 %v294, %v244
  %v311 = vadd.f32 %v185, %v295
  %v312 = vadd.f32 %v188, %v296
  %v313 = vadd.f32 %v193, %v297
  %v314 = vadd.f32 %v196, %v298
  %v315 = vadd.f32 %v201, %v299
  %v316 = vadd.f32 %v204, %v300
  %v317 = vadd.f32 %v209, %v301
  %v318 = vadd.f32 %v212, %v302
  %v319 = vadd.f32 %v217, %v303
  %v320 = vadd.f32 %v220, %v304
  %v321 = vadd.f32 %v225, %v305
  %v322 = vadd.f32 %v228, %v306
  %v323 = vadd.f32 %v233, %v307
  %v324 = vadd.f32 %v236, %v308
  %v325 = vadd.f32 %v241, %v309
  %v326 = vadd.f32 %v244, %v310
  %v327 = vmul.f32 %v311, 0.7978846
  %v328 = vmul.f32 %v312, 0.7978846
  %v329 = vmul.f32 %v313, 0.7978846
  %v330 = vmul.f32 %v314, 0.7978846
  %v331 = vmul.f32 %v315, 0.7978846
  %v332 = vmul.f32 %v316, 0.7978846
  %v333 = vmul.f32 %v317, 0.7978846
  %v334 = vmul.f32 %v318, 0.7978846
  %v335 = vmul.f32 %v319, 0.7978846
  %v336 = vmul.f32 %v320, 0.7978846
  %v337 = vmul.f32 %v321, 0.7978846
  %v338 = vmul.f32 %v322, 0.7978846
  %v339 = vmul.f32 %v323, 0.7978846
  %v340 = vmul.f32 %v324, 0.7978846
  %v341 = vmul.f32 %v325, 0.7978846
  %v342 = vmul.f32 %v326, 0.7978846
  %v343 = vtanh.pop %v327
  %v344 = vtanh.pop %v328
  %v345 = vtanh.pop %v329
  %v346 = vtanh.pop %v330
  %v347 = vtanh.pop %v331
  %v348 = vtanh.pop %v332
  %v349 = vtanh.pop %v333
  %v350 = vtanh.pop %v334
  %v351 = vtanh.pop %v335
  %v352 = vtanh.pop %v336
  %v353 = vtanh.pop %v337
  %v354 = vtanh.pop %v338
  %v355 = vtanh.pop %v339
  %v356 = vtanh.pop %v340
  %v357 = vtanh.pop %v341
  %v358 = vtanh.pop %v342
  %v359 = vadd.f32 %v343, 1.0
  %v360 = vadd.f32 %v344, 1.0
  %v361 = vadd.f32 %v345, 1.0
  %v362 = vadd.f32 %v346, 1.0
  %v363 = vadd.f32 %v347, 1.0
  %v364 = vadd.f32 %v348, 1.0
  %v365 = vadd.f32 %v349, 1.0
  %v366 = vadd.f32 %v350, 1.0
  %v367 = vadd.f32 %v351, 1.0
  %v368 = vadd.f32 %v352, 1.0
  %v369 = vadd.f32 %v353, 1.0
  %v370 = vadd.f32 %v354, 1.0
  %v371 = vadd.f32 %v355, 1.0
  %v372 = vadd.f32 %v356, 1.0
  %v373 = vadd.f32 %v357, 1.0
  %v374 = vadd.f32 %v358, 1.0
  %v375 = vmul.f32 %v247, %v359
  %v376 = vmul.f32 %v248, %v360
  %v377 = vmul.f32 %v249, %v361
  %v378 = vmul.f32 %v250, %v362
  %v379 = vmul.f32 %v251, %v363
  %v380 = vmul.f32 %v252, %v364
  %v381 = vmul.f32 %v253, %v365
  %v382 = vmul.f32 %v254, %v366
  %v383 = vmul.f32 %v255, %v367
  %v384 = vmul.f32 %v256, %v368
  %v385 = vmul.f32 %v257, %v369
  %v386 = vmul.f32 %v258, %v370
  %v387 = vmul.f32 %v259, %v371
  %v388 = vmul.f32 %v260, %v372
  %v389 = vmul.f32 %v261, %v373
  %v390 = vmul.f32 %v262, %v374
  %391 = vst [vmem:[%s3] sm:$0xff] %v375
  %392 = vst [vmem:[%s3 + $0x8] sm:$0xff] %v376
  %393 = vst [vmem:[%s3 + $0x10] sm:$0xff] %v377
  %394 = vst [vmem:[%s3 + $0x18] sm:$0xff] %v378
  %395 = vst [vmem:[%s3 + $0x20] sm:$0xff] %v379
  %396 = vst [vmem:[%s3 + $0x28] sm:$0xff] %v380
  %397 = vst [vmem:[%s3 + $0x30] sm:$0xff] %v381
  %398 = vst [vmem:[%s3 + $0x38] sm:$0xff] %v382
  %399 = vst [vmem:[%s3 + $0x40] sm:$0xff] %v383
  %400 = vst [vmem:[%s3 + $0x48] sm:$0xff] %v384
  %401 = vst [vmem:[%s3 + $0x50] sm:$0xff] %v385
  %402 = vst [vmem:[%s3 + $0x58] sm:$0xff] %v386
  %403 = vst [vmem:[%s3 + $0x60] sm:$0xff] %v387
  %404 = vst [vmem:[%s3 + $0x68] sm:$0xff] %v388
  %405 = vst [vmem:[%s3 + $0x70] sm:$0xff] %v389
  %406 = vst [vmem:[%s3 + $0x78] sm:$0xff] %v390
  // Predicated region
  $region14: #{_lambda_.56} parent=0 // pred_check
    _
  $region15: #{_lambda_.56} parent=0 // pred_check_branch
    %408 = sbr.rel (0) target = $region17
  $region16: #{_lambda_.56} parent=0 // pred_region
    _
  $region17: #{_lambda_.56} parent=0 // pred_fallthru
    _
  // Predicated region
  $region18: #{_lambda_.56} parent=0 // pred_check
    _
  $region19: #{_lambda_.56} parent=0 // pred_check_branch
    %410 = sbr.rel (0) target = $region21
  $region20: #{_lambda_.56} parent=0 // pred_region
    _
  $region21: #{_lambda_.56} parent=0 // pred_fallthru
    _

// kernel: _lambda_.58
$region0: #{_lambda_.58}
  #allocation0 [shape = 'u32[]', space=smem, size = 0x4, offset = 0x4, fixed_abs, tag = 'smem constant byte address 0x4 - core index']
  #allocation1 [shape = 'u32[144,128]{1,0:T(1,128)}', space=vmem, size = 0x12000, scoped, tag = 'internal scratch']
  %s0 = inlined_call_operand.vmem [shape: bf16[32,128], index: 0, kind: input, shape index: {}]
  %s1 = inlined_call_operand.vmem [shape: bf16[128,128], index: 1, kind: input, shape index: {}]
  %s2 = inlined_call_operand.vmem [shape: f32[1,128], index: 2, kind: input, shape index: {}]
  %s3 = inlined_call_operand.vmem [shape: f32[32,128], index: 3, kind: output, shape index: {}]
  %s4 = sld [smem:[#allocation0]]
  $region22: #{_lambda_.58} parent=0
    _
  %s6 = ssub.s32 1, %s4
  %s7 = scalar_select 0, %s6, %s4
  // Predicated region
  $region2: #{_lambda_.58} parent=0 // pred_check
    _
  $region3: #{_lambda_.58} parent=0 // pred_check_branch
    %9 = sbr.rel (0) target = $region5
  $region4: #{_lambda_.58} parent=0 // pred_region
    _
  $region5: #{_lambda_.58} parent=0 // pred_fallthru
    _
  // Predicated region
  $region6: #{_lambda_.58} parent=0 // pred_check
    _
  $region7: #{_lambda_.58} parent=0 // pred_check_branch
    %11 = sbr.rel (0) target = $region9
  $region8: #{_lambda_.58} parent=0 // pred_region
    _
  $region9: #{_lambda_.58} parent=0 // pred_fallthru
    _
  // Predicated region
  $region10: #{_lambda_.58} parent=0 // pred_check
    _
  $region11: #{_lambda_.58} parent=0 // pred_check_branch
    %13 = sbr.rel (0) target = $region13
  $region12: #{_lambda_.58} parent=0 // pred_region
    _
  $region13: #{_lambda_.58} parent=0 // pred_fallthru
    _
  %v15 = vld [vmem:[%s0] sm:$0xf]
  %v16 = vld [vmem:[%s0 + $0x4] sm:$0xf]
  %v17 = vld [vmem:[%s0 + $0x8] sm:$0xf]
  %v18 = vld [vmem:[%s0 + $0xc] sm:$0xf]
  %v19 = vld [vmem:[%s1] sm:$0xf]
  %v20 = vld [vmem:[%s1 + $0x4] sm:$0xf]
  %v21 = vld [vmem:[%s1 + $0x8] sm:$0xf]
  %v22 = vld [vmem:[%s1 + $0xc] sm:$0xf]
  %v23 = vld [vmem:[%s1 + $0x10] sm:$0xf]
  %v24 = vld [vmem:[%s1 + $0x14] sm:$0xf]
  %v25 = vld [vmem:[%s1 + $0x18] sm:$0xf]
  %v26 = vld [vmem:[%s1 + $0x1c] sm:$0xf]
  %v27 = vld [vmem:[%s1 + $0x20] sm:$0xf]
  %v28 = vld [vmem:[%s1 + $0x24] sm:$0xf]
  %v29 = vld [vmem:[%s1 + $0x28] sm:$0xf]
  %v30 = vld [vmem:[%s1 + $0x2c] sm:$0xf]
  %v31 = vld [vmem:[%s1 + $0x30] sm:$0xf]
  %v32 = vld [vmem:[%s1 + $0x34] sm:$0xf]
  %v33 = vld [vmem:[%s1 + $0x38] sm:$0xf]
  %v34 = vld [vmem:[%s1 + $0x3c] sm:$0xf]
  %v35 = vld [vmem:[%s2] sm:$0x1]
  %v37 = vlaneseq
  %v38 = vshrl.u32 %v37, 7
  %v39 = vsub.s32 0, %v38
  %v40 = vrot.slane %v35, %v39
  %v46 = vunpack.c.l.b16 %v15
  %v47 = vunpack.c.l.b16 %v16
  %v48 = vunpack.c.l.b16 %v17
  %v49 = vunpack.c.l.b16 %v18
  %v50 = vpack.c.b16 %v47, %v46
  %v51 = vpack.c.b16 %v49, %v48
  %v70 = vunpack.c.l.b16 %v19
  %v71 = vunpack.c.l.b16 %v20
  %v72 = vunpack.c.l.b16 %v21
  %v73 = vunpack.c.l.b16 %v22
  %v74 = vunpack.c.l.b16 %v23
  %v75 = vunpack.c.l.b16 %v24
  %v76 = vunpack.c.l.b16 %v25
  %v77 = vunpack.c.l.b16 %v26
  %v78 = vunpack.c.l.b16 %v27
  %v79 = vunpack.c.l.b16 %v28
  %v80 = vunpack.c.l.b16 %v29
  %v81 = vunpack.c.l.b16 %v30
  %v82 = vunpack.c.l.b16 %v31
  %v83 = vunpack.c.l.b16 %v32
  %v84 = vunpack.c.l.b16 %v33
  %v85 = vunpack.c.l.b16 %v34
  %v86 = vpack.c.b16 %v71, %v70
  %v87 = vpack.c.b16 %v73, %v72
  %v88 = vpack.c.b16 %v75, %v74
  %v89 = vpack.c.b16 %v77, %v76
  %v90 = vpack.c.b16 %v79, %v78
  %v91 = vpack.c.b16 %v81, %v80
  %v92 = vpack.c.b16 %v83, %v82
  %v93 = vpack.c.b16 %v85, %v84
  %102 = vmatprep.subr.bf16.mxu0 0
  %103 = vmatpush1.bf16.msra.mxu0 %v86
  %104 = vmatprep.subr.bf16.mxu0 0
  %105 = vmatpush1.bf16.msra.mxu0 %v87
  %106 = vmatprep.subr.bf16.mxu0 0
  %107 = vmatpush1.bf16.msra.mxu0 %v88
  %108 = vmatprep.subr.bf16.mxu0 0
  %109 = vmatpush1.bf16.msra.mxu0 %v89
  %110 = vmatprep.subr.bf16.mxu0 0
  %111 = vmatpush1.bf16.msra.mxu0 %v90
  %112 = vmatprep.subr.bf16.mxu0 0
  %113 = vmatpush1.bf16.msra.mxu0 %v91
  %114 = vmatprep.subr.bf16.mxu0 0
  %115 = vmatpush1.bf16.msra.mxu0 %v92
  %116 = vmatprep.subr.bf16.mxu0 0
  %117 = vmatpush1.bf16.msra.mxu0 %v93
  %118 = vmatprep.subr.bf16.mxu0 0
  %119 = vmatpush1.bf16.msra.mxu0 0
  %120 = vmatprep.subr.bf16.mxu0 0
  %121 = vmatpush1.bf16.msra.mxu0 0
  %122 = vmatprep.subr.bf16.mxu0 0
  %123 = vmatpush1.bf16.msra.mxu0 0
  %124 = vmatprep.subr.bf16.mxu0 0
  %125 = vmatpush1.bf16.msra.mxu0 0
  %126 = vmatprep.subr.bf16.mxu0 0
  %127 = vmatpush1.bf16.msra.mxu0 0
  %128 = vmatprep.subr.bf16.mxu0 0
  %129 = vmatpush1.bf16.msra.mxu0 0
  %130 = vmatprep.subr.bf16.mxu0 0
  %131 = vmatpush1.bf16.msra.mxu0 0
  %132 = vmatprep.subr.bf16.mxu0 0
  %133 = vmatpush1.bf16.msra.mxu0 0
  %134 = vmatprep.mubr.bf16.mxu0 0
  %135 = vmatmul.mubr.bf16.gmra.mrb[0].mxu0 %v50
  %v136 = vpop.f32.mrb[0].mxu0
  %v137 = vadd.f32 %v40, %v136
  %v138 = vpop.f32.mrb[0].mxu0
  %v139 = vpop.f32.mrb[0].mxu0
  %v140 = vadd.f32 %v40, %v139
  %v141 = vpop.f32.mrb[0].mxu0
  %142 = vmatprep.mubr.bf16.mxu0 0
  %143 = vmatmul.mubr.bf16.gmra.mrb[0].mxu0 %v51
  %v144 = vpop.f32.mrb[0].mxu0
  %v145 = vadd.f32 %v40, %v144
  %v146 = vpop.f32.mrb[0].mxu0
  %v147 = vpop.f32.mrb[0].mxu0
  %v148 = vadd.f32 %v40, %v147
  %v149 = vpop.f32.mrb[0].mxu0
  %150 = vdwg.mxu0
  %151 = vst [vmem:[%s3] sm:$0xff] %v137
  %152 = vst [vmem:[%s3 + $0x8] sm:$0xff] %v140
  %153 = vst [vmem:[%s3 + $0x10] sm:$0xff] %v145
  %154 = vst [vmem:[%s3 + $0x18] sm:$0xff] %v148
  // Predicated region
  $region14: #{_lambda_.58} parent=0 // pred_check
    _
  $region15: #{_lambda_.58} parent=0 // pred_check_branch
    %156 = sbr.rel (0) target = $region17
  $region16: #{_lambda_.58} parent=0 // pred_region
    _
  $region17: #{_lambda_.58} parent=0 // pred_fallthru
    _
  // Predicated region
  $region18: #{_lambda_.58} parent=0 // pred_check
    _
  $region19: #{_lambda_.58} parent=0 // pred_check_branch
    %158 = sbr.rel (0) target = $region21
  $region20: #{_lambda_.58} parent=0 // pred_region
    _
  $region21: #{_lambda_.58} parent=0 // pred_fallthru
    _

// kernel: _lambda_.57
$region0: #{_lambda_.57}
  #allocation0 [shape = 'u32[]', space=smem, size = 0x4, offset = 0x4, fixed_abs, tag = 'smem constant byte address 0x4 - core index']
  #allocation1 [shape = 'u32[144,128]{1,0:T(1,128)}', space=vmem, size = 0x12000, scoped, tag = 'internal scratch']
  %s0 = inlined_call_operand.vmem [shape: bf16[9,32,8], index: 0, kind: input, shape index: {}]
  %s1 = inlined_call_operand.vmem [shape: f32[9,1,8], index: 1, kind: input, shape index: {}]
  %s2 = inlined_call_operand.vmem [shape: f32[1,8], index: 2, kind: input, shape index: {}]
  %s3 = inlined_call_operand.vmem [shape: f32[1,8], index: 3, kind: input, shape index: {}]
  %s4 = inlined_call_operand.vmem [shape: bf16[32,8], index: 4, kind: output, shape index: {}]
  %s5 = sld [smem:[#allocation0]]
  $region26: #{_lambda_.57} parent=0
    _
  %s7 = ssub.s32 1, %s5
  %s8 = scalar_select 0, %s7, %s5
  // Predicated region
  $region2: #{_lambda_.57} parent=0 // pred_check
    _
  $region3: #{_lambda_.57} parent=0 // pred_check_branch
    %10 = sbr.rel (0) target = $region5
  $region4: #{_lambda_.57} parent=0 // pred_region
    _
  $region5: #{_lambda_.57} parent=0 // pred_fallthru
    _
  // Predicated region
  $region6: #{_lambda_.57} parent=0 // pred_check
    _
  $region7: #{_lambda_.57} parent=0 // pred_check_branch
    %12 = sbr.rel (0) target = $region9
  $region8: #{_lambda_.57} parent=0 // pred_region
    _
  $region9: #{_lambda_.57} parent=0 // pred_fallthru
    _
  // Predicated region
  $region10: #{_lambda_.57} parent=0 // pred_check
    _
  $region11: #{_lambda_.57} parent=0 // pred_check_branch
    %14 = sbr.rel (0) target = $region13
  $region12: #{_lambda_.57} parent=0 // pred_region
    _
  $region13: #{_lambda_.57} parent=0 // pred_fallthru
    _
  // Predicated region
  $region14: #{_lambda_.57} parent=0 // pred_check
    _
  $region15: #{_lambda_.57} parent=0 // pred_check_branch
    %16 = sbr.rel (0) target = $region17
  $region16: #{_lambda_.57} parent=0 // pred_region
    _
  $region17: #{_lambda_.57} parent=0 // pred_fallthru
    _
  %v17 = vld [vmem:[%s0] sm:$0xf]
  %v18 = vld [vmem:[%s0 + $0x4] sm:$0xf]
  %v19 = vld [vmem:[%s0 + $0x8] sm:$0xf]
  %v20 = vld [vmem:[%s0 + $0xc] sm:$0xf]
  %v21 = vunpack.c.l.bf16 %v17
  %v22 = vunpack.c.l.bf16 %v18
  %v23 = vunpack.c.l.bf16 %v19
  %v24 = vunpack.c.l.bf16 %v20
  %v25 = vld [vmem:[%s1] sm:$0x1]
  %v27 = vlaneseq
  %v28 = vshrl.u32 %v27, 7
  %v29 = vsub.s32 0, %v28
  %v30 = vrot.slane %v25, %v29
  %v32 = vmul.f32 %v21, %v30
  %v33 = vmul.f32 %v22, %v30
  %v34 = vmul.f32 %v23, %v30
  %v35 = vmul.f32 %v24, %v30
  %s36 = scalar_lea.vmem %s0, 16
  %v37 = vld [vmem:[%s36] sm:$0xf]
  %v38 = vld [vmem:[%s36 + $0x4] sm:$0xf]
  %v39 = vld [vmem:[%s36 + $0x8] sm:$0xf]
  %v40 = vld [vmem:[%s36 + $0xc] sm:$0xf]
  %v41 = vunpack.c.l.bf16 %v37
  %v42 = vunpack.c.l.bf16 %v38
  %v43 = vunpack.c.l.bf16 %v39
  %v44 = vunpack.c.l.bf16 %v40
  %s45 = scalar_lea.vmem %s1, 1
  %v46 = vld [vmem:[%s45] sm:$0x1]
  %v48 = vlaneseq
  %v49 = vshrl.u32 %v48, 7
  %v50 = vsub.s32 0, %v49
  %v51 = vrot.slane %v46, %v50
  %v53 = vmul.f32 %v41, %v51
  %v54 = vmul.f32 %v42, %v51
  %v55 = vmul.f32 %v43, %v51
  %v56 = vmul.f32 %v44, %v51
  %v57 = vadd.f32 %v32, %v53
  %v58 = vadd.f32 %v33, %v54
  %v59 = vadd.f32 %v34, %v55
  %v60 = vadd.f32 %v35, %v56
  %s61 = scalar_lea.vmem %s0, 32
  %v62 = vld [vmem:[%s61] sm:$0xf]
  %v63 = vld [vmem:[%s61 + $0x4] sm:$0xf]
  %v64 = vld [vmem:[%s61 + $0x8] sm:$0xf]
  %v65 = vld [vmem:[%s61 + $0xc] sm:$0xf]
  %v66 = vunpack.c.l.bf16 %v62
  %v67 = vunpack.c.l.bf16 %v63
  %v68 = vunpack.c.l.bf16 %v64
  %v69 = vunpack.c.l.bf16 %v65
  %s70 = scalar_lea.vmem %s1, 2
  %v71 = vld [vmem:[%s70] sm:$0x1]
  %v73 = vlaneseq
  %v74 = vshrl.u32 %v73, 7
  %v75 = vsub.s32 0, %v74
  %v76 = vrot.slane %v71, %v75
  %v78 = vmul.f32 %v66, %v76
  %v79 = vmul.f32 %v67, %v76
  %v80 = vmul.f32 %v68, %v76
  %v81 = vmul.f32 %v69, %v76
  %v82 = vadd.f32 %v57, %v78
  %v83 = vadd.f32 %v58, %v79
  %v84 = vadd.f32 %v59, %v80
  %v85 = vadd.f32 %v60, %v81
  %s86 = scalar_lea.vmem %s0, 48
  %v87 = vld [vmem:[%s86] sm:$0xf]
  %v88 = vld [vmem:[%s86 + $0x4] sm:$0xf]
  %v89 = vld [vmem:[%s86 + $0x8] sm:$0xf]
  %v90 = vld [vmem:[%s86 + $0xc] sm:$0xf]
  %v91 = vunpack.c.l.bf16 %v87
  %v92 = vunpack.c.l.bf16 %v88
  %v93 = vunpack.c.l.bf16 %v89
  %v94 = vunpack.c.l.bf16 %v90
  %s95 = scalar_lea.vmem %s1, 3
  %v96 = vld [vmem:[%s95] sm:$0x1]
  %v98 = vlaneseq
  %v99 = vshrl.u32 %v98, 7
  %v100 = vsub.s32 0, %v99
  %v101 = vrot.slane %v96, %v100
  %v103 = vmul.f32 %v91, %v101
  %v104 = vmul.f32 %v92, %v101
  %v105 = vmul.f32 %v93, %v101
  %v106 = vmul.f32 %v94, %v101
  %v107 = vadd.f32 %v82, %v103
  %v108 = vadd.f32 %v83, %v104
  %v109 = vadd.f32 %v84, %v105
  %v110 = vadd.f32 %v85, %v106
  %s111 = scalar_lea.vmem %s0, 64
  %v112 = vld [vmem:[%s111] sm:$0xf]
  %v113 = vld [vmem:[%s111 + $0x4] sm:$0xf]
  %v114 = vld [vmem:[%s111 + $0x8] sm:$0xf]
  %v115 = vld [vmem:[%s111 + $0xc] sm:$0xf]
  %v116 = vunpack.c.l.bf16 %v112
  %v117 = vunpack.c.l.bf16 %v113
  %v118 = vunpack.c.l.bf16 %v114
  %v119 = vunpack.c.l.bf16 %v115
  %s120 = scalar_lea.vmem %s1, 4
  %v121 = vld [vmem:[%s120] sm:$0x1]
  %v123 = vlaneseq
  %v124 = vshrl.u32 %v123, 7
  %v125 = vsub.s32 0, %v124
  %v126 = vrot.slane %v121, %v125
  %v128 = vmul.f32 %v116, %v126
  %v129 = vmul.f32 %v117, %v126
  %v130 = vmul.f32 %v118, %v126
  %v131 = vmul.f32 %v119, %v126
  %v132 = vadd.f32 %v107, %v128
  %v133 = vadd.f32 %v108, %v129
  %v134 = vadd.f32 %v109, %v130
  %v135 = vadd.f32 %v110, %v131
  %s136 = scalar_lea.vmem %s0, 80
  %v137 = vld [vmem:[%s136] sm:$0xf]
  %v138 = vld [vmem:[%s136 + $0x4] sm:$0xf]
  %v139 = vld [vmem:[%s136 + $0x8] sm:$0xf]
  %v140 = vld [vmem:[%s136 + $0xc] sm:$0xf]
  %v141 = vunpack.c.l.bf16 %v137
  %v142 = vunpack.c.l.bf16 %v138
  %v143 = vunpack.c.l.bf16 %v139
  %v144 = vunpack.c.l.bf16 %v140
  %s145 = scalar_lea.vmem %s1, 5
  %v146 = vld [vmem:[%s145] sm:$0x1]
  %v148 = vlaneseq
  %v149 = vshrl.u32 %v148, 7
  %v150 = vsub.s32 0, %v149
  %v151 = vrot.slane %v146, %v150
  %v153 = vmul.f32 %v141, %v151
  %v154 = vmul.f32 %v142, %v151
  %v155 = vmul.f32 %v143, %v151
  %v156 = vmul.f32 %v144, %v151
  %v157 = vadd.f32 %v132, %v153
  %v158 = vadd.f32 %v133, %v154
  %v159 = vadd.f32 %v134, %v155
  %v160 = vadd.f32 %v135, %v156
  %s161 = scalar_lea.vmem %s0, 96
  %v162 = vld [vmem:[%s161] sm:$0xf]
  %v163 = vld [vmem:[%s161 + $0x4] sm:$0xf]
  %v164 = vld [vmem:[%s161 + $0x8] sm:$0xf]
  %v165 = vld [vmem:[%s161 + $0xc] sm:$0xf]
  %v166 = vunpack.c.l.bf16 %v162
  %v167 = vunpack.c.l.bf16 %v163
  %v168 = vunpack.c.l.bf16 %v164
  %v169 = vunpack.c.l.bf16 %v165
  %s170 = scalar_lea.vmem %s1, 6
  %v171 = vld [vmem:[%s170] sm:$0x1]
  %v173 = vlaneseq
  %v174 = vshrl.u32 %v173, 7
  %v175 = vsub.s32 0, %v174
  %v176 = vrot.slane %v171, %v175
  %v178 = vmul.f32 %v166, %v176
  %v179 = vmul.f32 %v167, %v176
  %v180 = vmul.f32 %v168, %v176
  %v181 = vmul.f32 %v169, %v176
  %v182 = vadd.f32 %v157, %v178
  %v183 = vadd.f32 %v158, %v179
  %v184 = vadd.f32 %v159, %v180
  %v185 = vadd.f32 %v160, %v181
  %s186 = scalar_lea.vmem %s0, 112
  %v187 = vld [vmem:[%s186] sm:$0xf]
  %v188 = vld [vmem:[%s186 + $0x4] sm:$0xf]
  %v189 = vld [vmem:[%s186 + $0x8] sm:$0xf]
  %v190 = vld [vmem:[%s186 + $0xc] sm:$0xf]
  %v191 = vunpack.c.l.bf16 %v187
  %v192 = vunpack.c.l.bf16 %v188
  %v193 = vunpack.c.l.bf16 %v189
  %v194 = vunpack.c.l.bf16 %v190
  %s195 = scalar_lea.vmem %s1, 7
  %v196 = vld [vmem:[%s195] sm:$0x1]
  %v198 = vlaneseq
  %v199 = vshrl.u32 %v198, 7
  %v200 = vsub.s32 0, %v199
  %v201 = vrot.slane %v196, %v200
  %v203 = vmul.f32 %v191, %v201
  %v204 = vmul.f32 %v192, %v201
  %v205 = vmul.f32 %v193, %v201
  %v206 = vmul.f32 %v194, %v201
  %v207 = vadd.f32 %v182, %v203
  %v208 = vadd.f32 %v183, %v204
  %v209 = vadd.f32 %v184, %v205
  %v210 = vadd.f32 %v185, %v206
  %s211 = scalar_lea.vmem %s0, 128
  %v212 = vld [vmem:[%s211] sm:$0xf]
  %v213 = vld [vmem:[%s211 + $0x4] sm:$0xf]
  %v214 = vld [vmem:[%s211 + $0x8] sm:$0xf]
  %v215 = vld [vmem:[%s211 + $0xc] sm:$0xf]
  %v216 = vunpack.c.l.bf16 %v212
  %v217 = vunpack.c.l.bf16 %v213
  %v218 = vunpack.c.l.bf16 %v214
  %v219 = vunpack.c.l.bf16 %v215
  %s220 = scalar_lea.vmem %s1, 8
  %v221 = vld [vmem:[%s220] sm:$0x1]
  %v223 = vlaneseq
  %v224 = vshrl.u32 %v223, 7
  %v225 = vsub.s32 0, %v224
  %v226 = vrot.slane %v221, %v225
  %v228 = vmul.f32 %v216, %v226
  %v229 = vmul.f32 %v217, %v226
  %v230 = vmul.f32 %v218, %v226
  %v231 = vmul.f32 %v219, %v226
  %v232 = vadd.f32 %v207, %v228
  %v233 = vadd.f32 %v208, %v229
  %v234 = vadd.f32 %v209, %v230
  %v235 = vadd.f32 %v210, %v231
  %v236 = vld [vmem:[%s2] sm:$0x1]
  %v238 = vlaneseq
  %v239 = vshrl.u32 %v238, 7
  %v240 = vsub.s32 0, %v239
  %v241 = vrot.slane %v236, %v240
  %v243 = vmul.f32 %v232, %v241
  %v244 = vmul.f32 %v233, %v241
  %v245 = vmul.f32 %v234, %v241
  %v246 = vmul.f32 %v235, %v241
  %v247 = vld [vmem:[%s3] sm:$0x1]
  %v249 = vlaneseq
  %v250 = vshrl.u32 %v249, 7
  %v251 = vsub.s32 0, %v250
  %v252 = vrot.slane %v247, %v251
  %v254 = vadd.f32 %v243, %v252
  %v255 = vadd.f32 %v244, %v252
  %v256 = vadd.f32 %v245, %v252
  %v257 = vadd.f32 %v246, %v252
  %v258 = vmul.f32 %v254, 0.5
  %v259 = vmul.f32 %v255, 0.5
  %v260 = vmul.f32 %v256, 0.5
  %v261 = vmul.f32 %v257, 0.5
  %v262 = vmul.f32 %v254, 0.044715
  %v263 = vmul.f32 %v255, 0.044715
  %v264 = vmul.f32 %v256, 0.044715
  %v265 = vmul.f32 %v257, 0.044715
  %v266 = vmul.f32 %v262, %v254
  %v267 = vmul.f32 %v263, %v255
  %v268 = vmul.f32 %v264, %v256
  %v269 = vmul.f32 %v265, %v257
  %v270 = vmul.f32 %v266, %v254
  %v271 = vmul.f32 %v267, %v255
  %v272 = vmul.f32 %v268, %v256
  %v273 = vmul.f32 %v269, %v257
  %v274 = vadd.f32 %v254, %v270
  %v275 = vadd.f32 %v255, %v271
  %v276 = vadd.f32 %v256, %v272
  %v277 = vadd.f32 %v257, %v273
  %v278 = vmul.f32 %v274, 0.7978846
  %v279 = vmul.f32 %v275, 0.7978846
  %v280 = vmul.f32 %v276, 0.7978846
  %v281 = vmul.f32 %v277, 0.7978846
  %v282 = vtanh.pop %v278
  %v283 = vtanh.pop %v279
  %v284 = vtanh.pop %v280
  %v285 = vtanh.pop %v281
  %v286 = vadd.f32 %v282, 1.0
  %v287 = vadd.f32 %v283, 1.0
  %v288 = vadd.f32 %v284, 1.0
  %v289 = vadd.f32 %v285, 1.0
  %v290 = vmul.f32 %v258, %v286
  %v291 = vmul.f32 %v259, %v287
  %v292 = vmul.f32 %v260, %v288
  %v293 = vmul.f32 %v261, %v289
  %v294 = vpack.c.bf16 %v291, %v290
  %v295 = vpack.c.bf16 %v293, %v292
  %v298 = vunpack.c.l.b16 %v294
  %v299 = vunpack.c.h.b16 %v294
  %v300 = vunpack.c.l.b16 %v295
  %v301 = vunpack.c.h.b16 %v295
  %v302 = vpack.c.b16 %v298, %v298
  %v303 = vpack.c.b16 %v299, %v299
  %v304 = vpack.c.b16 %v300, %v300
  %v305 = vpack.c.b16 %v301, %v301
  %vm310 = vcmask 60416
  %311 = vst.msk [vmem:[%s4] sm:$0xf] %vm310, %v302
  %312 = vst.msk [vmem:[%s4 + $0x4] sm:$0xf] %vm310, %v303
  %313 = vst.msk [vmem:[%s4 + $0x8] sm:$0xf] %vm310, %v304
  %314 = vst.msk [vmem:[%s4 + $0xc] sm:$0xf] %vm310, %v305
  // Predicated region
  $region18: #{_lambda_.57} parent=0 // pred_check
    _
  $region19: #{_lambda_.57} parent=0 // pred_check_branch
    %316 = sbr.rel (0) target = $region21
  $region20: #{_lambda_.57} parent=0 // pred_region
    _
  $region21: #{_lambda_.57} parent=0 // pred_fallthru
    _
  // Predicated region
  $region22: #{_lambda_.57} parent=0 // pred_check
    _
  $region23: #{_lambda_.57} parent=0 // pred_check_branch
    %318 = sbr.rel (0) target = $region25
  $region24: #{_lambda_.57} parent=0 // pred_region
    _
  $region25: #{_lambda_.57} parent=0 // pred_fallthru
    _

// kernel: _lambda_.61
$region0: #{_lambda_.61}
  #allocation0 [shape = 'u32[]', space=smem, size = 0x4, offset = 0x4, fixed_abs, tag = 'smem constant byte address 0x4 - core index']
  #allocation1 [shape = 'u32[144,128]{1,0:T(1,128)}', space=vmem, size = 0x12000, scoped, tag = 'internal scratch']
  %s0 = inlined_call_operand.vmem [shape: f32[32,8], index: 0, kind: input, shape index: {}]
  %s1 = inlined_call_operand.vmem [shape: f32[1,8], index: 1, kind: input, shape index: {}]
  %s2 = inlined_call_operand.vmem [shape: f32[1,8], index: 2, kind: input, shape index: {}]
  %s3 = inlined_call_operand.vmem [shape: bf16[32,8], index: 3, kind: output, shape index: {}]
  %s4 = sld [smem:[#allocation0]]
  $region22: #{_lambda_.61} parent=0
    _
  %s6 = ssub.s32 1, %s4
  %s7 = scalar_select 0, %s6, %s4
  // Predicated region
  $region2: #{_lambda_.61} parent=0 // pred_check
    _
  $region3: #{_lambda_.61} parent=0 // pred_check_branch
    %9 = sbr.rel (0) target = $region5
  $region4: #{_lambda_.61} parent=0 // pred_region
    _
  $region5: #{_lambda_.61} parent=0 // pred_fallthru
    _
  // Predicated region
  $region6: #{_lambda_.61} parent=0 // pred_check
    _
  $region7: #{_lambda_.61} parent=0 // pred_check_branch
    %11 = sbr.rel (0) target = $region9
  $region8: #{_lambda_.61} parent=0 // pred_region
    _
  $region9: #{_lambda_.61} parent=0 // pred_fallthru
    _
  // Predicated region
  $region10: #{_lambda_.61} parent=0 // pred_check
    _
  $region11: #{_lambda_.61} parent=0 // pred_check_branch
    %13 = sbr.rel (0) target = $region13
  $region12: #{_lambda_.61} parent=0 // pred_region
    _
  $region13: #{_lambda_.61} parent=0 // pred_fallthru
    _
  %v14 = vld [vmem:[%s0] sm:$0xff]
  %v15 = vld [vmem:[%s0 + $0x8] sm:$0xff]
  %v16 = vld [vmem:[%s0 + $0x10] sm:$0xff]
  %v17 = vld [vmem:[%s0 + $0x18] sm:$0xff]
  %vm18 = vcmask 64512
  %v19 = vsel %vm18, %v14, 0.0
  %20 = vadd.xlane.f32.xlu0 %v19
  %v21 = vpop.xlane.xlu0 %20
  %v22 = vsel %vm18, %v15, 0.0
  %23 = vadd.xlane.f32.xlu0 %v22
  %v24 = vpop.xlane.xlu0 %23
  %v25 = vsel %vm18, %v16, 0.0
  %26 = vadd.xlane.f32.xlu0 %v25
  %v27 = vpop.xlane.xlu0 %26
  %v28 = vsel %vm18, %v17, 0.0
  %29 = vadd.xlane.f32.xlu0 %v28
  %v30 = vpop.xlane.xlu0 %29
  %v31 = vrcp.pop 8.0
  %v32 = vmul.f32 %v21, %v31
  %v33 = vmul.f32 %v24, %v31
  %v34 = vmul.f32 %v27, %v31
  %v35 = vmul.f32 %v30, %v31
  %v36 = vsub.f32 %v14, %v32
  %v37 = vsub.f32 %v15, %v33
  %v38 = vsub.f32 %v16, %v34
  %v39 = vsub.f32 %v17, %v35
  %v40 = vmul.f32 %v36, %v36
  %v41 = vmul.f32 %v37, %v37
  %v42 = vmul.f32 %v38, %v38
  %v43 = vmul.f32 %v39, %v39
  %v44 = vsel %vm18, %v40, 0.0
  %45 = vadd.xlane.f32.xlu0 %v44
  %v46 = vpop.xlane.xlu0 %45
  %v47 = vsel %vm18, %v41, 0.0
  %48 = vadd.xlane.f32.xlu0 %v47
  %v49 = vpop.xlane.xlu0 %48
  %v50 = vsel %vm18, %v42, 0.0
  %51 = vadd.xlane.f32.xlu0 %v50
  %v52 = vpop.xlane.xlu0 %51
  %v53 = vsel %vm18, %v43, 0.0
  %54 = vadd.xlane.f32.xlu0 %v53
  %v55 = vpop.xlane.xlu0 %54
  %v56 = vmul.f32 %v46, %v31
  %v57 = vmul.f32 %v49, %v31
  %v58 = vmul.f32 %v52, %v31
  %v59 = vmul.f32 %v55, %v31
  %v60 = vadd.f32 %v56, 1e-05
  %v61 = vadd.f32 %v57, 1e-05
  %v62 = vadd.f32 %v58, 1e-05
  %v63 = vadd.f32 %v59, 1e-05
  %v64 = vrsqrt.pop %v60
  %v65 = vrsqrt.pop %v61
  %v66 = vrsqrt.pop %v62
  %v67 = vrsqrt.pop %v63
  %v68 = vmul.f32 %v36, %v64
  %v69 = vmul.f32 %v37, %v65
  %v70 = vmul.f32 %v38, %v66
  %v71 = vmul.f32 %v39, %v67
  %v72 = vld [vmem:[%s1] sm:$0x1]
  %v74 = vlaneseq
  %v75 = vshrl.u32 %v74, 7
  %v76 = vsub.s32 0, %v75
  %v77 = vrot.slane %v72, %v76
  %v79 = vmul.f32 %v68, %v77
  %v80 = vmul.f32 %v69, %v77
  %v81 = vmul.f32 %v70, %v77
  %v82 = vmul.f32 %v71, %v77
  %v83 = vld [vmem:[%s2] sm:$0x1]
  %v85 = vlaneseq
  %v86 = vshrl.u32 %v85, 7
  %v87 = vsub.s32 0, %v86
  %v88 = vrot.slane %v83, %v87
  %v90 = vadd.f32 %v79, %v88
  %v91 = vadd.f32 %v80, %v88
  %v92 = vadd.f32 %v81, %v88
  %v93 = vadd.f32 %v82, %v88
  %v94 = vpack.c.bf16 %v91, %v90
  %v95 = vpack.c.bf16 %v93, %v92
  %v98 = vunpack.c.l.b16 %v94
  %v99 = vunpack.c.h.b16 %v94
  %v100 = vunpack.c.l.b16 %v95
  %v101 = vunpack.c.h.b16 %v95
  %v102 = vpack.c.b16 %v98, %v98
  %v103 = vpack.c.b16 %v99, %v99
  %v104 = vpack.c.b16 %v100, %v100
  %v105 = vpack.c.b16 %v101, %v101
  %vm110 = vcmask 60416
  %111 = vst.msk [vmem:[%s3] sm:$0xf] %vm110, %v102
  %112 = vst.msk [vmem:[%s3 + $0x4] sm:$0xf] %vm110, %v103
  %113 = vst.msk [vmem:[%s3 + $0x8] sm:$0xf] %vm110, %v104
  %114 = vst.msk [vmem:[%s3 + $0xc] sm:$0xf] %vm110, %v105
  // Predicated region
  $region14: #{_lambda_.61} parent=0 // pred_check
    _
  $region15: #{_lambda_.61} parent=0 // pred_check_branch
    %116 = sbr.rel (0) target = $region17
  $region16: #{_lambda_.61} parent=0 // pred_region
    _
  $region17: #{_lambda_.61} parent=0 // pred_fallthru
    _
  // Predicated region
  $region18: #{_lambda_.61} parent=0 // pred_check
    _
  $region19: #{_lambda_.61} parent=0 // pred_check_branch
    %118 = sbr.rel (0) target = $region21
  $region20: #{_lambda_.61} parent=0 // pred_region
    _
  $region21: #{_lambda_.61} parent=0 // pred_fallthru
    _

// kernel: _lambda_.62
$region0: #{_lambda_.62}
  #allocation0 [shape = 'u32[]', space=smem, size = 0x4, offset = 0x4, fixed_abs, tag = 'smem constant byte address 0x4 - core index']
  #allocation1 [shape = 'u32[144,128]{1,0:T(1,128)}', space=vmem, size = 0x12000, scoped, tag = 'internal scratch']
  %s0 = inlined_call_operand.vmem [shape: bf16[32,128], index: 0, kind: input, shape index: {}]
  %s1 = inlined_call_operand.vmem [shape: bf16[128,128], index: 1, kind: input, shape index: {}]
  %s2 = inlined_call_operand.vmem [shape: f32[1,128], index: 2, kind: input, shape index: {}]
  %s3 = inlined_call_operand.vmem [shape: bf16[32,128], index: 3, kind: output, shape index: {}]
  %s4 = sld [smem:[#allocation0]]
  $region22: #{_lambda_.62} parent=0
    _
  %s6 = ssub.s32 1, %s4
  %s7 = scalar_select 0, %s6, %s4
  // Predicated region
  $region2: #{_lambda_.62} parent=0 // pred_check
    _
  $region3: #{_lambda_.62} parent=0 // pred_check_branch
    %9 = sbr.rel (0) target = $region5
  $region4: #{_lambda_.62} parent=0 // pred_region
    _
  $region5: #{_lambda_.62} parent=0 // pred_fallthru
    _
  // Predicated region
  $region6: #{_lambda_.62} parent=0 // pred_check
    _
  $region7: #{_lambda_.62} parent=0 // pred_check_branch
    %11 = sbr.rel (0) target = $region9
  $region8: #{_lambda_.62} parent=0 // pred_region
    _
  $region9: #{_lambda_.62} parent=0 // pred_fallthru
    _
  // Predicated region
  $region10: #{_lambda_.62} parent=0 // pred_check
    _
  $region11: #{_lambda_.62} parent=0 // pred_check_branch
    %13 = sbr.rel (0) target = $region13
  $region12: #{_lambda_.62} parent=0 // pred_region
    _
  $region13: #{_lambda_.62} parent=0 // pred_fallthru
    _
  %v15 = vld [vmem:[%s0] sm:$0xf]
  %v16 = vld [vmem:[%s0 + $0x4] sm:$0xf]
  %v17 = vld [vmem:[%s0 + $0x8] sm:$0xf]
  %v18 = vld [vmem:[%s0 + $0xc] sm:$0xf]
  %v19 = vld [vmem:[%s1] sm:$0xf]
  %v20 = vld [vmem:[%s1 + $0x4] sm:$0xf]
  %v21 = vld [vmem:[%s1 + $0x8] sm:$0xf]
  %v22 = vld [vmem:[%s1 + $0xc] sm:$0xf]
  %v23 = vld [vmem:[%s1 + $0x10] sm:$0xf]
  %v24 = vld [vmem:[%s1 + $0x14] sm:$0xf]
  %v25 = vld [vmem:[%s1 + $0x18] sm:$0xf]
  %v26 = vld [vmem:[%s1 + $0x1c] sm:$0xf]
  %v27 = vld [vmem:[%s1 + $0x20] sm:$0xf]
  %v28 = vld [vmem:[%s1 + $0x24] sm:$0xf]
  %v29 = vld [vmem:[%s1 + $0x28] sm:$0xf]
  %v30 = vld [vmem:[%s1 + $0x2c] sm:$0xf]
  %v31 = vld [vmem:[%s1 + $0x30] sm:$0xf]
  %v32 = vld [vmem:[%s1 + $0x34] sm:$0xf]
  %v33 = vld [vmem:[%s1 + $0x38] sm:$0xf]
  %v34 = vld [vmem:[%s1 + $0x3c] sm:$0xf]
  %v35 = vld [vmem:[%s2] sm:$0x1]
  %v37 = vlaneseq
  %v38 = vshrl.u32 %v37, 7
  %v39 = vsub.s32 0, %v38
  %v40 = vrot.slane %v35, %v39
  %v46 = vunpack.c.l.b16 %v15
  %v47 = vunpack.c.l.b16 %v16
  %v48 = vunpack.c.l.b16 %v17
  %v49 = vunpack.c.l.b16 %v18
  %v50 = vpack.c.b16 %v47, %v46
  %v51 = vpack.c.b16 %v49, %v48
  %v70 = vunpack.c.l.b16 %v19
  %v71 = vunpack.c.l.b16 %v20
  %v72 = vunpack.c.l.b16 %v21
  %v73 = vunpack.c.l.b16 %v22
  %v74 = vunpack.c.l.b16 %v23
  %v75 = vunpack.c.l.b16 %v24
  %v76 = vunpack.c.l.b16 %v25
  %v77 = vunpack.c.l.b16 %v26
  %v78 = vunpack.c.l.b16 %v27
  %v79 = vunpack.c.l.b16 %v28
  %v80 = vunpack.c.l.b16 %v29
  %v81 = vunpack.c.l.b16 %v30
  %v82 = vunpack.c.l.b16 %v31
  %v83 = vunpack.c.l.b16 %v32
  %v84 = vunpack.c.l.b16 %v33
  %v85 = vunpack.c.l.b16 %v34
  %v86 = vpack.c.b16 %v71, %v70
  %v87 = vpack.c.b16 %v73, %v72
  %v88 = vpack.c.b16 %v75, %v74
  %v89 = vpack.c.b16 %v77, %v76
  %v90 = vpack.c.b16 %v79, %v78
  %v91 = vpack.c.b16 %v81, %v80
  %v92 = vpack.c.b16 %v83, %v82
  %v93 = vpack.c.b16 %v85, %v84
  %102 = vmatprep.subr.bf16.mxu0 0
  %103 = vmatpush1.bf16.msra.mxu0 %v86
  %104 = vmatprep.subr.bf16.mxu0 0
  %105 = vmatpush1.bf16.msra.mxu0 %v87
  %106 = vmatprep.subr.bf16.mxu0 0
  %107 = vmatpush1.bf16.msra.mxu0 %v88
  %108 = vmatprep.subr.bf16.mxu0 0
  %109 = vmatpush1.bf16.msra.mxu0 %v89
  %110 = vmatprep.subr.bf16.mxu0 0
  %111 = vmatpush1.bf16.msra.mxu0 %v90
  %112 = vmatprep.subr.bf16.mxu0 0
  %113 = vmatpush1.bf16.msra.mxu0 %v91
  %114 = vmatprep.subr.bf16.mxu0 0
  %115 = vmatpush1.bf16.msra.mxu0 %v92
  %116 = vmatprep.subr.bf16.mxu0 0
  %117 = vmatpush1.bf16.msra.mxu0 %v93
  %118 = vmatprep.subr.bf16.mxu0 0
  %119 = vmatpush1.bf16.msra.mxu0 0
  %120 = vmatprep.subr.bf16.mxu0 0
  %121 = vmatpush1.bf16.msra.mxu0 0
  %122 = vmatprep.subr.bf16.mxu0 0
  %123 = vmatpush1.bf16.msra.mxu0 0
  %124 = vmatprep.subr.bf16.mxu0 0
  %125 = vmatpush1.bf16.msra.mxu0 0
  %126 = vmatprep.subr.bf16.mxu0 0
  %127 = vmatpush1.bf16.msra.mxu0 0
  %128 = vmatprep.subr.bf16.mxu0 0
  %129 = vmatpush1.bf16.msra.mxu0 0
  %130 = vmatprep.subr.bf16.mxu0 0
  %131 = vmatpush1.bf16.msra.mxu0 0
  %132 = vmatprep.subr.bf16.mxu0 0
  %133 = vmatpush1.bf16.msra.mxu0 0
  %134 = vmatprep.mubr.bf16.mxu0 0
  %135 = vmatmul.mubr.bf16.gmra.mrb[0].mxu0 %v50
  %v136 = vpop.f32.mrb[0].mxu0
  %v137 = vadd.f32 %v40, %v136
  %v138 = vpop.f32.mrb[0].mxu0
  %v139 = vpop.f32.mrb[0].mxu0
  %v140 = vadd.f32 %v40, %v139
  %v141 = vpop.f32.mrb[0].mxu0
  %142 = vmatprep.mubr.bf16.mxu0 0
  %143 = vmatmul.mubr.bf16.gmra.mrb[0].mxu0 %v51
  %v144 = vpop.f32.mrb[0].mxu0
  %v145 = vadd.f32 %v40, %v144
  %v146 = vpop.f32.mrb[0].mxu0
  %v147 = vpop.f32.mrb[0].mxu0
  %v148 = vadd.f32 %v40, %v147
  %v149 = vpop.f32.mrb[0].mxu0
  %150 = vdwg.mxu0
  %v151 = vpack.c.bf16 %v140, %v137
  %v152 = vpack.c.bf16 %v148, %v145
  %v155 = vunpack.c.l.b16 %v151
  %v156 = vunpack.c.h.b16 %v151
  %v157 = vunpack.c.l.b16 %v152
  %v158 = vunpack.c.h.b16 %v152
  %v159 = vpack.c.b16 %v155, %v155
  %v160 = vpack.c.b16 %v156, %v156
  %v161 = vpack.c.b16 %v157, %v157
  %v162 = vpack.c.b16 %v158, %v158
  %167 = vst [vmem:[%s3] sm:$0xf] %v159
  %168 = vst [vmem:[%s3 + $0x4] sm:$0xf] %v160
  %169 = vst [vmem:[%s3 + $0x8] sm:$0xf] %v161
  %170 = vst [vmem:[%s3 + $0xc] sm:$0xf] %v162
  // Predicated region
  $region14: #{_lambda_.62} parent=0 // pred_check
    _
  $region15: #{_lambda_.62} parent=0 // pred_check_branch
    %172 = sbr.rel (0) target = $region17
  $region16: #{_lambda_.62} parent=0 // pred_region
    _
  $region17: #{_lambda_.62} parent=0 // pred_fallthru
    _
  // Predicated region
  $region18: #{_lambda_.62} parent=0 // pred_check
    _
  $region19: #{_lambda_.62} parent=0 // pred_check_branch
    %174 = sbr.rel (0) target = $region21
  $region20: #{_lambda_.62} parent=0 // pred_region
    _
  $region21: #{_lambda_.62} parent=0 // pred_fallthru
    _

// kernel: _lambda_.66
$region0: #{_lambda_.66}
  #allocation0 [shape = 'u32[]', space=smem, size = 0x4, offset = 0x4, fixed_abs, tag = 'smem constant byte address 0x4 - core index']
  #allocation1 [shape = 'u32[144,128]{1,0:T(1,128)}', space=vmem, size = 0x12000, scoped, tag = 'internal scratch']
  %s0 = inlined_call_operand.vmem [shape: bf16[32,128], index: 0, kind: input, shape index: {}]
  %s1 = inlined_call_operand.vmem [shape: bf16[128,128], index: 1, kind: input, shape index: {}]
  %s2 = inlined_call_operand.vmem [shape: f32[1,128], index: 2, kind: input, shape index: {}]
  %s3 = inlined_call_operand.vmem [shape: bf16[32,128], index: 3, kind: output, shape index: {}]
  %s4 = sld [smem:[#allocation0]]
  $region22: #{_lambda_.66} parent=0
    _
  %s6 = ssub.s32 1, %s4
  %s7 = scalar_select 0, %s6, %s4
  // Predicated region
  $region2: #{_lambda_.66} parent=0 // pred_check
    _
  $region3: #{_lambda_.66} parent=0 // pred_check_branch
    %9 = sbr.rel (0) target = $region5
  $region4: #{_lambda_.66} parent=0 // pred_region
    _
  $region5: #{_lambda_.66} parent=0 // pred_fallthru
    _
  // Predicated region
  $region6: #{_lambda_.66} parent=0 // pred_check
    _
  $region7: #{_lambda_.66} parent=0 // pred_check_branch
    %11 = sbr.rel (0) target = $region9
  $region8: #{_lambda_.66} parent=0 // pred_region
    _
  $region9: #{_lambda_.66} parent=0 // pred_fallthru
    _
  // Predicated region
  $region10: #{_lambda_.66} parent=0 // pred_check
    _
  $region11: #{_lambda_.66} parent=0 // pred_check_branch
    %13 = sbr.rel (0) target = $region13
  $region12: #{_lambda_.66} parent=0 // pred_region
    _
  $region13: #{_lambda_.66} parent=0 // pred_fallthru
    _
  %v15 = vld [vmem:[%s0] sm:$0xf]
  %v16 = vld [vmem:[%s0 + $0x4] sm:$0xf]
  %v17 = vld [vmem:[%s0 + $0x8] sm:$0xf]
  %v18 = vld [vmem:[%s0 + $0xc] sm:$0xf]
  %v19 = vld [vmem:[%s1] sm:$0xf]
  %v20 = vld [vmem:[%s1 + $0x4] sm:$0xf]
  %v21 = vld [vmem:[%s1 + $0x8] sm:$0xf]
  %v22 = vld [vmem:[%s1 + $0xc] sm:$0xf]
  %v23 = vld [vmem:[%s1 + $0x10] sm:$0xf]
  %v24 = vld [vmem:[%s1 + $0x14] sm:$0xf]
  %v25 = vld [vmem:[%s1 + $0x18] sm:$0xf]
  %v26 = vld [vmem:[%s1 + $0x1c] sm:$0xf]
  %v27 = vld [vmem:[%s1 + $0x20] sm:$0xf]
  %v28 = vld [vmem:[%s1 + $0x24] sm:$0xf]
  %v29 = vld [vmem:[%s1 + $0x28] sm:$0xf]
  %v30 = vld [vmem:[%s1 + $0x2c] sm:$0xf]
  %v31 = vld [vmem:[%s1 + $0x30] sm:$0xf]
  %v32 = vld [vmem:[%s1 + $0x34] sm:$0xf]
  %v33 = vld [vmem:[%s1 + $0x38] sm:$0xf]
  %v34 = vld [vmem:[%s1 + $0x3c] sm:$0xf]
  %v35 = vld [vmem:[%s2] sm:$0x1]
  %v37 = vlaneseq
  %v38 = vshrl.u32 %v37, 7
  %v39 = vsub.s32 0, %v38
  %v40 = vrot.slane %v35, %v39
  %v46 = vunpack.c.l.b16 %v15
  %v47 = vunpack.c.l.b16 %v16
  %v48 = vunpack.c.l.b16 %v17
  %v49 = vunpack.c.l.b16 %v18
  %v50 = vpack.c.b16 %v47, %v46
  %v51 = vpack.c.b16 %v49, %v48
  %v70 = vunpack.c.l.b16 %v19
  %v71 = vunpack.c.l.b16 %v20
  %v72 = vunpack.c.l.b16 %v21
  %v73 = vunpack.c.l.b16 %v22
  %v74 = vunpack.c.l.b16 %v23
  %v75 = vunpack.c.l.b16 %v24
  %v76 = vunpack.c.l.b16 %v25
  %v77 = vunpack.c.l.b16 %v26
  %v78 = vunpack.c.l.b16 %v27
  %v79 = vunpack.c.l.b16 %v28
  %v80 = vunpack.c.l.b16 %v29
  %v81 = vunpack.c.l.b16 %v30
  %v82 = vunpack.c.l.b16 %v31
  %v83 = vunpack.c.l.b16 %v32
  %v84 = vunpack.c.l.b16 %v33
  %v85 = vunpack.c.l.b16 %v34
  %v86 = vpack.c.b16 %v71, %v70
  %v87 = vpack.c.b16 %v73, %v72
  %v88 = vpack.c.b16 %v75, %v74
  %v89 = vpack.c.b16 %v77, %v76
  %v90 = vpack.c.b16 %v79, %v78
  %v91 = vpack.c.b16 %v81, %v80
  %v92 = vpack.c.b16 %v83, %v82
  %v93 = vpack.c.b16 %v85, %v84
  %102 = vmatprep.subr.bf16.mxu0 0
  %103 = vmatpush1.bf16.msra.mxu0 %v86
  %104 = vmatprep.subr.bf16.mxu0 0
  %105 = vmatpush1.bf16.msra.mxu0 %v87
  %106 = vmatprep.subr.bf16.mxu0 0
  %107 = vmatpush1.bf16.msra.mxu0 %v88
  %108 = vmatprep.subr.bf16.mxu0 0
  %109 = vmatpush1.bf16.msra.mxu0 %v89
  %110 = vmatprep.subr.bf16.mxu0 0
  %111 = vmatpush1.bf16.msra.mxu0 %v90
  %112 = vmatprep.subr.bf16.mxu0 0
  %113 = vmatpush1.bf16.msra.mxu0 %v91
  %114 = vmatprep.subr.bf16.mxu0 0
  %115 = vmatpush1.bf16.msra.mxu0 %v92
  %116 = vmatprep.subr.bf16.mxu0 0
  %117 = vmatpush1.bf16.msra.mxu0 %v93
  %118 = vmatprep.subr.bf16.mxu0 0
  %119 = vmatpush1.bf16.msra.mxu0 0
  %120 = vmatprep.subr.bf16.mxu0 0
  %121 = vmatpush1.bf16.msra.mxu0 0
  %122 = vmatprep.subr.bf16.mxu0 0
  %123 = vmatpush1.bf16.msra.mxu0 0
  %124 = vmatprep.subr.bf16.mxu0 0
  %125 = vmatpush1.bf16.msra.mxu0 0
  %126 = vmatprep.subr.bf16.mxu0 0
  %127 = vmatpush1.bf16.msra.mxu0 0
  %128 = vmatprep.subr.bf16.mxu0 0
  %129 = vmatpush1.bf16.msra.mxu0 0
  %130 = vmatprep.subr.bf16.mxu0 0
  %131 = vmatpush1.bf16.msra.mxu0 0
  %132 = vmatprep.subr.bf16.mxu0 0
  %133 = vmatpush1.bf16.msra.mxu0 0
  %134 = vmatprep.mubr.bf16.mxu0 0
  %135 = vmatmul.mubr.bf16.gmra.mrb[0].mxu0 %v50
  %v136 = vpop.f32.mrb[0].mxu0
  %v137 = vadd.f32 %v40, %v136
  %v138 = vpop.f32.mrb[0].mxu0
  %v139 = vpop.f32.mrb[0].mxu0
  %v140 = vadd.f32 %v40, %v139
  %v141 = vpop.f32.mrb[0].mxu0
  %142 = vmatprep.mubr.bf16.mxu0 0
  %143 = vmatmul.mubr.bf16.gmra.mrb[0].mxu0 %v51
  %v144 = vpop.f32.mrb[0].mxu0
  %v145 = vadd.f32 %v40, %v144
  %v146 = vpop.f32.mrb[0].mxu0
  %v147 = vpop.f32.mrb[0].mxu0
  %v148 = vadd.f32 %v40, %v147
  %v149 = vpop.f32.mrb[0].mxu0
  %150 = vdwg.mxu0
  %v151 = vmul.f32 %v137, 0.5
  %v152 = vmul.f32 %v140, 0.5
  %v153 = vmul.f32 %v145, 0.5
  %v154 = vmul.f32 %v148, 0.5
  %v155 = vmul.f32 %v137, 0.044715
  %v156 = vmul.f32 %v140, 0.044715
  %v157 = vmul.f32 %v145, 0.044715
  %v158 = vmul.f32 %v148, 0.044715
  %v159 = vmul.f32 %v155, %v137
  %v160 = vmul.f32 %v156, %v140
  %v161 = vmul.f32 %v157, %v145
  %v162 = vmul.f32 %v158, %v148
  %v163 = vmul.f32 %v159, %v137
  %v164 = vmul.f32 %v160, %v140
  %v165 = vmul.f32 %v161, %v145
  %v166 = vmul.f32 %v162, %v148
  %v167 = vadd.f32 %v137, %v163
  %v168 = vadd.f32 %v140, %v164
  %v169 = vadd.f32 %v145, %v165
  %v170 = vadd.f32 %v148, %v166
  %v171 = vmul.f32 %v167, 0.7978846
  %v172 = vmul.f32 %v168, 0.7978846
  %v173 = vmul.f32 %v169, 0.7978846
  %v174 = vmul.f32 %v170, 0.7978846
  %v175 = vtanh.pop %v171
  %v176 = vtanh.pop %v172
  %v177 = vtanh.pop %v173
  %v178 = vtanh.pop %v174
  %v179 = vadd.f32 %v175, 1.0
  %v180 = vadd.f32 %v176, 1.0
  %v181 = vadd.f32 %v177, 1.0
  %v182 = vadd.f32 %v178, 1.0
  %v183 = vmul.f32 %v151, %v179
  %v184 = vmul.f32 %v152, %v180
  %v185 = vmul.f32 %v153, %v181
  %v186 = vmul.f32 %v154, %v182
  %v187 = vpack.c.bf16 %v184, %v183
  %v188 = vpack.c.bf16 %v186, %v185
  %v191 = vunpack.c.l.b16 %v187
  %v192 = vunpack.c.h.b16 %v187
  %v193 = vunpack.c.l.b16 %v188
  %v194 = vunpack.c.h.b16 %v188
  %v195 = vpack.c.b16 %v191, %v191
  %v196 = vpack.c.b16 %v192, %v192
  %v197 = vpack.c.b16 %v193, %v193
  %v198 = vpack.c.b16 %v194, %v194
  %203 = vst [vmem:[%s3] sm:$0xf] %v195
  %204 = vst [vmem:[%s3 + $0x4] sm:$0xf] %v196
  %205 = vst [vmem:[%s3 + $0x8] sm:$0xf] %v197
  %206 = vst [vmem:[%s3 + $0xc] sm:$0xf] %v198
  // Predicated region
  $region14: #{_lambda_.66} parent=0 // pred_check
    _
  $region15: #{_lambda_.66} parent=0 // pred_check_branch
    %208 = sbr.rel (0) target = $region17
  $region16: #{_lambda_.66} parent=0 // pred_region
    _
  $region17: #{_lambda_.66} parent=0 // pred_fallthru
    _
  // Predicated region
  $region18: #{_lambda_.66} parent=0 // pred_check
    _
  $region19: #{_lambda_.66} parent=0 // pred_check_branch
    %210 = sbr.rel (0) target = $region21
  $region20: #{_lambda_.66} parent=0 // pred_region
    _
  $region21: #{_lambda_.66} parent=0 // pred_fallthru
    _

// kernel: _lambda_.63
$region0: #{_lambda_.63}
  #allocation0 [shape = 'u32[]', space=smem, size = 0x4, offset = 0x4, fixed_abs, tag = 'smem constant byte address 0x4 - core index']
  #allocation1 [shape = 'u32[144,128]{1,0:T(1,128)}', space=vmem, size = 0x12000, scoped, tag = 'internal scratch']
  %s0 = inlined_call_operand.vmem [shape: bf16[8,4,8], index: 0, kind: input, shape index: {}]
  %s1 = inlined_call_operand.vmem [shape: bf16[8,4,8], index: 1, kind: input, shape index: {}]
  %s2 = inlined_call_operand.vmem [shape: bf16[8,4,8], index: 2, kind: input, shape index: {}]
  %s3 = inlined_call_operand.vmem [shape: f32[2,4,4], index: 3, kind: input, shape index: {}]
  %s4 = inlined_call_operand.vmem [shape: bf16[8,4,8], index: 4, kind: output, shape index: {}]
  %s5 = sld [smem:[#allocation0]]
  $region26: #{_lambda_.63} parent=0
    _
  %s7 = ssub.s32 1, %s5
  %s8 = scalar_select 0, %s7, %s5
  // Predicated region
  $region2: #{_lambda_.63} parent=0 // pred_check
    _
  $region3: #{_lambda_.63} parent=0 // pred_check_branch
    %10 = sbr.rel (0) target = $region5
  $region4: #{_lambda_.63} parent=0 // pred_region
    _
  $region5: #{_lambda_.63} parent=0 // pred_fallthru
    _
  // Predicated region
  $region6: #{_lambda_.63} parent=0 // pred_check
    _
  $region7: #{_lambda_.63} parent=0 // pred_check_branch
    %12 = sbr.rel (0) target = $region9
  $region8: #{_lambda_.63} parent=0 // pred_region
    _
  $region9: #{_lambda_.63} parent=0 // pred_fallthru
    _
  // Predicated region
  $region10: #{_lambda_.63} parent=0 // pred_check
    _
  $region11: #{_lambda_.63} parent=0 // pred_check_branch
    %14 = sbr.rel (0) target = $region13
  $region12: #{_lambda_.63} parent=0 // pred_region
    _
  $region13: #{_lambda_.63} parent=0 // pred_fallthru
    _
  // Predicated region
  $region14: #{_lambda_.63} parent=0 // pred_check
    _
  $region15: #{_lambda_.63} parent=0 // pred_check_branch
    %16 = sbr.rel (0) target = $region17
  $region16: #{_lambda_.63} parent=0 // pred_region
    _
  $region17: #{_lambda_.63} parent=0 // pred_fallthru
    _
  %v18 = vld [vmem:[%s0] sm:$0x3]
  %v19 = vld [vmem:[%s0 + $0x2] sm:$0x3]
  %v20 = vld [vmem:[%s0 + $0x4] sm:$0x3]
  %v21 = vld [vmem:[%s0 + $0x6] sm:$0x3]
  %v22 = vld [vmem:[%s0 + $0x8] sm:$0x3]
  %v23 = vld [vmem:[%s0 + $0xa] sm:$0x3]
  %v24 = vld [vmem:[%s0 + $0xc] sm:$0x3]
  %v25 = vld [vmem:[%s0 + $0xe] sm:$0x3]
  %v26 = vld [vmem:[%s1] sm:$0x3]
  %v27 = vld [vmem:[%s1 + $0x2] sm:$0x3]
  %v28 = vld [vmem:[%s1 + $0x4] sm:$0x3]
  %v29 = vld [vmem:[%s1 + $0x6] sm:$0x3]
  %v30 = vld [vmem:[%s1 + $0x8] sm:$0x3]
  %v31 = vld [vmem:[%s1 + $0xa] sm:$0x3]
  %v32 = vld [vmem:[%s1 + $0xc] sm:$0x3]
  %v33 = vld [vmem:[%s1 + $0xe] sm:$0x3]
  %v34 = vld [vmem:[%s2] sm:$0x3]
  %v35 = vld [vmem:[%s2 + $0x2] sm:$0x3]
  %v36 = vld [vmem:[%s2 + $0x4] sm:$0x3]
  %v37 = vld [vmem:[%s2 + $0x6] sm:$0x3]
  %v38 = vld [vmem:[%s2 + $0x8] sm:$0x3]
  %v39 = vld [vmem:[%s2 + $0xa] sm:$0x3]
  %v40 = vld [vmem:[%s2 + $0xc] sm:$0x3]
  %v41 = vld [vmem:[%s2 + $0xe] sm:$0x3]
  %v42 = vld [vmem:[%s3] sm:$0xf]
  %v43 = vld [vmem:[%s3 + $0x4] sm:$0xf]
  %vm44 = vcmask 31744
  %v46 = vsel %vm44, %v18, 0
  %v49 = vsel %vm44, %v26, 0
  %51 = vmatprep.subr.bf16.mxu0 0
  %52 = vmatpush1.bf16.xpose.msra.mxu0 %v49
  %53 = vmatprep.subr.bf16.mxu0 0
  %54 = vmatpush1.bf16.xpose.msra.mxu0 0
  %55 = vmatprep.subr.bf16.mxu0 0
  %56 = vmatpush1.bf16.xpose.msra.mxu0 0
  %57 = vmatprep.subr.bf16.mxu0 0
  %58 = vmatpush1.bf16.xpose.msra.mxu0 0
  %59 = vmatprep.subr.bf16.mxu0 0
  %60 = vmatpush1.bf16.xpose.msra.mxu0 0
  %61 = vmatprep.subr.bf16.mxu0 0
  %62 = vmatpush1.bf16.xpose.msra.mxu0 0
  %63 = vmatprep.subr.bf16.mxu0 0
  %64 = vmatpush1.bf16.xpose.msra.mxu0 0
  %65 = vmatprep.subr.bf16.mxu0 0
  %66 = vmatpush1.bf16.xpose.msra.mxu0 0
  %67 = vmatprep.subr.bf16.mxu0 0
  %68 = vmatpush1.bf16.xpose.msra.mxu0 0
  %69 = vmatprep.subr.bf16.mxu0 0
  %70 = vmatpush1.bf16.xpose.msra.mxu0 0
  %71 = vmatprep.subr.bf16.mxu0 0
  %72 = vmatpush1.bf16.xpose.msra.mxu0 0
  %73 = vmatprep.subr.bf16.mxu0 0
  %74 = vmatpush1.bf16.xpose.msra.mxu0 0
  %75 = vmatprep.subr.bf16.mxu0 0
  %76 = vmatpush1.bf16.xpose.msra.mxu0 0
  %77 = vmatprep.subr.bf16.mxu0 0
  %78 = vmatpush1.bf16.xpose.msra.mxu0 0
  %79 = vmatprep.subr.bf16.mxu0 0
  %80 = vmatpush1.bf16.xpose.msra.mxu0 0
  %81 = vmatprep.subr.bf16.mxu0 0
  %82 = vmatpush1.bf16.xpose.msra.mxu0 0
  %83 = vmatprep.mubr.bf16.mxu0 0
  %84 = vmatmul.mubr.bf16.gmra.mrb[0].mxu0 %v46
  %v85 = vpop.f32.mrb[0].mxu0
  %v86 = vadd.f32 0.0, %v85
  %v87 = vpop.f32.mrb[0].mxu0
  %v88 = vpop.f32.mrb[0].mxu0
  %v89 = vpop.f32.mrb[0].mxu0
  %90 = vdwg.mxu0
  %v92 = vsel %vm44, %v19, 0
  %v95 = vsel %vm44, %v27, 0
  %97 = vmatprep.subr.bf16.mxu0 0
  %98 = vmatpush1.bf16.xpose.msra.mxu0 %v95
  %99 = vmatprep.subr.bf16.mxu0 0
  %100 = vmatpush1.bf16.xpose.msra.mxu0 0
  %101 = vmatprep.subr.bf16.mxu0 0
  %102 = vmatpush1.bf16.xpose.msra.mxu0 0
  %103 = vmatprep.subr.bf16.mxu0 0
  %104 = vmatpush1.bf16.xpose.msra.mxu0 0
  %105 = vmatprep.subr.bf16.mxu0 0
  %106 = vmatpush1.bf16.xpose.msra.mxu0 0
  %107 = vmatprep.subr.bf16.mxu0 0
  %108 = vmatpush1.bf16.xpose.msra.mxu0 0
  %109 = vmatprep.subr.bf16.mxu0 0
  %110 = vmatpush1.bf16.xpose.msra.mxu0 0
  %111 = vmatprep.subr.bf16.mxu0 0
  %112 = vmatpush1.bf16.xpose.msra.mxu0 0
  %113 = vmatprep.subr.bf16.mxu0 0
  %114 = vmatpush1.bf16.xpose.msra.mxu0 0
  %115 = vmatprep.subr.bf16.mxu0 0
  %116 = vmatpush1.bf16.xpose.msra.mxu0 0
  %117 = vmatprep.subr.bf16.mxu0 0
  %118 = vmatpush1.bf16.xpose.msra.mxu0 0
  %119 = vmatprep.subr.bf16.mxu0 0
  %120 = vmatpush1.bf16.xpose.msra.mxu0 0
  %121 = vmatprep.subr.bf16.mxu0 0
  %122 = vmatpush1.bf16.xpose.msra.mxu0 0
  %123 = vmatprep.subr.bf16.mxu0 0
  %124 = vmatpush1.bf16.xpose.msra.mxu0 0
  %125 = vmatprep.subr.bf16.mxu0 0
  %126 = vmatpush1.bf16.xpose.msra.mxu0 0
  %127 = vmatprep.subr.bf16.mxu0 0
  %128 = vmatpush1.bf16.xpose.msra.mxu0 0
  %129 = vmatprep.mubr.bf16.mxu0 0
  %130 = vmatmul.mubr.bf16.gmra.mrb[0].mxu0 %v92
  %v131 = vpop.f32.mrb[0].mxu0
  %v132 = vadd.f32 0.0, %v131
  %v133 = vpop.f32.mrb[0].mxu0
  %v134 = vpop.f32.mrb[0].mxu0
  %v135 = vpop.f32.mrb[0].mxu0
  %136 = vdwg.mxu0
  %v138 = vsel %vm44, %v20, 0
  %v141 = vsel %vm44, %v28, 0
  %143 = vmatprep.subr.bf16.mxu0 0
  %144 = vmatpush1.bf16.xpose.msra.mxu0 %v141
  %145 = vmatprep.subr.bf16.mxu0 0
  %146 = vmatpush1.bf16.xpose.msra.mxu0 0
  %147 = vmatprep.subr.bf16.mxu0 0
  %148 = vmatpush1.bf16.xpose.msra.mxu0 0
  %149 = vmatprep.subr.bf16.mxu0 0
  %150 = vmatpush1.bf16.xpose.msra.mxu0 0
  %151 = vmatprep.subr.bf16.mxu0 0
  %152 = vmatpush1.bf16.xpose.msra.mxu0 0
  %153 = vmatprep.subr.bf16.mxu0 0
  %154 = vmatpush1.bf16.xpose.msra.mxu0 0
  %155 = vmatprep.subr.bf16.mxu0 0
  %156 = vmatpush1.bf16.xpose.msra.mxu0 0
  %157 = vmatprep.subr.bf16.mxu0 0
  %158 = vmatpush1.bf16.xpose.msra.mxu0 0
  %159 = vmatprep.subr.bf16.mxu0 0
  %160 = vmatpush1.bf16.xpose.msra.mxu0 0
  %161 = vmatprep.subr.bf16.mxu0 0
  %162 = vmatpush1.bf16.xpose.msra.mxu0 0
  %163 = vmatprep.subr.bf16.mxu0 0
  %164 = vmatpush1.bf16.xpose.msra.mxu0 0
  %165 = vmatprep.subr.bf16.mxu0 0
  %166 = vmatpush1.bf16.xpose.msra.mxu0 0
  %167 = vmatprep.subr.bf16.mxu0 0
  %168 = vmatpush1.bf16.xpose.msra.mxu0 0
  %169 = vmatprep.subr.bf16.mxu0 0
  %170 = vmatpush1.bf16.xpose.msra.mxu0 0
  %171 = vmatprep.subr.bf16.mxu0 0
  %172 = vmatpush1.bf16.xpose.msra.mxu0 0
  %173 = vmatprep.subr.bf16.mxu0 0
  %174 = vmatpush1.bf16.xpose.msra.mxu0 0
  %175 = vmatprep.mubr.bf16.mxu0 0
  %176 = vmatmul.mubr.bf16.gmra.mrb[0].mxu0 %v138
  %v177 = vpop.f32.mrb[0].mxu0
  %v178 = vadd.f32 0.0, %v177
  %v179 = vpop.f32.mrb[0].mxu0
  %v180 = vpop.f32.mrb[0].mxu0
  %v181 = vpop.f32.mrb[0].mxu0
  %182 = vdwg.mxu0
  %v184 = vsel %vm44, %v21, 0
  %v187 = vsel %vm44, %v29, 0
  %189 = vmatprep.subr.bf16.mxu0 0
  %190 = vmatpush1.bf16.xpose.msra.mxu0 %v187
  %191 = vmatprep.subr.bf16.mxu0 0
  %192 = vmatpush1.bf16.xpose.msra.mxu0 0
  %193 = vmatprep.subr.bf16.mxu0 0
  %194 = vmatpush1.bf16.xpose.msra.mxu0 0
  %195 = vmatprep.subr.bf16.mxu0 0
  %196 = vmatpush1.bf16.xpose.msra.mxu0 0
  %197 = vmatprep.subr.bf16.mxu0 0
  %198 = vmatpush1.bf16.xpose.msra.mxu0 0
  %199 = vmatprep.subr.bf16.mxu0 0
  %200 = vmatpush1.bf16.xpose.msra.mxu0 0
  %201 = vmatprep.subr.bf16.mxu0 0
  %202 = vmatpush1.bf16.xpose.msra.mxu0 0
  %203 = vmatprep.subr.bf16.mxu0 0
  %204 = vmatpush1.bf16.xpose.msra.mxu0 0
  %205 = vmatprep.subr.bf16.mxu0 0
  %206 = vmatpush1.bf16.xpose.msra.mxu0 0
  %207 = vmatprep.subr.bf16.mxu0 0
  %208 = vmatpush1.bf16.xpose.msra.mxu0 0
  %209 = vmatprep.subr.bf16.mxu0 0
  %210 = vmatpush1.bf16.xpose.msra.mxu0 0
  %211 = vmatprep.subr.bf16.mxu0 0
  %212 = vmatpush1.bf16.xpose.msra.mxu0 0
  %213 = vmatprep.subr.bf16.mxu0 0
  %214 = vmatpush1.bf16.xpose.msra.mxu0 0
  %215 = vmatprep.subr.bf16.mxu0 0
  %216 = vmatpush1.bf16.xpose.msra.mxu0 0
  %217 = vmatprep.subr.bf16.mxu0 0
  %218 = vmatpush1.bf16.xpose.msra.mxu0 0
  %219 = vmatprep.subr.bf16.mxu0 0
  %220 = vmatpush1.bf16.xpose.msra.mxu0 0
  %221 = vmatprep.mubr.bf16.mxu0 0
  %222 = vmatmul.mubr.bf16.gmra.mrb[0].mxu0 %v184
  %v223 = vpop.f32.mrb[0].mxu0
  %v224 = vadd.f32 0.0, %v223
  %v225 = vpop.f32.mrb[0].mxu0
  %v226 = vpop.f32.mrb[0].mxu0
  %v227 = vpop.f32.mrb[0].mxu0
  %228 = vdwg.mxu0
  %v230 = vsel %vm44, %v22, 0
  %v233 = vsel %vm44, %v30, 0
  %235 = vmatprep.subr.bf16.mxu0 0
  %236 = vmatpush1.bf16.xpose.msra.mxu0 %v233
  %237 = vmatprep.subr.bf16.mxu0 0
  %238 = vmatpush1.bf16.xpose.msra.mxu0 0
  %239 = vmatprep.subr.bf16.mxu0 0
  %240 = vmatpush1.bf16.xpose.msra.mxu0 0
  %241 = vmatprep.subr.bf16.mxu0 0
  %242 = vmatpush1.bf16.xpose.msra.mxu0 0
  %243 = vmatprep.subr.bf16.mxu0 0
  %244 = vmatpush1.bf16.xpose.msra.mxu0 0
  %245 = vmatprep.subr.bf16.mxu0 0
  %246 = vmatpush1.bf16.xpose.msra.mxu0 0
  %247 = vmatprep.subr.bf16.mxu0 0
  %248 = vmatpush1.bf16.xpose.msra.mxu0 0
  %249 = vmatprep.subr.bf16.mxu0 0
  %250 = vmatpush1.bf16.xpose.msra.mxu0 0
  %251 = vmatprep.subr.bf16.mxu0 0
  %252 = vmatpush1.bf16.xpose.msra.mxu0 0
  %253 = vmatprep.subr.bf16.mxu0 0
  %254 = vmatpush1.bf16.xpose.msra.mxu0 0
  %255 = vmatprep.subr.bf16.mxu0 0
  %256 = vmatpush1.bf16.xpose.msra.mxu0 0
  %257 = vmatprep.subr.bf16.mxu0 0
  %258 = vmatpush1.bf16.xpose.msra.mxu0 0
  %259 = vmatprep.subr.bf16.mxu0 0
  %260 = vmatpush1.bf16.xpose.msra.mxu0 0
  %261 = vmatprep.subr.bf16.mxu0 0
  %262 = vmatpush1.bf16.xpose.msra.mxu0 0
  %263 = vmatprep.subr.bf16.mxu0 0
  %264 = vmatpush1.bf16.xpose.msra.mxu0 0
  %265 = vmatprep.subr.bf16.mxu0 0
  %266 = vmatpush1.bf16.xpose.msra.mxu0 0
  %267 = vmatprep.mubr.bf16.mxu0 0
  %268 = vmatmul.mubr.bf16.gmra.mrb[0].mxu0 %v230
  %v269 = vpop.f32.mrb[0].mxu0
  %v270 = vadd.f32 0.0, %v269
  %v271 = vpop.f32.mrb[0].mxu0
  %v272 = vpop.f32.mrb[0].mxu0
  %v273 = vpop.f32.mrb[0].mxu0
  %274 = vdwg.mxu0
  %v276 = vsel %vm44, %v23, 0
  %v279 = vsel %vm44, %v31, 0
  %281 = vmatprep.subr.bf16.mxu0 0
  %282 = vmatpush1.bf16.xpose.msra.mxu0 %v279
  %283 = vmatprep.subr.bf16.mxu0 0
  %284 = vmatpush1.bf16.xpose.msra.mxu0 0
  %285 = vmatprep.subr.bf16.mxu0 0
  %286 = vmatpush1.bf16.xpose.msra.mxu0 0
  %287 = vmatprep.subr.bf16.mxu0 0
  %288 = vmatpush1.bf16.xpose.msra.mxu0 0
  %289 = vmatprep.subr.bf16.mxu0 0
  %290 = vmatpush1.bf16.xpose.msra.mxu0 0
  %291 = vmatprep.subr.bf16.mxu0 0
  %292 = vmatpush1.bf16.xpose.msra.mxu0 0
  %293 = vmatprep.subr.bf16.mxu0 0
  %294 = vmatpush1.bf16.xpose.msra.mxu0 0
  %295 = vmatprep.subr.bf16.mxu0 0
  %296 = vmatpush1.bf16.xpose.msra.mxu0 0
  %297 = vmatprep.subr.bf16.mxu0 0
  %298 = vmatpush1.bf16.xpose.msra.mxu0 0
  %299 = vmatprep.subr.bf16.mxu0 0
  %300 = vmatpush1.bf16.xpose.msra.mxu0 0
  %301 = vmatprep.subr.bf16.mxu0 0
  %302 = vmatpush1.bf16.xpose.msra.mxu0 0
  %303 = vmatprep.subr.bf16.mxu0 0
  %304 = vmatpush1.bf16.xpose.msra.mxu0 0
  %305 = vmatprep.subr.bf16.mxu0 0
  %306 = vmatpush1.bf16.xpose.msra.mxu0 0
  %307 = vmatprep.subr.bf16.mxu0 0
  %308 = vmatpush1.bf16.xpose.msra.mxu0 0
  %309 = vmatprep.subr.bf16.mxu0 0
  %310 = vmatpush1.bf16.xpose.msra.mxu0 0
  %311 = vmatprep.subr.bf16.mxu0 0
  %312 = vmatpush1.bf16.xpose.msra.mxu0 0
  %313 = vmatprep.mubr.bf16.mxu0 0
  %314 = vmatmul.mubr.bf16.gmra.mrb[0].mxu0 %v276
  %v315 = vpop.f32.mrb[0].mxu0
  %v316 = vadd.f32 0.0, %v315
  %v317 = vpop.f32.mrb[0].mxu0
  %v318 = vpop.f32.mrb[0].mxu0
  %v319 = vpop.f32.mrb[0].mxu0
  %320 = vdwg.mxu0
  %v322 = vsel %vm44, %v24, 0
  %v325 = vsel %vm44, %v32, 0
  %327 = vmatprep.subr.bf16.mxu0 0
  %328 = vmatpush1.bf16.xpose.msra.mxu0 %v325
  %329 = vmatprep.subr.bf16.mxu0 0
  %330 = vmatpush1.bf16.xpose.msra.mxu0 0
  %331 = vmatprep.subr.bf16.mxu0 0
  %332 = vmatpush1.bf16.xpose.msra.mxu0 0
  %333 = vmatprep.subr.bf16.mxu0 0
  %334 = vmatpush1.bf16.xpose.msra.mxu0 0
  %335 = vmatprep.subr.bf16.mxu0 0
  %336 = vmatpush1.bf16.xpose.msra.mxu0 0
  %337 = vmatprep.subr.bf16.mxu0 0
  %338 = vmatpush1.bf16.xpose.msra.mxu0 0
  %339 = vmatprep.subr.bf16.mxu0 0
  %340 = vmatpush1.bf16.xpose.msra.mxu0 0
  %341 = vmatprep.subr.bf16.mxu0 0
  %342 = vmatpush1.bf16.xpose.msra.mxu0 0
  %343 = vmatprep.subr.bf16.mxu0 0
  %344 = vmatpush1.bf16.xpose.msra.mxu0 0
  %345 = vmatprep.subr.bf16.mxu0 0
  %346 = vmatpush1.bf16.xpose.msra.mxu0 0
  %347 = vmatprep.subr.bf16.mxu0 0
  %348 = vmatpush1.bf16.xpose.msra.mxu0 0
  %349 = vmatprep.subr.bf16.mxu0 0
  %350 = vmatpush1.bf16.xpose.msra.mxu0 0
  %351 = vmatprep.subr.bf16.mxu0 0
  %352 = vmatpush1.bf16.xpose.msra.mxu0 0
  %353 = vmatprep.subr.bf16.mxu0 0
  %354 = vmatpush1.bf16.xpose.msra.mxu0 0
  %355 = vmatprep.subr.bf16.mxu0 0
  %356 = vmatpush1.bf16.xpose.msra.mxu0 0
  %357 = vmatprep.subr.bf16.mxu0 0
  %358 = vmatpush1.bf16.xpose.msra.mxu0 0
  %359 = vmatprep.mubr.bf16.mxu0 0
  %360 = vmatmul.mubr.bf16.gmra.mrb[0].mxu0 %v322
  %v361 = vpop.f32.mrb[0].mxu0
  %v362 = vadd.f32 0.0, %v361
  %v363 = vpop.f32.mrb[0].mxu0
  %v364 = vpop.f32.mrb[0].mxu0
  %v365 = vpop.f32.mrb[0].mxu0
  %366 = vdwg.mxu0
  %v368 = vsel %vm44, %v25, 0
  %v371 = vsel %vm44, %v33, 0
  %373 = vmatprep.subr.bf16.mxu0 0
  %374 = vmatpush1.bf16.xpose.msra.mxu0 %v371
  %375 = vmatprep.subr.bf16.mxu0 0
  %376 = vmatpush1.bf16.xpose.msra.mxu0 0
  %377 = vmatprep.subr.bf16.mxu0 0
  %378 = vmatpush1.bf16.xpose.msra.mxu0 0
  %379 = vmatprep.subr.bf16.mxu0 0
  %380 = vmatpush1.bf16.xpose.msra.mxu0 0
  %381 = vmatprep.subr.bf16.mxu0 0
  %382 = vmatpush1.bf16.xpose.msra.mxu0 0
  %383 = vmatprep.subr.bf16.mxu0 0
  %384 = vmatpush1.bf16.xpose.msra.mxu0 0
  %385 = vmatprep.subr.bf16.mxu0 0
  %386 = vmatpush1.bf16.xpose.msra.mxu0 0
  %387 = vmatprep.subr.bf16.mxu0 0
  %388 = vmatpush1.bf16.xpose.msra.mxu0 0
  %389 = vmatprep.subr.bf16.mxu0 0
  %390 = vmatpush1.bf16.xpose.msra.mxu0 0
  %391 = vmatprep.subr.bf16.mxu0 0
  %392 = vmatpush1.bf16.xpose.msra.mxu0 0
  %393 = vmatprep.subr.bf16.mxu0 0
  %394 = vmatpush1.bf16.xpose.msra.mxu0 0
  %395 = vmatprep.subr.bf16.mxu0 0
  %396 = vmatpush1.bf16.xpose.msra.mxu0 0
  %397 = vmatprep.subr.bf16.mxu0 0
  %398 = vmatpush1.bf16.xpose.msra.mxu0 0
  %399 = vmatprep.subr.bf16.mxu0 0
  %400 = vmatpush1.bf16.xpose.msra.mxu0 0
  %401 = vmatprep.subr.bf16.mxu0 0
  %402 = vmatpush1.bf16.xpose.msra.mxu0 0
  %403 = vmatprep.subr.bf16.mxu0 0
  %404 = vmatpush1.bf16.xpose.msra.mxu0 0
  %405 = vmatprep.mubr.bf16.mxu0 0
  %406 = vmatmul.mubr.bf16.gmra.mrb[0].mxu0 %v368
  %v407 = vpop.f32.mrb[0].mxu0
  %v408 = vadd.f32 0.0, %v407
  %v409 = vpop.f32.mrb[0].mxu0
  %v410 = vpop.f32.mrb[0].mxu0
  %v411 = vpop.f32.mrb[0].mxu0
  %412 = vdwg.mxu0
  %v413 = vmul.f32 %v86, 0.70710677
  %v414 = vmul.f32 %v132, 0.70710677
  %v415 = vmul.f32 %v178, 0.70710677
  %v416 = vmul.f32 %v224, 0.70710677
  %v417 = vmul.f32 %v270, 0.70710677
  %v418 = vmul.f32 %v316, 0.70710677
  %v419 = vmul.f32 %v362, 0.70710677
  %v420 = vmul.f32 %v408, 0.70710677
  %v421 = vadd.f32 %v413, %v42
  %v422 = vadd.f32 %v414, %v42
  %v423 = vadd.f32 %v415, %v42
  %v424 = vadd.f32 %v416, %v42
  %v425 = vadd.f32 %v417, %v42
  %v426 = vadd.f32 %v418, %v42
  %v427 = vadd.f32 %v419, %v42
  %v428 = vadd.f32 %v420, %v42
  %vm429 = vcmask 27648
  %v430 = vsel %vm429, %v421, -inf
  %431 = vmax.xlane.f32.xlu0 %v430
  %v432 = vpop.xlane.xlu0 %431
  %v433 = vsel %vm429, %v422, -inf
  %434 = vmax.xlane.f32.xlu0 %v433
  %v435 = vpop.xlane.xlu0 %434
  %v436 = vsel %vm429, %v423, -inf
  %437 = vmax.xlane.f32.xlu0 %v436
  %v438 = vpop.xlane.xlu0 %437
  %v439 = vsel %vm429, %v424, -inf
  %440 = vmax.xlane.f32.xlu0 %v439
  %v441 = vpop.xlane.xlu0 %440
  %v442 = vsel %vm429, %v425, -inf
  %443 = vmax.xlane.f32.xlu0 %v442
  %v444 = vpop.xlane.xlu0 %443
  %v445 = vsel %vm429, %v426, -inf
  %446 = vmax.xlane.f32.xlu0 %v445
  %v447 = vpop.xlane.xlu0 %446
  %v448 = vsel %vm429, %v427, -inf
  %449 = vmax.xlane.f32.xlu0 %v448
  %v450 = vpop.xlane.xlu0 %449
  %v451 = vsel %vm429, %v428, -inf
  %452 = vmax.xlane.f32.xlu0 %v451
  %v453 = vpop.xlane.xlu0 %452
  %v454 = vsub.f32 %v421, %v432
  %v455 = vsub.f32 %v422, %v435
  %v456 = vsub.f32 %v423, %v438
  %v457 = vsub.f32 %v424, %v441
  %v458 = vsub.f32 %v425, %v444
  %v459 = vsub.f32 %v426, %v447
  %v460 = vsub.f32 %v427, %v450
  %v461 = vsub.f32 %v428, %v453
  %v462 = vmul.f32 %v454, 1.442695
  %v463 = vpow.pop %v462
  %v464 = vmul.f32 %v455, 1.442695
  %v465 = vpow.pop %v464
  %v466 = vmul.f32 %v456, 1.442695
  %v467 = vpow.pop %v466
  %v468 = vmul.f32 %v457, 1.442695
  %v469 = vpow.pop %v468
  %v470 = vmul.f32 %v458, 1.442695
  %v471 = vpow.pop %v470
  %v472 = vmul.f32 %v459, 1.442695
  %v473 = vpow.pop %v472
  %v474 = vmul.f32 %v460, 1.442695
  %v475 = vpow.pop %v474
  %v476 = vmul.f32 %v461, 1.442695
  %v477 = vpow.pop %v476
  %v478 = vsel %vm429, %v463, 0.0
  %479 = vadd.xlane.f32.xlu0 %v478
  %v480 = vpop.xlane.xlu0 %479
  %v481 = vsel %vm429, %v465, 0.0
  %482 = vadd.xlane.f32.xlu0 %v481
  %v483 = vpop.xlane.xlu0 %482
  %v484 = vsel %vm429, %v467, 0.0
  %485 = vadd.xlane.f32.xlu0 %v484
  %v486 = vpop.xlane.xlu0 %485
  %v487 = vsel %vm429, %v469, 0.0
  %488 = vadd.xlane.f32.xlu0 %v487
  %v489 = vpop.xlane.xlu0 %488
  %v490 = vsel %vm429, %v471, 0.0
  %491 = vadd.xlane.f32.xlu0 %v490
  %v492 = vpop.xlane.xlu0 %491
  %v493 = vsel %vm429, %v473, 0.0
  %494 = vadd.xlane.f32.xlu0 %v493
  %v495 = vpop.xlane.xlu0 %494
  %v496 = vsel %vm429, %v475, 0.0
  %497 = vadd.xlane.f32.xlu0 %v496
  %v498 = vpop.xlane.xlu0 %497
  %v499 = vsel %vm429, %v477, 0.0
  %500 = vadd.xlane.f32.xlu0 %v499
  %v501 = vpop.xlane.xlu0 %500
  %v502 = vrcp.pop %v480
  %v503 = vrcp.pop %v483
  %v504 = vrcp.pop %v486
  %v505 = vrcp.pop %v489
  %v506 = vrcp.pop %v492
  %v507 = vrcp.pop %v495
  %v508 = vrcp.pop %v498
  %v509 = vrcp.pop %v501
  %v510 = vmul.f32 %v463, %v502
  %v511 = vmul.f32 %v465, %v503
  %v512 = vmul.f32 %v467, %v504
  %v513 = vmul.f32 %v469, %v505
  %v514 = vmul.f32 %v471, %v506
  %v515 = vmul.f32 %v473, %v507
  %v516 = vmul.f32 %v475, %v508
  %v517 = vmul.f32 %v477, %v509
  %v518 = vpack.c.bf16 %v510, %v510
  %v519 = vpack.c.bf16 %v511, %v511
  %v520 = vpack.c.bf16 %v512, %v512
  %v521 = vpack.c.bf16 %v513, %v513
  %v522 = vpack.c.bf16 %v514, %v514
  %v523 = vpack.c.bf16 %v515, %v515
  %v524 = vpack.c.bf16 %v516, %v516
  %v525 = vpack.c.bf16 %v517, %v517
  %v527 = vsel %vm44, %v518, 0
  %vm529 = vcmask 1041408
  %v531 = vsel %vm529, %v34, 0
  %533 = vmatprep.subr.bf16.mxu0 0
  %534 = vmatpush1.bf16.msra.mxu0 %v531
  %535 = vmatprep.subr.bf16.mxu0 0
  %536 = vmatpush1.bf16.msra.mxu0 0
  %537 = vmatprep.subr.bf16.mxu0 0
  %538 = vmatpush1.bf16.msra.mxu0 0
  %539 = vmatprep.subr.bf16.mxu0 0
  %540 = vmatpush1.bf16.msra.mxu0 0
  %541 = vmatprep.subr.bf16.mxu0 0
  %542 = vmatpush1.bf16.msra.mxu0 0
  %543 = vmatprep.subr.bf16.mxu0 0
  %544 = vmatpush1.bf16.msra.mxu0 0
  %545 = vmatprep.subr.bf16.mxu0 0
  %546 = vmatpush1.bf16.msra.mxu0 0
  %547 = vmatprep.subr.bf16.mxu0 0
  %548 = vmatpush1.bf16.msra.mxu0 0
  %549 = vmatprep.subr.bf16.mxu0 0
  %550 = vmatpush1.bf16.msra.mxu0 0
  %551 = vmatprep.subr.bf16.mxu0 0
  %552 = vmatpush1.bf16.msra.mxu0 0
  %553 = vmatprep.subr.bf16.mxu0 0
  %554 = vmatpush1.bf16.msra.mxu0 0
  %555 = vmatprep.subr.bf16.mxu0 0
  %556 = vmatpush1.bf16.msra.mxu0 0
  %557 = vmatprep.subr.bf16.mxu0 0
  %558 = vmatpush1.bf16.msra.mxu0 0
  %559 = vmatprep.subr.bf16.mxu0 0
  %560 = vmatpush1.bf16.msra.mxu0 0
  %561 = vmatprep.subr.bf16.mxu0 0
  %562 = vmatpush1.bf16.msra.mxu0 0
  %563 = vmatprep.subr.bf16.mxu0 0
  %564 = vmatpush1.bf16.msra.mxu0 0
  %565 = vmatprep.mubr.bf16.mxu0 0
  %566 = vmatmul.mubr.bf16.gmra.mrb[0].mxu0 %v527
  %v567 = vpop.f32.mrb[0].mxu0
  %v568 = vadd.f32 0.0, %v567
  %v569 = vpop.f32.mrb[0].mxu0
  %v570 = vpop.f32.mrb[0].mxu0
  %v571 = vpop.f32.mrb[0].mxu0
  %572 = vdwg.mxu0
  %v574 = vsel %vm44, %v519, 0
  %v577 = vsel %vm529, %v35, 0
  %579 = vmatprep.subr.bf16.mxu0 0
  %580 = vmatpush1.bf16.msra.mxu0 %v577
  %581 = vmatprep.subr.bf16.mxu0 0
  %582 = vmatpush1.bf16.msra.mxu0 0
  %583 = vmatprep.subr.bf16.mxu0 0
  %584 = vmatpush1.bf16.msra.mxu0 0
  %585 = vmatprep.subr.bf16.mxu0 0
  %586 = vmatpush1.bf16.msra.mxu0 0
  %587 = vmatprep.subr.bf16.mxu0 0
  %588 = vmatpush1.bf16.msra.mxu0 0
  %589 = vmatprep.subr.bf16.mxu0 0
  %590 = vmatpush1.bf16.msra.mxu0 0
  %591 = vmatprep.subr.bf16.mxu0 0
  %592 = vmatpush1.bf16.msra.mxu0 0
  %593 = vmatprep.subr.bf16.mxu0 0
  %594 = vmatpush1.bf16.msra.mxu0 0
  %595 = vmatprep.subr.bf16.mxu0 0
  %596 = vmatpush1.bf16.msra.mxu0 0
  %597 = vmatprep.subr.bf16.mxu0 0
  %598 = vmatpush1.bf16.msra.mxu0 0
  %599 = vmatprep.subr.bf16.mxu0 0
  %600 = vmatpush1.bf16.msra.mxu0 0
  %601 = vmatprep.subr.bf16.mxu0 0
  %602 = vmatpush1.bf16.msra.mxu0 0
  %603 = vmatprep.subr.bf16.mxu0 0
  %604 = vmatpush1.bf16.msra.mxu0 0
  %605 = vmatprep.subr.bf16.mxu0 0
  %606 = vmatpush1.bf16.msra.mxu0 0
  %607 = vmatprep.subr.bf16.mxu0 0
  %608 = vmatpush1.bf16.msra.mxu0 0
  %609 = vmatprep.subr.bf16.mxu0 0
  %610 = vmatpush1.bf16.msra.mxu0 0
  %611 = vmatprep.mubr.bf16.mxu0 0
  %612 = vmatmul.mubr.bf16.gmra.mrb[0].mxu0 %v574
  %v613 = vpop.f32.mrb[0].mxu0
  %v614 = vadd.f32 0.0, %v613
  %v615 = vpop.f32.mrb[0].mxu0
  %v616 = vpop.f32.mrb[0].mxu0
  %v617 = vpop.f32.mrb[0].mxu0
  %618 = vdwg.mxu0
  %v620 = vsel %vm44, %v520, 0
  %v623 = vsel %vm529, %v36, 0
  %625 = vmatprep.subr.bf16.mxu0 0
  %626 = vmatpush1.bf16.msra.mxu0 %v623
  %627 = vmatprep.subr.bf16.mxu0 0
  %628 = vmatpush1.bf16.msra.mxu0 0
  %629 = vmatprep.subr.bf16.mxu0 0
  %630 = vmatpush1.bf16.msra.mxu0 0
  %631 = vmatprep.subr.bf16.mxu0 0
  %632 = vmatpush1.bf16.msra.mxu0 0
  %633 = vmatprep.subr.bf16.mxu0 0
  %634 = vmatpush1.bf16.msra.mxu0 0
  %635 = vmatprep.subr.bf16.mxu0 0
  %636 = vmatpush1.bf16.msra.mxu0 0
  %637 = vmatprep.subr.bf16.mxu0 0
  %638 = vmatpush1.bf16.msra.mxu0 0
  %639 = vmatprep.subr.bf16.mxu0 0
  %640 = vmatpush1.bf16.msra.mxu0 0
  %641 = vmatprep.subr.bf16.mxu0 0
  %642 = vmatpush1.bf16.msra.mxu0 0
  %643 = vmatprep.subr.bf16.mxu0 0
  %644 = vmatpush1.bf16.msra.mxu0 0
  %645 = vmatprep.subr.bf16.mxu0 0
  %646 = vmatpush1.bf16.msra.mxu0 0
  %647 = vmatprep.subr.bf16.mxu0 0
  %648 = vmatpush1.bf16.msra.mxu0 0
  %649 = vmatprep.subr.bf16.mxu0 0
  %650 = vmatpush1.bf16.msra.mxu0 0
  %651 = vmatprep.subr.bf16.mxu0 0
  %652 = vmatpush1.bf16.msra.mxu0 0
  %653 = vmatprep.subr.bf16.mxu0 0
  %654 = vmatpush1.bf16.msra.mxu0 0
  %655 = vmatprep.subr.bf16.mxu0 0
  %656 = vmatpush1.bf16.msra.mxu0 0
  %657 = vmatprep.mubr.bf16.mxu0 0
  %658 = vmatmul.mubr.bf16.gmra.mrb[0].mxu0 %v620
  %v659 = vpop.f32.mrb[0].mxu0
  %v660 = vadd.f32 0.0, %v659
  %v661 = vpop.f32.mrb[0].mxu0
  %v662 = vpop.f32.mrb[0].mxu0
  %v663 = vpop.f32.mrb[0].mxu0
  %664 = vdwg.mxu0
  %v666 = vsel %vm44, %v521, 0
  %v669 = vsel %vm529, %v37, 0
  %671 = vmatprep.subr.bf16.mxu0 0
  %672 = vmatpush1.bf16.msra.mxu0 %v669
  %673 = vmatprep.subr.bf16.mxu0 0
  %674 = vmatpush1.bf16.msra.mxu0 0
  %675 = vmatprep.subr.bf16.mxu0 0
  %676 = vmatpush1.bf16.msra.mxu0 0
  %677 = vmatprep.subr.bf16.mxu0 0
  %678 = vmatpush1.bf16.msra.mxu0 0
  %679 = vmatprep.subr.bf16.mxu0 0
  %680 = vmatpush1.bf16.msra.mxu0 0
  %681 = vmatprep.subr.bf16.mxu0 0
  %682 = vmatpush1.bf16.msra.mxu0 0
  %683 = vmatprep.subr.bf16.mxu0 0
  %684 = vmatpush1.bf16.msra.mxu0 0
  %685 = vmatprep.subr.bf16.mxu0 0
  %686 = vmatpush1.bf16.msra.mxu0 0
  %687 = vmatprep.subr.bf16.mxu0 0
  %688 = vmatpush1.bf16.msra.mxu0 0
  %689 = vmatprep.subr.bf16.mxu0 0
  %690 = vmatpush1.bf16.msra.mxu0 0
  %691 = vmatprep.subr.bf16.mxu0 0
  %692 = vmatpush1.bf16.msra.mxu0 0
  %693 = vmatprep.subr.bf16.mxu0 0
  %694 = vmatpush1.bf16.msra.mxu0 0
  %695 = vmatprep.subr.bf16.mxu0 0
  %696 = vmatpush1.bf16.msra.mxu0 0
  %697 = vmatprep.subr.bf16.mxu0 0
  %698 = vmatpush1.bf16.msra.mxu0 0
  %699 = vmatprep.subr.bf16.mxu0 0
  %700 = vmatpush1.bf16.msra.mxu0 0
  %701 = vmatprep.subr.bf16.mxu0 0
  %702 = vmatpush1.bf16.msra.mxu0 0
  %703 = vmatprep.mubr.bf16.mxu0 0
  %704 = vmatmul.mubr.bf16.gmra.mrb[0].mxu0 %v666
  %v705 = vpop.f32.mrb[0].mxu0
  %v706 = vadd.f32 0.0, %v705
  %v707 = vpop.f32.mrb[0].mxu0
  %v708 = vpop.f32.mrb[0].mxu0
  %v709 = vpop.f32.mrb[0].mxu0
  %710 = vdwg.mxu0
  %v712 = vsel %vm44, %v522, 0
  %v715 = vsel %vm529, %v38, 0
  %717 = vmatprep.subr.bf16.mxu0 0
  %718 = vmatpush1.bf16.msra.mxu0 %v715
  %719 = vmatprep.subr.bf16.mxu0 0
  %720 = vmatpush1.bf16.msra.mxu0 0
  %721 = vmatprep.subr.bf16.mxu0 0
  %722 = vmatpush1.bf16.msra.mxu0 0
  %723 = vmatprep.subr.bf16.mxu0 0
  %724 = vmatpush1.bf16.msra.mxu0 0
  %725 = vmatprep.subr.bf16.mxu0 0
  %726 = vmatpush1.bf16.msra.mxu0 0
  %727 = vmatprep.subr.bf16.mxu0 0
  %728 = vmatpush1.bf16.msra.mxu0 0
  %729 = vmatprep.subr.bf16.mxu0 0
  %730 = vmatpush1.bf16.msra.mxu0 0
  %731 = vmatprep.subr.bf16.mxu0 0
  %732 = vmatpush1.bf16.msra.mxu0 0
  %733 = vmatprep.subr.bf16.mxu0 0
  %734 = vmatpush1.bf16.msra.mxu0 0
  %735 = vmatprep.subr.bf16.mxu0 0
  %736 = vmatpush1.bf16.msra.mxu0 0
  %737 = vmatprep.subr.bf16.mxu0 0
  %738 = vmatpush1.bf16.msra.mxu0 0
  %739 = vmatprep.subr.bf16.mxu0 0
  %740 = vmatpush1.bf16.msra.mxu0 0
  %741 = vmatprep.subr.bf16.mxu0 0
  %742 = vmatpush1.bf16.msra.mxu0 0
  %743 = vmatprep.subr.bf16.mxu0 0
  %744 = vmatpush1.bf16.msra.mxu0 0
  %745 = vmatprep.subr.bf16.mxu0 0
  %746 = vmatpush1.bf16.msra.mxu0 0
  %747 = vmatprep.subr.bf16.mxu0 0
  %748 = vmatpush1.bf16.msra.mxu0 0
  %749 = vmatprep.mubr.bf16.mxu0 0
  %750 = vmatmul.mubr.bf16.gmra.mrb[0].mxu0 %v712
  %v751 = vpop.f32.mrb[0].mxu0
  %v752 = vadd.f32 0.0, %v751
  %v753 = vpop.f32.mrb[0].mxu0
  %v754 = vpop.f32.mrb[0].mxu0
  %v755 = vpop.f32.mrb[0].mxu0
  %756 = vdwg.mxu0
  %v758 = vsel %vm44, %v523, 0
  %v761 = vsel %vm529, %v39, 0
  %763 = vmatprep.subr.bf16.mxu0 0
  %764 = vmatpush1.bf16.msra.mxu0 %v761
  %765 = vmatprep.subr.bf16.mxu0 0
  %766 = vmatpush1.bf16.msra.mxu0 0
  %767 = vmatprep.subr.bf16.mxu0 0
  %768 = vmatpush1.bf16.msra.mxu0 0
  %769 = vmatprep.subr.bf16.mxu0 0
  %770 = vmatpush1.bf16.msra.mxu0 0
  %771 = vmatprep.subr.bf16.mxu0 0
  %772 = vmatpush1.bf16.msra.mxu0 0
  %773 = vmatprep.subr.bf16.mxu0 0
  %774 = vmatpush1.bf16.msra.mxu0 0
  %775 = vmatprep.subr.bf16.mxu0 0
  %776 = vmatpush1.bf16.msra.mxu0 0
  %777 = vmatprep.subr.bf16.mxu0 0
  %778 = vmatpush1.bf16.msra.mxu0 0
  %779 = vmatprep.subr.bf16.mxu0 0
  %780 = vmatpush1.bf16.msra.mxu0 0
  %781 = vmatprep.subr.bf16.mxu0 0
  %782 = vmatpush1.bf16.msra.mxu0 0
  %783 = vmatprep.subr.bf16.mxu0 0
  %784 = vmatpush1.bf16.msra.mxu0 0
  %785 = vmatprep.subr.bf16.mxu0 0
  %786 = vmatpush1.bf16.msra.mxu0 0
  %787 = vmatprep.subr.bf16.mxu0 0
  %788 = vmatpush1.bf16.msra.mxu0 0
  %789 = vmatprep.subr.bf16.mxu0 0
  %790 = vmatpush1.bf16.msra.mxu0 0
  %791 = vmatprep.subr.bf16.mxu0 0
  %792 = vmatpush1.bf16.msra.mxu0 0
  %793 = vmatprep.subr.bf16.mxu0 0
  %794 = vmatpush1.bf16.msra.mxu0 0
  %795 = vmatprep.mubr.bf16.mxu0 0
  %796 = vmatmul.mubr.bf16.gmra.mrb[0].mxu0 %v758
  %v797 = vpop.f32.mrb[0].mxu0
  %v798 = vadd.f32 0.0, %v797
  %v799 = vpop.f32.mrb[0].mxu0
  %v800 = vpop.f32.mrb[0].mxu0
  %v801 = vpop.f32.mrb[0].mxu0
  %802 = vdwg.mxu0
  %v804 = vsel %vm44, %v524, 0
  %v807 = vsel %vm529, %v40, 0
  %809 = vmatprep.subr.bf16.mxu0 0
  %810 = vmatpush1.bf16.msra.mxu0 %v807
  %811 = vmatprep.subr.bf16.mxu0 0
  %812 = vmatpush1.bf16.msra.mxu0 0
  %813 = vmatprep.subr.bf16.mxu0 0
  %814 = vmatpush1.bf16.msra.mxu0 0
  %815 = vmatprep.subr.bf16.mxu0 0
  %816 = vmatpush1.bf16.msra.mxu0 0
  %817 = vmatprep.subr.bf16.mxu0 0
  %818 = vmatpush1.bf16.msra.mxu0 0
  %819 = vmatprep.subr.bf16.mxu0 0
  %820 = vmatpush1.bf16.msra.mxu0 0
  %821 = vmatprep.subr.bf16.mxu0 0
  %822 = vmatpush1.bf16.msra.mxu0 0
  %823 = vmatprep.subr.bf16.mxu0 0
  %824 = vmatpush1.bf16.msra.mxu0 0
  %825 = vmatprep.subr.bf16.mxu0 0
  %826 = vmatpush1.bf16.msra.mxu0 0
  %827 = vmatprep.subr.bf16.mxu0 0
  %828 = vmatpush1.bf16.msra.mxu0 0
  %829 = vmatprep.subr.bf16.mxu0 0
  %830 = vmatpush1.bf16.msra.mxu0 0
  %831 = vmatprep.subr.bf16.mxu0 0
  %832 = vmatpush1.bf16.msra.mxu0 0
  %833 = vmatprep.subr.bf16.mxu0 0
  %834 = vmatpush1.bf16.msra.mxu0 0
  %835 = vmatprep.subr.bf16.mxu0 0
  %836 = vmatpush1.bf16.msra.mxu0 0
  %837 = vmatprep.subr.bf16.mxu0 0
  %838 = vmatpush1.bf16.msra.mxu0 0
  %839 = vmatprep.subr.bf16.mxu0 0
  %840 = vmatpush1.bf16.msra.mxu0 0
  %841 = vmatprep.mubr.bf16.mxu0 0
  %842 = vmatmul.mubr.bf16.gmra.mrb[0].mxu0 %v804
  %v843 = vpop.f32.mrb[0].mxu0
  %v844 = vadd.f32 0.0, %v843
  %v845 = vpop.f32.mrb[0].mxu0
  %v846 = vpop.f32.mrb[0].mxu0
  %v847 = vpop.f32.mrb[0].mxu0
  %848 = vdwg.mxu0
  %v850 = vsel %vm44, %v525, 0
  %v853 = vsel %vm529, %v41, 0
  %855 = vmatprep.subr.bf16.mxu0 0
  %856 = vmatpush1.bf16.msra.mxu0 %v853
  %857 = vmatprep.subr.bf16.mxu0 0
  %858 = vmatpush1.bf16.msra.mxu0 0
  %859 = vmatprep.subr.bf16.mxu0 0
  %860 = vmatpush1.bf16.msra.mxu0 0
  %861 = vmatprep.subr.bf16.mxu0 0
  %862 = vmatpush1.bf16.msra.mxu0 0
  %863 = vmatprep.subr.bf16.mxu0 0
  %864 = vmatpush1.bf16.msra.mxu0 0
  %865 = vmatprep.subr.bf16.mxu0 0
  %866 = vmatpush1.bf16.msra.mxu0 0
  %867 = vmatprep.subr.bf16.mxu0 0
  %868 = vmatpush1.bf16.msra.mxu0 0
  %869 = vmatprep.subr.bf16.mxu0 0
  %870 = vmatpush1.bf16.msra.mxu0 0
  %871 = vmatprep.subr.bf16.mxu0 0
  %872 = vmatpush1.bf16.msra.mxu0 0
  %873 = vmatprep.subr.bf16.mxu0 0
  %874 = vmatpush1.bf16.msra.mxu0 0
  %875 = vmatprep.subr.bf16.mxu0 0
  %876 = vmatpush1.bf16.msra.mxu0 0
  %877 = vmatprep.subr.bf16.mxu0 0
  %878 = vmatpush1.bf16.msra.mxu0 0
  %879 = vmatprep.subr.bf16.mxu0 0
  %880 = vmatpush1.bf16.msra.mxu0 0
  %881 = vmatprep.subr.bf16.mxu0 0
  %882 = vmatpush1.bf16.msra.mxu0 0
  %883 = vmatprep.subr.bf16.mxu0 0
  %884 = vmatpush1.bf16.msra.mxu0 0
  %885 = vmatprep.subr.bf16.mxu0 0
  %886 = vmatpush1.bf16.msra.mxu0 0
  %887 = vmatprep.mubr.bf16.mxu0 0
  %888 = vmatmul.mubr.bf16.gmra.mrb[0].mxu0 %v850
  %v889 = vpop.f32.mrb[0].mxu0
  %v890 = vadd.f32 0.0, %v889
  %v891 = vpop.f32.mrb[0].mxu0
  %v892 = vpop.f32.mrb[0].mxu0
  %v893 = vpop.f32.mrb[0].mxu0
  %894 = vdwg.mxu0
  %v897 = vunpack.c.l.s4 1983009808
  %v898 = vunpack.c.0.s8 %v897
  %v899 = vlaneseq
  %v900 = vshrl.u32 %v899, 7
  %v901 = vsub.s32 %v898, %v900
  %v902 = vrot.slane %v18, %v901
  %903 = vrot.lane.b32.xlu0 %v902, 124
  %v904 = vpop.permute.xlu0 %903
  %v907 = vunpack.c.l.s4 1983009808
  %v908 = vunpack.c.0.s8 %v907
  %v909 = vlaneseq
  %v910 = vshrl.u32 %v909, 7
  %v911 = vsub.s32 %v908, %v910
  %v912 = vrot.slane %v26, %v911
  %913 = vrot.lane.b32.xlu0 %v912, 124
  %v914 = vpop.permute.xlu0 %913
  %v916 = vsel %vm44, %v904, 0
  %v919 = vsel %vm44, %v914, 0
  %921 = vmatprep.subr.bf16.mxu0 0
  %922 = vmatpush1.bf16.xpose.msra.mxu0 %v919
  %923 = vmatprep.subr.bf16.mxu0 0
  %924 = vmatpush1.bf16.xpose.msra.mxu0 0
  %925 = vmatprep.subr.bf16.mxu0 0
  %926 = vmatpush1.bf16.xpose.msra.mxu0 0
  %927 = vmatprep.subr.bf16.mxu0 0
  %928 = vmatpush1.bf16.xpose.msra.mxu0 0
  %929 = vmatprep.subr.bf16.mxu0 0
  %930 = vmatpush1.bf16.xpose.msra.mxu0 0
  %931 = vmatprep.subr.bf16.mxu0 0
  %932 = vmatpush1.bf16.xpose.msra.mxu0 0
  %933 = vmatprep.subr.bf16.mxu0 0
  %934 = vmatpush1.bf16.xpose.msra.mxu0 0
  %935 = vmatprep.subr.bf16.mxu0 0
  %936 = vmatpush1.bf16.xpose.msra.mxu0 0
  %937 = vmatprep.subr.bf16.mxu0 0
  %938 = vmatpush1.bf16.xpose.msra.mxu0 0
  %939 = vmatprep.subr.bf16.mxu0 0
  %940 = vmatpush1.bf16.xpose.msra.mxu0 0
  %941 = vmatprep.subr.bf16.mxu0 0
  %942 = vmatpush1.bf16.xpose.msra.mxu0 0
  %943 = vmatprep.subr.bf16.mxu0 0
  %944 = vmatpush1.bf16.xpose.msra.mxu0 0
  %945 = vmatprep.subr.bf16.mxu0 0
  %946 = vmatpush1.bf16.xpose.msra.mxu0 0
  %947 = vmatprep.subr.bf16.mxu0 0
  %948 = vmatpush1.bf16.xpose.msra.mxu0 0
  %949 = vmatprep.subr.bf16.mxu0 0
  %950 = vmatpush1.bf16.xpose.msra.mxu0 0
  %951 = vmatprep.subr.bf16.mxu0 0
  %952 = vmatpush1.bf16.xpose.msra.mxu0 0
  %953 = vmatprep.mubr.bf16.mxu0 0
  %954 = vmatmul.mubr.bf16.gmra.mrb[0].mxu0 %v916
  %v955 = vpop.f32.mrb[0].mxu0
  %v956 = vadd.f32 0.0, %v955
  %v957 = vpop.f32.mrb[0].mxu0
  %v958 = vpop.f32.mrb[0].mxu0
  %v959 = vpop.f32.mrb[0].mxu0
  %960 = vdwg.mxu0
  %v963 = vunpack.c.l.s4 1983009808
  %v964 = vunpack.c.0.s8 %v963
  %v965 = vlaneseq
  %v966 = vshrl.u32 %v965, 7
  %v967 = vsub.s32 %v964, %v966
  %v968 = vrot.slane %v19, %v967
  %969 = vrot.lane.b32.xlu0 %v968, 124
  %v970 = vpop.permute.xlu0 %969
  %v973 = vunpack.c.l.s4 1983009808
  %v974 = vunpack.c.0.s8 %v973
  %v975 = vlaneseq
  %v976 = vshrl.u32 %v975, 7
  %v977 = vsub.s32 %v974, %v976
  %v978 = vrot.slane %v27, %v977
  %979 = vrot.lane.b32.xlu0 %v978, 124
  %v980 = vpop.permute.xlu0 %979
  %v982 = vsel %vm44, %v970, 0
  %v985 = vsel %vm44, %v980, 0
  %987 = vmatprep.subr.bf16.mxu0 0
  %988 = vmatpush1.bf16.xpose.msra.mxu0 %v985
  %989 = vmatprep.subr.bf16.mxu0 0
  %990 = vmatpush1.bf16.xpose.msra.mxu0 0
  %991 = vmatprep.subr.bf16.mxu0 0
  %992 = vmatpush1.bf16.xpose.msra.mxu0 0
  %993 = vmatprep.subr.bf16.mxu0 0
  %994 = vmatpush1.bf16.xpose.msra.mxu0 0
  %995 = vmatprep.subr.bf16.mxu0 0
  %996 = vmatpush1.bf16.xpose.msra.mxu0 0
  %997 = vmatprep.subr.bf16.mxu0 0
  %998 = vmatpush1.bf16.xpose.msra.mxu0 0
  %999 = vmatprep.subr.bf16.mxu0 0
  %1000 = vmatpush1.bf16.xpose.msra.mxu0 0
  %1001 = vmatprep.subr.bf16.mxu0 0
  %1002 = vmatpush1.bf16.xpose.msra.mxu0 0
  %1003 = vmatprep.subr.bf16.mxu0 0
  %1004 = vmatpush1.bf16.xpose.msra.mxu0 0
  %1005 = vmatprep.subr.bf16.mxu0 0
  %1006 = vmatpush1.bf16.xpose.msra.mxu0 0
  %1007 = vmatprep.subr.bf16.mxu0 0
  %1008 = vmatpush1.bf16.xpose.msra.mxu0 0
  %1009 = vmatprep.subr.bf16.mxu0 0
  %1010 = vmatpush1.bf16.xpose.msra.mxu0 0
  %1011 = vmatprep.subr.bf16.mxu0 0
  %1012 = vmatpush1.bf16.xpose.msra.mxu0 0
  %1013 = vmatprep.subr.bf16.mxu0 0
  %1014 = vmatpush1.bf16.xpose.msra.mxu0 0
  %1015 = vmatprep.subr.bf16.mxu0 0
  %1016 = vmatpush1.bf16.xpose.msra.mxu0 0
  %1017 = vmatprep.subr.bf16.mxu0 0
  %1018 = vmatpush1.bf16.xpose.msra.mxu0 0
  %1019 = vmatprep.mubr.bf16.mxu0 0
  %1020 = vmatmul.mubr.bf16.gmra.mrb[0].mxu0 %v982
  %v1021 = vpop.f32.mrb[0].mxu0
  %v1022 = vadd.f32 0.0, %v1021
  %v1023 = vpop.f32.mrb[0].mxu0
  %v1024 = vpop.f32.mrb[0].mxu0
  %v1025 = vpop.f32.mrb[0].mxu0
  %1026 = vdwg.mxu0
  %v1029 = vunpack.c.l.s4 1983009808
  %v1030 = vunpack.c.0.s8 %v1029
  %v1031 = vlaneseq
  %v1032 = vshrl.u32 %v1031, 7
  %v1033 = vsub.s32 %v1030, %v1032
  %v1034 = vrot.slane %v20, %v1033
  %1035 = vrot.lane.b32.xlu0 %v1034, 124
  %v1036 = vpop.permute.xlu0 %1035
  %v1039 = vunpack.c.l.s4 1983009808
  %v1040 = vunpack.c.0.s8 %v1039
  %v1041 = vlaneseq
  %v1042 = vshrl.u32 %v1041, 7
  %v1043 = vsub.s32 %v1040, %v1042
  %v1044 = vrot.slane %v28, %v1043
  %1045 = vrot.lane.b32.xlu0 %v1044, 124
  %v1046 = vpop.permute.xlu0 %1045
  %v1048 = vsel %vm44, %v1036, 0
  %v1051 = vsel %vm44, %v1046, 0
  %1053 = vmatprep.subr.bf16.mxu0 0
  %1054 = vmatpush1.bf16.xpose.msra.mxu0 %v1051
  %1055 = vmatprep.subr.bf16.mxu0 0
  %1056 = vmatpush1.bf16.xpose.msra.mxu0 0
  %1057 = vmatprep.subr.bf16.mxu0 0
  %1058 = vmatpush1.bf16.xpose.msra.mxu0 0
  %1059 = vmatprep.subr.bf16.mxu0 0
  %1060 = vmatpush1.bf16.xpose.msra.mxu0 0
  %1061 = vmatprep.subr.bf16.mxu0 0
  %1062 = vmatpush1.bf16.xpose.msra.mxu0 0
  %1063 = vmatprep.subr.bf16.mxu0 0
  %1064 = vmatpush1.bf16.xpose.msra.mxu0 0
  %1065 = vmatprep.subr.bf16.mxu0 0
  %1066 = vmatpush1.bf16.xpose.msra.mxu0 0
  %1067 = vmatprep.subr.bf16.mxu0 0
  %1068 = vmatpush1.bf16.xpose.msra.mxu0 0
  %1069 = vmatprep.subr.bf16.mxu0 0
  %1070 = vmatpush1.bf16.xpose.msra.mxu0 0
  %1071 = vmatprep.subr.bf16.mxu0 0
  %1072 = vmatpush1.bf16.xpose.msra.mxu0 0
  %1073 = vmatprep.subr.bf16.mxu0 0
  %1074 = vmatpush1.bf16.xpose.msra.mxu0 0
  %1075 = vmatprep.subr.bf16.mxu0 0
  %1076 = vmatpush1.bf16.xpose.msra.mxu0 0
  %1077 = vmatprep.subr.bf16.mxu0 0
  %1078 = vmatpush1.bf16.xpose.msra.mxu0 0
  %1079 = vmatprep.subr.bf16.mxu0 0
  %1080 = vmatpush1.bf16.xpose.msra.mxu0 0
  %1081 = vmatprep.subr.bf16.mxu0 0
  %1082 = vmatpush1.bf16.xpose.msra.mxu0 0
  %1083 = vmatprep.subr.bf16.mxu0 0
  %1084 = vmatpush1.bf16.xpose.msra.mxu0 0
  %1085 = vmatprep.mubr.bf16.mxu0 0
  %1086 = vmatmul.mubr.bf16.gmra.mrb[0].mxu0 %v1048
  %v1087 = vpop.f32.mrb[0].mxu0
  %v1088 = vadd.f32 0.0, %v1087
  %v1089 = vpop.f32.mrb[0].mxu0
  %v1090 = vpop.f32.mrb[0].mxu0
  %v1091 = vpop.f32.mrb[0].mxu0
  %1092 = vdwg.mxu0
  %v1095 = vunpack.c.l.s4 1983009808
  %v1096 = vunpack.c.0.s8 %v1095
  %v1097 = vlaneseq
  %v1098 = vshrl.u32 %v1097, 7
  %v1099 = vsub.s32 %v1096, %v1098
  %v1100 = vrot.slane %v21, %v1099
  %1101 = vrot.lane.b32.xlu0 %v1100, 124
  %v1102 = vpop.permute.xlu0 %1101
  %v1105 = vunpack.c.l.s4 1983009808
  %v1106 = vunpack.c.0.s8 %v1105
  %v1107 = vlaneseq
  %v1108 = vshrl.u32 %v1107, 7
  %v1109 = vsub.s32 %v1106, %v1108
  %v1110 = vrot.slane %v29, %v1109
  %1111 = vrot.lane.b32.xlu0 %v1110, 124
  %v1112 = vpop.permute.xlu0 %1111
  %v1114 = vsel %vm44, %v1102, 0
  %v1117 = vsel %vm44, %v1112, 0
  %1119 = vmatprep.subr.bf16.mxu0 0
  %1120 = vmatpush1.bf16.xpose.msra.mxu0 %v1117
  %1121 = vmatprep.subr.bf16.mxu0 0
  %1122 = vmatpush1.bf16.xpose.msra.mxu0 0
  %1123 = vmatprep.subr.bf16.mxu0 0
  %1124 = vmatpush1.bf16.xpose.msra.mxu0 0
  %1125 = vmatprep.subr.bf16.mxu0 0
  %1126 = vmatpush1.bf16.xpose.msra.mxu0 0
  %1127 = vmatprep.subr.bf16.mxu0 0
  %1128 = vmatpush1.bf16.xpose.msra.mxu0 0
  %1129 = vmatprep.subr.bf16.mxu0 0
  %1130 = vmatpush1.bf16.xpose.msra.mxu0 0
  %1131 = vmatprep.subr.bf16.mxu0 0
  %1132 = vmatpush1.bf16.xpose.msra.mxu0 0
  %1133 = vmatprep.subr.bf16.mxu0 0
  %1134 = vmatpush1.bf16.xpose.msra.mxu0 0
  %1135 = vmatprep.subr.bf16.mxu0 0
  %1136 = vmatpush1.bf16.xpose.msra.mxu0 0
  %1137 = vmatprep.subr.bf16.mxu0 0
  %1138 = vmatpush1.bf16.xpose.msra.mxu0 0
  %1139 = vmatprep.subr.bf16.mxu0 0
  %1140 = vmatpush1.bf16.xpose.msra.mxu0 0
  %1141 = vmatprep.subr.bf16.mxu0 0
  %1142 = vmatpush1.bf16.xpose.msra.mxu0 0
  %1143 = vmatprep.subr.bf16.mxu0 0
  %1144 = vmatpush1.bf16.xpose.msra.mxu0 0
  %1145 = vmatprep.subr.bf16.mxu0 0
  %1146 = vmatpush1.bf16.xpose.msra.mxu0 0
  %1147 = vmatprep.subr.bf16.mxu0 0
  %1148 = vmatpush1.bf16.xpose.msra.mxu0 0
  %1149 = vmatprep.subr.bf16.mxu0 0
  %1150 = vmatpush1.bf16.xpose.msra.mxu0 0
  %1151 = vmatprep.mubr.bf16.mxu0 0
  %1152 = vmatmul.mubr.bf16.gmra.mrb[0].mxu0 %v1114
  %v1153 = vpop.f32.mrb[0].mxu0
  %v1154 = vadd.f32 0.0, %v1153
  %v1155 = vpop.f32.mrb[0].mxu0
  %v1156 = vpop.f32.mrb[0].mxu0
  %v1157 = vpop.f32.mrb[0].mxu0
  %1158 = vdwg.mxu0
  %v1161 = vunpack.c.l.s4 1983009808
  %v1162 = vunpack.c.0.s8 %v1161
  %v1163 = vlaneseq
  %v1164 = vshrl.u32 %v1163, 7
  %v1165 = vsub.s32 %v1162, %v1164
  %v1166 = vrot.slane %v22, %v1165
  %1167 = vrot.lane.b32.xlu0 %v1166, 124
  %v1168 = vpop.permute.xlu0 %1167
  %v1171 = vunpack.c.l.s4 1983009808
  %v1172 = vunpack.c.0.s8 %v1171
  %v1173 = vlaneseq
  %v1174 = vshrl.u32 %v1173, 7
  %v1175 = vsub.s32 %v1172, %v1174
  %v1176 = vrot.slane %v30, %v1175
  %1177 = vrot.lane.b32.xlu0 %v1176, 124
  %v1178 = vpop.permute.xlu0 %1177
  %v1180 = vsel %vm44, %v1168, 0
  %v1183 = vsel %vm44, %v1178, 0
  %1185 = vmatprep.subr.bf16.mxu0 0
  %1186 = vmatpush1.bf16.xpose.msra.mxu0 %v1183
  %1187 = vmatprep.subr.bf16.mxu0 0
  %1188 = vmatpush1.bf16.xpose.msra.mxu0 0
  %1189 = vmatprep.subr.bf16.mxu0 0
  %1190 = vmatpush1.bf16.xpose.msra.mxu0 0
  %1191 = vmatprep.subr.bf16.mxu0 0
  %1192 = vmatpush1.bf16.xpose.msra.mxu0 0
  %1193 = vmatprep.subr.bf16.mxu0 0
  %1194 = vmatpush1.bf16.xpose.msra.mxu0 0
  %1195 = vmatprep.subr.bf16.mxu0 0
  %1196 = vmatpush1.bf16.xpose.msra.mxu0 0
  %1197 = vmatprep.subr.bf16.mxu0 0
  %1198 = vmatpush1.bf16.xpose.msra.mxu0 0
  %1199 = vmatprep.subr.bf16.mxu0 0
  %1200 = vmatpush1.bf16.xpose.msra.mxu0 0
  %1201 = vmatprep.subr.bf16.mxu0 0
  %1202 = vmatpush1.bf16.xpose.msra.mxu0 0
  %1203 = vmatprep.subr.bf16.mxu0 0
  %1204 = vmatpush1.bf16.xpose.msra.mxu0 0
  %1205 = vmatprep.subr.bf16.mxu0 0
  %1206 = vmatpush1.bf16.xpose.msra.mxu0 0
  %1207 = vmatprep.subr.bf16.mxu0 0
  %1208 = vmatpush1.bf16.xpose.msra.mxu0 0
  %1209 = vmatprep.subr.bf16.mxu0 0
  %1210 = vmatpush1.bf16.xpose.msra.mxu0 0
  %1211 = vmatprep.subr.bf16.mxu0 0
  %1212 = vmatpush1.bf16.xpose.msra.mxu0 0
  %1213 = vmatprep.subr.bf16.mxu0 0
  %1214 = vmatpush1.bf16.xpose.msra.mxu0 0
  %1215 = vmatprep.subr.bf16.mxu0 0
  %1216 = vmatpush1.bf16.xpose.msra.mxu0 0
  %1217 = vmatprep.mubr.bf16.mxu0 0
  %1218 = vmatmul.mubr.bf16.gmra.mrb[0].mxu0 %v1180
  %v1219 = vpop.f32.mrb[0].mxu0
  %v1220 = vadd.f32 0.0, %v1219
  %v1221 = vpop.f32.mrb[0].mxu0
  %v1222 = vpop.f32.mrb[0].mxu0
  %v1223 = vpop.f32.mrb[0].mxu0
  %1224 = vdwg.mxu0
  %v1227 = vunpack.c.l.s4 1983009808
  %v1228 = vunpack.c.0.s8 %v1227
  %v1229 = vlaneseq
  %v1230 = vshrl.u32 %v1229, 7
  %v1231 = vsub.s32 %v1228, %v1230
  %v1232 = vrot.slane %v23, %v1231
  %1233 = vrot.lane.b32.xlu0 %v1232, 124
  %v1234 = vpop.permute.xlu0 %1233
  %v1237 = vunpack.c.l.s4 1983009808
  %v1238 = vunpack.c.0.s8 %v1237
  %v1239 = vlaneseq
  %v1240 = vshrl.u32 %v1239, 7
  %v1241 = vsub.s32 %v1238, %v1240
  %v1242 = vrot.slane %v31, %v1241
  %1243 = vrot.lane.b32.xlu0 %v1242, 124
  %v1244 = vpop.permute.xlu0 %1243
  %v1246 = vsel %vm44, %v1234, 0
  %v1249 = vsel %vm44, %v1244, 0
  %1251 = vmatprep.subr.bf16.mxu0 0
  %1252 = vmatpush1.bf16.xpose.msra.mxu0 %v1249
  %1253 = vmatprep.subr.bf16.mxu0 0
  %1254 = vmatpush1.bf16.xpose.msra.mxu0 0
  %1255 = vmatprep.subr.bf16.mxu0 0
  %1256 = vmatpush1.bf16.xpose.msra.mxu0 0
  %1257 = vmatprep.subr.bf16.mxu0 0
  %1258 = vmatpush1.bf16.xpose.msra.mxu0 0
  %1259 = vmatprep.subr.bf16.mxu0 0
  %1260 = vmatpush1.bf16.xpose.msra.mxu0 0
  %1261 = vmatprep.subr.bf16.mxu0 0
  %1262 = vmatpush1.bf16.xpose.msra.mxu0 0
  %1263 = vmatprep.subr.bf16.mxu0 0
  %1264 = vmatpush1.bf16.xpose.msra.mxu0 0
  %1265 = vmatprep.subr.bf16.mxu0 0
  %1266 = vmatpush1.bf16.xpose.msra.mxu0 0
  %1267 = vmatprep.subr.bf16.mxu0 0
  %1268 = vmatpush1.bf16.xpose.msra.mxu0 0
  %1269 = vmatprep.subr.bf16.mxu0 0
  %1270 = vmatpush1.bf16.xpose.msra.mxu0 0
  %1271 = vmatprep.subr.bf16.mxu0 0
  %1272 = vmatpush1.bf16.xpose.msra.mxu0 0
  %1273 = vmatprep.subr.bf16.mxu0 0
  %1274 = vmatpush1.bf16.xpose.msra.mxu0 0
  %1275 = vmatprep.subr.bf16.mxu0 0
  %1276 = vmatpush1.bf16.xpose.msra.mxu0 0
  %1277 = vmatprep.subr.bf16.mxu0 0
  %1278 = vmatpush1.bf16.xpose.msra.mxu0 0
  %1279 = vmatprep.subr.bf16.mxu0 0
  %1280 = vmatpush1.bf16.xpose.msra.mxu0 0
  %1281 = vmatprep.subr.bf16.mxu0 0
  %1282 = vmatpush1.bf16.xpose.msra.mxu0 0
  %1283 = vmatprep.mubr.bf16.mxu0 0
  %1284 = vmatmul.mubr.bf16.gmra.mrb[0].mxu0 %v1246
  %v1285 = vpop.f32.mrb[0].mxu0
  %v1286 = vadd.f32 0.0, %v1285
  %v1287 = vpop.f32.mrb[0].mxu0
  %v1288 = vpop.f32.mrb[0].mxu0
  %v1289 = vpop.f32.mrb[0].mxu0
  %1290 = vdwg.mxu0
  %v1293 = vunpack.c.l.s4 1983009808
  %v1294 = vunpack.c.0.s8 %v1293
  %v1295 = vlaneseq
  %v1296 = vshrl.u32 %v1295, 7
  %v1297 = vsub.s32 %v1294, %v1296
  %v1298 = vrot.slane %v24, %v1297
  %1299 = vrot.lane.b32.xlu0 %v1298, 124
  %v1300 = vpop.permute.xlu0 %1299
  %v1303 = vunpack.c.l.s4 1983009808
  %v1304 = vunpack.c.0.s8 %v1303
  %v1305 = vlaneseq
  %v1306 = vshrl.u32 %v1305, 7
  %v1307 = vsub.s32 %v1304, %v1306
  %v1308 = vrot.slane %v32, %v1307
  %1309 = vrot.lane.b32.xlu0 %v1308, 124
  %v1310 = vpop.permute.xlu0 %1309
  %v1312 = vsel %vm44, %v1300, 0
  %v1315 = vsel %vm44, %v1310, 0
  %1317 = vmatprep.subr.bf16.mxu0 0
  %1318 = vmatpush1.bf16.xpose.msra.mxu0 %v1315
  %1319 = vmatprep.subr.bf16.mxu0 0
  %1320 = vmatpush1.bf16.xpose.msra.mxu0 0
  %1321 = vmatprep.subr.bf16.mxu0 0
  %1322 = vmatpush1.bf16.xpose.msra.mxu0 0
  %1323 = vmatprep.subr.bf16.mxu0 0
  %1324 = vmatpush1.bf16.xpose.msra.mxu0 0
  %1325 = vmatprep.subr.bf16.mxu0 0
  %1326 = vmatpush1.bf16.xpose.msra.mxu0 0
  %1327 = vmatprep.subr.bf16.mxu0 0
  %1328 = vmatpush1.bf16.xpose.msra.mxu0 0
  %1329 = vmatprep.subr.bf16.mxu0 0
  %1330 = vmatpush1.bf16.xpose.msra.mxu0 0
  %1331 = vmatprep.subr.bf16.mxu0 0
  %1332 = vmatpush1.bf16.xpose.msra.mxu0 0
  %1333 = vmatprep.subr.bf16.mxu0 0
  %1334 = vmatpush1.bf16.xpose.msra.mxu0 0
  %1335 = vmatprep.subr.bf16.mxu0 0
  %1336 = vmatpush1.bf16.xpose.msra.mxu0 0
  %1337 = vmatprep.subr.bf16.mxu0 0
  %1338 = vmatpush1.bf16.xpose.msra.mxu0 0
  %1339 = vmatprep.subr.bf16.mxu0 0
  %1340 = vmatpush1.bf16.xpose.msra.mxu0 0
  %1341 = vmatprep.subr.bf16.mxu0 0
  %1342 = vmatpush1.bf16.xpose.msra.mxu0 0
  %1343 = vmatprep.subr.bf16.mxu0 0
  %1344 = vmatpush1.bf16.xpose.msra.mxu0 0
  %1345 = vmatprep.subr.bf16.mxu0 0
  %1346 = vmatpush1.bf16.xpose.msra.mxu0 0
  %1347 = vmatprep.subr.bf16.mxu0 0
  %1348 = vmatpush1.bf16.xpose.msra.mxu0 0
  %1349 = vmatprep.mubr.bf16.mxu0 0
  %1350 = vmatmul.mubr.bf16.gmra.mrb[0].mxu0 %v1312
  %v1351 = vpop.f32.mrb[0].mxu0
  %v1352 = vadd.f32 0.0, %v1351
  %v1353 = vpop.f32.mrb[0].mxu0
  %v1354 = vpop.f32.mrb[0].mxu0
  %v1355 = vpop.f32.mrb[0].mxu0
  %1356 = vdwg.mxu0
  %v1359 = vunpack.c.l.s4 1983009808
  %v1360 = vunpack.c.0.s8 %v1359
  %v1361 = vlaneseq
  %v1362 = vshrl.u32 %v1361, 7
  %v1363 = vsub.s32 %v1360, %v1362
  %v1364 = vrot.slane %v25, %v1363
  %1365 = vrot.lane.b32.xlu0 %v1364, 124
  %v1366 = vpop.permute.xlu0 %1365
  %v1369 = vunpack.c.l.s4 1983009808
  %v1370 = vunpack.c.0.s8 %v1369
  %v1371 = vlaneseq
  %v1372 = vshrl.u32 %v1371, 7
  %v1373 = vsub.s32 %v1370, %v1372
  %v1374 = vrot.slane %v33, %v1373
  %1375 = vrot.lane.b32.xlu0 %v1374, 124
  %v1376 = vpop.permute.xlu0 %1375
  %v1378 = vsel %vm44, %v1366, 0
  %v1381 = vsel %vm44, %v1376, 0
  %1383 = vmatprep.subr.bf16.mxu0 0
  %1384 = vmatpush1.bf16.xpose.msra.mxu0 %v1381
  %1385 = vmatprep.subr.bf16.mxu0 0
  %1386 = vmatpush1.bf16.xpose.msra.mxu0 0
  %1387 = vmatprep.subr.bf16.mxu0 0
  %1388 = vmatpush1.bf16.xpose.msra.mxu0 0
  %1389 = vmatprep.subr.bf16.mxu0 0
  %1390 = vmatpush1.bf16.xpose.msra.mxu0 0
  %1391 = vmatprep.subr.bf16.mxu0 0
  %1392 = vmatpush1.bf16.xpose.msra.mxu0 0
  %1393 = vmatprep.subr.bf16.mxu0 0
  %1394 = vmatpush1.bf16.xpose.msra.mxu0 0
  %1395 = vmatprep.subr.bf16.mxu0 0
  %1396 = vmatpush1.bf16.xpose.msra.mxu0 0
  %1397 = vmatprep.subr.bf16.mxu0 0
  %1398 = vmatpush1.bf16.xpose.msra.mxu0 0
  %1399 = vmatprep.subr.bf16.mxu0 0
  %1400 = vmatpush1.bf16.xpose.msra.mxu0 0
  %1401 = vmatprep.subr.bf16.mxu0 0
  %1402 = vmatpush1.bf16.xpose.msra.mxu0 0
  %1403 = vmatprep.subr.bf16.mxu0 0
  %1404 = vmatpush1.bf16.xpose.msra.mxu0 0
  %1405 = vmatprep.subr.bf16.mxu0 0
  %1406 = vmatpush1.bf16.xpose.msra.mxu0 0
  %1407 = vmatprep.subr.bf16.mxu0 0
  %1408 = vmatpush1.bf16.xpose.msra.mxu0 0
  %1409 = vmatprep.subr.bf16.mxu0 0
  %1410 = vmatpush1.bf16.xpose.msra.mxu0 0
  %1411 = vmatprep.subr.bf16.mxu0 0
  %1412 = vmatpush1.bf16.xpose.msra.mxu0 0
  %1413 = vmatprep.subr.bf16.mxu0 0
  %1414 = vmatpush1.bf16.xpose.msra.mxu0 0
  %1415 = vmatprep.mubr.bf16.mxu0 0
  %1416 = vmatmul.mubr.bf16.gmra.mrb[0].mxu0 %v1378
  %v1417 = vpop.f32.mrb[0].mxu0
  %v1418 = vadd.f32 0.0, %v1417
  %v1419 = vpop.f32.mrb[0].mxu0
  %v1420 = vpop.f32.mrb[0].mxu0
  %v1421 = vpop.f32.mrb[0].mxu0
  %1422 = vdwg.mxu0
  %v1423 = vmul.f32 %v956, 0.70710677
  %v1424 = vmul.f32 %v1022, 0.70710677
  %v1425 = vmul.f32 %v1088, 0.70710677
  %v1426 = vmul.f32 %v1154, 0.70710677
  %v1427 = vmul.f32 %v1220, 0.70710677
  %v1428 = vmul.f32 %v1286, 0.70710677
  %v1429 = vmul.f32 %v1352, 0.70710677
  %v1430 = vmul.f32 %v1418, 0.70710677
  %v1431 = vadd.f32 %v1423, %v43
  %v1432 = vadd.f32 %v1424, %v43
  %v1433 = vadd.f32 %v1425, %v43
  %v1434 = vadd.f32 %v1426, %v43
  %v1435 = vadd.f32 %v1427, %v43
  %v1436 = vadd.f32 %v1428, %v43
  %v1437 = vadd.f32 %v1429, %v43
  %v1438 = vadd.f32 %v1430, %v43
  %v1439 = vsel %vm429, %v1431, -inf
  %1440 = vmax.xlane.f32.xlu0 %v1439
  %v1441 = vpop.xlane.xlu0 %1440
  %v1442 = vsel %vm429, %v1432, -inf
  %1443 = vmax.xlane.f32.xlu0 %v1442
  %v1444 = vpop.xlane.xlu0 %1443
  %v1445 = vsel %vm429, %v1433, -inf
  %1446 = vmax.xlane.f32.xlu0 %v1445
  %v1447 = vpop.xlane.xlu0 %1446
  %v1448 = vsel %vm429, %v1434, -inf
  %1449 = vmax.xlane.f32.xlu0 %v1448
  %v1450 = vpop.xlane.xlu0 %1449
  %v1451 = vsel %vm429, %v1435, -inf
  %1452 = vmax.xlane.f32.xlu0 %v1451
  %v1453 = vpop.xlane.xlu0 %1452
  %v1454 = vsel %vm429, %v1436, -inf
  %1455 = vmax.xlane.f32.xlu0 %v1454
  %v1456 = vpop.xlane.xlu0 %1455
  %v1457 = vsel %vm429, %v1437, -inf
  %1458 = vmax.xlane.f32.xlu0 %v1457
  %v1459 = vpop.xlane.xlu0 %1458
  %v1460 = vsel %vm429, %v1438, -inf
  %1461 = vmax.xlane.f32.xlu0 %v1460
  %v1462 = vpop.xlane.xlu0 %1461
  %v1463 = vsub.f32 %v1431, %v1441
  %v1464 = vsub.f32 %v1432, %v1444
  %v1465 = vsub.f32 %v1433, %v1447
  %v1466 = vsub.f32 %v1434, %v1450
  %v1467 = vsub.f32 %v1435, %v1453
  %v1468 = vsub.f32 %v1436, %v1456
  %v1469 = vsub.f32 %v1437, %v1459
  %v1470 = vsub.f32 %v1438, %v1462
  %v1471 = vmul.f32 %v1463, 1.442695
  %v1472 = vpow.pop %v1471
  %v1473 = vmul.f32 %v1464, 1.442695
  %v1474 = vpow.pop %v1473
  %v1475 = vmul.f32 %v1465, 1.442695
  %v1476 = vpow.pop %v1475
  %v1477 = vmul.f32 %v1466, 1.442695
  %v1478 = vpow.pop %v1477
  %v1479 = vmul.f32 %v1467, 1.442695
  %v1480 = vpow.pop %v1479
  %v1481 = vmul.f32 %v1468, 1.442695
  %v1482 = vpow.pop %v1481
  %v1483 = vmul.f32 %v1469, 1.442695
  %v1484 = vpow.pop %v1483
  %v1485 = vmul.f32 %v1470, 1.442695
  %v1486 = vpow.pop %v1485
  %v1487 = vsel %vm429, %v1472, 0.0
  %1488 = vadd.xlane.f32.xlu0 %v1487
  %v1489 = vpop.xlane.xlu0 %1488
  %v1490 = vsel %vm429, %v1474, 0.0
  %1491 = vadd.xlane.f32.xlu0 %v1490
  %v1492 = vpop.xlane.xlu0 %1491
  %v1493 = vsel %vm429, %v1476, 0.0
  %1494 = vadd.xlane.f32.xlu0 %v1493
  %v1495 = vpop.xlane.xlu0 %1494
  %v1496 = vsel %vm429, %v1478, 0.0
  %1497 = vadd.xlane.f32.xlu0 %v1496
  %v1498 = vpop.xlane.xlu0 %1497
  %v1499 = vsel %vm429, %v1480, 0.0
  %1500 = vadd.xlane.f32.xlu0 %v1499
  %v1501 = vpop.xlane.xlu0 %1500
  %v1502 = vsel %vm429, %v1482, 0.0
  %1503 = vadd.xlane.f32.xlu0 %v1502
  %v1504 = vpop.xlane.xlu0 %1503
  %v1505 = vsel %vm429, %v1484, 0.0
  %1506 = vadd.xlane.f32.xlu0 %v1505
  %v1507 = vpop.xlane.xlu0 %1506
  %v1508 = vsel %vm429, %v1486, 0.0
  %1509 = vadd.xlane.f32.xlu0 %v1508
  %v1510 = vpop.xlane.xlu0 %1509
  %v1511 = vrcp.pop %v1489
  %v1512 = vrcp.pop %v1492
  %v1513 = vrcp.pop %v1495
  %v1514 = vrcp.pop %v1498
  %v1515 = vrcp.pop %v1501
  %v1516 = vrcp.pop %v1504
  %v1517 = vrcp.pop %v1507
  %v1518 = vrcp.pop %v1510
  %v1519 = vmul.f32 %v1472, %v1511
  %v1520 = vmul.f32 %v1474, %v1512
  %v1521 = vmul.f32 %v1476, %v1513
  %v1522 = vmul.f32 %v1478, %v1514
  %v1523 = vmul.f32 %v1480, %v1515
  %v1524 = vmul.f32 %v1482, %v1516
  %v1525 = vmul.f32 %v1484, %v1517
  %v1526 = vmul.f32 %v1486, %v1518
  %v1527 = vpack.c.bf16 %v1519, %v1519
  %v1528 = vpack.c.bf16 %v1520, %v1520
  %v1529 = vpack.c.bf16 %v1521, %v1521
  %v1530 = vpack.c.bf16 %v1522, %v1522
  %v1531 = vpack.c.bf16 %v1523, %v1523
  %v1532 = vpack.c.bf16 %v1524, %v1524
  %v1533 = vpack.c.bf16 %v1525, %v1525
  %v1534 = vpack.c.bf16 %v1526, %v1526
  %v1537 = vunpack.c.l.s4 1983009808
  %v1538 = vunpack.c.0.s8 %v1537
  %v1539 = vlaneseq
  %v1540 = vshrl.u32 %v1539, 7
  %v1541 = vsub.s32 %v1538, %v1540
  %v1542 = vrot.slane %v34, %v1541
  %1543 = vrot.lane.b32.xlu0 %v1542, 124
  %v1544 = vpop.permute.xlu0 %1543
  %v1546 = vsel %vm44, %v1527, 0
  %v1549 = vsel %vm529, %v1544, 0
  %1551 = vmatprep.subr.bf16.mxu0 0
  %1552 = vmatpush1.bf16.msra.mxu0 %v1549
  %1553 = vmatprep.subr.bf16.mxu0 0
  %1554 = vmatpush1.bf16.msra.mxu0 0
  %1555 = vmatprep.subr.bf16.mxu0 0
  %1556 = vmatpush1.bf16.msra.mxu0 0
  %1557 = vmatprep.subr.bf16.mxu0 0
  %1558 = vmatpush1.bf16.msra.mxu0 0
  %1559 = vmatprep.subr.bf16.mxu0 0
  %1560 = vmatpush1.bf16.msra.mxu0 0
  %1561 = vmatprep.subr.bf16.mxu0 0
  %1562 = vmatpush1.bf16.msra.mxu0 0
  %1563 = vmatprep.subr.bf16.mxu0 0
  %1564 = vmatpush1.bf16.msra.mxu0 0
  %1565 = vmatprep.subr.bf16.mxu0 0
  %1566 = vmatpush1.bf16.msra.mxu0 0
  %1567 = vmatprep.subr.bf16.mxu0 0
  %1568 = vmatpush1.bf16.msra.mxu0 0
  %1569 = vmatprep.subr.bf16.mxu0 0
  %1570 = vmatpush1.bf16.msra.mxu0 0
  %1571 = vmatprep.subr.bf16.mxu0 0
  %1572 = vmatpush1.bf16.msra.mxu0 0
  %1573 = vmatprep.subr.bf16.mxu0 0
  %1574 = vmatpush1.bf16.msra.mxu0 0
  %1575 = vmatprep.subr.bf16.mxu0 0
  %1576 = vmatpush1.bf16.msra.mxu0 0
  %1577 = vmatprep.subr.bf16.mxu0 0
  %1578 = vmatpush1.bf16.msra.mxu0 0
  %1579 = vmatprep.subr.bf16.mxu0 0
  %1580 = vmatpush1.bf16.msra.mxu0 0
  %1581 = vmatprep.subr.bf16.mxu0 0
  %1582 = vmatpush1.bf16.msra.mxu0 0
  %1583 = vmatprep.mubr.bf16.mxu0 0
  %1584 = vmatmul.mubr.bf16.gmra.mrb[0].mxu0 %v1546
  %v1585 = vpop.f32.mrb[0].mxu0
  %v1586 = vadd.f32 0.0, %v1585
  %v1587 = vpop.f32.mrb[0].mxu0
  %v1588 = vpop.f32.mrb[0].mxu0
  %v1589 = vpop.f32.mrb[0].mxu0
  %1590 = vdwg.mxu0
  %v1593 = vunpack.c.l.s4 1983009808
  %v1594 = vunpack.c.0.s8 %v1593
  %v1595 = vlaneseq
  %v1596 = vshrl.u32 %v1595, 7
  %v1597 = vsub.s32 %v1594, %v1596
  %v1598 = vrot.slane %v35, %v1597
  %1599 = vrot.lane.b32.xlu0 %v1598, 124
  %v1600 = vpop.permute.xlu0 %1599
  %v1602 = vsel %vm44, %v1528, 0
  %v1605 = vsel %vm529, %v1600, 0
  %1607 = vmatprep.subr.bf16.mxu0 0
  %1608 = vmatpush1.bf16.msra.mxu0 %v1605
  %1609 = vmatprep.subr.bf16.mxu0 0
  %1610 = vmatpush1.bf16.msra.mxu0 0
  %1611 = vmatprep.subr.bf16.mxu0 0
  %1612 = vmatpush1.bf16.msra.mxu0 0
  %1613 = vmatprep.subr.bf16.mxu0 0
  %1614 = vmatpush1.bf16.msra.mxu0 0
  %1615 = vmatprep.subr.bf16.mxu0 0
  %1616 = vmatpush1.bf16.msra.mxu0 0
  %1617 = vmatprep.subr.bf16.mxu0 0
  %1618 = vmatpush1.bf16.msra.mxu0 0
  %1619 = vmatprep.subr.bf16.mxu0 0
  %1620 = vmatpush1.bf16.msra.mxu0 0
  %1621 = vmatprep.subr.bf16.mxu0 0
  %1622 = vmatpush1.bf16.msra.mxu0 0
  %1623 = vmatprep.subr.bf16.mxu0 0
  %1624 = vmatpush1.bf16.msra.mxu0 0
  %1625 = vmatprep.subr.bf16.mxu0 0
  %1626 = vmatpush1.bf16.msra.mxu0 0
  %1627 = vmatprep.subr.bf16.mxu0 0
  %1628 = vmatpush1.bf16.msra.mxu0 0
  %1629 = vmatprep.subr.bf16.mxu0 0
  %1630 = vmatpush1.bf16.msra.mxu0 0
  %1631 = vmatprep.subr.bf16.mxu0 0
  %1632 = vmatpush1.bf16.msra.mxu0 0
  %1633 = vmatprep.subr.bf16.mxu0 0
  %1634 = vmatpush1.bf16.msra.mxu0 0
  %1635 = vmatprep.subr.bf16.mxu0 0
  %1636 = vmatpush1.bf16.msra.mxu0 0
  %1637 = vmatprep.subr.bf16.mxu0 0
  %1638 = vmatpush1.bf16.msra.mxu0 0
  %1639 = vmatprep.mubr.bf16.mxu0 0
  %1640 = vmatmul.mubr.bf16.gmra.mrb[0].mxu0 %v1602
  %v1641 = vpop.f32.mrb[0].mxu0
  %v1642 = vadd.f32 0.0, %v1641
  %v1643 = vpop.f32.mrb[0].mxu0
  %v1644 = vpop.f32.mrb[0].mxu0
  %v1645 = vpop.f32.mrb[0].mxu0
  %1646 = vdwg.mxu0
  %v1649 = vunpack.c.l.s4 1983009808
  %v1650 = vunpack.c.0.s8 %v1649
  %v1651 = vlaneseq
  %v1652 = vshrl.u32 %v1651, 7
  %v1653 = vsub.s32 %v1650, %v1652
  %v1654 = vrot.slane %v36, %v1653
  %1655 = vrot.lane.b32.xlu0 %v1654, 124
  %v1656 = vpop.permute.xlu0 %1655
  %v1658 = vsel %vm44, %v1529, 0
  %v1661 = vsel %vm529, %v1656, 0
  %1663 = vmatprep.subr.bf16.mxu0 0
  %1664 = vmatpush1.bf16.msra.mxu0 %v1661
  %1665 = vmatprep.subr.bf16.mxu0 0
  %1666 = vmatpush1.bf16.msra.mxu0 0
  %1667 = vmatprep.subr.bf16.mxu0 0
  %1668 = vmatpush1.bf16.msra.mxu0 0
  %1669 = vmatprep.subr.bf16.mxu0 0
  %1670 = vmatpush1.bf16.msra.mxu0 0
  %1671 = vmatprep.subr.bf16.mxu0 0
  %1672 = vmatpush1.bf16.msra.mxu0 0
  %1673 = vmatprep.subr.bf16.mxu0 0
  %1674 = vmatpush1.bf16.msra.mxu0 0
  %1675 = vmatprep.subr.bf16.mxu0 0
  %1676 = vmatpush1.bf16.msra.mxu0 0
  %1677 = vmatprep.subr.bf16.mxu0 0
  %1678 = vmatpush1.bf16.msra.mxu0 0
  %1679 = vmatprep.subr.bf16.mxu0 0
  %1680 = vmatpush1.bf16.msra.mxu0 0
  %1681 = vmatprep.subr.bf16.mxu0 0
  %1682 = vmatpush1.bf16.msra.mxu0 0
  %1683 = vmatprep.subr.bf16.mxu0 0
  %1684 = vmatpush1.bf16.msra.mxu0 0
  %1685 = vmatprep.subr.bf16.mxu0 0
  %1686 = vmatpush1.bf16.msra.mxu0 0
  %1687 = vmatprep.subr.bf16.mxu0 0
  %1688 = vmatpush1.bf16.msra.mxu0 0
  %1689 = vmatprep.subr.bf16.mxu0 0
  %1690 = vmatpush1.bf16.msra.mxu0 0
  %1691 = vmatprep.subr.bf16.mxu0 0
  %1692 = vmatpush1.bf16.msra.mxu0 0
  %1693 = vmatprep.subr.bf16.mxu0 0
  %1694 = vmatpush1.bf16.msra.mxu0 0
  %1695 = vmatprep.mubr.bf16.mxu0 0
  %1696 = vmatmul.mubr.bf16.gmra.mrb[0].mxu0 %v1658
  %v1697 = vpop.f32.mrb[0].mxu0
  %v1698 = vadd.f32 0.0, %v1697
  %v1699 = vpop.f32.mrb[0].mxu0
  %v1700 = vpop.f32.mrb[0].mxu0
  %v1701 = vpop.f32.mrb[0].mxu0
  %1702 = vdwg.mxu0
  %v1705 = vunpack.c.l.s4 1983009808
  %v1706 = vunpack.c.0.s8 %v1705
  %v1707 = vlaneseq
  %v1708 = vshrl.u32 %v1707, 7
  %v1709 = vsub.s32 %v1706, %v1708
  %v1710 = vrot.slane %v37, %v1709
  %1711 = vrot.lane.b32.xlu0 %v1710, 124
  %v1712 = vpop.permute.xlu0 %1711
  %v1714 = vsel %vm44, %v1530, 0
  %v1717 = vsel %vm529, %v1712, 0
  %1719 = vmatprep.subr.bf16.mxu0 0
  %1720 = vmatpush1.bf16.msra.mxu0 %v1717
  %1721 = vmatprep.subr.bf16.mxu0 0
  %1722 = vmatpush1.bf16.msra.mxu0 0
  %1723 = vmatprep.subr.bf16.mxu0 0
  %1724 = vmatpush1.bf16.msra.mxu0 0
  %1725 = vmatprep.subr.bf16.mxu0 0
  %1726 = vmatpush1.bf16.msra.mxu0 0
  %1727 = vmatprep.subr.bf16.mxu0 0
  %1728 = vmatpush1.bf16.msra.mxu0 0
  %1729 = vmatprep.subr.bf16.mxu0 0
  %1730 = vmatpush1.bf16.msra.mxu0 0
  %1731 = vmatprep.subr.bf16.mxu0 0
  %1732 = vmatpush1.bf16.msra.mxu0 0
  %1733 = vmatprep.subr.bf16.mxu0 0
  %1734 = vmatpush1.bf16.msra.mxu0 0
  %1735 = vmatprep.subr.bf16.mxu0 0
  %1736 = vmatpush1.bf16.msra.mxu0 0
  %1737 = vmatprep.subr.bf16.mxu0 0
  %1738 = vmatpush1.bf16.msra.mxu0 0
  %1739 = vmatprep.subr.bf16.mxu0 0
  %1740 = vmatpush1.bf16.msra.mxu0 0
  %1741 = vmatprep.subr.bf16.mxu0 0
  %1742 = vmatpush1.bf16.msra.mxu0 0
  %1743 = vmatprep.subr.bf16.mxu0 0
  %1744 = vmatpush1.bf16.msra.mxu0 0
  %1745 = vmatprep.subr.bf16.mxu0 0
  %1746 = vmatpush1.bf16.msra.mxu0 0
  %1747 = vmatprep.subr.bf16.mxu0 0
  %1748 = vmatpush1.bf16.msra.mxu0 0
  %1749 = vmatprep.subr.bf16.mxu0 0
  %1750 = vmatpush1.bf16.msra.mxu0 0
  %1751 = vmatprep.mubr.bf16.mxu0 0
  %1752 = vmatmul.mubr.bf16.gmra.mrb[0].mxu0 %v1714
  %v1753 = vpop.f32.mrb[0].mxu0
  %v1754 = vadd.f32 0.0, %v1753
  %v1755 = vpop.f32.mrb[0].mxu0
  %v1756 = vpop.f32.mrb[0].mxu0
  %v1757 = vpop.f32.mrb[0].mxu0
  %1758 = vdwg.mxu0
  %v1761 = vunpack.c.l.s4 1983009808
  %v1762 = vunpack.c.0.s8 %v1761
  %v1763 = vlaneseq
  %v1764 = vshrl.u32 %v1763, 7
  %v1765 = vsub.s32 %v1762, %v1764
  %v1766 = vrot.slane %v38, %v1765
  %1767 = vrot.lane.b32.xlu0 %v1766, 124
  %v1768 = vpop.permute.xlu0 %1767
  %v1770 = vsel %vm44, %v1531, 0
  %v1773 = vsel %vm529, %v1768, 0
  %1775 = vmatprep.subr.bf16.mxu0 0
  %1776 = vmatpush1.bf16.msra.mxu0 %v1773
  %1777 = vmatprep.subr.bf16.mxu0 0
  %1778 = vmatpush1.bf16.msra.mxu0 0
  %1779 = vmatprep.subr.bf16.mxu0 0
  %1780 = vmatpush1.bf16.msra.mxu0 0
  %1781 = vmatprep.subr.bf16.mxu0 0
  %1782 = vmatpush1.bf16.msra.mxu0 0
  %1783 = vmatprep.subr.bf16.mxu0 0
  %1784 = vmatpush1.bf16.msra.mxu0 0
  %1785 = vmatprep.subr.bf16.mxu0 0
  %1786 = vmatpush1.bf16.msra.mxu0 0
  %1787 = vmatprep.subr.bf16.mxu0 0
  %1788 = vmatpush1.bf16.msra.mxu0 0
  %1789 = vmatprep.subr.bf16.mxu0 0
  %1790 = vmatpush1.bf16.msra.mxu0 0
  %1791 = vmatprep.subr.bf16.mxu0 0
  %1792 = vmatpush1.bf16.msra.mxu0 0
  %1793 = vmatprep.subr.bf16.mxu0 0
  %1794 = vmatpush1.bf16.msra.mxu0 0
  %1795 = vmatprep.subr.bf16.mxu0 0
  %1796 = vmatpush1.bf16.msra.mxu0 0
  %1797 = vmatprep.subr.bf16.mxu0 0
  %1798 = vmatpush1.bf16.msra.mxu0 0
  %1799 = vmatprep.subr.bf16.mxu0 0
  %1800 = vmatpush1.bf16.msra.mxu0 0
  %1801 = vmatprep.subr.bf16.mxu0 0
  %1802 = vmatpush1.bf16.msra.mxu0 0
  %1803 = vmatprep.subr.bf16.mxu0 0
  %1804 = vmatpush1.bf16.msra.mxu0 0
  %1805 = vmatprep.subr.bf16.mxu0 0
  %1806 = vmatpush1.bf16.msra.mxu0 0
  %1807 = vmatprep.mubr.bf16.mxu0 0
  %1808 = vmatmul.mubr.bf16.gmra.mrb[0].mxu0 %v1770
  %v1809 = vpop.f32.mrb[0].mxu0
  %v1810 = vadd.f32 0.0, %v1809
  %v1811 = vpop.f32.mrb[0].mxu0
  %v1812 = vpop.f32.mrb[0].mxu0
  %v1813 = vpop.f32.mrb[0].mxu0
  %1814 = vdwg.mxu0
  %v1817 = vunpack.c.l.s4 1983009808
  %v1818 = vunpack.c.0.s8 %v1817
  %v1819 = vlaneseq
  %v1820 = vshrl.u32 %v1819, 7
  %v1821 = vsub.s32 %v1818, %v1820
  %v1822 = vrot.slane %v39, %v1821
  %1823 = vrot.lane.b32.xlu0 %v1822, 124
  %v1824 = vpop.permute.xlu0 %1823
  %v1826 = vsel %vm44, %v1532, 0
  %v1829 = vsel %vm529, %v1824, 0
  %1831 = vmatprep.subr.bf16.mxu0 0
  %1832 = vmatpush1.bf16.msra.mxu0 %v1829
  %1833 = vmatprep.subr.bf16.mxu0 0
  %1834 = vmatpush1.bf16.msra.mxu0 0
  %1835 = vmatprep.subr.bf16.mxu0 0
  %1836 = vmatpush1.bf16.msra.mxu0 0
  %1837 = vmatprep.subr.bf16.mxu0 0
  %1838 = vmatpush1.bf16.msra.mxu0 0
  %1839 = vmatprep.subr.bf16.mxu0 0
  %1840 = vmatpush1.bf16.msra.mxu0 0
  %1841 = vmatprep.subr.bf16.mxu0 0
  %1842 = vmatpush1.bf16.msra.mxu0 0
  %1843 = vmatprep.subr.bf16.mxu0 0
  %1844 = vmatpush1.bf16.msra.mxu0 0
  %1845 = vmatprep.subr.bf16.mxu0 0
  %1846 = vmatpush1.bf16.msra.mxu0 0
  %1847 = vmatprep.subr.bf16.mxu0 0
  %1848 = vmatpush1.bf16.msra.mxu0 0
  %1849 = vmatprep.subr.bf16.mxu0 0
  %1850 = vmatpush1.bf16.msra.mxu0 0
  %1851 = vmatprep.subr.bf16.mxu0 0
  %1852 = vmatpush1.bf16.msra.mxu0 0
  %1853 = vmatprep.subr.bf16.mxu0 0
  %1854 = vmatpush1.bf16.msra.mxu0 0
  %1855 = vmatprep.subr.bf16.mxu0 0
  %1856 = vmatpush1.bf16.msra.mxu0 0
  %1857 = vmatprep.subr.bf16.mxu0 0
  %1858 = vmatpush1.bf16.msra.mxu0 0
  %1859 = vmatprep.subr.bf16.mxu0 0
  %1860 = vmatpush1.bf16.msra.mxu0 0
  %1861 = vmatprep.subr.bf16.mxu0 0
  %1862 = vmatpush1.bf16.msra.mxu0 0
  %1863 = vmatprep.mubr.bf16.mxu0 0
  %1864 = vmatmul.mubr.bf16.gmra.mrb[0].mxu0 %v1826
  %v1865 = vpop.f32.mrb[0].mxu0
  %v1866 = vadd.f32 0.0, %v1865
  %v1867 = vpop.f32.mrb[0].mxu0
  %v1868 = vpop.f32.mrb[0].mxu0
  %v1869 = vpop.f32.mrb[0].mxu0
  %1870 = vdwg.mxu0
  %v1873 = vunpack.c.l.s4 1983009808
  %v1874 = vunpack.c.0.s8 %v1873
  %v1875 = vlaneseq
  %v1876 = vshrl.u32 %v1875, 7
  %v1877 = vsub.s32 %v1874, %v1876
  %v1878 = vrot.slane %v40, %v1877
  %1879 = vrot.lane.b32.xlu0 %v1878, 124
  %v1880 = vpop.permute.xlu0 %1879
  %v1882 = vsel %vm44, %v1533, 0
  %v1885 = vsel %vm529, %v1880, 0
  %1887 = vmatprep.subr.bf16.mxu0 0
  %1888 = vmatpush1.bf16.msra.mxu0 %v1885
  %1889 = vmatprep.subr.bf16.mxu0 0
  %1890 = vmatpush1.bf16.msra.mxu0 0
  %1891 = vmatprep.subr.bf16.mxu0 0
  %1892 = vmatpush1.bf16.msra.mxu0 0
  %1893 = vmatprep.subr.bf16.mxu0 0
  %1894 = vmatpush1.bf16.msra.mxu0 0
  %1895 = vmatprep.subr.bf16.mxu0 0
  %1896 = vmatpush1.bf16.msra.mxu0 0
  %1897 = vmatprep.subr.bf16.mxu0 0
  %1898 = vmatpush1.bf16.msra.mxu0 0
  %1899 = vmatprep.subr.bf16.mxu0 0
  %1900 = vmatpush1.bf16.msra.mxu0 0
  %1901 = vmatprep.subr.bf16.mxu0 0
  %1902 = vmatpush1.bf16.msra.mxu0 0
  %1903 = vmatprep.subr.bf16.mxu0 0
  %1904 = vmatpush1.bf16.msra.mxu0 0
  %1905 = vmatprep.subr.bf16.mxu0 0
  %1906 = vmatpush1.bf16.msra.mxu0 0
  %1907 = vmatprep.subr.bf16.mxu0 0
  %1908 = vmatpush1.bf16.msra.mxu0 0
  %1909 = vmatprep.subr.bf16.mxu0 0
  %1910 = vmatpush1.bf16.msra.mxu0 0
  %1911 = vmatprep.subr.bf16.mxu0 0
  %1912 = vmatpush1.bf16.msra.mxu0 0
  %1913 = vmatprep.subr.bf16.mxu0 0
  %1914 = vmatpush1.bf16.msra.mxu0 0
  %1915 = vmatprep.subr.bf16.mxu0 0
  %1916 = vmatpush1.bf16.msra.mxu0 0
  %1917 = vmatprep.subr.bf16.mxu0 0
  %1918 = vmatpush1.bf16.msra.mxu0 0
  %1919 = vmatprep.mubr.bf16.mxu0 0
  %1920 = vmatmul.mubr.bf16.gmra.mrb[0].mxu0 %v1882
  %v1921 = vpop.f32.mrb[0].mxu0
  %v1922 = vadd.f32 0.0, %v1921
  %v1923 = vpop.f32.mrb[0].mxu0
  %v1924 = vpop.f32.mrb[0].mxu0
  %v1925 = vpop.f32.mrb[0].mxu0
  %1926 = vdwg.mxu0
  %v1929 = vunpack.c.l.s4 1983009808
  %v1930 = vunpack.c.0.s8 %v1929
  %v1931 = vlaneseq
  %v1932 = vshrl.u32 %v1931, 7
  %v1933 = vsub.s32 %v1930, %v1932
  %v1934 = vrot.slane %v41, %v1933
  %1935 = vrot.lane.b32.xlu0 %v1934, 124
  %v1936 = vpop.permute.xlu0 %1935
  %v1938 = vsel %vm44, %v1534, 0
  %v1941 = vsel %vm529, %v1936, 0
  %1943 = vmatprep.subr.bf16.mxu0 0
  %1944 = vmatpush1.bf16.msra.mxu0 %v1941
  %1945 = vmatprep.subr.bf16.mxu0 0
  %1946 = vmatpush1.bf16.msra.mxu0 0
  %1947 = vmatprep.subr.bf16.mxu0 0
  %1948 = vmatpush1.bf16.msra.mxu0 0
  %1949 = vmatprep.subr.bf16.mxu0 0
  %1950 = vmatpush1.bf16.msra.mxu0 0
  %1951 = vmatprep.subr.bf16.mxu0 0
  %1952 = vmatpush1.bf16.msra.mxu0 0
  %1953 = vmatprep.subr.bf16.mxu0 0
  %1954 = vmatpush1.bf16.msra.mxu0 0
  %1955 = vmatprep.subr.bf16.mxu0 0
  %1956 = vmatpush1.bf16.msra.mxu0 0
  %1957 = vmatprep.subr.bf16.mxu0 0
  %1958 = vmatpush1.bf16.msra.mxu0 0
  %1959 = vmatprep.subr.bf16.mxu0 0
  %1960 = vmatpush1.bf16.msra.mxu0 0
  %1961 = vmatprep.subr.bf16.mxu0 0
  %1962 = vmatpush1.bf16.msra.mxu0 0
  %1963 = vmatprep.subr.bf16.mxu0 0
  %1964 = vmatpush1.bf16.msra.mxu0 0
  %1965 = vmatprep.subr.bf16.mxu0 0
  %1966 = vmatpush1.bf16.msra.mxu0 0
  %1967 = vmatprep.subr.bf16.mxu0 0
  %1968 = vmatpush1.bf16.msra.mxu0 0
  %1969 = vmatprep.subr.bf16.mxu0 0
  %1970 = vmatpush1.bf16.msra.mxu0 0
  %1971 = vmatprep.subr.bf16.mxu0 0
  %1972 = vmatpush1.bf16.msra.mxu0 0
  %1973 = vmatprep.subr.bf16.mxu0 0
  %1974 = vmatpush1.bf16.msra.mxu0 0
  %1975 = vmatprep.mubr.bf16.mxu0 0
  %1976 = vmatmul.mubr.bf16.gmra.mrb[0].mxu0 %v1938
  %v1977 = vpop.f32.mrb[0].mxu0
  %v1978 = vadd.f32 0.0, %v1977
  %v1979 = vpop.f32.mrb[0].mxu0
  %v1980 = vpop.f32.mrb[0].mxu0
  %v1981 = vpop.f32.mrb[0].mxu0
  %1982 = vdwg.mxu0
  %1991 = vrot.lane.b32.xlu0 %v1586, 4
  %v1992 = vpop.permute.xlu0 %1991
  %1993 = vrot.lane.b32.xlu0 %v1642, 4
  %v1994 = vpop.permute.xlu0 %1993
  %1995 = vrot.lane.b32.xlu0 %v1698, 4
  %v1996 = vpop.permute.xlu0 %1995
  %1997 = vrot.lane.b32.xlu0 %v1754, 4
  %v1998 = vpop.permute.xlu0 %1997
  %1999 = vrot.lane.b32.xlu0 %v1810, 4
  %v2000 = vpop.permute.xlu0 %1999
  %2001 = vrot.lane.b32.xlu0 %v1866, 4
  %v2002 = vpop.permute.xlu0 %2001
  %2003 = vrot.lane.b32.xlu0 %v1922, 4
  %v2004 = vpop.permute.xlu0 %2003
  %2005 = vrot.lane.b32.xlu0 %v1978, 4
  %v2006 = vpop.permute.xlu0 %2005
  %v2015 = vsel %vm44, %v568, %v1992
  %v2016 = vsel %vm44, %v614, %v1994
  %v2017 = vsel %vm44, %v660, %v1996
  %v2018 = vsel %vm44, %v706, %v1998
  %v2019 = vsel %vm44, %v752, %v2000
  %v2020 = vsel %vm44, %v798, %v2002
  %v2021 = vsel %vm44, %v844, %v2004
  %v2022 = vsel %vm44, %v890, %v2006
  %v2023 = vpack.c.bf16 %v2015, %v2015
  %v2024 = vpack.c.bf16 %v2016, %v2016
  %v2025 = vpack.c.bf16 %v2017, %v2017
  %v2026 = vpack.c.bf16 %v2018, %v2018
  %v2027 = vpack.c.bf16 %v2019, %v2019
  %v2028 = vpack.c.bf16 %v2020, %v2020
  %v2029 = vpack.c.bf16 %v2021, %v2021
  %v2030 = vpack.c.bf16 %v2022, %v2022
  %vm2031 = vcmask 58368
  %2032 = vst.msk [vmem:[%s4] sm:$0x3] %vm2031, %v2023
  %2033 = vst.msk [vmem:[%s4 + $0x2] sm:$0x3] %vm2031, %v2024
  %2034 = vst.msk [vmem:[%s4 + $0x4] sm:$0x3] %vm2031, %v2025
  %2035 = vst.msk [vmem:[%s4 + $0x6] sm:$0x3] %vm2031, %v2026
  %2036 = vst.msk [vmem:[%s4 + $0x8] sm:$0x3] %vm2031, %v2027
  %2037 = vst.msk [vmem:[%s4 + $0xa] sm:$0x3] %vm2031, %v2028
  %2038 = vst.msk [vmem:[%s4 + $0xc] sm:$0x3] %vm2031, %v2029
  %2039 = vst.msk [vmem:[%s4 + $0xe] sm:$0x3] %vm2031, %v2030
  // Predicated region
  $region18: #{_lambda_.63} parent=0 // pred_check
    _
  $region19: #{_lambda_.63} parent=0 // pred_check_branch
    %2041 = sbr.rel (0) target = $region21
  $region20: #{_lambda_.63} parent=0 // pred_region
    _
  $region21: #{_lambda_.63} parent=0 // pred_fallthru
    _
  // Predicated region
  $region22: #{_lambda_.63} parent=0 // pred_check
    _
  $region23: #{_lambda_.63} parent=0 // pred_check_branch
    %2043 = sbr.rel (0) target = $region25
  $region24: #{_lambda_.63} parent=0 // pred_region
    _
  $region25: #{_lambda_.63} parent=0 // pred_fallthru
    _

// kernel: _lambda_.92
$region0: #{_lambda_.92}
  #allocation0 [shape = 'u32[]', space=smem, size = 0x4, offset = 0x4, fixed_abs, tag = 'smem constant byte address 0x4 - core index']
  #allocation1 [shape = 'u32[144,128]{1,0:T(1,128)}', space=vmem, size = 0x12000, scoped, tag = 'internal scratch']
  %s0 = inlined_call_operand.vmem [shape: bf16[9,16,8], index: 0, kind: input, shape index: {}]
  %s1 = inlined_call_operand.vmem [shape: f32[9,1,8], index: 1, kind: input, shape index: {}]
  %s2 = inlined_call_operand.vmem [shape: f32[1,8], index: 2, kind: input, shape index: {}]
  %s3 = inlined_call_operand.vmem [shape: f32[1,8], index: 3, kind: input, shape index: {}]
  %s4 = inlined_call_operand.vmem [shape: bf16[16,8], index: 4, kind: output, shape index: {}]
  %s5 = sld [smem:[#allocation0]]
  $region26: #{_lambda_.92} parent=0
    _
  %s7 = ssub.s32 1, %s5
  %s8 = scalar_select 0, %s7, %s5
  // Predicated region
  $region2: #{_lambda_.92} parent=0 // pred_check
    _
  $region3: #{_lambda_.92} parent=0 // pred_check_branch
    %10 = sbr.rel (0) target = $region5
  $region4: #{_lambda_.92} parent=0 // pred_region
    _
  $region5: #{_lambda_.92} parent=0 // pred_fallthru
    _
  // Predicated region
  $region6: #{_lambda_.92} parent=0 // pred_check
    _
  $region7: #{_lambda_.92} parent=0 // pred_check_branch
    %12 = sbr.rel (0) target = $region9
  $region8: #{_lambda_.92} parent=0 // pred_region
    _
  $region9: #{_lambda_.92} parent=0 // pred_fallthru
    _
  // Predicated region
  $region10: #{_lambda_.92} parent=0 // pred_check
    _
  $region11: #{_lambda_.92} parent=0 // pred_check_branch
    %14 = sbr.rel (0) target = $region13
  $region12: #{_lambda_.92} parent=0 // pred_region
    _
  $region13: #{_lambda_.92} parent=0 // pred_fallthru
    _
  // Predicated region
  $region14: #{_lambda_.92} parent=0 // pred_check
    _
  $region15: #{_lambda_.92} parent=0 // pred_check_branch
    %16 = sbr.rel (0) target = $region17
  $region16: #{_lambda_.92} parent=0 // pred_region
    _
  $region17: #{_lambda_.92} parent=0 // pred_fallthru
    _
  %v17 = vld [vmem:[%s0] sm:$0xf]
  %v18 = vld [vmem:[%s0 + $0x4] sm:$0xf]
  %v19 = vunpack.c.l.bf16 %v17
  %v20 = vunpack.c.l.bf16 %v18
  %v21 = vld [vmem:[%s1] sm:$0x1]
  %v23 = vlaneseq
  %v24 = vshrl.u32 %v23, 7
  %v25 = vsub.s32 0, %v24
  %v26 = vrot.slane %v21, %v25
  %v28 = vmul.f32 %v19, %v26
  %v29 = vmul.f32 %v20, %v26
  %s30 = scalar_lea.vmem %s0, 8
  %v31 = vld [vmem:[%s30] sm:$0xf]
  %v32 = vld [vmem:[%s30 + $0x4] sm:$0xf]
  %v33 = vunpack.c.l.bf16 %v31
  %v34 = vunpack.c.l.bf16 %v32
  %s35 = scalar_lea.vmem %s1, 1
  %v36 = vld [vmem:[%s35] sm:$0x1]
  %v38 = vlaneseq
  %v39 = vshrl.u32 %v38, 7
  %v40 = vsub.s32 0, %v39
  %v41 = vrot.slane %v36, %v40
  %v43 = vmul.f32 %v33, %v41
  %v44 = vmul.f32 %v34, %v41
  %v45 = vadd.f32 %v28, %v43
  %v46 = vadd.f32 %v29, %v44
  %s47 = scalar_lea.vmem %s0, 16
  %v48 = vld [vmem:[%s47] sm:$0xf]
  %v49 = vld [vmem:[%s47 + $0x4] sm:$0xf]
  %v50 = vunpack.c.l.bf16 %v48
  %v51 = vunpack.c.l.bf16 %v49
  %s52 = scalar_lea.vmem %s1, 2
  %v53 = vld [vmem:[%s52] sm:$0x1]
  %v55 = vlaneseq
  %v56 = vshrl.u32 %v55, 7
  %v57 = vsub.s32 0, %v56
  %v58 = vrot.slane %v53, %v57
  %v60 = vmul.f32 %v50, %v58
  %v61 = vmul.f32 %v51, %v58
  %v62 = vadd.f32 %v45, %v60
  %v63 = vadd.f32 %v46, %v61
  %s64 = scalar_lea.vmem %s0, 24
  %v65 = vld [vmem:[%s64] sm:$0xf]
  %v66 = vld [vmem:[%s64 + $0x4] sm:$0xf]
  %v67 = vunpack.c.l.bf16 %v65
  %v68 = vunpack.c.l.bf16 %v66
  %s69 = scalar_lea.vmem %s1, 3
  %v70 = vld [vmem:[%s69] sm:$0x1]
  %v72 = vlaneseq
  %v73 = vshrl.u32 %v72, 7
  %v74 = vsub.s32 0, %v73
  %v75 = vrot.slane %v70, %v74
  %v77 = vmul.f32 %v67, %v75
  %v78 = vmul.f32 %v68, %v75
  %v79 = vadd.f32 %v62, %v77
  %v80 = vadd.f32 %v63, %v78
  %s81 = scalar_lea.vmem %s0, 32
  %v82 = vld [vmem:[%s81] sm:$0xf]
  %v83 = vld [vmem:[%s81 + $0x4] sm:$0xf]
  %v84 = vunpack.c.l.bf16 %v82
  %v85 = vunpack.c.l.bf16 %v83
  %s86 = scalar_lea.vmem %s1, 4
  %v87 = vld [vmem:[%s86] sm:$0x1]
  %v89 = vlaneseq
  %v90 = vshrl.u32 %v89, 7
  %v91 = vsub.s32 0, %v90
  %v92 = vrot.slane %v87, %v91
  %v94 = vmul.f32 %v84, %v92
  %v95 = vmul.f32 %v85, %v92
  %v96 = vadd.f32 %v79, %v94
  %v97 = vadd.f32 %v80, %v95
  %s98 = scalar_lea.vmem %s0, 40
  %v99 = vld [vmem:[%s98] sm:$0xf]
  %v100 = vld [vmem:[%s98 + $0x4] sm:$0xf]
  %v101 = vunpack.c.l.bf16 %v99
  %v102 = vunpack.c.l.bf16 %v100
  %s103 = scalar_lea.vmem %s1, 5
  %v104 = vld [vmem:[%s103] sm:$0x1]
  %v106 = vlaneseq
  %v107 = vshrl.u32 %v106, 7
  %v108 = vsub.s32 0, %v107
  %v109 = vrot.slane %v104, %v108
  %v111 = vmul.f32 %v101, %v109
  %v112 = vmul.f32 %v102, %v109
  %v113 = vadd.f32 %v96, %v111
  %v114 = vadd.f32 %v97, %v112
  %s115 = scalar_lea.vmem %s0, 48
  %v116 = vld [vmem:[%s115] sm:$0xf]
  %v117 = vld [vmem:[%s115 + $0x4] sm:$0xf]
  %v118 = vunpack.c.l.bf16 %v116
  %v119 = vunpack.c.l.bf16 %v117
  %s120 = scalar_lea.vmem %s1, 6
  %v121 = vld [vmem:[%s120] sm:$0x1]
  %v123 = vlaneseq
  %v124 = vshrl.u32 %v123, 7
  %v125 = vsub.s32 0, %v124
  %v126 = vrot.slane %v121, %v125
  %v128 = vmul.f32 %v118, %v126
  %v129 = vmul.f32 %v119, %v126
  %v130 = vadd.f32 %v113, %v128
  %v131 = vadd.f32 %v114, %v129
  %s132 = scalar_lea.vmem %s0, 56
  %v133 = vld [vmem:[%s132] sm:$0xf]
  %v134 = vld [vmem:[%s132 + $0x4] sm:$0xf]
  %v135 = vunpack.c.l.bf16 %v133
  %v136 = vunpack.c.l.bf16 %v134
  %s137 = scalar_lea.vmem %s1, 7
  %v138 = vld [vmem:[%s137] sm:$0x1]
  %v140 = vlaneseq
  %v141 = vshrl.u32 %v140, 7
  %v142 = vsub.s32 0, %v141
  %v143 = vrot.slane %v138, %v142
  %v145 = vmul.f32 %v135, %v143
  %v146 = vmul.f32 %v136, %v143
  %v147 = vadd.f32 %v130, %v145
  %v148 = vadd.f32 %v131, %v146
  %s149 = scalar_lea.vmem %s0, 64
  %v150 = vld [vmem:[%s149] sm:$0xf]
  %v151 = vld [vmem:[%s149 + $0x4] sm:$0xf]
  %v152 = vunpack.c.l.bf16 %v150
  %v153 = vunpack.c.l.bf16 %v151
  %s154 = scalar_lea.vmem %s1, 8
  %v155 = vld [vmem:[%s154] sm:$0x1]
  %v157 = vlaneseq
  %v158 = vshrl.u32 %v157, 7
  %v159 = vsub.s32 0, %v158
  %v160 = vrot.slane %v155, %v159
  %v162 = vmul.f32 %v152, %v160
  %v163 = vmul.f32 %v153, %v160
  %v164 = vadd.f32 %v147, %v162
  %v165 = vadd.f32 %v148, %v163
  %v166 = vld [vmem:[%s2] sm:$0x1]
  %v168 = vlaneseq
  %v169 = vshrl.u32 %v168, 7
  %v170 = vsub.s32 0, %v169
  %v171 = vrot.slane %v166, %v170
  %v173 = vmul.f32 %v164, %v171
  %v174 = vmul.f32 %v165, %v171
  %v175 = vld [vmem:[%s3] sm:$0x1]
  %v177 = vlaneseq
  %v178 = vshrl.u32 %v177, 7
  %v179 = vsub.s32 0, %v178
  %v180 = vrot.slane %v175, %v179
  %v182 = vadd.f32 %v173, %v180
  %v183 = vadd.f32 %v174, %v180
  %v184 = vmul.f32 %v182, 0.5
  %v185 = vmul.f32 %v183, 0.5
  %v186 = vmul.f32 %v182, 0.044715
  %v187 = vmul.f32 %v183, 0.044715
  %v188 = vmul.f32 %v186, %v182
  %v189 = vmul.f32 %v187, %v183
  %v190 = vmul.f32 %v188, %v182
  %v191 = vmul.f32 %v189, %v183
  %v192 = vadd.f32 %v182, %v190
  %v193 = vadd.f32 %v183, %v191
  %v194 = vmul.f32 %v192, 0.7978846
  %v195 = vmul.f32 %v193, 0.7978846
  %v196 = vtanh.pop %v194
  %v197 = vtanh.pop %v195
  %v198 = vadd.f32 %v196, 1.0
  %v199 = vadd.f32 %v197, 1.0
  %v200 = vmul.f32 %v184, %v198
  %v201 = vmul.f32 %v185, %v199
  %v202 = vpack.c.bf16 %v201, %v200
  %v204 = vunpack.c.l.b16 %v202
  %v205 = vunpack.c.h.b16 %v202
  %v206 = vpack.c.b16 %v204, %v204
  %v207 = vpack.c.b16 %v205, %v205
  %vm210 = vcmask 60416
  %211 = vst.msk [vmem:[%s4] sm:$0xf] %vm210, %v206
  %212 = vst.msk [vmem:[%s4 + $0x4] sm:$0xf] %vm210, %v207
  // Predicated region
  $region18: #{_lambda_.92} parent=0 // pred_check
    _
  $region19: #{_lambda_.92} parent=0 // pred_check_branch
    %214 = sbr.rel (0) target = $region21
  $region20: #{_lambda_.92} parent=0 // pred_region
    _
  $region21: #{_lambda_.92} parent=0 // pred_fallthru
    _
  // Predicated region
  $region22: #{_lambda_.92} parent=0 // pred_check
    _
  $region23: #{_lambda_.92} parent=0 // pred_check_branch
    %216 = sbr.rel (0) target = $region25
  $region24: #{_lambda_.92} parent=0 // pred_region
    _
  $region25: #{_lambda_.92} parent=0 // pred_fallthru
    _

// kernel: _lambda_.93
$region0: #{_lambda_.93}
  #allocation0 [shape = 'u32[]', space=smem, size = 0x4, offset = 0x4, fixed_abs, tag = 'smem constant byte address 0x4 - core index']
  #allocation1 [shape = 'u32[144,128]{1,0:T(1,128)}', space=vmem, size = 0x12000, scoped, tag = 'internal scratch']
  %s0 = inlined_call_operand.vmem [shape: bf16[16,128], index: 0, kind: input, shape index: {}]
  %s1 = inlined_call_operand.vmem [shape: bf16[128,128], index: 1, kind: input, shape index: {}]
  %s2 = inlined_call_operand.vmem [shape: f32[1,128], index: 2, kind: input, shape index: {}]
  %s3 = inlined_call_operand.vmem [shape: f32[16,128], index: 3, kind: output, shape index: {}]
  %s4 = sld [smem:[#allocation0]]
  $region22: #{_lambda_.93} parent=0
    _
  %s6 = ssub.s32 1, %s4
  %s7 = scalar_select 0, %s6, %s4
  // Predicated region
  $region2: #{_lambda_.93} parent=0 // pred_check
    _
  $region3: #{_lambda_.93} parent=0 // pred_check_branch
    %9 = sbr.rel (0) target = $region5
  $region4: #{_lambda_.93} parent=0 // pred_region
    _
  $region5: #{_lambda_.93} parent=0 // pred_fallthru
    _
  // Predicated region
  $region6: #{_lambda_.93} parent=0 // pred_check
    _
  $region7: #{_lambda_.93} parent=0 // pred_check_branch
    %11 = sbr.rel (0) target = $region9
  $region8: #{_lambda_.93} parent=0 // pred_region
    _
  $region9: #{_lambda_.93} parent=0 // pred_fallthru
    _
  // Predicated region
  $region10: #{_lambda_.93} parent=0 // pred_check
    _
  $region11: #{_lambda_.93} parent=0 // pred_check_branch
    %13 = sbr.rel (0) target = $region13
  $region12: #{_lambda_.93} parent=0 // pred_region
    _
  $region13: #{_lambda_.93} parent=0 // pred_fallthru
    _
  %v15 = vld [vmem:[%s0] sm:$0xf]
  %v16 = vld [vmem:[%s0 + $0x4] sm:$0xf]
  %v17 = vld [vmem:[%s1] sm:$0xf]
  %v18 = vld [vmem:[%s1 + $0x4] sm:$0xf]
  %v19 = vld [vmem:[%s1 + $0x8] sm:$0xf]
  %v20 = vld [vmem:[%s1 + $0xc] sm:$0xf]
  %v21 = vld [vmem:[%s1 + $0x10] sm:$0xf]
  %v22 = vld [vmem:[%s1 + $0x14] sm:$0xf]
  %v23 = vld [vmem:[%s1 + $0x18] sm:$0xf]
  %v24 = vld [vmem:[%s1 + $0x1c] sm:$0xf]
  %v25 = vld [vmem:[%s1 + $0x20] sm:$0xf]
  %v26 = vld [vmem:[%s1 + $0x24] sm:$0xf]
  %v27 = vld [vmem:[%s1 + $0x28] sm:$0xf]
  %v28 = vld [vmem:[%s1 + $0x2c] sm:$0xf]
  %v29 = vld [vmem:[%s1 + $0x30] sm:$0xf]
  %v30 = vld [vmem:[%s1 + $0x34] sm:$0xf]
  %v31 = vld [vmem:[%s1 + $0x38] sm:$0xf]
  %v32 = vld [vmem:[%s1 + $0x3c] sm:$0xf]
  %v33 = vld [vmem:[%s2] sm:$0x1]
  %v35 = vlaneseq
  %v36 = vshrl.u32 %v35, 7
  %v37 = vsub.s32 0, %v36
  %v38 = vrot.slane %v33, %v37
  %v42 = vunpack.c.l.b16 %v15
  %v43 = vunpack.c.l.b16 %v16
  %v44 = vpack.c.b16 %v43, %v42
  %v62 = vunpack.c.l.b16 %v17
  %v63 = vunpack.c.l.b16 %v18
  %v64 = vunpack.c.l.b16 %v19
  %v65 = vunpack.c.l.b16 %v20
  %v66 = vunpack.c.l.b16 %v21
  %v67 = vunpack.c.l.b16 %v22
  %v68 = vunpack.c.l.b16 %v23
  %v69 = vunpack.c.l.b16 %v24
  %v70 = vunpack.c.l.b16 %v25
  %v71 = vunpack.c.l.b16 %v26
  %v72 = vunpack.c.l.b16 %v27
  %v73 = vunpack.c.l.b16 %v28
  %v74 = vunpack.c.l.b16 %v29
  %v75 = vunpack.c.l.b16 %v30
  %v76 = vunpack.c.l.b16 %v31
  %v77 = vunpack.c.l.b16 %v32
  %v78 = vpack.c.b16 %v63, %v62
  %v79 = vpack.c.b16 %v65, %v64
  %v80 = vpack.c.b16 %v67, %v66
  %v81 = vpack.c.b16 %v69, %v68
  %v82 = vpack.c.b16 %v71, %v70
  %v83 = vpack.c.b16 %v73, %v72
  %v84 = vpack.c.b16 %v75, %v74
  %v85 = vpack.c.b16 %v77, %v76
  %94 = vmatprep.subr.bf16.mxu0 0
  %95 = vmatpush1.bf16.msra.mxu0 %v78
  %96 = vmatprep.subr.bf16.mxu0 0
  %97 = vmatpush1.bf16.msra.mxu0 %v79
  %98 = vmatprep.subr.bf16.mxu0 0
  %99 = vmatpush1.bf16.msra.mxu0 %v80
  %100 = vmatprep.subr.bf16.mxu0 0
  %101 = vmatpush1.bf16.msra.mxu0 %v81
  %102 = vmatprep.subr.bf16.mxu0 0
  %103 = vmatpush1.bf16.msra.mxu0 %v82
  %104 = vmatprep.subr.bf16.mxu0 0
  %105 = vmatpush1.bf16.msra.mxu0 %v83
  %106 = vmatprep.subr.bf16.mxu0 0
  %107 = vmatpush1.bf16.msra.mxu0 %v84
  %108 = vmatprep.subr.bf16.mxu0 0
  %109 = vmatpush1.bf16.msra.mxu0 %v85
  %110 = vmatprep.subr.bf16.mxu0 0
  %111 = vmatpush1.bf16.msra.mxu0 0
  %112 = vmatprep.subr.bf16.mxu0 0
  %113 = vmatpush1.bf16.msra.mxu0 0
  %114 = vmatprep.subr.bf16.mxu0 0
  %115 = vmatpush1.bf16.msra.mxu0 0
  %116 = vmatprep.subr.bf16.mxu0 0
  %117 = vmatpush1.bf16.msra.mxu0 0
  %118 = vmatprep.subr.bf16.mxu0 0
  %119 = vmatpush1.bf16.msra.mxu0 0
  %120 = vmatprep.subr.bf16.mxu0 0
  %121 = vmatpush1.bf16.msra.mxu0 0
  %122 = vmatprep.subr.bf16.mxu0 0
  %123 = vmatpush1.bf16.msra.mxu0 0
  %124 = vmatprep.subr.bf16.mxu0 0
  %125 = vmatpush1.bf16.msra.mxu0 0
  %126 = vmatprep.mubr.bf16.mxu0 0
  %127 = vmatmul.mubr.bf16.gmra.mrb[0].mxu0 %v44
  %v128 = vpop.f32.mrb[0].mxu0
  %v129 = vadd.f32 %v38, %v128
  %v130 = vpop.f32.mrb[0].mxu0
  %v131 = vpop.f32.mrb[0].mxu0
  %v132 = vadd.f32 %v38, %v131
  %v133 = vpop.f32.mrb[0].mxu0
  %134 = vdwg.mxu0
  %135 = vst [vmem:[%s3] sm:$0xff] %v129
  %136 = vst [vmem:[%s3 + $0x8] sm:$0xff] %v132
  // Predicated region
  $region14: #{_lambda_.93} parent=0 // pred_check
    _
  $region15: #{_lambda_.93} parent=0 // pred_check_branch
    %138 = sbr.rel (0) target = $region17
  $region16: #{_lambda_.93} parent=0 // pred_region
    _
  $region17: #{_lambda_.93} parent=0 // pred_fallthru
    _
  // Predicated region
  $region18: #{_lambda_.93} parent=0 // pred_check
    _
  $region19: #{_lambda_.93} parent=0 // pred_check_branch
    %140 = sbr.rel (0) target = $region21
  $region20: #{_lambda_.93} parent=0 // pred_region
    _
  $region21: #{_lambda_.93} parent=0 // pred_fallthru
    _

// kernel: _lambda_.96
$region0: #{_lambda_.96}
  #allocation0 [shape = 'u32[]', space=smem, size = 0x4, offset = 0x4, fixed_abs, tag = 'smem constant byte address 0x4 - core index']
  #allocation1 [shape = 'u32[144,128]{1,0:T(1,128)}', space=vmem, size = 0x12000, scoped, tag = 'internal scratch']
  %s0 = inlined_call_operand.vmem [shape: f32[16,16], index: 0, kind: input, shape index: {}]
  %s1 = inlined_call_operand.vmem [shape: f32[1,16], index: 1, kind: input, shape index: {}]
  %s2 = inlined_call_operand.vmem [shape: f32[1,16], index: 2, kind: input, shape index: {}]
  %s3 = inlined_call_operand.vmem [shape: bf16[16,16], index: 3, kind: output, shape index: {}]
  %s4 = sld [smem:[#allocation0]]
  $region22: #{_lambda_.96} parent=0
    _
  %s6 = ssub.s32 1, %s4
  %s7 = scalar_select 0, %s6, %s4
  // Predicated region
  $region2: #{_lambda_.96} parent=0 // pred_check
    _
  $region3: #{_lambda_.96} parent=0 // pred_check_branch
    %9 = sbr.rel (0) target = $region5
  $region4: #{_lambda_.96} parent=0 // pred_region
    _
  $region5: #{_lambda_.96} parent=0 // pred_fallthru
    _
  // Predicated region
  $region6: #{_lambda_.96} parent=0 // pred_check
    _
  $region7: #{_lambda_.96} parent=0 // pred_check_branch
    %11 = sbr.rel (0) target = $region9
  $region8: #{_lambda_.96} parent=0 // pred_region
    _
  $region9: #{_lambda_.96} parent=0 // pred_fallthru
    _
  // Predicated region
  $region10: #{_lambda_.96} parent=0 // pred_check
    _
  $region11: #{_lambda_.96} parent=0 // pred_check_branch
    %13 = sbr.rel (0) target = $region13
  $region12: #{_lambda_.96} parent=0 // pred_region
    _
  $region13: #{_lambda_.96} parent=0 // pred_fallthru
    _
  %v14 = vld [vmem:[%s0] sm:$0xff]
  %v15 = vld [vmem:[%s0 + $0x8] sm:$0xff]
  %vm16 = vcmask 130048
  %v17 = vsel %vm16, %v14, 0.0
  %18 = vadd.xlane.f32.xlu0 %v17
  %v19 = vpop.xlane.xlu0 %18
  %v20 = vsel %vm16, %v15, 0.0
  %21 = vadd.xlane.f32.xlu0 %v20
  %v22 = vpop.xlane.xlu0 %21
  %v23 = vrcp.pop 16.0
  %v24 = vmul.f32 %v19, %v23
  %v25 = vmul.f32 %v22, %v23
  %v26 = vsub.f32 %v14, %v24
  %v27 = vsub.f32 %v15, %v25
  %v28 = vmul.f32 %v26, %v26
  %v29 = vmul.f32 %v27, %v27
  %v30 = vsel %vm16, %v28, 0.0
  %31 = vadd.xlane.f32.xlu0 %v30
  %v32 = vpop.xlane.xlu0 %31
  %v33 = vsel %vm16, %v29, 0.0
  %34 = vadd.xlane.f32.xlu0 %v33
  %v35 = vpop.xlane.xlu0 %34
  %v36 = vmul.f32 %v32, %v23
  %v37 = vmul.f32 %v35, %v23
  %v38 = vadd.f32 %v36, 1e-05
  %v39 = vadd.f32 %v37, 1e-05
  %v40 = vrsqrt.pop %v38
  %v41 = vrsqrt.pop %v39
  %v42 = vmul.f32 %v26, %v40
  %v43 = vmul.f32 %v27, %v41
  %v44 = vld [vmem:[%s1] sm:$0x1]
  %v46 = vlaneseq
  %v47 = vshrl.u32 %v46, 7
  %v48 = vsub.s32 0, %v47
  %v49 = vrot.slane %v44, %v48
  %v51 = vmul.f32 %v42, %v49
  %v52 = vmul.f32 %v43, %v49
  %v53 = vld [vmem:[%s2] sm:$0x1]
  %v55 = vlaneseq
  %v56 = vshrl.u32 %v55, 7
  %v57 = vsub.s32 0, %v56
  %v58 = vrot.slane %v53, %v57
  %v60 = vadd.f32 %v51, %v58
  %v61 = vadd.f32 %v52, %v58
  %v62 = vpack.c.bf16 %v61, %v60
  %v64 = vunpack.c.l.b16 %v62
  %v65 = vunpack.c.h.b16 %v62
  %v66 = vpack.c.b16 %v64, %v64
  %v67 = vpack.c.b16 %v65, %v65
  %vm70 = vcmask 125952
  %71 = vst.msk [vmem:[%s3] sm:$0xf] %vm70, %v66
  %72 = vst.msk [vmem:[%s3 + $0x4] sm:$0xf] %vm70, %v67
  // Predicated region
  $region14: #{_lambda_.96} parent=0 // pred_check
    _
  $region15: #{_lambda_.96} parent=0 // pred_check_branch
    %74 = sbr.rel (0) target = $region17
  $region16: #{_lambda_.96} parent=0 // pred_region
    _
  $region17: #{_lambda_.96} parent=0 // pred_fallthru
    _
  // Predicated region
  $region18: #{_lambda_.96} parent=0 // pred_check
    _
  $region19: #{_lambda_.96} parent=0 // pred_check_branch
    %76 = sbr.rel (0) target = $region21
  $region20: #{_lambda_.96} parent=0 // pred_region
    _
  $region21: #{_lambda_.96} parent=0 // pred_fallthru
    _

// kernel: _lambda_.97
$region0: #{_lambda_.97}
  #allocation0 [shape = 'u32[]', space=smem, size = 0x4, offset = 0x4, fixed_abs, tag = 'smem constant byte address 0x4 - core index']
  #allocation1 [shape = 'u32[144,128]{1,0:T(1,128)}', space=vmem, size = 0x12000, scoped, tag = 'internal scratch']
  %s0 = inlined_call_operand.vmem [shape: bf16[16,128], index: 0, kind: input, shape index: {}]
  %s1 = inlined_call_operand.vmem [shape: bf16[128,128], index: 1, kind: input, shape index: {}]
  %s2 = inlined_call_operand.vmem [shape: f32[1,128], index: 2, kind: input, shape index: {}]
  %s3 = inlined_call_operand.vmem [shape: bf16[16,128], index: 3, kind: output, shape index: {}]
  %s4 = sld [smem:[#allocation0]]
  $region22: #{_lambda_.97} parent=0
    _
  %s6 = ssub.s32 1, %s4
  %s7 = scalar_select 0, %s6, %s4
  // Predicated region
  $region2: #{_lambda_.97} parent=0 // pred_check
    _
  $region3: #{_lambda_.97} parent=0 // pred_check_branch
    %9 = sbr.rel (0) target = $region5
  $region4: #{_lambda_.97} parent=0 // pred_region
    _
  $region5: #{_lambda_.97} parent=0 // pred_fallthru
    _
  // Predicated region
  $region6: #{_lambda_.97} parent=0 // pred_check
    _
  $region7: #{_lambda_.97} parent=0 // pred_check_branch
    %11 = sbr.rel (0) target = $region9
  $region8: #{_lambda_.97} parent=0 // pred_region
    _
  $region9: #{_lambda_.97} parent=0 // pred_fallthru
    _
  // Predicated region
  $region10: #{_lambda_.97} parent=0 // pred_check
    _
  $region11: #{_lambda_.97} parent=0 // pred_check_branch
    %13 = sbr.rel (0) target = $region13
  $region12: #{_lambda_.97} parent=0 // pred_region
    _
  $region13: #{_lambda_.97} parent=0 // pred_fallthru
    _
  %v15 = vld [vmem:[%s0] sm:$0xf]
  %v16 = vld [vmem:[%s0 + $0x4] sm:$0xf]
  %v17 = vld [vmem:[%s1] sm:$0xf]
  %v18 = vld [vmem:[%s1 + $0x4] sm:$0xf]
  %v19 = vld [vmem:[%s1 + $0x8] sm:$0xf]
  %v20 = vld [vmem:[%s1 + $0xc] sm:$0xf]
  %v21 = vld [vmem:[%s1 + $0x10] sm:$0xf]
  %v22 = vld [vmem:[%s1 + $0x14] sm:$0xf]
  %v23 = vld [vmem:[%s1 + $0x18] sm:$0xf]
  %v24 = vld [vmem:[%s1 + $0x1c] sm:$0xf]
  %v25 = vld [vmem:[%s1 + $0x20] sm:$0xf]
  %v26 = vld [vmem:[%s1 + $0x24] sm:$0xf]
  %v27 = vld [vmem:[%s1 + $0x28] sm:$0xf]
  %v28 = vld [vmem:[%s1 + $0x2c] sm:$0xf]
  %v29 = vld [vmem:[%s1 + $0x30] sm:$0xf]
  %v30 = vld [vmem:[%s1 + $0x34] sm:$0xf]
  %v31 = vld [vmem:[%s1 + $0x38] sm:$0xf]
  %v32 = vld [vmem:[%s1 + $0x3c] sm:$0xf]
  %v33 = vld [vmem:[%s2] sm:$0x1]
  %v35 = vlaneseq
  %v36 = vshrl.u32 %v35, 7
  %v37 = vsub.s32 0, %v36
  %v38 = vrot.slane %v33, %v37
  %v42 = vunpack.c.l.b16 %v15
  %v43 = vunpack.c.l.b16 %v16
  %v44 = vpack.c.b16 %v43, %v42
  %v62 = vunpack.c.l.b16 %v17
  %v63 = vunpack.c.l.b16 %v18
  %v64 = vunpack.c.l.b16 %v19
  %v65 = vunpack.c.l.b16 %v20
  %v66 = vunpack.c.l.b16 %v21
  %v67 = vunpack.c.l.b16 %v22
  %v68 = vunpack.c.l.b16 %v23
  %v69 = vunpack.c.l.b16 %v24
  %v70 = vunpack.c.l.b16 %v25
  %v71 = vunpack.c.l.b16 %v26
  %v72 = vunpack.c.l.b16 %v27
  %v73 = vunpack.c.l.b16 %v28
  %v74 = vunpack.c.l.b16 %v29
  %v75 = vunpack.c.l.b16 %v30
  %v76 = vunpack.c.l.b16 %v31
  %v77 = vunpack.c.l.b16 %v32
  %v78 = vpack.c.b16 %v63, %v62
  %v79 = vpack.c.b16 %v65, %v64
  %v80 = vpack.c.b16 %v67, %v66
  %v81 = vpack.c.b16 %v69, %v68
  %v82 = vpack.c.b16 %v71, %v70
  %v83 = vpack.c.b16 %v73, %v72
  %v84 = vpack.c.b16 %v75, %v74
  %v85 = vpack.c.b16 %v77, %v76
  %94 = vmatprep.subr.bf16.mxu0 0
  %95 = vmatpush1.bf16.msra.mxu0 %v78
  %96 = vmatprep.subr.bf16.mxu0 0
  %97 = vmatpush1.bf16.msra.mxu0 %v79
  %98 = vmatprep.subr.bf16.mxu0 0
  %99 = vmatpush1.bf16.msra.mxu0 %v80
  %100 = vmatprep.subr.bf16.mxu0 0
  %101 = vmatpush1.bf16.msra.mxu0 %v81
  %102 = vmatprep.subr.bf16.mxu0 0
  %103 = vmatpush1.bf16.msra.mxu0 %v82
  %104 = vmatprep.subr.bf16.mxu0 0
  %105 = vmatpush1.bf16.msra.mxu0 %v83
  %106 = vmatprep.subr.bf16.mxu0 0
  %107 = vmatpush1.bf16.msra.mxu0 %v84
  %108 = vmatprep.subr.bf16.mxu0 0
  %109 = vmatpush1.bf16.msra.mxu0 %v85
  %110 = vmatprep.subr.bf16.mxu0 0
  %111 = vmatpush1.bf16.msra.mxu0 0
  %112 = vmatprep.subr.bf16.mxu0 0
  %113 = vmatpush1.bf16.msra.mxu0 0
  %114 = vmatprep.subr.bf16.mxu0 0
  %115 = vmatpush1.bf16.msra.mxu0 0
  %116 = vmatprep.subr.bf16.mxu0 0
  %117 = vmatpush1.bf16.msra.mxu0 0
  %118 = vmatprep.subr.bf16.mxu0 0
  %119 = vmatpush1.bf16.msra.mxu0 0
  %120 = vmatprep.subr.bf16.mxu0 0
  %121 = vmatpush1.bf16.msra.mxu0 0
  %122 = vmatprep.subr.bf16.mxu0 0
  %123 = vmatpush1.bf16.msra.mxu0 0
  %124 = vmatprep.subr.bf16.mxu0 0
  %125 = vmatpush1.bf16.msra.mxu0 0
  %126 = vmatprep.mubr.bf16.mxu0 0
  %127 = vmatmul.mubr.bf16.gmra.mrb[0].mxu0 %v44
  %v128 = vpop.f32.mrb[0].mxu0
  %v129 = vadd.f32 %v38, %v128
  %v130 = vpop.f32.mrb[0].mxu0
  %v131 = vpop.f32.mrb[0].mxu0
  %v132 = vadd.f32 %v38, %v131
  %v133 = vpop.f32.mrb[0].mxu0
  %134 = vdwg.mxu0
  %v135 = vpack.c.bf16 %v132, %v129
  %v137 = vunpack.c.l.b16 %v135
  %v138 = vunpack.c.h.b16 %v135
  %v139 = vpack.c.b16 %v137, %v137
  %v140 = vpack.c.b16 %v138, %v138
  %143 = vst [vmem:[%s3] sm:$0xf] %v139
  %144 = vst [vmem:[%s3 + $0x4] sm:$0xf] %v140
  // Predicated region
  $region14: #{_lambda_.97} parent=0 // pred_check
    _
  $region15: #{_lambda_.97} parent=0 // pred_check_branch
    %146 = sbr.rel (0) target = $region17
  $region16: #{_lambda_.97} parent=0 // pred_region
    _
  $region17: #{_lambda_.97} parent=0 // pred_fallthru
    _
  // Predicated region
  $region18: #{_lambda_.97} parent=0 // pred_check
    _
  $region19: #{_lambda_.97} parent=0 // pred_check_branch
    %148 = sbr.rel (0) target = $region21
  $region20: #{_lambda_.97} parent=0 // pred_region
    _
  $region21: #{_lambda_.97} parent=0 // pred_fallthru
    _

// kernel: _lambda_.101
$region0: #{_lambda_.101}
  #allocation0 [shape = 'u32[]', space=smem, size = 0x4, offset = 0x4, fixed_abs, tag = 'smem constant byte address 0x4 - core index']
  #allocation1 [shape = 'u32[144,128]{1,0:T(1,128)}', space=vmem, size = 0x12000, scoped, tag = 'internal scratch']
  %s0 = inlined_call_operand.vmem [shape: bf16[16,128], index: 0, kind: input, shape index: {}]
  %s1 = inlined_call_operand.vmem [shape: bf16[128,128], index: 1, kind: input, shape index: {}]
  %s2 = inlined_call_operand.vmem [shape: f32[1,128], index: 2, kind: input, shape index: {}]
  %s3 = inlined_call_operand.vmem [shape: bf16[16,128], index: 3, kind: output, shape index: {}]
  %s4 = sld [smem:[#allocation0]]
  $region22: #{_lambda_.101} parent=0
    _
  %s6 = ssub.s32 1, %s4
  %s7 = scalar_select 0, %s6, %s4
  // Predicated region
  $region2: #{_lambda_.101} parent=0 // pred_check
    _
  $region3: #{_lambda_.101} parent=0 // pred_check_branch
    %9 = sbr.rel (0) target = $region5
  $region4: #{_lambda_.101} parent=0 // pred_region
    _
  $region5: #{_lambda_.101} parent=0 // pred_fallthru
    _
  // Predicated region
  $region6: #{_lambda_.101} parent=0 // pred_check
    _
  $region7: #{_lambda_.101} parent=0 // pred_check_branch
    %11 = sbr.rel (0) target = $region9
  $region8: #{_lambda_.101} parent=0 // pred_region
    _
  $region9: #{_lambda_.101} parent=0 // pred_fallthru
    _
  // Predicated region
  $region10: #{_lambda_.101} parent=0 // pred_check
    _
  $region11: #{_lambda_.101} parent=0 // pred_check_branch
    %13 = sbr.rel (0) target = $region13
  $region12: #{_lambda_.101} parent=0 // pred_region
    _
  $region13: #{_lambda_.101} parent=0 // pred_fallthru
    _
  %v15 = vld [vmem:[%s0] sm:$0xf]
  %v16 = vld [vmem:[%s0 + $0x4] sm:$0xf]
  %v17 = vld [vmem:[%s1] sm:$0xf]
  %v18 = vld [vmem:[%s1 + $0x4] sm:$0xf]
  %v19 = vld [vmem:[%s1 + $0x8] sm:$0xf]
  %v20 = vld [vmem:[%s1 + $0xc] sm:$0xf]
  %v21 = vld [vmem:[%s1 + $0x10] sm:$0xf]
  %v22 = vld [vmem:[%s1 + $0x14] sm:$0xf]
  %v23 = vld [vmem:[%s1 + $0x18] sm:$0xf]
  %v24 = vld [vmem:[%s1 + $0x1c] sm:$0xf]
  %v25 = vld [vmem:[%s1 + $0x20] sm:$0xf]
  %v26 = vld [vmem:[%s1 + $0x24] sm:$0xf]
  %v27 = vld [vmem:[%s1 + $0x28] sm:$0xf]
  %v28 = vld [vmem:[%s1 + $0x2c] sm:$0xf]
  %v29 = vld [vmem:[%s1 + $0x30] sm:$0xf]
  %v30 = vld [vmem:[%s1 + $0x34] sm:$0xf]
  %v31 = vld [vmem:[%s1 + $0x38] sm:$0xf]
  %v32 = vld [vmem:[%s1 + $0x3c] sm:$0xf]
  %v33 = vld [vmem:[%s2] sm:$0x1]
  %v35 = vlaneseq
  %v36 = vshrl.u32 %v35, 7
  %v37 = vsub.s32 0, %v36
  %v38 = vrot.slane %v33, %v37
  %v42 = vunpack.c.l.b16 %v15
  %v43 = vunpack.c.l.b16 %v16
  %v44 = vpack.c.b16 %v43, %v42
  %v62 = vunpack.c.l.b16 %v17
  %v63 = vunpack.c.l.b16 %v18
  %v64 = vunpack.c.l.b16 %v19
  %v65 = vunpack.c.l.b16 %v20
  %v66 = vunpack.c.l.b16 %v21
  %v67 = vunpack.c.l.b16 %v22
  %v68 = vunpack.c.l.b16 %v23
  %v69 = vunpack.c.l.b16 %v24
  %v70 = vunpack.c.l.b16 %v25
  %v71 = vunpack.c.l.b16 %v26
  %v72 = vunpack.c.l.b16 %v27
  %v73 = vunpack.c.l.b16 %v28
  %v74 = vunpack.c.l.b16 %v29
  %v75 = vunpack.c.l.b16 %v30
  %v76 = vunpack.c.l.b16 %v31
  %v77 = vunpack.c.l.b16 %v32
  %v78 = vpack.c.b16 %v63, %v62
  %v79 = vpack.c.b16 %v65, %v64
  %v80 = vpack.c.b16 %v67, %v66
  %v81 = vpack.c.b16 %v69, %v68
  %v82 = vpack.c.b16 %v71, %v70
  %v83 = vpack.c.b16 %v73, %v72
  %v84 = vpack.c.b16 %v75, %v74
  %v85 = vpack.c.b16 %v77, %v76
  %94 = vmatprep.subr.bf16.mxu0 0
  %95 = vmatpush1.bf16.msra.mxu0 %v78
  %96 = vmatprep.subr.bf16.mxu0 0
  %97 = vmatpush1.bf16.msra.mxu0 %v79
  %98 = vmatprep.subr.bf16.mxu0 0
  %99 = vmatpush1.bf16.msra.mxu0 %v80
  %100 = vmatprep.subr.bf16.mxu0 0
  %101 = vmatpush1.bf16.msra.mxu0 %v81
  %102 = vmatprep.subr.bf16.mxu0 0
  %103 = vmatpush1.bf16.msra.mxu0 %v82
  %104 = vmatprep.subr.bf16.mxu0 0
  %105 = vmatpush1.bf16.msra.mxu0 %v83
  %106 = vmatprep.subr.bf16.mxu0 0
  %107 = vmatpush1.bf16.msra.mxu0 %v84
  %108 = vmatprep.subr.bf16.mxu0 0
  %109 = vmatpush1.bf16.msra.mxu0 %v85
  %110 = vmatprep.subr.bf16.mxu0 0
  %111 = vmatpush1.bf16.msra.mxu0 0
  %112 = vmatprep.subr.bf16.mxu0 0
  %113 = vmatpush1.bf16.msra.mxu0 0
  %114 = vmatprep.subr.bf16.mxu0 0
  %115 = vmatpush1.bf16.msra.mxu0 0
  %116 = vmatprep.subr.bf16.mxu0 0
  %117 = vmatpush1.bf16.msra.mxu0 0
  %118 = vmatprep.subr.bf16.mxu0 0
  %119 = vmatpush1.bf16.msra.mxu0 0
  %120 = vmatprep.subr.bf16.mxu0 0
  %121 = vmatpush1.bf16.msra.mxu0 0
  %122 = vmatprep.subr.bf16.mxu0 0
  %123 = vmatpush1.bf16.msra.mxu0 0
  %124 = vmatprep.subr.bf16.mxu0 0
  %125 = vmatpush1.bf16.msra.mxu0 0
  %126 = vmatprep.mubr.bf16.mxu0 0
  %127 = vmatmul.mubr.bf16.gmra.mrb[0].mxu0 %v44
  %v128 = vpop.f32.mrb[0].mxu0
  %v129 = vadd.f32 %v38, %v128
  %v130 = vpop.f32.mrb[0].mxu0
  %v131 = vpop.f32.mrb[0].mxu0
  %v132 = vadd.f32 %v38, %v131
  %v133 = vpop.f32.mrb[0].mxu0
  %134 = vdwg.mxu0
  %v135 = vmul.f32 %v129, 0.5
  %v136 = vmul.f32 %v132, 0.5
  %v137 = vmul.f32 %v129, 0.044715
  %v138 = vmul.f32 %v132, 0.044715
  %v139 = vmul.f32 %v137, %v129
  %v140 = vmul.f32 %v138, %v132
  %v141 = vmul.f32 %v139, %v129
  %v142 = vmul.f32 %v140, %v132
  %v143 = vadd.f32 %v129, %v141
  %v144 = vadd.f32 %v132, %v142
  %v145 = vmul.f32 %v143, 0.7978846
  %v146 = vmul.f32 %v144, 0.7978846
  %v147 = vtanh.pop %v145
  %v148 = vtanh.pop %v146
  %v149 = vadd.f32 %v147, 1.0
  %v150 = vadd.f32 %v148, 1.0
  %v151 = vmul.f32 %v135, %v149
  %v152 = vmul.f32 %v136, %v150
  %v153 = vpack.c.bf16 %v152, %v151
  %v155 = vunpack.c.l.b16 %v153
  %v156 = vunpack.c.h.b16 %v153
  %v157 = vpack.c.b16 %v155, %v155
  %v158 = vpack.c.b16 %v156, %v156
  %161 = vst [vmem:[%s3] sm:$0xf] %v157
  %162 = vst [vmem:[%s3 + $0x4] sm:$0xf] %v158
  // Predicated region
  $region14: #{_lambda_.101} parent=0 // pred_check
    _
  $region15: #{_lambda_.101} parent=0 // pred_check_branch
    %164 = sbr.rel (0) target = $region17
  $region16: #{_lambda_.101} parent=0 // pred_region
    _
  $region17: #{_lambda_.101} parent=0 // pred_fallthru
    _
  // Predicated region
  $region18: #{_lambda_.101} parent=0 // pred_check
    _
  $region19: #{_lambda_.101} parent=0 // pred_check_branch
    %166 = sbr.rel (0) target = $region21
  $region20: #{_lambda_.101} parent=0 // pred_region
    _
  $region21: #{_lambda_.101} parent=0 // pred_fallthru
    _

// kernel: _lambda_.98
$region0: #{_lambda_.98}
  #allocation0 [shape = 'u32[]', space=smem, size = 0x4, offset = 0x4, fixed_abs, tag = 'smem constant byte address 0x4 - core index']
  #allocation1 [shape = 'u32[144,128]{1,0:T(1,128)}', space=vmem, size = 0x12000, scoped, tag = 'internal scratch']
  %s0 = inlined_call_operand.vmem [shape: bf16[2,4,16], index: 0, kind: input, shape index: {}]
  %s1 = inlined_call_operand.vmem [shape: bf16[2,4,16], index: 1, kind: input, shape index: {}]
  %s2 = inlined_call_operand.vmem [shape: bf16[2,4,16], index: 2, kind: input, shape index: {}]
  %s3 = inlined_call_operand.vmem [shape: f32[2,4,4], index: 3, kind: input, shape index: {}]
  %s4 = inlined_call_operand.vmem [shape: bf16[2,4,16], index: 4, kind: output, shape index: {}]
  %s5 = sld [smem:[#allocation0]]
  $region26: #{_lambda_.98} parent=0
    _
  %s7 = ssub.s32 1, %s5
  %s8 = scalar_select 0, %s7, %s5
  // Predicated region
  $region2: #{_lambda_.98} parent=0 // pred_check
    _
  $region3: #{_lambda_.98} parent=0 // pred_check_branch
    %10 = sbr.rel (0) target = $region5
  $region4: #{_lambda_.98} parent=0 // pred_region
    _
  $region5: #{_lambda_.98} parent=0 // pred_fallthru
    _
  // Predicated region
  $region6: #{_lambda_.98} parent=0 // pred_check
    _
  $region7: #{_lambda_.98} parent=0 // pred_check_branch
    %12 = sbr.rel (0) target = $region9
  $region8: #{_lambda_.98} parent=0 // pred_region
    _
  $region9: #{_lambda_.98} parent=0 // pred_fallthru
    _
  // Predicated region
  $region10: #{_lambda_.98} parent=0 // pred_check
    _
  $region11: #{_lambda_.98} parent=0 // pred_check_branch
    %14 = sbr.rel (0) target = $region13
  $region12: #{_lambda_.98} parent=0 // pred_region
    _
  $region13: #{_lambda_.98} parent=0 // pred_fallthru
    _
  // Predicated region
  $region14: #{_lambda_.98} parent=0 // pred_check
    _
  $region15: #{_lambda_.98} parent=0 // pred_check_branch
    %16 = sbr.rel (0) target = $region17
  $region16: #{_lambda_.98} parent=0 // pred_region
    _
  $region17: #{_lambda_.98} parent=0 // pred_fallthru
    _
  %v18 = vld [vmem:[%s0] sm:$0x3]
  %v19 = vld [vmem:[%s0 + $0x2] sm:$0x3]
  %v20 = vld [vmem:[%s1] sm:$0x3]
  %v21 = vld [vmem:[%s1 + $0x2] sm:$0x3]
  %v22 = vld [vmem:[%s2] sm:$0x3]
  %v23 = vld [vmem:[%s2 + $0x2] sm:$0x3]
  %v24 = vld [vmem:[%s3] sm:$0xf]
  %v25 = vld [vmem:[%s3 + $0x4] sm:$0xf]
  %vm26 = vcmask 64512
  %v28 = vsel %vm26, %v18, 0
  %v31 = vsel %vm26, %v20, 0
  %33 = vmatprep.subr.bf16.mxu0 0
  %34 = vmatpush1.bf16.xpose.msra.mxu0 %v31
  %35 = vmatprep.subr.bf16.mxu0 0
  %36 = vmatpush1.bf16.xpose.msra.mxu0 0
  %37 = vmatprep.subr.bf16.mxu0 0
  %38 = vmatpush1.bf16.xpose.msra.mxu0 0
  %39 = vmatprep.subr.bf16.mxu0 0
  %40 = vmatpush1.bf16.xpose.msra.mxu0 0
  %41 = vmatprep.subr.bf16.mxu0 0
  %42 = vmatpush1.bf16.xpose.msra.mxu0 0
  %43 = vmatprep.subr.bf16.mxu0 0
  %44 = vmatpush1.bf16.xpose.msra.mxu0 0
  %45 = vmatprep.subr.bf16.mxu0 0
  %46 = vmatpush1.bf16.xpose.msra.mxu0 0
  %47 = vmatprep.subr.bf16.mxu0 0
  %48 = vmatpush1.bf16.xpose.msra.mxu0 0
  %49 = vmatprep.subr.bf16.mxu0 0
  %50 = vmatpush1.bf16.xpose.msra.mxu0 0
  %51 = vmatprep.subr.bf16.mxu0 0
  %52 = vmatpush1.bf16.xpose.msra.mxu0 0
  %53 = vmatprep.subr.bf16.mxu0 0
  %54 = vmatpush1.bf16.xpose.msra.mxu0 0
  %55 = vmatprep.subr.bf16.mxu0 0
  %56 = vmatpush1.bf16.xpose.msra.mxu0 0
  %57 = vmatprep.subr.bf16.mxu0 0
  %58 = vmatpush1.bf16.xpose.msra.mxu0 0
  %59 = vmatprep.subr.bf16.mxu0 0
  %60 = vmatpush1.bf16.xpose.msra.mxu0 0
  %61 = vmatprep.subr.bf16.mxu0 0
  %62 = vmatpush1.bf16.xpose.msra.mxu0 0
  %63 = vmatprep.subr.bf16.mxu0 0
  %64 = vmatpush1.bf16.xpose.msra.mxu0 0
  %65 = vmatprep.mubr.bf16.mxu0 0
  %66 = vmatmul.mubr.bf16.gmra.mrb[0].mxu0 %v28
  %v67 = vpop.f32.mrb[0].mxu0
  %v68 = vadd.f32 0.0, %v67
  %v69 = vpop.f32.mrb[0].mxu0
  %v70 = vpop.f32.mrb[0].mxu0
  %v71 = vpop.f32.mrb[0].mxu0
  %72 = vdwg.mxu0
  %v74 = vsel %vm26, %v19, 0
  %v77 = vsel %vm26, %v21, 0
  %79 = vmatprep.subr.bf16.mxu0 0
  %80 = vmatpush1.bf16.xpose.msra.mxu0 %v77
  %81 = vmatprep.subr.bf16.mxu0 0
  %82 = vmatpush1.bf16.xpose.msra.mxu0 0
  %83 = vmatprep.subr.bf16.mxu0 0
  %84 = vmatpush1.bf16.xpose.msra.mxu0 0
  %85 = vmatprep.subr.bf16.mxu0 0
  %86 = vmatpush1.bf16.xpose.msra.mxu0 0
  %87 = vmatprep.subr.bf16.mxu0 0
  %88 = vmatpush1.bf16.xpose.msra.mxu0 0
  %89 = vmatprep.subr.bf16.mxu0 0
  %90 = vmatpush1.bf16.xpose.msra.mxu0 0
  %91 = vmatprep.subr.bf16.mxu0 0
  %92 = vmatpush1.bf16.xpose.msra.mxu0 0
  %93 = vmatprep.subr.bf16.mxu0 0
  %94 = vmatpush1.bf16.xpose.msra.mxu0 0
  %95 = vmatprep.subr.bf16.mxu0 0
  %96 = vmatpush1.bf16.xpose.msra.mxu0 0
  %97 = vmatprep.subr.bf16.mxu0 0
  %98 = vmatpush1.bf16.xpose.msra.mxu0 0
  %99 = vmatprep.subr.bf16.mxu0 0
  %100 = vmatpush1.bf16.xpose.msra.mxu0 0
  %101 = vmatprep.subr.bf16.mxu0 0
  %102 = vmatpush1.bf16.xpose.msra.mxu0 0
  %103 = vmatprep.subr.bf16.mxu0 0
  %104 = vmatpush1.bf16.xpose.msra.mxu0 0
  %105 = vmatprep.subr.bf16.mxu0 0
  %106 = vmatpush1.bf16.xpose.msra.mxu0 0
  %107 = vmatprep.subr.bf16.mxu0 0
  %108 = vmatpush1.bf16.xpose.msra.mxu0 0
  %109 = vmatprep.subr.bf16.mxu0 0
  %110 = vmatpush1.bf16.xpose.msra.mxu0 0
  %111 = vmatprep.mubr.bf16.mxu0 0
  %112 = vmatmul.mubr.bf16.gmra.mrb[0].mxu0 %v74
  %v113 = vpop.f32.mrb[0].mxu0
  %v114 = vadd.f32 0.0, %v113
  %v115 = vpop.f32.mrb[0].mxu0
  %v116 = vpop.f32.mrb[0].mxu0
  %v117 = vpop.f32.mrb[0].mxu0
  %118 = vdwg.mxu0
  %v119 = vmul.f32 %v68, 0.70710677
  %v120 = vmul.f32 %v114, 0.70710677
  %v121 = vadd.f32 %v119, %v24
  %v122 = vadd.f32 %v120, %v24
  %vm123 = vcmask 27648
  %v124 = vsel %vm123, %v121, -inf
  %125 = vmax.xlane.f32.xlu0 %v124
  %v126 = vpop.xlane.xlu0 %125
  %v127 = vsel %vm123, %v122, -inf
  %128 = vmax.xlane.f32.xlu0 %v127
  %v129 = vpop.xlane.xlu0 %128
  %v130 = vsub.f32 %v121, %v126
  %v131 = vsub.f32 %v122, %v129
  %v132 = vmul.f32 %v130, 1.442695
  %v133 = vpow.pop %v132
  %v134 = vmul.f32 %v131, 1.442695
  %v135 = vpow.pop %v134
  %v136 = vsel %vm123, %v133, 0.0
  %137 = vadd.xlane.f32.xlu0 %v136
  %v138 = vpop.xlane.xlu0 %137
  %v139 = vsel %vm123, %v135, 0.0
  %140 = vadd.xlane.f32.xlu0 %v139
  %v141 = vpop.xlane.xlu0 %140
  %v142 = vrcp.pop %v138
  %v143 = vrcp.pop %v141
  %v144 = vmul.f32 %v133, %v142
  %v145 = vmul.f32 %v135, %v143
  %v146 = vpack.c.bf16 %v144, %v144
  %v147 = vpack.c.bf16 %v145, %v145
  %vm148 = vcmask 31744
  %v150 = vsel %vm148, %v146, 0
  %vm152 = vcmask 1041408
  %v154 = vsel %vm152, %v22, 0
  %156 = vmatprep.subr.bf16.mxu0 0
  %157 = vmatpush1.bf16.msra.mxu0 %v154
  %158 = vmatprep.subr.bf16.mxu0 0
  %159 = vmatpush1.bf16.msra.mxu0 0
  %160 = vmatprep.subr.bf16.mxu0 0
  %161 = vmatpush1.bf16.msra.mxu0 0
  %162 = vmatprep.subr.bf16.mxu0 0
  %163 = vmatpush1.bf16.msra.mxu0 0
  %164 = vmatprep.subr.bf16.mxu0 0
  %165 = vmatpush1.bf16.msra.mxu0 0
  %166 = vmatprep.subr.bf16.mxu0 0
  %167 = vmatpush1.bf16.msra.mxu0 0
  %168 = vmatprep.subr.bf16.mxu0 0
  %169 = vmatpush1.bf16.msra.mxu0 0
  %170 = vmatprep.subr.bf16.mxu0 0
  %171 = vmatpush1.bf16.msra.mxu0 0
  %172 = vmatprep.subr.bf16.mxu0 0
  %173 = vmatpush1.bf16.msra.mxu0 0
  %174 = vmatprep.subr.bf16.mxu0 0
  %175 = vmatpush1.bf16.msra.mxu0 0
  %176 = vmatprep.subr.bf16.mxu0 0
  %177 = vmatpush1.bf16.msra.mxu0 0
  %178 = vmatprep.subr.bf16.mxu0 0
  %179 = vmatpush1.bf16.msra.mxu0 0
  %180 = vmatprep.subr.bf16.mxu0 0
  %181 = vmatpush1.bf16.msra.mxu0 0
  %182 = vmatprep.subr.bf16.mxu0 0
  %183 = vmatpush1.bf16.msra.mxu0 0
  %184 = vmatprep.subr.bf16.mxu0 0
  %185 = vmatpush1.bf16.msra.mxu0 0
  %186 = vmatprep.subr.bf16.mxu0 0
  %187 = vmatpush1.bf16.msra.mxu0 0
  %188 = vmatprep.mubr.bf16.mxu0 0
  %189 = vmatmul.mubr.bf16.gmra.mrb[0].mxu0 %v150
  %v190 = vpop.f32.mrb[0].mxu0
  %v191 = vadd.f32 0.0, %v190
  %v192 = vpop.f32.mrb[0].mxu0
  %v193 = vpop.f32.mrb[0].mxu0
  %v194 = vpop.f32.mrb[0].mxu0
  %195 = vdwg.mxu0
  %v197 = vsel %vm148, %v147, 0
  %v200 = vsel %vm152, %v23, 0
  %202 = vmatprep.subr.bf16.mxu0 0
  %203 = vmatpush1.bf16.msra.mxu0 %v200
  %204 = vmatprep.subr.bf16.mxu0 0
  %205 = vmatpush1.bf16.msra.mxu0 0
  %206 = vmatprep.subr.bf16.mxu0 0
  %207 = vmatpush1.bf16.msra.mxu0 0
  %208 = vmatprep.subr.bf16.mxu0 0
  %209 = vmatpush1.bf16.msra.mxu0 0
  %210 = vmatprep.subr.bf16.mxu0 0
  %211 = vmatpush1.bf16.msra.mxu0 0
  %212 = vmatprep.subr.bf16.mxu0 0
  %213 = vmatpush1.bf16.msra.mxu0 0
  %214 = vmatprep.subr.bf16.mxu0 0
  %215 = vmatpush1.bf16.msra.mxu0 0
  %216 = vmatprep.subr.bf16.mxu0 0
  %217 = vmatpush1.bf16.msra.mxu0 0
  %218 = vmatprep.subr.bf16.mxu0 0
  %219 = vmatpush1.bf16.msra.mxu0 0
  %220 = vmatprep.subr.bf16.mxu0 0
  %221 = vmatpush1.bf16.msra.mxu0 0
  %222 = vmatprep.subr.bf16.mxu0 0
  %223 = vmatpush1.bf16.msra.mxu0 0
  %224 = vmatprep.subr.bf16.mxu0 0
  %225 = vmatpush1.bf16.msra.mxu0 0
  %226 = vmatprep.subr.bf16.mxu0 0
  %227 = vmatpush1.bf16.msra.mxu0 0
  %228 = vmatprep.subr.bf16.mxu0 0
  %229 = vmatpush1.bf16.msra.mxu0 0
  %230 = vmatprep.subr.bf16.mxu0 0
  %231 = vmatpush1.bf16.msra.mxu0 0
  %232 = vmatprep.subr.bf16.mxu0 0
  %233 = vmatpush1.bf16.msra.mxu0 0
  %234 = vmatprep.mubr.bf16.mxu0 0
  %235 = vmatmul.mubr.bf16.gmra.mrb[0].mxu0 %v197
  %v236 = vpop.f32.mrb[0].mxu0
  %v237 = vadd.f32 0.0, %v236
  %v238 = vpop.f32.mrb[0].mxu0
  %v239 = vpop.f32.mrb[0].mxu0
  %v240 = vpop.f32.mrb[0].mxu0
  %241 = vdwg.mxu0
  %v244 = vunpack.c.l.s4 1983009808
  %v245 = vunpack.c.0.s8 %v244
  %v246 = vlaneseq
  %v247 = vshrl.u32 %v246, 7
  %v248 = vsub.s32 %v245, %v247
  %v249 = vrot.slane %v18, %v248
  %250 = vrot.lane.b32.xlu0 %v249, 120
  %v251 = vpop.permute.xlu0 %250
  %v254 = vunpack.c.l.s4 1983009808
  %v255 = vunpack.c.0.s8 %v254
  %v256 = vlaneseq
  %v257 = vshrl.u32 %v256, 7
  %v258 = vsub.s32 %v255, %v257
  %v259 = vrot.slane %v20, %v258
  %260 = vrot.lane.b32.xlu0 %v259, 120
  %v261 = vpop.permute.xlu0 %260
  %v263 = vsel %vm26, %v251, 0
  %v266 = vsel %vm26, %v261, 0
  %268 = vmatprep.subr.bf16.mxu0 0
  %269 = vmatpush1.bf16.xpose.msra.mxu0 %v266
  %270 = vmatprep.subr.bf16.mxu0 0
  %271 = vmatpush1.bf16.xpose.msra.mxu0 0
  %272 = vmatprep.subr.bf16.mxu0 0
  %273 = vmatpush1.bf16.xpose.msra.mxu0 0
  %274 = vmatprep.subr.bf16.mxu0 0
  %275 = vmatpush1.bf16.xpose.msra.mxu0 0
  %276 = vmatprep.subr.bf16.mxu0 0
  %277 = vmatpush1.bf16.xpose.msra.mxu0 0
  %278 = vmatprep.subr.bf16.mxu0 0
  %279 = vmatpush1.bf16.xpose.msra.mxu0 0
  %280 = vmatprep.subr.bf16.mxu0 0
  %281 = vmatpush1.bf16.xpose.msra.mxu0 0
  %282 = vmatprep.subr.bf16.mxu0 0
  %283 = vmatpush1.bf16.xpose.msra.mxu0 0
  %284 = vmatprep.subr.bf16.mxu0 0
  %285 = vmatpush1.bf16.xpose.msra.mxu0 0
  %286 = vmatprep.subr.bf16.mxu0 0
  %287 = vmatpush1.bf16.xpose.msra.mxu0 0
  %288 = vmatprep.subr.bf16.mxu0 0
  %289 = vmatpush1.bf16.xpose.msra.mxu0 0
  %290 = vmatprep.subr.bf16.mxu0 0
  %291 = vmatpush1.bf16.xpose.msra.mxu0 0
  %292 = vmatprep.subr.bf16.mxu0 0
  %293 = vmatpush1.bf16.xpose.msra.mxu0 0
  %294 = vmatprep.subr.bf16.mxu0 0
  %295 = vmatpush1.bf16.xpose.msra.mxu0 0
  %296 = vmatprep.subr.bf16.mxu0 0
  %297 = vmatpush1.bf16.xpose.msra.mxu0 0
  %298 = vmatprep.subr.bf16.mxu0 0
  %299 = vmatpush1.bf16.xpose.msra.mxu0 0
  %300 = vmatprep.mubr.bf16.mxu0 0
  %301 = vmatmul.mubr.bf16.gmra.mrb[0].mxu0 %v263
  %v302 = vpop.f32.mrb[0].mxu0
  %v303 = vadd.f32 0.0, %v302
  %v304 = vpop.f32.mrb[0].mxu0
  %v305 = vpop.f32.mrb[0].mxu0
  %v306 = vpop.f32.mrb[0].mxu0
  %307 = vdwg.mxu0
  %v310 = vunpack.c.l.s4 1983009808
  %v311 = vunpack.c.0.s8 %v310
  %v312 = vlaneseq
  %v313 = vshrl.u32 %v312, 7
  %v314 = vsub.s32 %v311, %v313
  %v315 = vrot.slane %v19, %v314
  %316 = vrot.lane.b32.xlu0 %v315, 120
  %v317 = vpop.permute.xlu0 %316
  %v320 = vunpack.c.l.s4 1983009808
  %v321 = vunpack.c.0.s8 %v320
  %v322 = vlaneseq
  %v323 = vshrl.u32 %v322, 7
  %v324 = vsub.s32 %v321, %v323
  %v325 = vrot.slane %v21, %v324
  %326 = vrot.lane.b32.xlu0 %v325, 120
  %v327 = vpop.permute.xlu0 %326
  %v329 = vsel %vm26, %v317, 0
  %v332 = vsel %vm26, %v327, 0
  %334 = vmatprep.subr.bf16.mxu0 0
  %335 = vmatpush1.bf16.xpose.msra.mxu0 %v332
  %336 = vmatprep.subr.bf16.mxu0 0
  %337 = vmatpush1.bf16.xpose.msra.mxu0 0
  %338 = vmatprep.subr.bf16.mxu0 0
  %339 = vmatpush1.bf16.xpose.msra.mxu0 0
  %340 = vmatprep.subr.bf16.mxu0 0
  %341 = vmatpush1.bf16.xpose.msra.mxu0 0
  %342 = vmatprep.subr.bf16.mxu0 0
  %343 = vmatpush1.bf16.xpose.msra.mxu0 0
  %344 = vmatprep.subr.bf16.mxu0 0
  %345 = vmatpush1.bf16.xpose.msra.mxu0 0
  %346 = vmatprep.subr.bf16.mxu0 0
  %347 = vmatpush1.bf16.xpose.msra.mxu0 0
  %348 = vmatprep.subr.bf16.mxu0 0
  %349 = vmatpush1.bf16.xpose.msra.mxu0 0
  %350 = vmatprep.subr.bf16.mxu0 0
  %351 = vmatpush1.bf16.xpose.msra.mxu0 0
  %352 = vmatprep.subr.bf16.mxu0 0
  %353 = vmatpush1.bf16.xpose.msra.mxu0 0
  %354 = vmatprep.subr.bf16.mxu0 0
  %355 = vmatpush1.bf16.xpose.msra.mxu0 0
  %356 = vmatprep.subr.bf16.mxu0 0
  %357 = vmatpush1.bf16.xpose.msra.mxu0 0
  %358 = vmatprep.subr.bf16.mxu0 0
  %359 = vmatpush1.bf16.xpose.msra.mxu0 0
  %360 = vmatprep.subr.bf16.mxu0 0
  %361 = vmatpush1.bf16.xpose.msra.mxu0 0
  %362 = vmatprep.subr.bf16.mxu0 0
  %363 = vmatpush1.bf16.xpose.msra.mxu0 0
  %364 = vmatprep.subr.bf16.mxu0 0
  %365 = vmatpush1.bf16.xpose.msra.mxu0 0
  %366 = vmatprep.mubr.bf16.mxu0 0
  %367 = vmatmul.mubr.bf16.gmra.mrb[0].mxu0 %v329
  %v368 = vpop.f32.mrb[0].mxu0
  %v369 = vadd.f32 0.0, %v368
  %v370 = vpop.f32.mrb[0].mxu0
  %v371 = vpop.f32.mrb[0].mxu0
  %v372 = vpop.f32.mrb[0].mxu0
  %373 = vdwg.mxu0
  %v374 = vmul.f32 %v303, 0.70710677
  %v375 = vmul.f32 %v369, 0.70710677
  %v376 = vadd.f32 %v374, %v25
  %v377 = vadd.f32 %v375, %v25
  %v378 = vsel %vm123, %v376, -inf
  %379 = vmax.xlane.f32.xlu0 %v378
  %v380 = vpop.xlane.xlu0 %379
  %v381 = vsel %vm123, %v377, -inf
  %382 = vmax.xlane.f32.xlu0 %v381
  %v383 = vpop.xlane.xlu0 %382
  %v384 = vsub.f32 %v376, %v380
  %v385 = vsub.f32 %v377, %v383
  %v386 = vmul.f32 %v384, 1.442695
  %v387 = vpow.pop %v386
  %v388 = vmul.f32 %v385, 1.442695
  %v389 = vpow.pop %v388
  %v390 = vsel %vm123, %v387, 0.0
  %391 = vadd.xlane.f32.xlu0 %v390
  %v392 = vpop.xlane.xlu0 %391
  %v393 = vsel %vm123, %v389, 0.0
  %394 = vadd.xlane.f32.xlu0 %v393
  %v395 = vpop.xlane.xlu0 %394
  %v396 = vrcp.pop %v392
  %v397 = vrcp.pop %v395
  %v398 = vmul.f32 %v387, %v396
  %v399 = vmul.f32 %v389, %v397
  %v400 = vpack.c.bf16 %v398, %v398
  %v401 = vpack.c.bf16 %v399, %v399
  %v404 = vunpack.c.l.s4 1983009808
  %v405 = vunpack.c.0.s8 %v404
  %v406 = vlaneseq
  %v407 = vshrl.u32 %v406, 7
  %v408 = vsub.s32 %v405, %v407
  %v409 = vrot.slane %v22, %v408
  %410 = vrot.lane.b32.xlu0 %v409, 120
  %v411 = vpop.permute.xlu0 %410
  %v413 = vsel %vm148, %v400, 0
  %v416 = vsel %vm152, %v411, 0
  %418 = vmatprep.subr.bf16.mxu0 0
  %419 = vmatpush1.bf16.msra.mxu0 %v416
  %420 = vmatprep.subr.bf16.mxu0 0
  %421 = vmatpush1.bf16.msra.mxu0 0
  %422 = vmatprep.subr.bf16.mxu0 0
  %423 = vmatpush1.bf16.msra.mxu0 0
  %424 = vmatprep.subr.bf16.mxu0 0
  %425 = vmatpush1.bf16.msra.mxu0 0
  %426 = vmatprep.subr.bf16.mxu0 0
  %427 = vmatpush1.bf16.msra.mxu0 0
  %428 = vmatprep.subr.bf16.mxu0 0
  %429 = vmatpush1.bf16.msra.mxu0 0
  %430 = vmatprep.subr.bf16.mxu0 0
  %431 = vmatpush1.bf16.msra.mxu0 0
  %432 = vmatprep.subr.bf16.mxu0 0
  %433 = vmatpush1.bf16.msra.mxu0 0
  %434 = vmatprep.subr.bf16.mxu0 0
  %435 = vmatpush1.bf16.msra.mxu0 0
  %436 = vmatprep.subr.bf16.mxu0 0
  %437 = vmatpush1.bf16.msra.mxu0 0
  %438 = vmatprep.subr.bf16.mxu0 0
  %439 = vmatpush1.bf16.msra.mxu0 0
  %440 = vmatprep.subr.bf16.mxu0 0
  %441 = vmatpush1.bf16.msra.mxu0 0
  %442 = vmatprep.subr.bf16.mxu0 0
  %443 = vmatpush1.bf16.msra.mxu0 0
  %444 = vmatprep.subr.bf16.mxu0 0
  %445 = vmatpush1.bf16.msra.mxu0 0
  %446 = vmatprep.subr.bf16.mxu0 0
  %447 = vmatpush1.bf16.msra.mxu0 0
  %448 = vmatprep.subr.bf16.mxu0 0
  %449 = vmatpush1.bf16.msra.mxu0 0
  %450 = vmatprep.mubr.bf16.mxu0 0
  %451 = vmatmul.mubr.bf16.gmra.mrb[0].mxu0 %v413
  %v452 = vpop.f32.mrb[0].mxu0
  %v453 = vadd.f32 0.0, %v452
  %v454 = vpop.f32.mrb[0].mxu0
  %v455 = vpop.f32.mrb[0].mxu0
  %v456 = vpop.f32.mrb[0].mxu0
  %457 = vdwg.mxu0
  %v460 = vunpack.c.l.s4 1983009808
  %v461 = vunpack.c.0.s8 %v460
  %v462 = vlaneseq
  %v463 = vshrl.u32 %v462, 7
  %v464 = vsub.s32 %v461, %v463
  %v465 = vrot.slane %v23, %v464
  %466 = vrot.lane.b32.xlu0 %v465, 120
  %v467 = vpop.permute.xlu0 %466
  %v469 = vsel %vm148, %v401, 0
  %v472 = vsel %vm152, %v467, 0
  %474 = vmatprep.subr.bf16.mxu0 0
  %475 = vmatpush1.bf16.msra.mxu0 %v472
  %476 = vmatprep.subr.bf16.mxu0 0
  %477 = vmatpush1.bf16.msra.mxu0 0
  %478 = vmatprep.subr.bf16.mxu0 0
  %479 = vmatpush1.bf16.msra.mxu0 0
  %480 = vmatprep.subr.bf16.mxu0 0
  %481 = vmatpush1.bf16.msra.mxu0 0
  %482 = vmatprep.subr.bf16.mxu0 0
  %483 = vmatpush1.bf16.msra.mxu0 0
  %484 = vmatprep.subr.bf16.mxu0 0
  %485 = vmatpush1.bf16.msra.mxu0 0
  %486 = vmatprep.subr.bf16.mxu0 0
  %487 = vmatpush1.bf16.msra.mxu0 0
  %488 = vmatprep.subr.bf16.mxu0 0
  %489 = vmatpush1.bf16.msra.mxu0 0
  %490 = vmatprep.subr.bf16.mxu0 0
  %491 = vmatpush1.bf16.msra.mxu0 0
  %492 = vmatprep.subr.bf16.mxu0 0
  %493 = vmatpush1.bf16.msra.mxu0 0
  %494 = vmatprep.subr.bf16.mxu0 0
  %495 = vmatpush1.bf16.msra.mxu0 0
  %496 = vmatprep.subr.bf16.mxu0 0
  %497 = vmatpush1.bf16.msra.mxu0 0
  %498 = vmatprep.subr.bf16.mxu0 0
  %499 = vmatpush1.bf16.msra.mxu0 0
  %500 = vmatprep.subr.bf16.mxu0 0
  %501 = vmatpush1.bf16.msra.mxu0 0
  %502 = vmatprep.subr.bf16.mxu0 0
  %503 = vmatpush1.bf16.msra.mxu0 0
  %504 = vmatprep.subr.bf16.mxu0 0
  %505 = vmatpush1.bf16.msra.mxu0 0
  %506 = vmatprep.mubr.bf16.mxu0 0
  %507 = vmatmul.mubr.bf16.gmra.mrb[0].mxu0 %v469
  %v508 = vpop.f32.mrb[0].mxu0
  %v509 = vadd.f32 0.0, %v508
  %v510 = vpop.f32.mrb[0].mxu0
  %v511 = vpop.f32.mrb[0].mxu0
  %v512 = vpop.f32.mrb[0].mxu0
  %513 = vdwg.mxu0
  %516 = vrot.lane.b32.xlu0 %v453, 8
  %v517 = vpop.permute.xlu0 %516
  %518 = vrot.lane.b32.xlu0 %v509, 8
  %v519 = vpop.permute.xlu0 %518
  %v522 = vsel %vm26, %v191, %v517
  %v523 = vsel %vm26, %v237, %v519
  %v524 = vpack.c.bf16 %v522, %v522
  %v525 = vpack.c.bf16 %v523, %v523
  %vm526 = vcmask 123904
  %527 = vst.msk [vmem:[%s4] sm:$0x3] %vm526, %v524
  %528 = vst.msk [vmem:[%s4 + $0x2] sm:$0x3] %vm526, %v525
  // Predicated region
  $region18: #{_lambda_.98} parent=0 // pred_check
    _
  $region19: #{_lambda_.98} parent=0 // pred_check_branch
    %530 = sbr.rel (0) target = $region21
  $region20: #{_lambda_.98} parent=0 // pred_region
    _
  $region21: #{_lambda_.98} parent=0 // pred_fallthru
    _
  // Predicated region
  $region22: #{_lambda_.98} parent=0 // pred_check
    _
  $region23: #{_lambda_.98} parent=0 // pred_check_branch
    %532 = sbr.rel (0) target = $region25
  $region24: #{_lambda_.98} parent=0 // pred_region
    _
  $region25: #{_lambda_.98} parent=0 // pred_fallthru
    _

</llo_original>
